<compile_context>
chip_gen: v6e
topology: v6e:2x2x1
jax: 0.10.0
libtpu: 0.0.40
codegen_flags: <defaults>
</compile_context>

<pallas_src>
import functools

import jax
import jax.numpy as jnp
from jax import lax
from jax.experimental import pallas as pl
from jax.experimental.pallas import tpu as pltpu


def attention_kernel(x_ref, wqkv_ref, wproj_ref, bproj_ref, o_ref,
                     qkv_scr, ctx_scr, *, num_heads, head_dim):
    # x_ref:     (1, N, C)   bf16
    # wqkv_ref:  (C, 3C)     bf16   (softmax scale folded into the Q columns)
    # wproj_ref: (C, C)      bf16
    # bproj_ref: (1, C)      f32
    # o_ref:     (1, N, C)   x.dtype
    # qkv_scr:   (N, 3C)     bf16 scratch (fused QKV activations)
    # ctx_scr:   (N, C)      bf16 scratch (per-head contexts, head-major lanes)
    C = num_heads * head_dim
    x = x_ref[0]                                                     # (N, C)

    # Fused QKV projection: one full-width MXU matmul per batch element.
    qkv = jnp.dot(x, wqkv_ref[...], preferred_element_type=jnp.float32)
    qkv_scr[...] = qkv.astype(jnp.bfloat16)                          # (N, 3C)

    # Static head loop (unrolled): independent per-head work, disjoint writes.
    for h in range(num_heads):
        lo = h * head_dim
        hi = lo + head_dim
        q = qkv_scr[:, lo:hi]                                        # (N, hd)
        k = qkv_scr[:, C + lo:C + hi]                                # (N, hd)
        v = qkv_scr[:, 2 * C + lo:2 * C + hi]                        # (N, hd)

        # Scores q @ k^T (contract the lane dims; no explicit transpose).
        s = lax.dot_general(q, k, (((1,), (1,)), ((), ())),
                            preferred_element_type=jnp.float32)      # (N, N)

        # Numerically stable softmax numerator, f32 on VPU/EUP.
        s = s - jnp.max(s, axis=-1, keepdims=True)
        p = jnp.exp(s)
        denom = jnp.sum(p, axis=-1, keepdims=True)                   # (N, 1)

        # Deferred normalization: scale the small (N, hd) context, not (N, N).
        ctx = jnp.dot(p.astype(jnp.bfloat16), v,
                      preferred_element_type=jnp.float32)            # (N, hd)
        ctx = ctx * pl.reciprocal(denom, approx=True)

        ctx_scr[:, lo:hi] = ctx.astype(jnp.bfloat16)

    # Single fused output projection (full-depth contraction) + bias.
    out = jnp.dot(ctx_scr[...], wproj_ref[...],
                  preferred_element_type=jnp.float32)                # (N, C)
    o_ref[0] = (out + bproj_ref[...]).astype(o_ref.dtype)


def attention_forward(x, w_qkv, w_proj, b_proj, *, num_heads):
    B, N, C = x.shape
    assert C % num_heads == 0, "dim should be divisible by num_heads"
    hd = C // num_heads
    scale = hd ** (-0.5)

    # One-time host-side weight prep (free at runtime): fold the softmax scale
    # into the Q columns of the fused QKV weight and cast MXU operands to bf16.
    w_qkv_scaled = jnp.concatenate([w_qkv[:, :C] * scale, w_qkv[:, C:]], axis=1)
    w_qkv_bf = w_qkv_scaled.astype(jnp.bfloat16)                     # (C, 3C)
    w_proj_bf = w_proj.astype(jnp.bfloat16)                          # (C, C)
    b_p = b_proj.reshape(1, C).astype(jnp.float32)
    x_bf = x.astype(jnp.bfloat16)

    kernel = functools.partial(attention_kernel,
                               num_heads=num_heads, head_dim=hd)

    # TODO(synk): attn_mask (module default None) is not implemented; for very
    # large N add a query-tile grid axis + online-softmax kv loop (sized for
    # the 64 MiB VMEM of v7x) so the (N, N) score tile stays bounded.
    return pl.pallas_call(
        kernel,
        out_shape=jax.ShapeDtypeStruct((B, N, C), x.dtype),
        grid_spec=pltpu.PrefetchScalarGridSpec(
            num_scalar_prefetch=0,
            grid=(B,),
            in_specs=[
                pl.BlockSpec((1, N, C), lambda b: (b, 0, 0)),     # x block
                pl.BlockSpec((C, 3 * C), lambda b: (0, 0)),       # fused QKV W
                pl.BlockSpec((C, C), lambda b: (0, 0)),           # proj W
                pl.BlockSpec((1, C), lambda b: (0, 0)),           # proj bias
            ],
            out_specs=pl.BlockSpec((1, N, C), lambda b: (b, 0, 0)),
            scratch_shapes=[
                pltpu.VMEM((N, 3 * C), jnp.bfloat16),             # QKV cache
                pltpu.VMEM((N, C), jnp.bfloat16),                 # ctx cache
            ],
        ),
        compiler_params=pltpu.CompilerParams(
            dimension_semantics=("parallel",),
            vmem_limit_bytes=32 * 1024 * 1024,
        ),
    )(x_bf, w_qkv_bf, w_proj_bf, b_p)


def attention_reference(x, w_qkv, w_proj, b_proj, *, num_heads):
    # Plain-JAX (f32 math) reference mirroring the PyTorch forward.
    B, N, C = x.shape
    hd = C // num_heads
    scale = hd ** (-0.5)
    qkv = jnp.einsum("bnc,cd->bnd", x, w_qkv).reshape(B, N, 3, num_heads, hd)
    qkv = jnp.transpose(qkv, (2, 0, 3, 1, 4))
    q, k, v = qkv[0], qkv[1], qkv[2]                   # (B, H, N, hd)
    q = q * scale
    attn = jax.nn.softmax(jnp.einsum("bhnd,bhmd->bhnm", q, k), axis=-1)
    out = jnp.einsum("bhnm,bhmd->bhnd", attn, v)
    out = jnp.transpose(out, (0, 2, 1, 3)).reshape(B, N, C)
    return jnp.einsum("bnc,cd->bnd", out, w_proj) + b_proj


if __name__ == "__main__":
    B, N, C = 2, 128, 128          # small, (8,128)-aligned, lane-dense output
    num_heads = 8

    key = jax.random.PRNGKey(0)
    kx, kqkv, kproj, kb = jax.random.split(key, 4)

    x = jax.random.normal(kx, (B, N, C), dtype=jnp.float32)
    # weights stored as (in, out); deterministic small init
    w_qkv = jax.random.normal(kqkv, (C, 3 * C), dtype=jnp.float32) * 0.05
    w_proj = jax.random.normal(kproj, (C, C), dtype=jnp.float32) * 0.05
    b_proj = jax.random.normal(kb, (C,), dtype=jnp.float32) * 0.01

    out = attention_forward(x, w_qkv, w_proj, b_proj, num_heads=num_heads)
    out = jax.block_until_ready(out)

    # Reference evaluated on the same bf16-rounded operands the kernel consumes
    # (math in f32), so the tolerance only absorbs in-kernel bf16 matmul
    # rounding (incl. the bf16 QKV activation cache) + the approx reciprocal.
    bf = lambda a: a.astype(jnp.bfloat16).astype(jnp.float32)
    ref = attention_reference(bf(x), bf(w_qkv), bf(w_proj), b_proj,
                              num_heads=num_heads)

    assert out.shape == (B, N, C)
    assert jnp.allclose(out, ref, atol=3e-2, rtol=3e-2), "mismatch vs reference"

    print("KERNEL_OK")
</pallas_src>

<mosaic_0001>
module attributes {stable_mosaic.version = 11 : i64} {
  func.func @attention_kernel(%arg0: i32, %arg1: memref<1x128x128xbf16, #tpu.memory_space<vmem>>, %arg2: memref<128x384xbf16, #tpu.memory_space<vmem>>, %arg3: memref<128x128xbf16, #tpu.memory_space<vmem>>, %arg4: memref<1x128xf32, #tpu.memory_space<vmem>>, %arg5: memref<1x128x128xf32, #tpu.memory_space<vmem>>, %arg6: memref<128x384xbf16, #tpu.memory_space<vmem>>, %arg7: memref<128x128xbf16, #tpu.memory_space<vmem>>) attributes {dimension_semantics = [#tpu.dimension_semantics<parallel>], iteration_bounds = array<i64: 2>, scalar_prefetch = 0 : i64, scratch_operands = 2 : i64, tpu.core_type = #tpu.core_type<tc>, window_params = [{transform_indices = @transform_0, window_bounds = array<i64: 1, 128, 128>}, {pipeline_mode = #tpu.pipeline_mode<synchronous>, transform_indices = @transform_1, window_bounds = array<i64: 128, 384>}, {pipeline_mode = #tpu.pipeline_mode<synchronous>, transform_indices = @transform_2, window_bounds = array<i64: 128, 128>}, {pipeline_mode = #tpu.pipeline_mode<synchronous>, transform_indices = @transform_3, window_bounds = array<i64: 1, 128>}, {transform_indices = @transform_4, window_bounds = array<i64: 1, 128, 128>}]} {
    %c0 = arith.constant 0 : index
    %c0_0 = arith.constant 0 : index
    %c0_1 = arith.constant 0 : index
    %0 = vector.load %arg1[%c0, %c0_0, %c0_1] : memref<1x128x128xbf16, #tpu.memory_space<vmem>>, vector<1x128x128xbf16>
    %1 = vector.shape_cast %0 : vector<1x128x128xbf16> to vector<128x128xbf16>
    %c0_2 = arith.constant 0 : index
    %c0_3 = arith.constant 0 : index
    %2 = vector.load %arg2[%c0_2, %c0_3] : memref<128x384xbf16, #tpu.memory_space<vmem>>, vector<128x384xbf16>
    %cst = arith.constant dense<0.000000e+00> : vector<128x384xf32>
    %3 = tpu.matmul %1, %2, %cst {dimension_numbers = #tpu.dot_dimension_numbers<[1], [0], [0], [1], [0, 0, 1, 1], [], []>} : vector<128x128xbf16>, vector<128x384xbf16>, vector<128x384xf32> -> vector<128x384xf32>
    %4 = arith.truncf %3 : vector<128x384xf32> to vector<128x384xbf16>
    %c0_4 = arith.constant 0 : index
    %c0_5 = arith.constant 0 : index
    %5 = vector.load %arg6[%c0_4, %c0_5] : memref<128x384xbf16, #tpu.memory_space<vmem>>, vector<128x384xbf16>
    tpu.vector_store %arg6[%c0_4, %c0_5], %4 {strides = array<i32>} : memref<128x384xbf16, #tpu.memory_space<vmem>>, vector<128x384xbf16>,
    %c0_6 = arith.constant 0 : index
    %c0_7 = arith.constant 0 : index
    %6 = vector.load %arg6[%c0_6, %c0_7] : memref<128x384xbf16, #tpu.memory_space<vmem>>, vector<128x16xbf16>
    %c0_8 = arith.constant 0 : index
    %c128 = arith.constant 128 : index
    %7 = vector.load %arg6[%c0_8, %c128] : memref<128x384xbf16, #tpu.memory_space<vmem>>, vector<128x16xbf16>
    %c0_9 = arith.constant 0 : index
    %c256 = arith.constant 256 : index
    %8 = vector.load %arg6[%c0_9, %c256] : memref<128x384xbf16, #tpu.memory_space<vmem>>, vector<128x16xbf16>
    %cst_10 = arith.constant dense<0.000000e+00> : vector<128x128xf32>
    %9 = tpu.matmul %6, %7, %cst_10 {dimension_numbers = #tpu.dot_dimension_numbers<[1], [1], [0], [0], [0, 0, 1, 0], [], []>} : vector<128x16xbf16>, vector<128x16xbf16>, vector<128x128xf32> -> vector<128x128xf32>
    %cst_11 = arith.constant dense<0xFF800000> : vector<128xf32>
    %10 = vector.multi_reduction <maximumf>, %9, %cst_11 [1] : vector<128x128xf32> to vector<128xf32>
    %11 = vector.shape_cast %10 : vector<128xf32> to vector<128x1xf32>
    %12 = vector.broadcast %11 : vector<128x1xf32> to vector<128x128xf32>
    %13 = arith.subf %9, %12 : vector<128x128xf32>
    %14 = math.exp %13 : vector<128x128xf32>
    %cst_12 = arith.constant dense<0.000000e+00> : vector<128xf32>
    %15 = vector.multi_reduction <add>, %14, %cst_12 [1] : vector<128x128xf32> to vector<128xf32>
    %16 = vector.shape_cast %15 : vector<128xf32> to vector<128x1xf32>
    %17 = arith.truncf %14 : vector<128x128xf32> to vector<128x128xbf16>
    %cst_13 = arith.constant dense<0.000000e+00> : vector<128x16xf32>
    %18 = tpu.matmul %17, %8, %cst_13 {dimension_numbers = #tpu.dot_dimension_numbers<[1], [0], [0], [1], [0, 0, 1, 1], [], []>} : vector<128x128xbf16>, vector<128x16xbf16>, vector<128x16xf32> -> vector<128x16xf32>
    %19 = tpu.reciprocal %16 {approx = true} : vector<128x1xf32> -> vector<128x1xf32>
    %20 = vector.broadcast %19 : vector<128x1xf32> to vector<128x16xf32>
    %21 = arith.mulf %18, %20 : vector<128x16xf32>
    %22 = arith.truncf %21 : vector<128x16xf32> to vector<128x16xbf16>
    %c0_14 = arith.constant 0 : index
    %c0_15 = arith.constant 0 : index
    %23 = vector.load %arg7[%c0_14, %c0_15] : memref<128x128xbf16, #tpu.memory_space<vmem>>, vector<128x16xbf16>
    tpu.vector_store %arg7[%c0_14, %c0_15], %22 {strides = array<i32>} : memref<128x128xbf16, #tpu.memory_space<vmem>>, vector<128x16xbf16>,
    %c0_16 = arith.constant 0 : index
    %c16 = arith.constant 16 : index
    %24 = vector.load %arg6[%c0_16, %c16] : memref<128x384xbf16, #tpu.memory_space<vmem>>, vector<128x16xbf16>
    %c0_17 = arith.constant 0 : index
    %c144 = arith.constant 144 : index
    %25 = vector.load %arg6[%c0_17, %c144] : memref<128x384xbf16, #tpu.memory_space<vmem>>, vector<128x16xbf16>
    %c0_18 = arith.constant 0 : index
    %c272 = arith.constant 272 : index
    %26 = vector.load %arg6[%c0_18, %c272] : memref<128x384xbf16, #tpu.memory_space<vmem>>, vector<128x16xbf16>
    %cst_19 = arith.constant dense<0.000000e+00> : vector<128x128xf32>
    %27 = tpu.matmul %24, %25, %cst_19 {dimension_numbers = #tpu.dot_dimension_numbers<[1], [1], [0], [0], [0, 0, 1, 0], [], []>} : vector<128x16xbf16>, vector<128x16xbf16>, vector<128x128xf32> -> vector<128x128xf32>
    %cst_20 = arith.constant dense<0xFF800000> : vector<128xf32>
    %28 = vector.multi_reduction <maximumf>, %27, %cst_20 [1] : vector<128x128xf32> to vector<128xf32>
    %29 = vector.shape_cast %28 : vector<128xf32> to vector<128x1xf32>
    %30 = vector.broadcast %29 : vector<128x1xf32> to vector<128x128xf32>
    %31 = arith.subf %27, %30 : vector<128x128xf32>
    %32 = math.exp %31 : vector<128x128xf32>
    %cst_21 = arith.constant dense<0.000000e+00> : vector<128xf32>
    %33 = vector.multi_reduction <add>, %32, %cst_21 [1] : vector<128x128xf32> to vector<128xf32>
    %34 = vector.shape_cast %33 : vector<128xf32> to vector<128x1xf32>
    %35 = arith.truncf %32 : vector<128x128xf32> to vector<128x128xbf16>
    %cst_22 = arith.constant dense<0.000000e+00> : vector<128x16xf32>
    %36 = tpu.matmul %35, %26, %cst_22 {dimension_numbers = #tpu.dot_dimension_numbers<[1], [0], [0], [1], [0, 0, 1, 1], [], []>} : vector<128x128xbf16>, vector<128x16xbf16>, vector<128x16xf32> -> vector<128x16xf32>
    %37 = tpu.reciprocal %34 {approx = true} : vector<128x1xf32> -> vector<128x1xf32>
    %38 = vector.broadcast %37 : vector<128x1xf32> to vector<128x16xf32>
    %39 = arith.mulf %36, %38 : vector<128x16xf32>
    %40 = arith.truncf %39 : vector<128x16xf32> to vector<128x16xbf16>
    %c0_23 = arith.constant 0 : index
    %c16_24 = arith.constant 16 : index
    %41 = vector.load %arg7[%c0_23, %c16_24] : memref<128x128xbf16, #tpu.memory_space<vmem>>, vector<128x16xbf16>
    tpu.vector_store %arg7[%c0_23, %c16_24], %40 {strides = array<i32>} : memref<128x128xbf16, #tpu.memory_space<vmem>>, vector<128x16xbf16>,
    %c0_25 = arith.constant 0 : index
    %c32 = arith.constant 32 : index
    %42 = vector.load %arg6[%c0_25, %c32] : memref<128x384xbf16, #tpu.memory_space<vmem>>, vector<128x16xbf16>
    %c0_26 = arith.constant 0 : index
    %c160 = arith.constant 160 : index
    %43 = vector.load %arg6[%c0_26, %c160] : memref<128x384xbf16, #tpu.memory_space<vmem>>, vector<128x16xbf16>
    %c0_27 = arith.constant 0 : index
    %c288 = arith.constant 288 : index
    %44 = vector.load %arg6[%c0_27, %c288] : memref<128x384xbf16, #tpu.memory_space<vmem>>, vector<128x16xbf16>
    %cst_28 = arith.constant dense<0.000000e+00> : vector<128x128xf32>
    %45 = tpu.matmul %42, %43, %cst_28 {dimension_numbers = #tpu.dot_dimension_numbers<[1], [1], [0], [0], [0, 0, 1, 0], [], []>} : vector<128x16xbf16>, vector<128x16xbf16>, vector<128x128xf32> -> vector<128x128xf32>
    %cst_29 = arith.constant dense<0xFF800000> : vector<128xf32>
    %46 = vector.multi_reduction <maximumf>, %45, %cst_29 [1] : vector<128x128xf32> to vector<128xf32>
    %47 = vector.shape_cast %46 : vector<128xf32> to vector<128x1xf32>
    %48 = vector.broadcast %47 : vector<128x1xf32> to vector<128x128xf32>
    %49 = arith.subf %45, %48 : vector<128x128xf32>
    %50 = math.exp %49 : vector<128x128xf32>
    %cst_30 = arith.constant dense<0.000000e+00> : vector<128xf32>
    %51 = vector.multi_reduction <add>, %50, %cst_30 [1] : vector<128x128xf32> to vector<128xf32>
    %52 = vector.shape_cast %51 : vector<128xf32> to vector<128x1xf32>
    %53 = arith.truncf %50 : vector<128x128xf32> to vector<128x128xbf16>
    %cst_31 = arith.constant dense<0.000000e+00> : vector<128x16xf32>
    %54 = tpu.matmul %53, %44, %cst_31 {dimension_numbers = #tpu.dot_dimension_numbers<[1], [0], [0], [1], [0, 0, 1, 1], [], []>} : vector<128x128xbf16>, vector<128x16xbf16>, vector<128x16xf32> -> vector<128x16xf32>
    %55 = tpu.reciprocal %52 {approx = true} : vector<128x1xf32> -> vector<128x1xf32>
    %56 = vector.broadcast %55 : vector<128x1xf32> to vector<128x16xf32>
    %57 = arith.mulf %54, %56 : vector<128x16xf32>
    %58 = arith.truncf %57 : vector<128x16xf32> to vector<128x16xbf16>
    %c0_32 = arith.constant 0 : index
    %c32_33 = arith.constant 32 : index
    %59 = vector.load %arg7[%c0_32, %c32_33] : memref<128x128xbf16, #tpu.memory_space<vmem>>, vector<128x16xbf16>
    tpu.vector_store %arg7[%c0_32, %c32_33], %58 {strides = array<i32>} : memref<128x128xbf16, #tpu.memory_space<vmem>>, vector<128x16xbf16>,
    %c0_34 = arith.constant 0 : index
    %c48 = arith.constant 48 : index
    %60 = vector.load %arg6[%c0_34, %c48] : memref<128x384xbf16, #tpu.memory_space<vmem>>, vector<128x16xbf16>
    %c0_35 = arith.constant 0 : index
    %c176 = arith.constant 176 : index
    %61 = vector.load %arg6[%c0_35, %c176] : memref<128x384xbf16, #tpu.memory_space<vmem>>, vector<128x16xbf16>
    %c0_36 = arith.constant 0 : index
    %c304 = arith.constant 304 : index
    %62 = vector.load %arg6[%c0_36, %c304] : memref<128x384xbf16, #tpu.memory_space<vmem>>, vector<128x16xbf16>
    %cst_37 = arith.constant dense<0.000000e+00> : vector<128x128xf32>
    %63 = tpu.matmul %60, %61, %cst_37 {dimension_numbers = #tpu.dot_dimension_numbers<[1], [1], [0], [0], [0, 0, 1, 0], [], []>} : vector<128x16xbf16>, vector<128x16xbf16>, vector<128x128xf32> -> vector<128x128xf32>
    %cst_38 = arith.constant dense<0xFF800000> : vector<128xf32>
    %64 = vector.multi_reduction <maximumf>, %63, %cst_38 [1] : vector<128x128xf32> to vector<128xf32>
    %65 = vector.shape_cast %64 : vector<128xf32> to vector<128x1xf32>
    %66 = vector.broadcast %65 : vector<128x1xf32> to vector<128x128xf32>
    %67 = arith.subf %63, %66 : vector<128x128xf32>
    %68 = math.exp %67 : vector<128x128xf32>
    %cst_39 = arith.constant dense<0.000000e+00> : vector<128xf32>
    %69 = vector.multi_reduction <add>, %68, %cst_39 [1] : vector<128x128xf32> to vector<128xf32>
    %70 = vector.shape_cast %69 : vector<128xf32> to vector<128x1xf32>
    %71 = arith.truncf %68 : vector<128x128xf32> to vector<128x128xbf16>
    %cst_40 = arith.constant dense<0.000000e+00> : vector<128x16xf32>
    %72 = tpu.matmul %71, %62, %cst_40 {dimension_numbers = #tpu.dot_dimension_numbers<[1], [0], [0], [1], [0, 0, 1, 1], [], []>} : vector<128x128xbf16>, vector<128x16xbf16>, vector<128x16xf32> -> vector<128x16xf32>
    %73 = tpu.reciprocal %70 {approx = true} : vector<128x1xf32> -> vector<128x1xf32>
    %74 = vector.broadcast %73 : vector<128x1xf32> to vector<128x16xf32>
    %75 = arith.mulf %72, %74 : vector<128x16xf32>
    %76 = arith.truncf %75 : vector<128x16xf32> to vector<128x16xbf16>
    %c0_41 = arith.constant 0 : index
    %c48_42 = arith.constant 48 : index
    %77 = vector.load %arg7[%c0_41, %c48_42] : memref<128x128xbf16, #tpu.memory_space<vmem>>, vector<128x16xbf16>
    tpu.vector_store %arg7[%c0_41, %c48_42], %76 {strides = array<i32>} : memref<128x128xbf16, #tpu.memory_space<vmem>>, vector<128x16xbf16>,
    %c0_43 = arith.constant 0 : index
    %c64 = arith.constant 64 : index
    %78 = vector.load %arg6[%c0_43, %c64] : memref<128x384xbf16, #tpu.memory_space<vmem>>, vector<128x16xbf16>
    %c0_44 = arith.constant 0 : index
    %c192 = arith.constant 192 : index
    %79 = vector.load %arg6[%c0_44, %c192] : memref<128x384xbf16, #tpu.memory_space<vmem>>, vector<128x16xbf16>
    %c0_45 = arith.constant 0 : index
    %c320 = arith.constant 320 : index
    %80 = vector.load %arg6[%c0_45, %c320] : memref<128x384xbf16, #tpu.memory_space<vmem>>, vector<128x16xbf16>
    %cst_46 = arith.constant dense<0.000000e+00> : vector<128x128xf32>
    %81 = tpu.matmul %78, %79, %cst_46 {dimension_numbers = #tpu.dot_dimension_numbers<[1], [1], [0], [0], [0, 0, 1, 0], [], []>} : vector<128x16xbf16>, vector<128x16xbf16>, vector<128x128xf32> -> vector<128x128xf32>
    %cst_47 = arith.constant dense<0xFF800000> : vector<128xf32>
    %82 = vector.multi_reduction <maximumf>, %81, %cst_47 [1] : vector<128x128xf32> to vector<128xf32>
    %83 = vector.shape_cast %82 : vector<128xf32> to vector<128x1xf32>
    %84 = vector.broadcast %83 : vector<128x1xf32> to vector<128x128xf32>
    %85 = arith.subf %81, %84 : vector<128x128xf32>
    %86 = math.exp %85 : vector<128x128xf32>
    %cst_48 = arith.constant dense<0.000000e+00> : vector<128xf32>
    %87 = vector.multi_reduction <add>, %86, %cst_48 [1] : vector<128x128xf32> to vector<128xf32>
    %88 = vector.shape_cast %87 : vector<128xf32> to vector<128x1xf32>
    %89 = arith.truncf %86 : vector<128x128xf32> to vector<128x128xbf16>
    %cst_49 = arith.constant dense<0.000000e+00> : vector<128x16xf32>
    %90 = tpu.matmul %89, %80, %cst_49 {dimension_numbers = #tpu.dot_dimension_numbers<[1], [0], [0], [1], [0, 0, 1, 1], [], []>} : vector<128x128xbf16>, vector<128x16xbf16>, vector<128x16xf32> -> vector<128x16xf32>
    %91 = tpu.reciprocal %88 {approx = true} : vector<128x1xf32> -> vector<128x1xf32>
    %92 = vector.broadcast %91 : vector<128x1xf32> to vector<128x16xf32>
    %93 = arith.mulf %90, %92 : vector<128x16xf32>
    %94 = arith.truncf %93 : vector<128x16xf32> to vector<128x16xbf16>
    %c0_50 = arith.constant 0 : index
    %c64_51 = arith.constant 64 : index
    %95 = vector.load %arg7[%c0_50, %c64_51] : memref<128x128xbf16, #tpu.memory_space<vmem>>, vector<128x16xbf16>
    tpu.vector_store %arg7[%c0_50, %c64_51], %94 {strides = array<i32>} : memref<128x128xbf16, #tpu.memory_space<vmem>>, vector<128x16xbf16>,
    %c0_52 = arith.constant 0 : index
    %c80 = arith.constant 80 : index
    %96 = vector.load %arg6[%c0_52, %c80] : memref<128x384xbf16, #tpu.memory_space<vmem>>, vector<128x16xbf16>
    %c0_53 = arith.constant 0 : index
    %c208 = arith.constant 208 : index
    %97 = vector.load %arg6[%c0_53, %c208] : memref<128x384xbf16, #tpu.memory_space<vmem>>, vector<128x16xbf16>
    %c0_54 = arith.constant 0 : index
    %c336 = arith.constant 336 : index
    %98 = vector.load %arg6[%c0_54, %c336] : memref<128x384xbf16, #tpu.memory_space<vmem>>, vector<128x16xbf16>
    %cst_55 = arith.constant dense<0.000000e+00> : vector<128x128xf32>
    %99 = tpu.matmul %96, %97, %cst_55 {dimension_numbers = #tpu.dot_dimension_numbers<[1], [1], [0], [0], [0, 0, 1, 0], [], []>} : vector<128x16xbf16>, vector<128x16xbf16>, vector<128x128xf32> -> vector<128x128xf32>
    %cst_56 = arith.constant dense<0xFF800000> : vector<128xf32>
    %100 = vector.multi_reduction <maximumf>, %99, %cst_56 [1] : vector<128x128xf32> to vector<128xf32>
    %101 = vector.shape_cast %100 : vector<128xf32> to vector<128x1xf32>
    %102 = vector.broadcast %101 : vector<128x1xf32> to vector<128x128xf32>
    %103 = arith.subf %99, %102 : vector<128x128xf32>
    %104 = math.exp %103 : vector<128x128xf32>
    %cst_57 = arith.constant dense<0.000000e+00> : vector<128xf32>
    %105 = vector.multi_reduction <add>, %104, %cst_57 [1] : vector<128x128xf32> to vector<128xf32>
    %106 = vector.shape_cast %105 : vector<128xf32> to vector<128x1xf32>
    %107 = arith.truncf %104 : vector<128x128xf32> to vector<128x128xbf16>
    %cst_58 = arith.constant dense<0.000000e+00> : vector<128x16xf32>
    %108 = tpu.matmul %107, %98, %cst_58 {dimension_numbers = #tpu.dot_dimension_numbers<[1], [0], [0], [1], [0, 0, 1, 1], [], []>} : vector<128x128xbf16>, vector<128x16xbf16>, vector<128x16xf32> -> vector<128x16xf32>
    %109 = tpu.reciprocal %106 {approx = true} : vector<128x1xf32> -> vector<128x1xf32>
    %110 = vector.broadcast %109 : vector<128x1xf32> to vector<128x16xf32>
    %111 = arith.mulf %108, %110 : vector<128x16xf32>
    %112 = arith.truncf %111 : vector<128x16xf32> to vector<128x16xbf16>
    %c0_59 = arith.constant 0 : index
    %c80_60 = arith.constant 80 : index
    %113 = vector.load %arg7[%c0_59, %c80_60] : memref<128x128xbf16, #tpu.memory_space<vmem>>, vector<128x16xbf16>
    tpu.vector_store %arg7[%c0_59, %c80_60], %112 {strides = array<i32>} : memref<128x128xbf16, #tpu.memory_space<vmem>>, vector<128x16xbf16>,
    %c0_61 = arith.constant 0 : index
    %c96 = arith.constant 96 : index
    %114 = vector.load %arg6[%c0_61, %c96] : memref<128x384xbf16, #tpu.memory_space<vmem>>, vector<128x16xbf16>
    %c0_62 = arith.constant 0 : index
    %c224 = arith.constant 224 : index
    %115 = vector.load %arg6[%c0_62, %c224] : memref<128x384xbf16, #tpu.memory_space<vmem>>, vector<128x16xbf16>
    %c0_63 = arith.constant 0 : index
    %c352 = arith.constant 352 : index
    %116 = vector.load %arg6[%c0_63, %c352] : memref<128x384xbf16, #tpu.memory_space<vmem>>, vector<128x16xbf16>
    %cst_64 = arith.constant dense<0.000000e+00> : vector<128x128xf32>
    %117 = tpu.matmul %114, %115, %cst_64 {dimension_numbers = #tpu.dot_dimension_numbers<[1], [1], [0], [0], [0, 0, 1, 0], [], []>} : vector<128x16xbf16>, vector<128x16xbf16>, vector<128x128xf32> -> vector<128x128xf32>
    %cst_65 = arith.constant dense<0xFF800000> : vector<128xf32>
    %118 = vector.multi_reduction <maximumf>, %117, %cst_65 [1] : vector<128x128xf32> to vector<128xf32>
    %119 = vector.shape_cast %118 : vector<128xf32> to vector<128x1xf32>
    %120 = vector.broadcast %119 : vector<128x1xf32> to vector<128x128xf32>
    %121 = arith.subf %117, %120 : vector<128x128xf32>
    %122 = math.exp %121 : vector<128x128xf32>
    %cst_66 = arith.constant dense<0.000000e+00> : vector<128xf32>
    %123 = vector.multi_reduction <add>, %122, %cst_66 [1] : vector<128x128xf32> to vector<128xf32>
    %124 = vector.shape_cast %123 : vector<128xf32> to vector<128x1xf32>
    %125 = arith.truncf %122 : vector<128x128xf32> to vector<128x128xbf16>
    %cst_67 = arith.constant dense<0.000000e+00> : vector<128x16xf32>
    %126 = tpu.matmul %125, %116, %cst_67 {dimension_numbers = #tpu.dot_dimension_numbers<[1], [0], [0], [1], [0, 0, 1, 1], [], []>} : vector<128x128xbf16>, vector<128x16xbf16>, vector<128x16xf32> -> vector<128x16xf32>
    %127 = tpu.reciprocal %124 {approx = true} : vector<128x1xf32> -> vector<128x1xf32>
    %128 = vector.broadcast %127 : vector<128x1xf32> to vector<128x16xf32>
    %129 = arith.mulf %126, %128 : vector<128x16xf32>
    %130 = arith.truncf %129 : vector<128x16xf32> to vector<128x16xbf16>
    %c0_68 = arith.constant 0 : index
    %c96_69 = arith.constant 96 : index
    %131 = vector.load %arg7[%c0_68, %c96_69] : memref<128x128xbf16, #tpu.memory_space<vmem>>, vector<128x16xbf16>
    tpu.vector_store %arg7[%c0_68, %c96_69], %130 {strides = array<i32>} : memref<128x128xbf16, #tpu.memory_space<vmem>>, vector<128x16xbf16>,
    %c0_70 = arith.constant 0 : index
    %c112 = arith.constant 112 : index
    %132 = vector.load %arg6[%c0_70, %c112] : memref<128x384xbf16, #tpu.memory_space<vmem>>, vector<128x16xbf16>
    %c0_71 = arith.constant 0 : index
    %c240 = arith.constant 240 : index
    %133 = vector.load %arg6[%c0_71, %c240] : memref<128x384xbf16, #tpu.memory_space<vmem>>, vector<128x16xbf16>
    %c0_72 = arith.constant 0 : index
    %c368 = arith.constant 368 : index
    %134 = vector.load %arg6[%c0_72, %c368] : memref<128x384xbf16, #tpu.memory_space<vmem>>, vector<128x16xbf16>
    %cst_73 = arith.constant dense<0.000000e+00> : vector<128x128xf32>
    %135 = tpu.matmul %132, %133, %cst_73 {dimension_numbers = #tpu.dot_dimension_numbers<[1], [1], [0], [0], [0, 0, 1, 0], [], []>} : vector<128x16xbf16>, vector<128x16xbf16>, vector<128x128xf32> -> vector<128x128xf32>
    %cst_74 = arith.constant dense<0xFF800000> : vector<128xf32>
    %136 = vector.multi_reduction <maximumf>, %135, %cst_74 [1] : vector<128x128xf32> to vector<128xf32>
    %137 = vector.shape_cast %136 : vector<128xf32> to vector<128x1xf32>
    %138 = vector.broadcast %137 : vector<128x1xf32> to vector<128x128xf32>
    %139 = arith.subf %135, %138 : vector<128x128xf32>
    %140 = math.exp %139 : vector<128x128xf32>
    %cst_75 = arith.constant dense<0.000000e+00> : vector<128xf32>
    %141 = vector.multi_reduction <add>, %140, %cst_75 [1] : vector<128x128xf32> to vector<128xf32>
    %142 = vector.shape_cast %141 : vector<128xf32> to vector<128x1xf32>
    %143 = arith.truncf %140 : vector<128x128xf32> to vector<128x128xbf16>
    %cst_76 = arith.constant dense<0.000000e+00> : vector<128x16xf32>
    %144 = tpu.matmul %143, %134, %cst_76 {dimension_numbers = #tpu.dot_dimension_numbers<[1], [0], [0], [1], [0, 0, 1, 1], [], []>} : vector<128x128xbf16>, vector<128x16xbf16>, vector<128x16xf32> -> vector<128x16xf32>
    %145 = tpu.reciprocal %142 {approx = true} : vector<128x1xf32> -> vector<128x1xf32>
    %146 = vector.broadcast %145 : vector<128x1xf32> to vector<128x16xf32>
    %147 = arith.mulf %144, %146 : vector<128x16xf32>
    %148 = arith.truncf %147 : vector<128x16xf32> to vector<128x16xbf16>
    %c0_77 = arith.constant 0 : index
    %c112_78 = arith.constant 112 : index
    %149 = vector.load %arg7[%c0_77, %c112_78] : memref<128x128xbf16, #tpu.memory_space<vmem>>, vector<128x16xbf16>
    tpu.vector_store %arg7[%c0_77, %c112_78], %148 {strides = array<i32>} : memref<128x128xbf16, #tpu.memory_space<vmem>>, vector<128x16xbf16>,
    %c0_79 = arith.constant 0 : index
    %c0_80 = arith.constant 0 : index
    %150 = vector.load %arg7[%c0_79, %c0_80] : memref<128x128xbf16, #tpu.memory_space<vmem>>, vector<128x128xbf16>
    %c0_81 = arith.constant 0 : index
    %c0_82 = arith.constant 0 : index
    %151 = vector.load %arg3[%c0_81, %c0_82] : memref<128x128xbf16, #tpu.memory_space<vmem>>, vector<128x128xbf16>
    %cst_83 = arith.constant dense<0.000000e+00> : vector<128x128xf32>
    %152 = tpu.matmul %150, %151, %cst_83 {dimension_numbers = #tpu.dot_dimension_numbers<[1], [0], [0], [1], [0, 0, 1, 1], [], []>} : vector<128x128xbf16>, vector<128x128xbf16>, vector<128x128xf32> -> vector<128x128xf32>
    %c0_84 = arith.constant 0 : index
    %c0_85 = arith.constant 0 : index
    %153 = vector.load %arg4[%c0_84, %c0_85] : memref<1x128xf32, #tpu.memory_space<vmem>>, vector<1x128xf32>
    %154 = vector.broadcast %153 : vector<1x128xf32> to vector<128x128xf32>
    %155 = arith.addf %152, %154 : vector<128x128xf32>
    %c0_86 = arith.constant 0 : index
    %c0_87 = arith.constant 0 : index
    %c0_88 = arith.constant 0 : index
    %156 = vector.load %arg5[%c0_86, %c0_87, %c0_88] : memref<1x128x128xf32, #tpu.memory_space<vmem>>, vector<1x128x128xf32>
    %157 = vector.shape_cast %156 : vector<1x128x128xf32> to vector<128x128xf32>
    %158 = vector.shape_cast %155 : vector<128x128xf32> to vector<1x128x128xf32>
    tpu.vector_store %arg5[%c0_86, %c0_87, %c0_88], %158 {strides = array<i32>} : memref<1x128x128xf32, #tpu.memory_space<vmem>>, vector<1x128x128xf32>,
    return
  }
  func.func @transform_0(%arg0: i32) -> (i32, i32, i32) {
    %c0_i32 = arith.constant 0 : i32
    %c0_i32_0 = arith.constant 0 : i32
    %c0_i32_1 = arith.constant 0 : i32
    return %arg0, %c0_i32, %c0_i32_0 : i32, i32, i32
  }
  func.func @transform_1(%arg0: i32) -> (i32, i32) {
    %c0_i32 = arith.constant 0 : i32
    %c0_i32_0 = arith.constant 0 : i32
    %c0_i32_1 = arith.constant 0 : i32
    return %c0_i32, %c0_i32_0 : i32, i32
  }
  func.func @transform_2(%arg0: i32) -> (i32, i32) {
    %c0_i32 = arith.constant 0 : i32
    %c0_i32_0 = arith.constant 0 : i32
    %c0_i32_1 = arith.constant 0 : i32
    return %c0_i32, %c0_i32_0 : i32, i32
  }
  func.func @transform_3(%arg0: i32) -> (i32, i32) {
    %c0_i32 = arith.constant 0 : i32
    %c0_i32_0 = arith.constant 0 : i32
    %c0_i32_1 = arith.constant 0 : i32
    return %c0_i32, %c0_i32_0 : i32, i32
  }
  func.func @transform_4(%arg0: i32) -> (i32, i32, i32) {
    %c0_i32 = arith.constant 0 : i32
    %c0_i32_0 = arith.constant 0 : i32
    %c0_i32_1 = arith.constant 0 : i32
    return %arg0, %c0_i32, %c0_i32_0 : i32, i32, i32
  }
}

</mosaic_0001>

<llo_original>
// kernel: tpu_custom_call.1
$region0: #{tpu_custom_call.1}
  #allocation0 [shape = 'u32[]', space=smem, size = 0x4, offset = 0x4, fixed_abs, tag = 'smem constant byte address 0x4 - core index']
  #allocation1 [shape = 'u32[144,128]{1,0:T(1,128)}', space=vmem, size = 0x12000, scoped, tag = 'internal scratch']
  #allocation2 [shape = 'bf16[128,384]{1,0:T(8,128)(2,1)}', space=vmem, size = 0x18000, scoped, tag = 'scratch operand']
  #allocation3 [shape = 'bf16[128,128]{1,0:T(8,128)(2,1)}', space=vmem, size = 0x8000, scoped, tag = 'scratch operand']
  %s0 = inlined_call_operand.hbm [shape: bf16[2,128,128], index: 0, kind: input, shape index: {}]
  %s1 = inlined_call_operand.hbm [shape: bf16[128,384], index: 1, kind: input, shape index: {}]
  %s2 = inlined_call_operand.hbm [shape: bf16[128,128], index: 2, kind: input, shape index: {}]
  %s3 = inlined_call_operand.vmem [shape: f32[1,128], index: 3, kind: input, shape index: {}]
  %s4 = inlined_call_operand.hbm [shape: f32[2,128,128], index: 4, kind: output, shape index: {}]
  %s5 = sld [smem:[#allocation0]]
  $region61: #{tpu_custom_call.1} parent=0
    _
  %s7 = ssub.s32 1, %s5
  %s8 = scalar_select 0, %s7, %s5
  $region1: #{tpu_custom_call.1} parent=0
    #allocation4 [shape = 'u8[65536]{0}', space=vmem, size = 0x10000, scoped, tag = 'input window, operand 0']
    #allocation5 [shape = 's32[2]{0}', space=sflag, size = 0x8, scoped, tag = 'scoped memory for tpu_custom_call.1']
    #allocation6 [shape = 's32[2]{0}', space=sflag, size = 0x8, scoped, tag = 'scoped memory for tpu_custom_call.1']
    #allocation7 [shape = 'u8[98304]{0}', space=vmem, size = 0x18000, scoped, tag = 'input window, operand 1, single buffered']
    #allocation8 [shape = 's32[1]{0}', space=sflag, size = 0x4, scoped, tag = 'scoped memory for tpu_custom_call.1']
    #allocation9 [shape = 'u8[32768]{0}', space=vmem, size = 0x8000, scoped, tag = 'input window, operand 2, single buffered']
    #allocation10 [shape = 'u8[131072]{0}', space=vmem, size = 0x20000, scoped, tag = 'output window, operand 0']
    %9 = vsyncpa [#allocation5], 0
    %s10 = scalar_lea.sflag [#allocation5], 1
    %11 = vsyncpa %s10, 0
    %12 = vsyncpa [#allocation8], 0
    %13 = vsyncpa [#allocation6], 0
    %s14 = scalar_lea.sflag [#allocation6], 1
    %15 = vsyncpa %s14, 0
    loop: start=0, step=1, limit=4
    $region2: #{tpu_custom_call.1} parent=1 // loop_pre_header
      _
    $region3: #{tpu_custom_call.1} parent=1 // loop_header
      %s17 = sphi 0, %s21
      %p18 = scmp.ge.s32.totalorder %s17, 4
      %s27 = sphi 0, %s29
      %s30 = sphi 0, %s27
      %s31 = sphi 0, %s30
      %s47 = sphi 0, %s31
      %s51 = sphi 0, %s51
      %s53 = sphi 0, %s51
      %s54 = sphi 0, %s53
      %s68 = sphi 0, %s54
      %s72 = sphi 0, %s72
      %s74 = sphi 0, %s72
      %s75 = sphi 0, %s74
      %s89 = sphi 0, %s75
      %s93 = sphi 0, %s93
      %s95 = sphi 0, %s93
      %s96 = sphi 0, %s95
      %s110 = sphi 0, %s96
      %s116 = sphi 0, %s118
      %s119 = sphi 0, %s116
      %s120 = sphi 0, %s119
      %s136 = sphi 0, %s120
    $region4: #{tpu_custom_call.1} parent=1 // loop_header_branch
      %20 = sbr.rel (%p18) target = $region8
    $region5: #{tpu_custom_call.1} parent=1 // loop_body
      %s22 = ssub.s32 %s17, 1
      %s23 = ssub.s32 %s17, 2
      %s24 = sadd.s32 %s17, 1
      %s25 = ssub.s32 %s17, %s24
      %p26 = scmp.eq.s32.totalorder %s25, 0
      %s28 = sadd.s32 %s27, 1
      %s29 = scalar_select %p26, %s27, %s28
      %p32 = pneg %p26
      %p33 = scmp.eq.s32.totalorder %s17, 1
      %p34 = por %p32, %p33
      %p35 = scmp.ne.s32.totalorder %s27, %s30
      %p36 = scmp.eq.s32.totalorder %s17, 0
      %p37 = por %p35, %p36
      %p38 = scmp.ne.s32.totalorder %s27, %s30
      %p39 = scmp.eq.s32.totalorder %s22, 1
      %p40 = por %p38, %p39
      %p41 = scmp.ne.s32.totalorder %s30, %s31
      %p42 = scmp.eq.s32.totalorder %s22, 0
      %p43 = por %p41, %p42
      %p44 = scmp.ne.s32.totalorder %s30, %s31
      %p45 = scmp.eq.s32.totalorder %s23, 1
      %p46 = por %p44, %p45
      %p48 = scmp.ne.s32.totalorder %s31, %s47
      %p49 = scmp.eq.s32.totalorder %s23, 0
      %p50 = por %p48, %p49
      %s52 = sadd.s32 %s51, 1
      %p55 = scmp.eq.s32.totalorder %s17, 1
      %p56 = scmp.ne.s32.totalorder %s51, %s53
      %p57 = scmp.eq.s32.totalorder %s17, 0
      %p58 = por %p56, %p57
      %p59 = scmp.ne.s32.totalorder %s51, %s53
      %p60 = scmp.eq.s32.totalorder %s22, 1
      %p61 = por %p59, %p60
      %p62 = scmp.ne.s32.totalorder %s53, %s54
      %p63 = scmp.eq.s32.totalorder %s22, 0
      %p64 = por %p62, %p63
      %p65 = scmp.ne.s32.totalorder %s53, %s54
      %p66 = scmp.eq.s32.totalorder %s23, 1
      %p67 = por %p65, %p66
      %p69 = scmp.ne.s32.totalorder %s54, %s68
      %p70 = scmp.eq.s32.totalorder %s23, 0
      %p71 = por %p69, %p70
      %s73 = sadd.s32 %s72, 1
      %p76 = scmp.eq.s32.totalorder %s17, 1
      %p77 = scmp.ne.s32.totalorder %s72, %s74
      %p78 = scmp.eq.s32.totalorder %s17, 0
      %p79 = por %p77, %p78
      %p80 = scmp.ne.s32.totalorder %s72, %s74
      %p81 = scmp.eq.s32.totalorder %s22, 1
      %p82 = por %p80, %p81
      %p83 = scmp.ne.s32.totalorder %s74, %s75
      %p84 = scmp.eq.s32.totalorder %s22, 0
      %p85 = por %p83, %p84
      %p86 = scmp.ne.s32.totalorder %s74, %s75
      %p87 = scmp.eq.s32.totalorder %s23, 1
      %p88 = por %p86, %p87
      %p90 = scmp.ne.s32.totalorder %s75, %s89
      %p91 = scmp.eq.s32.totalorder %s23, 0
      %p92 = por %p90, %p91
      %s94 = sadd.s32 %s93, 1
      %p97 = scmp.eq.s32.totalorder %s17, 1
      %p98 = scmp.ne.s32.totalorder %s93, %s95
      %p99 = scmp.eq.s32.totalorder %s17, 0
      %p100 = por %p98, %p99
      %p101 = scmp.ne.s32.totalorder %s93, %s95
      %p102 = scmp.eq.s32.totalorder %s22, 1
      %p103 = por %p101, %p102
      %p104 = scmp.ne.s32.totalorder %s95, %s96
      %p105 = scmp.eq.s32.totalorder %s22, 0
      %p106 = por %p104, %p105
      %p107 = scmp.ne.s32.totalorder %s95, %s96
      %p108 = scmp.eq.s32.totalorder %s23, 1
      %p109 = por %p107, %p108
      %p111 = scmp.ne.s32.totalorder %s96, %s110
      %p112 = scmp.eq.s32.totalorder %s23, 0
      %p113 = por %p111, %p112
      %s114 = ssub.s32 %s17, %s24
      %p115 = scmp.eq.s32.totalorder %s114, 0
      %s117 = sadd.s32 %s116, 1
      %s118 = scalar_select %p115, %s116, %s117
      %p121 = pneg %p115
      %p122 = scmp.eq.s32.totalorder %s17, 1
      %p123 = por %p121, %p122
      %p124 = scmp.ne.s32.totalorder %s116, %s119
      %p125 = scmp.eq.s32.totalorder %s17, 0
      %p126 = por %p124, %p125
      %p127 = scmp.ne.s32.totalorder %s116, %s119
      %p128 = scmp.eq.s32.totalorder %s22, 1
      %p129 = por %p127, %p128
      %p130 = scmp.ne.s32.totalorder %s119, %s120
      %p131 = scmp.eq.s32.totalorder %s22, 0
      %p132 = por %p130, %p131
      %p133 = scmp.ne.s32.totalorder %s119, %s120
      %p134 = scmp.eq.s32.totalorder %s23, 1
      %p135 = por %p133, %p134
      %p137 = scmp.ne.s32.totalorder %s120, %s136
      %p138 = scmp.eq.s32.totalorder %s23, 0
      %p139 = por %p137, %p138
      %p140 = scmp.le.s32.totalorder 1, %s17
      %p141 = scmp.lt.s32.totalorder %s17, 3
      %p142 = pnand %p140, %p141
      %p143 = pneg %p142
      // Predicated region
      $region9: #{tpu_custom_call.1} parent=5 // pred_check
        _
      $region10: #{tpu_custom_call.1} parent=5 // pred_check_branch
        %145 = sbr.rel (%p142) target = $region12
      $region11: #{tpu_custom_call.1} parent=5 // pred_region
        %s146 = ssub.s32 %s17, 1
        // Predicated region
        $region13: #{tpu_custom_call.1} parent=11 // pred_check
          %p147 = pneg %p64
        $region14: #{tpu_custom_call.1} parent=11 // pred_check_branch
          %149 = sbr.rel (%p147) target = $region16
        $region15: #{tpu_custom_call.1} parent=11 // pred_region
          %s151 = ssub.s32 3072, 3072
          %152 = vsyncadd [#allocation8], %s151
          %s153 = sshll.u32 [#allocation7], 4
          %s154 = int_to_ptr.vmem [resolvable:$true] %s153
          %159 = dma.hbm_to_vmem [thread:$0]  %s1, 3072, %s154, [#allocation8], 192, 192, 12
        $region16: #{tpu_custom_call.1} parent=11 // pred_fallthru
          _
        // Predicated region
        $region17: #{tpu_custom_call.1} parent=11 // pred_check
          %p160 = pneg %p85
        $region18: #{tpu_custom_call.1} parent=11 // pred_check_branch
          %162 = sbr.rel (%p160) target = $region20
        $region19: #{tpu_custom_call.1} parent=11 // pred_region
          %s164 = ssub.s32 1024, 1024
          %165 = vsyncadd [#allocation8], %s164
          %s166 = sshll.u32 [#allocation9], 4
          %s167 = int_to_ptr.vmem [resolvable:$true] %s166
          %172 = dma.hbm_to_vmem [thread:$0]  %s2, 1024, %s167, [#allocation8], 64, 64, 4
        $region20: #{tpu_custom_call.1} parent=11 // pred_fallthru
          _
        // Predicated region
        $region21: #{tpu_custom_call.1} parent=11 // pred_check
          %p173 = pneg %p106
        $region22: #{tpu_custom_call.1} parent=11 // pred_check_branch
          %175 = sbr.rel (%p173) target = $region24
        $region23: #{tpu_custom_call.1} parent=11 // pred_region
          _
        $region24: #{tpu_custom_call.1} parent=11 // pred_fallthru
          _
      $region12: #{tpu_custom_call.1} parent=5 // pred_fallthru
        _
      %p176 = scmp.lt.s32.totalorder %s17, 2
      // Predicated region
      $region25: #{tpu_custom_call.1} parent=5 // pred_check
        %p177 = pneg %p176
      $region26: #{tpu_custom_call.1} parent=5 // pred_check_branch
        %179 = sbr.rel (%p177) target = $region28
      $region27: #{tpu_custom_call.1} parent=5 // pred_region
        // Predicated region
        $region29: #{tpu_custom_call.1} parent=27 // pred_check
          %p180 = pneg %p37
        $region30: #{tpu_custom_call.1} parent=27 // pred_check_branch
          %182 = sbr.rel (%p180) target = $region32
        $region31: #{tpu_custom_call.1} parent=27 // pred_region
          %s183 = sand.u32 %s27, 1
          %s184 = scalar_lea.sflag [#allocation5], %s183
          %s185 = sand.u32 %s27, 1
          %s186 = smul.addr %s185, 64
          %s187 = scalar_lea.vmem [#allocation4], %s186
          %s189 = ssub.s32 1024, 1024
          %190 = vsyncadd %s184, %s189
          %s191 = smul.addr %s17, 16
          %s192 = smul.addr %s191, 64
          %s193 = scalar_lea.hbm %s0, %s192
          %s194 = sshll.u32 %s187, 4
          %s195 = int_to_ptr.vmem [resolvable:$true] %s194
          %200 = dma.hbm_to_vmem [thread:$0]  %s193, 1024, %s195, %s184, 64, 64, 4
        $region32: #{tpu_custom_call.1} parent=27 // pred_fallthru
          _
      $region28: #{tpu_custom_call.1} parent=5 // pred_fallthru
        _
      %p201 = scmp.le.s32.totalorder 1, %s17
      %p202 = scmp.lt.s32.totalorder %s17, 3
      %p203 = pnand %p201, %p202
      %p204 = pneg %p203
      // Predicated region
      $region33: #{tpu_custom_call.1} parent=5 // pred_check
        _
      $region34: #{tpu_custom_call.1} parent=5 // pred_check_branch
        %206 = sbr.rel (%p203) target = $region36
      $region35: #{tpu_custom_call.1} parent=5 // pred_region
        %s207 = ssub.s32 %s17, 1
        %s208 = sand.u32 %s30, 1
        %s209 = scalar_lea.sflag [#allocation5], %s208
        %s210 = sand.u32 %s30, 1
        %s211 = smul.addr %s210, 64
        %s212 = scalar_lea.vmem [#allocation4], %s211
        // Predicated region
        $region37: #{tpu_custom_call.1} parent=35 // pred_check
          %p213 = pneg %p43
        $region38: #{tpu_custom_call.1} parent=35 // pred_check_branch
          %215 = sbr.rel (%p213) target = $region40
        $region39: #{tpu_custom_call.1} parent=35 // pred_region
          %216 = dma.done %s209, 1024
        $region40: #{tpu_custom_call.1} parent=35 // pred_fallthru
          _
        // Predicated region
        $region41: #{tpu_custom_call.1} parent=35 // pred_check
          %p217 = pneg %p64
        $region42: #{tpu_custom_call.1} parent=35 // pred_check_branch
          %219 = sbr.rel (%p217) target = $region44
        $region43: #{tpu_custom_call.1} parent=35 // pred_region
          %220 = dma.done [#allocation8], 3072
        $region44: #{tpu_custom_call.1} parent=35 // pred_fallthru
          _
        // Predicated region
        $region45: #{tpu_custom_call.1} parent=35 // pred_check
          %p221 = pneg %p85
        $region46: #{tpu_custom_call.1} parent=35 // pred_check_branch
          %223 = sbr.rel (%p221) target = $region48
        $region47: #{tpu_custom_call.1} parent=35 // pred_region
          %224 = dma.done [#allocation8], 1024
        $region48: #{tpu_custom_call.1} parent=35 // pred_fallthru
          _
        %s225 = sand.u32 %s30, 1
        %s226 = scalar_lea.sflag [#allocation5], %s225
        %s227 = sand.u32 %s30, 1
        %s228 = smul.addr %s227, 64
        %s229 = scalar_lea.vmem [#allocation4], %s228
        %p230 = pneg %p43
        %p231 = pneg %p40
        %p232 = pneg %p64
        %p233 = pneg %p61
        %p234 = pneg %p85
        %p235 = pneg %p82
        %p236 = pneg %p106
        %p237 = pneg %p103
        %p238 = pneg %p132
        %p239 = pneg %p129
        %s240 = sand.u32 %s119, 1
        %s241 = scalar_lea.sflag [#allocation6], %s240
        %s242 = sand.u32 %s119, 1
        %s243 = smul.addr %s242, 128
        %s244 = scalar_lea.vmem [#allocation10], %s243
        %v246 = vld [vmem:[%s212] sm:$0xf]
        %v247 = vld [vmem:[%s212 + $0x4] sm:$0xf]
        %v248 = vld [vmem:[%s212 + $0x8] sm:$0xf]
        %v249 = vld [vmem:[%s212 + $0xc] sm:$0xf]
        %v250 = vld [vmem:[%s212 + $0x10] sm:$0xf]
        %v251 = vld [vmem:[%s212 + $0x14] sm:$0xf]
        %v252 = vld [vmem:[%s212 + $0x18] sm:$0xf]
        %v253 = vld [vmem:[%s212 + $0x1c] sm:$0xf]
        %v254 = vld [vmem:[%s212 + $0x20] sm:$0xf]
        %v255 = vld [vmem:[%s212 + $0x24] sm:$0xf]
        %v256 = vld [vmem:[%s212 + $0x28] sm:$0xf]
        %v257 = vld [vmem:[%s212 + $0x2c] sm:$0xf]
        %v258 = vld [vmem:[%s212 + $0x30] sm:$0xf]
        %v259 = vld [vmem:[%s212 + $0x34] sm:$0xf]
        %v260 = vld [vmem:[%s212 + $0x38] sm:$0xf]
        %v261 = vld [vmem:[%s212 + $0x3c] sm:$0xf]
        %v262 = vld [vmem:[#allocation7] sm:$0xff]
        %v263 = vld [vmem:[#allocation7 + $0x8] sm:$0xf]
        %v264 = vld [vmem:[#allocation7 + $0xc] sm:$0xff]
        %v265 = vld [vmem:[#allocation7 + $0x14] sm:$0xf]
        %v266 = vld [vmem:[#allocation7 + $0x18] sm:$0xff]
        %v267 = vld [vmem:[#allocation7 + $0x20] sm:$0xf]
        %v268 = vld [vmem:[#allocation7 + $0x24] sm:$0xff]
        %v269 = vld [vmem:[#allocation7 + $0x2c] sm:$0xf]
        %v270 = vld [vmem:[#allocation7 + $0x30] sm:$0xff]
        %v271 = vld [vmem:[#allocation7 + $0x38] sm:$0xf]
        %v272 = vld [vmem:[#allocation7 + $0x3c] sm:$0xff]
        %v273 = vld [vmem:[#allocation7 + $0x44] sm:$0xf]
        %v274 = vld [vmem:[#allocation7 + $0x48] sm:$0xff]
        %v275 = vld [vmem:[#allocation7 + $0x50] sm:$0xf]
        %v276 = vld [vmem:[#allocation7 + $0x54] sm:$0xff]
        %v277 = vld [vmem:[#allocation7 + $0x5c] sm:$0xf]
        %v278 = vld [vmem:[#allocation7 + $0x60] sm:$0xff]
        %v279 = vld [vmem:[#allocation7 + $0x68] sm:$0xf]
        %v280 = vld [vmem:[#allocation7 + $0x6c] sm:$0xff]
        %v281 = vld [vmem:[#allocation7 + $0x74] sm:$0xf]
        %v282 = vld [vmem:[#allocation7 + $0x78] sm:$0xff]
        %v283 = vld [vmem:[#allocation7 + $0x80] sm:$0xf]
        %v284 = vld [vmem:[#allocation7 + $0x84] sm:$0xff]
        %v285 = vld [vmem:[#allocation7 + $0x8c] sm:$0xf]
        %v286 = vld [vmem:[#allocation7 + $0x90] sm:$0xff]
        %v287 = vld [vmem:[#allocation7 + $0x98] sm:$0xf]
        %v288 = vld [vmem:[#allocation7 + $0x9c] sm:$0xff]
        %v289 = vld [vmem:[#allocation7 + $0xa4] sm:$0xf]
        %v290 = vld [vmem:[#allocation7 + $0xa8] sm:$0xff]
        %v291 = vld [vmem:[#allocation7 + $0xb0] sm:$0xf]
        %v292 = vld [vmem:[#allocation7 + $0xb4] sm:$0xff]
        %v293 = vld [vmem:[#allocation7 + $0xbc] sm:$0xf]
        %v310 = vunpack.c.l.b16 %v246
        %v311 = vunpack.c.l.b16 %v247
        %v312 = vunpack.c.l.b16 %v248
        %v313 = vunpack.c.l.b16 %v249
        %v314 = vunpack.c.l.b16 %v250
        %v315 = vunpack.c.l.b16 %v251
        %v316 = vunpack.c.l.b16 %v252
        %v317 = vunpack.c.l.b16 %v253
        %v318 = vunpack.c.l.b16 %v254
        %v319 = vunpack.c.l.b16 %v255
        %v320 = vunpack.c.l.b16 %v256
        %v321 = vunpack.c.l.b16 %v257
        %v322 = vunpack.c.l.b16 %v258
        %v323 = vunpack.c.l.b16 %v259
        %v324 = vunpack.c.l.b16 %v260
        %v325 = vunpack.c.l.b16 %v261
        %v326 = vpack.c.b16 %v311, %v310
        %v327 = vpack.c.b16 %v313, %v312
        %v328 = vpack.c.b16 %v315, %v314
        %v329 = vpack.c.b16 %v317, %v316
        %v330 = vpack.c.b16 %v319, %v318
        %v331 = vpack.c.b16 %v321, %v320
        %v332 = vpack.c.b16 %v323, %v322
        %v333 = vpack.c.b16 %v325, %v324
        %v374 = vunpack.c.l.b16 %v262
        %v375 = vunpack.c.h.b16 %v262
        %v376 = vunpack.c.l.b16 %v263
        %v377 = vunpack.c.l.b16 %v264
        %v378 = vunpack.c.h.b16 %v264
        %v379 = vunpack.c.l.b16 %v265
        %v380 = vunpack.c.l.b16 %v266
        %v381 = vunpack.c.h.b16 %v266
        %v382 = vunpack.c.l.b16 %v267
        %v383 = vunpack.c.l.b16 %v268
        %v384 = vunpack.c.h.b16 %v268
        %v385 = vunpack.c.l.b16 %v269
        %v386 = vunpack.c.l.b16 %v270
        %v387 = vunpack.c.h.b16 %v270
        %v388 = vunpack.c.l.b16 %v271
        %v389 = vunpack.c.l.b16 %v272
        %v390 = vunpack.c.h.b16 %v272
        %v391 = vunpack.c.l.b16 %v273
        %v392 = vunpack.c.l.b16 %v274
        %v393 = vunpack.c.h.b16 %v274
        %v394 = vunpack.c.l.b16 %v275
        %v395 = vunpack.c.l.b16 %v276
        %v396 = vunpack.c.h.b16 %v276
        %v397 = vunpack.c.l.b16 %v277
        %v398 = vunpack.c.l.b16 %v278
        %v399 = vunpack.c.h.b16 %v278
        %v400 = vunpack.c.l.b16 %v279
        %v401 = vunpack.c.l.b16 %v280
        %v402 = vunpack.c.h.b16 %v280
        %v403 = vunpack.c.l.b16 %v281
        %v404 = vunpack.c.l.b16 %v282
        %v405 = vunpack.c.h.b16 %v282
        %v406 = vunpack.c.l.b16 %v283
        %v407 = vunpack.c.l.b16 %v284
        %v408 = vunpack.c.h.b16 %v284
        %v409 = vunpack.c.l.b16 %v285
        %v410 = vunpack.c.l.b16 %v286
        %v411 = vunpack.c.h.b16 %v286
        %v412 = vunpack.c.l.b16 %v287
        %v413 = vunpack.c.l.b16 %v288
        %v414 = vunpack.c.h.b16 %v288
        %v415 = vunpack.c.l.b16 %v289
        %v416 = vunpack.c.l.b16 %v290
        %v417 = vunpack.c.h.b16 %v290
        %v418 = vunpack.c.l.b16 %v291
        %v419 = vunpack.c.l.b16 %v292
        %v420 = vunpack.c.h.b16 %v292
        %v421 = vunpack.c.l.b16 %v293
        %v422 = vpack.c.b16 %v377, %v374
        %v423 = vpack.c.b16 %v378, %v375
        %v424 = vpack.c.b16 %v379, %v376
        %v425 = vpack.c.b16 %v383, %v380
        %v426 = vpack.c.b16 %v384, %v381
        %v427 = vpack.c.b16 %v385, %v382
        %v428 = vpack.c.b16 %v389, %v386
        %v429 = vpack.c.b16 %v390, %v387
        %v430 = vpack.c.b16 %v391, %v388
        %v431 = vpack.c.b16 %v395, %v392
        %v432 = vpack.c.b16 %v396, %v393
        %v433 = vpack.c.b16 %v397, %v394
        %v434 = vpack.c.b16 %v401, %v398
        %v435 = vpack.c.b16 %v402, %v399
        %v436 = vpack.c.b16 %v403, %v400
        %v437 = vpack.c.b16 %v407, %v404
        %v438 = vpack.c.b16 %v408, %v405
        %v439 = vpack.c.b16 %v409, %v406
        %v440 = vpack.c.b16 %v413, %v410
        %v441 = vpack.c.b16 %v414, %v411
        %v442 = vpack.c.b16 %v415, %v412
        %v443 = vpack.c.b16 %v419, %v416
        %v444 = vpack.c.b16 %v420, %v417
        %v445 = vpack.c.b16 %v421, %v418
        %470 = vmatprep.subr.bf16.mxu0 %v444
        %471 = vmatpush1.bf16.msra.mxu0 %v443
        %472 = vmatprep.subr.bf16.mxu0 %v441
        %473 = vmatpush1.bf16.msra.mxu0 %v440
        %474 = vmatprep.subr.bf16.mxu0 %v438
        %475 = vmatpush1.bf16.msra.mxu0 %v437
        %476 = vmatprep.subr.bf16.mxu0 %v435
        %477 = vmatpush1.bf16.msra.mxu0 %v434
        %478 = vmatprep.subr.bf16.mxu0 %v432
        %479 = vmatpush1.bf16.msra.mxu0 %v431
        %480 = vmatprep.subr.bf16.mxu0 %v429
        %481 = vmatpush1.bf16.msra.mxu0 %v428
        %482 = vmatprep.subr.bf16.mxu0 %v426
        %483 = vmatpush1.bf16.msra.mxu0 %v425
        %484 = vmatprep.subr.bf16.mxu0 %v423
        %485 = vmatpush1.bf16.msra.mxu0 %v422
        %486 = vmatprep.subr.bf16.mxu0 0
        %487 = vmatpush2.bf16.msra.mxu0 0
        %488 = vmatprep.subr.bf16.mxu0 0
        %489 = vmatpush2.bf16.msra.mxu0 0
        %490 = vmatprep.subr.bf16.mxu0 0
        %491 = vmatpush2.bf16.msra.mxu0 0
        %492 = vmatprep.subr.bf16.mxu0 0
        %493 = vmatpush2.bf16.msra.mxu0 0
        %494 = vmatprep.subr.bf16.mxu0 0
        %495 = vmatpush2.bf16.msra.mxu0 0
        %496 = vmatprep.subr.bf16.mxu0 0
        %497 = vmatpush2.bf16.msra.mxu0 0
        %498 = vmatprep.subr.bf16.mxu0 0
        %499 = vmatpush2.bf16.msra.mxu0 0
        %500 = vmatprep.subr.bf16.mxu0 0
        %501 = vmatpush2.bf16.msra.mxu0 0
        %502 = vmatprep.mubr.bf16.mxu0 0
        %503 = vmatmul.mubr.bf16.gmra.mxu0 %v326
        %v504 = vpop.f32.mrf.mxu0
        %v505 = vadd.f32 0.0, %v504
        %v506 = vpop.f32.mrf.mxu0
        %v507 = vadd.f32 0.0, %v506
        %v508 = vpop.f32.mrf.mxu0
        %v509 = vadd.f32 0.0, %v508
        %v510 = vpop.f32.mrf.mxu0
        %v511 = vadd.f32 0.0, %v510
        %512 = vmatprep.mubr.bf16.mxu0 0
        %513 = vmatmul.mubr.bf16.gmra.mxu0 %v327
        %v514 = vpop.f32.mrf.mxu0
        %v515 = vadd.f32 0.0, %v514
        %v516 = vpop.f32.mrf.mxu0
        %v517 = vadd.f32 0.0, %v516
        %v518 = vpop.f32.mrf.mxu0
        %v519 = vadd.f32 0.0, %v518
        %v520 = vpop.f32.mrf.mxu0
        %v521 = vadd.f32 0.0, %v520
        %522 = vmatprep.mubr.bf16.mxu0 0
        %523 = vmatmul.mubr.bf16.gmra.mxu0 %v328
        %v524 = vpop.f32.mrf.mxu0
        %v525 = vadd.f32 0.0, %v524
        %v526 = vpop.f32.mrf.mxu0
        %v527 = vadd.f32 0.0, %v526
        %v528 = vpop.f32.mrf.mxu0
        %v529 = vadd.f32 0.0, %v528
        %v530 = vpop.f32.mrf.mxu0
        %v531 = vadd.f32 0.0, %v530
        %532 = vmatprep.mubr.bf16.mxu0 0
        %533 = vmatmul.mubr.bf16.gmra.mxu0 %v329
        %v534 = vpop.f32.mrf.mxu0
        %v535 = vadd.f32 0.0, %v534
        %v536 = vpop.f32.mrf.mxu0
        %v537 = vadd.f32 0.0, %v536
        %v538 = vpop.f32.mrf.mxu0
        %v539 = vadd.f32 0.0, %v538
        %v540 = vpop.f32.mrf.mxu0
        %v541 = vadd.f32 0.0, %v540
        %542 = vmatprep.mubr.bf16.mxu0 0
        %543 = vmatmul.mubr.bf16.gmra.mxu0 %v330
        %v544 = vpop.f32.mrf.mxu0
        %v545 = vadd.f32 0.0, %v544
        %v546 = vpop.f32.mrf.mxu0
        %v547 = vadd.f32 0.0, %v546
        %v548 = vpop.f32.mrf.mxu0
        %v549 = vadd.f32 0.0, %v548
        %v550 = vpop.f32.mrf.mxu0
        %v551 = vadd.f32 0.0, %v550
        %552 = vmatprep.mubr.bf16.mxu0 0
        %553 = vmatmul.mubr.bf16.gmra.mxu0 %v331
        %v554 = vpop.f32.mrf.mxu0
        %v555 = vadd.f32 0.0, %v554
        %v556 = vpop.f32.mrf.mxu0
        %v557 = vadd.f32 0.0, %v556
        %v558 = vpop.f32.mrf.mxu0
        %v559 = vadd.f32 0.0, %v558
        %v560 = vpop.f32.mrf.mxu0
        %v561 = vadd.f32 0.0, %v560
        %562 = vmatprep.mubr.bf16.mxu0 0
        %563 = vmatmul.mubr.bf16.gmra.mxu0 %v332
        %v564 = vpop.f32.mrf.mxu0
        %v565 = vadd.f32 0.0, %v564
        %v566 = vpop.f32.mrf.mxu0
        %v567 = vadd.f32 0.0, %v566
        %v568 = vpop.f32.mrf.mxu0
        %v569 = vadd.f32 0.0, %v568
        %v570 = vpop.f32.mrf.mxu0
        %v571 = vadd.f32 0.0, %v570
        %572 = vmatprep.mubr.bf16.mxu0 0
        %573 = vmatmul.mubr.bf16.gmra.mxu0 %v333
        %v574 = vpop.f32.mrf.mxu0
        %v575 = vadd.f32 0.0, %v574
        %v576 = vpop.f32.mrf.mxu0
        %v577 = vadd.f32 0.0, %v576
        %v578 = vpop.f32.mrf.mxu0
        %v579 = vadd.f32 0.0, %v578
        %v580 = vpop.f32.mrf.mxu0
        %v581 = vadd.f32 0.0, %v580
        %582 = vdwg.mxu0
        %583 = vmatprep.subr.bf16.mxu0 0
        %584 = vmatpush1.bf16.msra.mxu0 %v445
        %585 = vmatprep.subr.bf16.mxu0 0
        %586 = vmatpush1.bf16.msra.mxu0 %v442
        %587 = vmatprep.subr.bf16.mxu0 0
        %588 = vmatpush1.bf16.msra.mxu0 %v439
        %589 = vmatprep.subr.bf16.mxu0 0
        %590 = vmatpush1.bf16.msra.mxu0 %v436
        %591 = vmatprep.subr.bf16.mxu0 0
        %592 = vmatpush1.bf16.msra.mxu0 %v433
        %593 = vmatprep.subr.bf16.mxu0 0
        %594 = vmatpush1.bf16.msra.mxu0 %v430
        %595 = vmatprep.subr.bf16.mxu0 0
        %596 = vmatpush1.bf16.msra.mxu0 %v427
        %597 = vmatprep.subr.bf16.mxu0 0
        %598 = vmatpush1.bf16.msra.mxu0 %v424
        %599 = vmatprep.subr.bf16.mxu0 0
        %600 = vmatpush2.bf16.msra.mxu0 0
        %601 = vmatprep.subr.bf16.mxu0 0
        %602 = vmatpush2.bf16.msra.mxu0 0
        %603 = vmatprep.subr.bf16.mxu0 0
        %604 = vmatpush2.bf16.msra.mxu0 0
        %605 = vmatprep.subr.bf16.mxu0 0
        %606 = vmatpush2.bf16.msra.mxu0 0
        %607 = vmatprep.subr.bf16.mxu0 0
        %608 = vmatpush2.bf16.msra.mxu0 0
        %609 = vmatprep.subr.bf16.mxu0 0
        %610 = vmatpush2.bf16.msra.mxu0 0
        %611 = vmatprep.subr.bf16.mxu0 0
        %612 = vmatpush2.bf16.msra.mxu0 0
        %613 = vmatprep.subr.bf16.mxu0 0
        %614 = vmatpush2.bf16.msra.mxu0 0
        %615 = vmatprep.mubr.bf16.mxu0 0
        %616 = vmatmul.mubr.bf16.gmra.mxu0 %v326
        %v617 = vpop.f32.mrf.mxu0
        %v618 = vadd.f32 0.0, %v617
        %v619 = vpop.f32.mrf.mxu0
        %v620 = vpop.f32.mrf.mxu0
        %v621 = vadd.f32 0.0, %v620
        %v622 = vpop.f32.mrf.mxu0
        %623 = vmatprep.mubr.bf16.mxu0 0
        %624 = vmatmul.mubr.bf16.gmra.mxu0 %v327
        %v625 = vpop.f32.mrf.mxu0
        %v626 = vadd.f32 0.0, %v625
        %v627 = vpop.f32.mrf.mxu0
        %v628 = vpop.f32.mrf.mxu0
        %v629 = vadd.f32 0.0, %v628
        %v630 = vpop.f32.mrf.mxu0
        %631 = vmatprep.mubr.bf16.mxu0 0
        %632 = vmatmul.mubr.bf16.gmra.mxu0 %v328
        %v633 = vpop.f32.mrf.mxu0
        %v634 = vadd.f32 0.0, %v633
        %v635 = vpop.f32.mrf.mxu0
        %v636 = vpop.f32.mrf.mxu0
        %v637 = vadd.f32 0.0, %v636
        %v638 = vpop.f32.mrf.mxu0
        %639 = vmatprep.mubr.bf16.mxu0 0
        %640 = vmatmul.mubr.bf16.gmra.mxu0 %v329
        %v641 = vpop.f32.mrf.mxu0
        %v642 = vadd.f32 0.0, %v641
        %v643 = vpop.f32.mrf.mxu0
        %v644 = vpop.f32.mrf.mxu0
        %v645 = vadd.f32 0.0, %v644
        %v646 = vpop.f32.mrf.mxu0
        %647 = vmatprep.mubr.bf16.mxu0 0
        %648 = vmatmul.mubr.bf16.gmra.mxu0 %v330
        %v649 = vpop.f32.mrf.mxu0
        %v650 = vadd.f32 0.0, %v649
        %v651 = vpop.f32.mrf.mxu0
        %v652 = vpop.f32.mrf.mxu0
        %v653 = vadd.f32 0.0, %v652
        %v654 = vpop.f32.mrf.mxu0
        %655 = vmatprep.mubr.bf16.mxu0 0
        %656 = vmatmul.mubr.bf16.gmra.mxu0 %v331
        %v657 = vpop.f32.mrf.mxu0
        %v658 = vadd.f32 0.0, %v657
        %v659 = vpop.f32.mrf.mxu0
        %v660 = vpop.f32.mrf.mxu0
        %v661 = vadd.f32 0.0, %v660
        %v662 = vpop.f32.mrf.mxu0
        %663 = vmatprep.mubr.bf16.mxu0 0
        %664 = vmatmul.mubr.bf16.gmra.mxu0 %v332
        %v665 = vpop.f32.mrf.mxu0
        %v666 = vadd.f32 0.0, %v665
        %v667 = vpop.f32.mrf.mxu0
        %v668 = vpop.f32.mrf.mxu0
        %v669 = vadd.f32 0.0, %v668
        %v670 = vpop.f32.mrf.mxu0
        %671 = vmatprep.mubr.bf16.mxu0 0
        %672 = vmatmul.mubr.bf16.gmra.mxu0 %v333
        %v673 = vpop.f32.mrf.mxu0
        %v674 = vadd.f32 0.0, %v673
        %v675 = vpop.f32.mrf.mxu0
        %v676 = vpop.f32.mrf.mxu0
        %v677 = vadd.f32 0.0, %v676
        %v678 = vpop.f32.mrf.mxu0
        %679 = vdwg.mxu0
        %v680 = vpack.c.bf16 %v509, %v505
        %v681 = vpack.c.bf16 %v511, %v507
        %v682 = vpack.c.bf16 %v621, %v618
        %v683 = vpack.c.bf16 %v519, %v515
        %v684 = vpack.c.bf16 %v521, %v517
        %v685 = vpack.c.bf16 %v629, %v626
        %v686 = vpack.c.bf16 %v529, %v525
        %v687 = vpack.c.bf16 %v531, %v527
        %v688 = vpack.c.bf16 %v637, %v634
        %v689 = vpack.c.bf16 %v539, %v535
        %v690 = vpack.c.bf16 %v541, %v537
        %v691 = vpack.c.bf16 %v645, %v642
        %v692 = vpack.c.bf16 %v549, %v545
        %v693 = vpack.c.bf16 %v551, %v547
        %v694 = vpack.c.bf16 %v653, %v650
        %v695 = vpack.c.bf16 %v559, %v555
        %v696 = vpack.c.bf16 %v561, %v557
        %v697 = vpack.c.bf16 %v661, %v658
        %v698 = vpack.c.bf16 %v569, %v565
        %v699 = vpack.c.bf16 %v571, %v567
        %v700 = vpack.c.bf16 %v669, %v666
        %v701 = vpack.c.bf16 %v579, %v575
        %v702 = vpack.c.bf16 %v581, %v577
        %v703 = vpack.c.bf16 %v677, %v674
        %v728 = vunpack.c.l.b16 %v680
        %v729 = vunpack.c.l.b16 %v681
        %v730 = vunpack.c.l.b16 %v682
        %v731 = vunpack.c.h.b16 %v680
        %v732 = vunpack.c.h.b16 %v681
        %v733 = vunpack.c.h.b16 %v682
        %v734 = vunpack.c.l.b16 %v683
        %v735 = vunpack.c.l.b16 %v684
        %v736 = vunpack.c.l.b16 %v685
        %v737 = vunpack.c.h.b16 %v683
        %v738 = vunpack.c.h.b16 %v684
        %v739 = vunpack.c.h.b16 %v685
        %v740 = vunpack.c.l.b16 %v686
        %v741 = vunpack.c.l.b16 %v687
        %v742 = vunpack.c.l.b16 %v688
        %v743 = vunpack.c.h.b16 %v686
        %v744 = vunpack.c.h.b16 %v687
        %v745 = vunpack.c.h.b16 %v688
        %v746 = vunpack.c.l.b16 %v689
        %v747 = vunpack.c.l.b16 %v690
        %v748 = vunpack.c.l.b16 %v691
        %v749 = vunpack.c.h.b16 %v689
        %v750 = vunpack.c.h.b16 %v690
        %v751 = vunpack.c.h.b16 %v691
        %v752 = vunpack.c.l.b16 %v692
        %v753 = vunpack.c.l.b16 %v693
        %v754 = vunpack.c.l.b16 %v694
        %v755 = vunpack.c.h.b16 %v692
        %v756 = vunpack.c.h.b16 %v693
        %v757 = vunpack.c.h.b16 %v694
        %v758 = vunpack.c.l.b16 %v695
        %v759 = vunpack.c.l.b16 %v696
        %v760 = vunpack.c.l.b16 %v697
        %v761 = vunpack.c.h.b16 %v695
        %v762 = vunpack.c.h.b16 %v696
        %v763 = vunpack.c.h.b16 %v697
        %v764 = vunpack.c.l.b16 %v698
        %v765 = vunpack.c.l.b16 %v699
        %v766 = vunpack.c.l.b16 %v700
        %v767 = vunpack.c.h.b16 %v698
        %v768 = vunpack.c.h.b16 %v699
        %v769 = vunpack.c.h.b16 %v700
        %v770 = vunpack.c.l.b16 %v701
        %v771 = vunpack.c.l.b16 %v702
        %v772 = vunpack.c.l.b16 %v703
        %v773 = vunpack.c.h.b16 %v701
        %v774 = vunpack.c.h.b16 %v702
        %v775 = vunpack.c.h.b16 %v703
        %v776 = vpack.c.b16 %v729, %v728
        %v777 = vpack.c.b16 %v730, %v730
        %v778 = vpack.c.b16 %v732, %v731
        %v779 = vpack.c.b16 %v733, %v733
        %v780 = vpack.c.b16 %v735, %v734
        %v781 = vpack.c.b16 %v736, %v736
        %v782 = vpack.c.b16 %v738, %v737
        %v783 = vpack.c.b16 %v739, %v739
        %v784 = vpack.c.b16 %v741, %v740
        %v785 = vpack.c.b16 %v742, %v742
        %v786 = vpack.c.b16 %v744, %v743
        %v787 = vpack.c.b16 %v745, %v745
        %v788 = vpack.c.b16 %v747, %v746
        %v789 = vpack.c.b16 %v748, %v748
        %v790 = vpack.c.b16 %v750, %v749
        %v791 = vpack.c.b16 %v751, %v751
        %v792 = vpack.c.b16 %v753, %v752
        %v793 = vpack.c.b16 %v754, %v754
        %v794 = vpack.c.b16 %v756, %v755
        %v795 = vpack.c.b16 %v757, %v757
        %v796 = vpack.c.b16 %v759, %v758
        %v797 = vpack.c.b16 %v760, %v760
        %v798 = vpack.c.b16 %v762, %v761
        %v799 = vpack.c.b16 %v763, %v763
        %v800 = vpack.c.b16 %v765, %v764
        %v801 = vpack.c.b16 %v766, %v766
        %v802 = vpack.c.b16 %v768, %v767
        %v803 = vpack.c.b16 %v769, %v769
        %v804 = vpack.c.b16 %v771, %v770
        %v805 = vpack.c.b16 %v772, %v772
        %v806 = vpack.c.b16 %v774, %v773
        %v807 = vpack.c.b16 %v775, %v775
        %840 = vst [vmem:[#allocation2] sm:$0xff] %v776
        %841 = vst [vmem:[#allocation2 + $0x8] sm:$0xf] %v777
        %842 = vst [vmem:[#allocation2 + $0xc] sm:$0xff] %v778
        %843 = vst [vmem:[#allocation2 + $0x14] sm:$0xf] %v779
        %844 = vst [vmem:[#allocation2 + $0x18] sm:$0xff] %v780
        %845 = vst [vmem:[#allocation2 + $0x20] sm:$0xf] %v781
        %846 = vst [vmem:[#allocation2 + $0x24] sm:$0xff] %v782
        %847 = vst [vmem:[#allocation2 + $0x2c] sm:$0xf] %v783
        %848 = vst [vmem:[#allocation2 + $0x30] sm:$0xff] %v784
        %849 = vst [vmem:[#allocation2 + $0x38] sm:$0xf] %v785
        %850 = vst [vmem:[#allocation2 + $0x3c] sm:$0xff] %v786
        %851 = vst [vmem:[#allocation2 + $0x44] sm:$0xf] %v787
        %852 = vst [vmem:[#allocation2 + $0x48] sm:$0xff] %v788
        %853 = vst [vmem:[#allocation2 + $0x50] sm:$0xf] %v789
        %854 = vst [vmem:[#allocation2 + $0x54] sm:$0xff] %v790
        %855 = vst [vmem:[#allocation2 + $0x5c] sm:$0xf] %v791
        %856 = vst [vmem:[#allocation2 + $0x60] sm:$0xff] %v792
        %857 = vst [vmem:[#allocation2 + $0x68] sm:$0xf] %v793
        %858 = vst [vmem:[#allocation2 + $0x6c] sm:$0xff] %v794
        %859 = vst [vmem:[#allocation2 + $0x74] sm:$0xf] %v795
        %860 = vst [vmem:[#allocation2 + $0x78] sm:$0xff] %v796
        %861 = vst [vmem:[#allocation2 + $0x80] sm:$0xf] %v797
        %862 = vst [vmem:[#allocation2 + $0x84] sm:$0xff] %v798
        %863 = vst [vmem:[#allocation2 + $0x8c] sm:$0xf] %v799
        %864 = vst [vmem:[#allocation2 + $0x90] sm:$0xff] %v800
        %865 = vst [vmem:[#allocation2 + $0x98] sm:$0xf] %v801
        %866 = vst [vmem:[#allocation2 + $0x9c] sm:$0xff] %v802
        %867 = vst [vmem:[#allocation2 + $0xa4] sm:$0xf] %v803
        %868 = vst [vmem:[#allocation2 + $0xa8] sm:$0xff] %v804
        %869 = vst [vmem:[#allocation2 + $0xb0] sm:$0xf] %v805
        %870 = vst [vmem:[#allocation2 + $0xb4] sm:$0xff] %v806
        %871 = vst [vmem:[#allocation2 + $0xbc] sm:$0xf] %v807
        %v872 = vld [vmem:[#allocation2] sm:$0xf]
        %v873 = vld [vmem:[#allocation2 + $0xc] sm:$0xf]
        %v874 = vld [vmem:[#allocation2 + $0x18] sm:$0xf]
        %v875 = vld [vmem:[#allocation2 + $0x24] sm:$0xf]
        %v876 = vld [vmem:[#allocation2 + $0x30] sm:$0xf]
        %v877 = vld [vmem:[#allocation2 + $0x3c] sm:$0xf]
        %v878 = vld [vmem:[#allocation2 + $0x48] sm:$0xf]
        %v879 = vld [vmem:[#allocation2 + $0x54] sm:$0xf]
        %v880 = vld [vmem:[#allocation2 + $0x60] sm:$0xf]
        %v881 = vld [vmem:[#allocation2 + $0x6c] sm:$0xf]
        %v882 = vld [vmem:[#allocation2 + $0x78] sm:$0xf]
        %v883 = vld [vmem:[#allocation2 + $0x84] sm:$0xf]
        %v884 = vld [vmem:[#allocation2 + $0x90] sm:$0xf]
        %v885 = vld [vmem:[#allocation2 + $0x9c] sm:$0xf]
        %v886 = vld [vmem:[#allocation2 + $0xa8] sm:$0xf]
        %v887 = vld [vmem:[#allocation2 + $0xb4] sm:$0xf]
        %v888 = vld [vmem:[#allocation2 + $0x4] sm:$0xf]
        %v889 = vld [vmem:[#allocation2 + $0x10] sm:$0xf]
        %v890 = vld [vmem:[#allocation2 + $0x1c] sm:$0xf]
        %v891 = vld [vmem:[#allocation2 + $0x28] sm:$0xf]
        %v892 = vld [vmem:[#allocation2 + $0x34] sm:$0xf]
        %v893 = vld [vmem:[#allocation2 + $0x40] sm:$0xf]
        %v894 = vld [vmem:[#allocation2 + $0x4c] sm:$0xf]
        %v895 = vld [vmem:[#allocation2 + $0x58] sm:$0xf]
        %v896 = vld [vmem:[#allocation2 + $0x64] sm:$0xf]
        %v897 = vld [vmem:[#allocation2 + $0x70] sm:$0xf]
        %v898 = vld [vmem:[#allocation2 + $0x7c] sm:$0xf]
        %v899 = vld [vmem:[#allocation2 + $0x88] sm:$0xf]
        %v900 = vld [vmem:[#allocation2 + $0x94] sm:$0xf]
        %v901 = vld [vmem:[#allocation2 + $0xa0] sm:$0xf]
        %v902 = vld [vmem:[#allocation2 + $0xac] sm:$0xf]
        %v903 = vld [vmem:[#allocation2 + $0xb8] sm:$0xf]
        %v904 = vld [vmem:[#allocation2 + $0x8] sm:$0xf]
        %v905 = vld [vmem:[#allocation2 + $0x14] sm:$0xf]
        %v906 = vld [vmem:[#allocation2 + $0x20] sm:$0xf]
        %v907 = vld [vmem:[#allocation2 + $0x2c] sm:$0xf]
        %v908 = vld [vmem:[#allocation2 + $0x38] sm:$0xf]
        %v909 = vld [vmem:[#allocation2 + $0x44] sm:$0xf]
        %v910 = vld [vmem:[#allocation2 + $0x50] sm:$0xf]
        %v911 = vld [vmem:[#allocation2 + $0x5c] sm:$0xf]
        %v912 = vld [vmem:[#allocation2 + $0x68] sm:$0xf]
        %v913 = vld [vmem:[#allocation2 + $0x74] sm:$0xf]
        %v914 = vld [vmem:[#allocation2 + $0x80] sm:$0xf]
        %v915 = vld [vmem:[#allocation2 + $0x8c] sm:$0xf]
        %v916 = vld [vmem:[#allocation2 + $0x98] sm:$0xf]
        %v917 = vld [vmem:[#allocation2 + $0xa4] sm:$0xf]
        %v918 = vld [vmem:[#allocation2 + $0xb0] sm:$0xf]
        %v919 = vld [vmem:[#allocation2 + $0xbc] sm:$0xf]
        %v936 = vunpack.c.l.b16 %v872
        %v937 = vunpack.c.l.b16 %v873
        %v938 = vunpack.c.l.b16 %v874
        %v939 = vunpack.c.l.b16 %v875
        %v940 = vunpack.c.l.b16 %v876
        %v941 = vunpack.c.l.b16 %v877
        %v942 = vunpack.c.l.b16 %v878
        %v943 = vunpack.c.l.b16 %v879
        %v944 = vunpack.c.l.b16 %v880
        %v945 = vunpack.c.l.b16 %v881
        %v946 = vunpack.c.l.b16 %v882
        %v947 = vunpack.c.l.b16 %v883
        %v948 = vunpack.c.l.b16 %v884
        %v949 = vunpack.c.l.b16 %v885
        %v950 = vunpack.c.l.b16 %v886
        %v951 = vunpack.c.l.b16 %v887
        %v952 = vpack.c.b16 %v937, %v936
        %v953 = vpack.c.b16 %v939, %v938
        %v954 = vpack.c.b16 %v941, %v940
        %v955 = vpack.c.b16 %v943, %v942
        %v956 = vpack.c.b16 %v945, %v944
        %v957 = vpack.c.b16 %v947, %v946
        %v958 = vpack.c.b16 %v949, %v948
        %v959 = vpack.c.b16 %v951, %v950
        %v976 = vunpack.c.l.b16 %v888
        %v977 = vunpack.c.l.b16 %v889
        %v978 = vunpack.c.l.b16 %v890
        %v979 = vunpack.c.l.b16 %v891
        %v980 = vunpack.c.l.b16 %v892
        %v981 = vunpack.c.l.b16 %v893
        %v982 = vunpack.c.l.b16 %v894
        %v983 = vunpack.c.l.b16 %v895
        %v984 = vunpack.c.l.b16 %v896
        %v985 = vunpack.c.l.b16 %v897
        %v986 = vunpack.c.l.b16 %v898
        %v987 = vunpack.c.l.b16 %v899
        %v988 = vunpack.c.l.b16 %v900
        %v989 = vunpack.c.l.b16 %v901
        %v990 = vunpack.c.l.b16 %v902
        %v991 = vunpack.c.l.b16 %v903
        %v992 = vpack.c.b16 %v977, %v976
        %v993 = vpack.c.b16 %v979, %v978
        %v994 = vpack.c.b16 %v981, %v980
        %v995 = vpack.c.b16 %v983, %v982
        %v996 = vpack.c.b16 %v985, %v984
        %v997 = vpack.c.b16 %v987, %v986
        %v998 = vpack.c.b16 %v989, %v988
        %v999 = vpack.c.b16 %v991, %v990
        %vm1000 = vcmask 130048
        %v1002 = vsel %vm1000, %v952, 0
        %v1005 = vsel %vm1000, %v953, 0
        %v1008 = vsel %vm1000, %v954, 0
        %v1011 = vsel %vm1000, %v955, 0
        %v1014 = vsel %vm1000, %v956, 0
        %v1017 = vsel %vm1000, %v957, 0
        %v1020 = vsel %vm1000, %v958, 0
        %v1023 = vsel %vm1000, %v959, 0
        %v1026 = vsel %vm1000, %v992, 0
        %v1029 = vsel %vm1000, %v993, 0
        %v1032 = vsel %vm1000, %v994, 0
        %v1035 = vsel %vm1000, %v995, 0
        %v1038 = vsel %vm1000, %v996, 0
        %v1041 = vsel %vm1000, %v997, 0
        %v1044 = vsel %vm1000, %v998, 0
        %v1047 = vsel %vm1000, %v999, 0
        %1049 = vmatprep.subr.bf16.mxu0 0
        %1050 = vmatpush1.bf16.xpose.msra.mxu0 %v1047
        %1051 = vmatprep.subr.bf16.mxu0 0
        %1052 = vmatpush1.bf16.xpose.msra.mxu0 %v1044
        %1053 = vmatprep.subr.bf16.mxu0 0
        %1054 = vmatpush1.bf16.xpose.msra.mxu0 %v1041
        %1055 = vmatprep.subr.bf16.mxu0 0
        %1056 = vmatpush1.bf16.xpose.msra.mxu0 %v1038
        %1057 = vmatprep.subr.bf16.mxu0 0
        %1058 = vmatpush1.bf16.xpose.msra.mxu0 %v1035
        %1059 = vmatprep.subr.bf16.mxu0 0
        %1060 = vmatpush1.bf16.xpose.msra.mxu0 %v1032
        %1061 = vmatprep.subr.bf16.mxu0 0
        %1062 = vmatpush1.bf16.xpose.msra.mxu0 %v1029
        %1063 = vmatprep.subr.bf16.mxu0 0
        %1064 = vmatpush1.bf16.xpose.msra.mxu0 %v1026
        %1065 = vmatprep.subr.bf16.mxu0 0
        %1066 = vmatpush2.bf16.xpose.msra.mxu0 0
        %1067 = vmatprep.subr.bf16.mxu0 0
        %1068 = vmatpush2.bf16.xpose.msra.mxu0 0
        %1069 = vmatprep.subr.bf16.mxu0 0
        %1070 = vmatpush2.bf16.xpose.msra.mxu0 0
        %1071 = vmatprep.subr.bf16.mxu0 0
        %1072 = vmatpush2.bf16.xpose.msra.mxu0 0
        %1073 = vmatprep.subr.bf16.mxu0 0
        %1074 = vmatpush2.bf16.xpose.msra.mxu0 0
        %1075 = vmatprep.subr.bf16.mxu0 0
        %1076 = vmatpush2.bf16.xpose.msra.mxu0 0
        %1077 = vmatprep.subr.bf16.mxu0 0
        %1078 = vmatpush2.bf16.xpose.msra.mxu0 0
        %1079 = vmatprep.subr.bf16.mxu0 0
        %1080 = vmatpush2.bf16.xpose.msra.mxu0 0
        %1081 = vmatprep.mubr.bf16.mxu0 0
        %1082 = vmatmul.mubr.bf16.gmra.mxu0 %v1002
        %v1083 = vpop.f32.mrf.mxu0
        %v1084 = vadd.f32 0.0, %v1083
        %v1085 = vpop.f32.mrf.mxu0
        %v1086 = vpop.f32.mrf.mxu0
        %v1087 = vadd.f32 0.0, %v1086
        %v1088 = vpop.f32.mrf.mxu0
        %1089 = vmatprep.mubr.bf16.mxu0 0
        %1090 = vmatmul.mubr.bf16.gmra.mxu0 %v1005
        %v1091 = vpop.f32.mrf.mxu0
        %v1092 = vadd.f32 0.0, %v1091
        %v1093 = vpop.f32.mrf.mxu0
        %v1094 = vpop.f32.mrf.mxu0
        %v1095 = vadd.f32 0.0, %v1094
        %v1096 = vpop.f32.mrf.mxu0
        %1097 = vmatprep.mubr.bf16.mxu0 0
        %1098 = vmatmul.mubr.bf16.gmra.mxu0 %v1008
        %v1099 = vpop.f32.mrf.mxu0
        %v1100 = vadd.f32 0.0, %v1099
        %v1101 = vpop.f32.mrf.mxu0
        %v1102 = vpop.f32.mrf.mxu0
        %v1103 = vadd.f32 0.0, %v1102
        %v1104 = vpop.f32.mrf.mxu0
        %1105 = vmatprep.mubr.bf16.mxu0 0
        %1106 = vmatmul.mubr.bf16.gmra.mxu0 %v1011
        %v1107 = vpop.f32.mrf.mxu0
        %v1108 = vadd.f32 0.0, %v1107
        %v1109 = vpop.f32.mrf.mxu0
        %v1110 = vpop.f32.mrf.mxu0
        %v1111 = vadd.f32 0.0, %v1110
        %v1112 = vpop.f32.mrf.mxu0
        %1113 = vmatprep.mubr.bf16.mxu0 0
        %1114 = vmatmul.mubr.bf16.gmra.mxu0 %v1014
        %v1115 = vpop.f32.mrf.mxu0
        %v1116 = vadd.f32 0.0, %v1115
        %v1117 = vpop.f32.mrf.mxu0
        %v1118 = vpop.f32.mrf.mxu0
        %v1119 = vadd.f32 0.0, %v1118
        %v1120 = vpop.f32.mrf.mxu0
        %1121 = vmatprep.mubr.bf16.mxu0 0
        %1122 = vmatmul.mubr.bf16.gmra.mxu0 %v1017
        %v1123 = vpop.f32.mrf.mxu0
        %v1124 = vadd.f32 0.0, %v1123
        %v1125 = vpop.f32.mrf.mxu0
        %v1126 = vpop.f32.mrf.mxu0
        %v1127 = vadd.f32 0.0, %v1126
        %v1128 = vpop.f32.mrf.mxu0
        %1129 = vmatprep.mubr.bf16.mxu0 0
        %1130 = vmatmul.mubr.bf16.gmra.mxu0 %v1020
        %v1131 = vpop.f32.mrf.mxu0
        %v1132 = vadd.f32 0.0, %v1131
        %v1133 = vpop.f32.mrf.mxu0
        %v1134 = vpop.f32.mrf.mxu0
        %v1135 = vadd.f32 0.0, %v1134
        %v1136 = vpop.f32.mrf.mxu0
        %1137 = vmatprep.mubr.bf16.mxu0 0
        %1138 = vmatmul.mubr.bf16.gmra.mxu0 %v1023
        %v1139 = vpop.f32.mrf.mxu0
        %v1140 = vadd.f32 0.0, %v1139
        %v1141 = vpop.f32.mrf.mxu0
        %v1142 = vpop.f32.mrf.mxu0
        %v1143 = vadd.f32 0.0, %v1142
        %v1144 = vpop.f32.mrf.mxu0
        %1145 = vdwg.mxu0
        %1146 = vmax.xlane.f32.xlu0 %v1084
        %v1147 = vpop.xlane.xlu0 %1146
        %1148 = vmax.xlane.f32.xlu0 %v1087
        %v1149 = vpop.xlane.xlu0 %1148
        %1150 = vmax.xlane.f32.xlu0 %v1092
        %v1151 = vpop.xlane.xlu0 %1150
        %1152 = vmax.xlane.f32.xlu0 %v1095
        %v1153 = vpop.xlane.xlu0 %1152
        %1154 = vmax.xlane.f32.xlu0 %v1100
        %v1155 = vpop.xlane.xlu0 %1154
        %1156 = vmax.xlane.f32.xlu0 %v1103
        %v1157 = vpop.xlane.xlu0 %1156
        %1158 = vmax.xlane.f32.xlu0 %v1108
        %v1159 = vpop.xlane.xlu0 %1158
        %1160 = vmax.xlane.f32.xlu0 %v1111
        %v1161 = vpop.xlane.xlu0 %1160
        %1162 = vmax.xlane.f32.xlu0 %v1116
        %v1163 = vpop.xlane.xlu0 %1162
        %1164 = vmax.xlane.f32.xlu0 %v1119
        %v1165 = vpop.xlane.xlu0 %1164
        %1166 = vmax.xlane.f32.xlu0 %v1124
        %v1167 = vpop.xlane.xlu0 %1166
        %1168 = vmax.xlane.f32.xlu0 %v1127
        %v1169 = vpop.xlane.xlu0 %1168
        %1170 = vmax.xlane.f32.xlu0 %v1132
        %v1171 = vpop.xlane.xlu0 %1170
        %1172 = vmax.xlane.f32.xlu0 %v1135
        %v1173 = vpop.xlane.xlu0 %1172
        %1174 = vmax.xlane.f32.xlu0 %v1140
        %v1175 = vpop.xlane.xlu0 %1174
        %1176 = vmax.xlane.f32.xlu0 %v1143
        %v1177 = vpop.xlane.xlu0 %1176
        %v1178 = vsub.f32 %v1084, %v1147
        %v1179 = vsub.f32 %v1087, %v1149
        %v1180 = vsub.f32 %v1092, %v1151
        %v1181 = vsub.f32 %v1095, %v1153
        %v1182 = vsub.f32 %v1100, %v1155
        %v1183 = vsub.f32 %v1103, %v1157
        %v1184 = vsub.f32 %v1108, %v1159
        %v1185 = vsub.f32 %v1111, %v1161
        %v1186 = vsub.f32 %v1116, %v1163
        %v1187 = vsub.f32 %v1119, %v1165
        %v1188 = vsub.f32 %v1124, %v1167
        %v1189 = vsub.f32 %v1127, %v1169
        %v1190 = vsub.f32 %v1132, %v1171
        %v1191 = vsub.f32 %v1135, %v1173
        %v1192 = vsub.f32 %v1140, %v1175
        %v1193 = vsub.f32 %v1143, %v1177
        %v1194 = vmul.f32 %v1178, 1.442695
        %v1195 = vpow.pop %v1194
        %v1196 = vmul.f32 %v1179, 1.442695
        %v1197 = vpow.pop %v1196
        %v1198 = vmul.f32 %v1180, 1.442695
        %v1199 = vpow.pop %v1198
        %v1200 = vmul.f32 %v1181, 1.442695
        %v1201 = vpow.pop %v1200
        %v1202 = vmul.f32 %v1182, 1.442695
        %v1203 = vpow.pop %v1202
        %v1204 = vmul.f32 %v1183, 1.442695
        %v1205 = vpow.pop %v1204
        %v1206 = vmul.f32 %v1184, 1.442695
        %v1207 = vpow.pop %v1206
        %v1208 = vmul.f32 %v1185, 1.442695
        %v1209 = vpow.pop %v1208
        %v1210 = vmul.f32 %v1186, 1.442695
        %v1211 = vpow.pop %v1210
        %v1212 = vmul.f32 %v1187, 1.442695
        %v1213 = vpow.pop %v1212
        %v1214 = vmul.f32 %v1188, 1.442695
        %v1215 = vpow.pop %v1214
        %v1216 = vmul.f32 %v1189, 1.442695
        %v1217 = vpow.pop %v1216
        %v1218 = vmul.f32 %v1190, 1.442695
        %v1219 = vpow.pop %v1218
        %v1220 = vmul.f32 %v1191, 1.442695
        %v1221 = vpow.pop %v1220
        %v1222 = vmul.f32 %v1192, 1.442695
        %v1223 = vpow.pop %v1222
        %v1224 = vmul.f32 %v1193, 1.442695
        %v1225 = vpow.pop %v1224
        %1226 = vadd.xlane.f32.xlu0 %v1195
        %v1227 = vpop.xlane.xlu0 %1226
        %1228 = vadd.xlane.f32.xlu0 %v1197
        %v1229 = vpop.xlane.xlu0 %1228
        %1230 = vadd.xlane.f32.xlu0 %v1199
        %v1231 = vpop.xlane.xlu0 %1230
        %1232 = vadd.xlane.f32.xlu0 %v1201
        %v1233 = vpop.xlane.xlu0 %1232
        %1234 = vadd.xlane.f32.xlu0 %v1203
        %v1235 = vpop.xlane.xlu0 %1234
        %1236 = vadd.xlane.f32.xlu0 %v1205
        %v1237 = vpop.xlane.xlu0 %1236
        %1238 = vadd.xlane.f32.xlu0 %v1207
        %v1239 = vpop.xlane.xlu0 %1238
        %1240 = vadd.xlane.f32.xlu0 %v1209
        %v1241 = vpop.xlane.xlu0 %1240
        %1242 = vadd.xlane.f32.xlu0 %v1211
        %v1243 = vpop.xlane.xlu0 %1242
        %1244 = vadd.xlane.f32.xlu0 %v1213
        %v1245 = vpop.xlane.xlu0 %1244
        %1246 = vadd.xlane.f32.xlu0 %v1215
        %v1247 = vpop.xlane.xlu0 %1246
        %1248 = vadd.xlane.f32.xlu0 %v1217
        %v1249 = vpop.xlane.xlu0 %1248
        %1250 = vadd.xlane.f32.xlu0 %v1219
        %v1251 = vpop.xlane.xlu0 %1250
        %1252 = vadd.xlane.f32.xlu0 %v1221
        %v1253 = vpop.xlane.xlu0 %1252
        %1254 = vadd.xlane.f32.xlu0 %v1223
        %v1255 = vpop.xlane.xlu0 %1254
        %1256 = vadd.xlane.f32.xlu0 %v1225
        %v1257 = vpop.xlane.xlu0 %1256
        %v1258 = vpack.c.bf16 %v1197, %v1195
        %v1259 = vpack.c.bf16 %v1201, %v1199
        %v1260 = vpack.c.bf16 %v1205, %v1203
        %v1261 = vpack.c.bf16 %v1209, %v1207
        %v1262 = vpack.c.bf16 %v1213, %v1211
        %v1263 = vpack.c.bf16 %v1217, %v1215
        %v1264 = vpack.c.bf16 %v1221, %v1219
        %v1265 = vpack.c.bf16 %v1225, %v1223
        %v1282 = vunpack.c.l.b16 %v904
        %v1283 = vunpack.c.l.b16 %v905
        %v1284 = vunpack.c.l.b16 %v906
        %v1285 = vunpack.c.l.b16 %v907
        %v1286 = vunpack.c.l.b16 %v908
        %v1287 = vunpack.c.l.b16 %v909
        %v1288 = vunpack.c.l.b16 %v910
        %v1289 = vunpack.c.l.b16 %v911
        %v1290 = vunpack.c.l.b16 %v912
        %v1291 = vunpack.c.l.b16 %v913
        %v1292 = vunpack.c.l.b16 %v914
        %v1293 = vunpack.c.l.b16 %v915
        %v1294 = vunpack.c.l.b16 %v916
        %v1295 = vunpack.c.l.b16 %v917
        %v1296 = vunpack.c.l.b16 %v918
        %v1297 = vunpack.c.l.b16 %v919
        %v1298 = vpack.c.b16 %v1283, %v1282
        %v1299 = vpack.c.b16 %v1285, %v1284
        %v1300 = vpack.c.b16 %v1287, %v1286
        %v1301 = vpack.c.b16 %v1289, %v1288
        %v1302 = vpack.c.b16 %v1291, %v1290
        %v1303 = vpack.c.b16 %v1293, %v1292
        %v1304 = vpack.c.b16 %v1295, %v1294
        %v1305 = vpack.c.b16 %v1297, %v1296
        %1314 = vmatprep.subr.bf16.mxu0 0
        %1315 = vmatpush1.bf16.msra.mxu0 %v1305
        %1316 = vmatprep.subr.bf16.mxu0 0
        %1317 = vmatpush1.bf16.msra.mxu0 %v1304
        %1318 = vmatprep.subr.bf16.mxu0 0
        %1319 = vmatpush1.bf16.msra.mxu0 %v1303
        %1320 = vmatprep.subr.bf16.mxu0 0
        %1321 = vmatpush1.bf16.msra.mxu0 %v1302
        %1322 = vmatprep.subr.bf16.mxu0 0
        %1323 = vmatpush1.bf16.msra.mxu0 %v1301
        %1324 = vmatprep.subr.bf16.mxu0 0
        %1325 = vmatpush1.bf16.msra.mxu0 %v1300
        %1326 = vmatprep.subr.bf16.mxu0 0
        %1327 = vmatpush1.bf16.msra.mxu0 %v1299
        %1328 = vmatprep.subr.bf16.mxu0 0
        %1329 = vmatpush1.bf16.msra.mxu0 %v1298
        %1330 = vmatprep.subr.bf16.mxu0 0
        %1331 = vmatpush2.bf16.msra.mxu0 0
        %1332 = vmatprep.subr.bf16.mxu0 0
        %1333 = vmatpush2.bf16.msra.mxu0 0
        %1334 = vmatprep.subr.bf16.mxu0 0
        %1335 = vmatpush2.bf16.msra.mxu0 0
        %1336 = vmatprep.subr.bf16.mxu0 0
        %1337 = vmatpush2.bf16.msra.mxu0 0
        %1338 = vmatprep.subr.bf16.mxu0 0
        %1339 = vmatpush2.bf16.msra.mxu0 0
        %1340 = vmatprep.subr.bf16.mxu0 0
        %1341 = vmatpush2.bf16.msra.mxu0 0
        %1342 = vmatprep.subr.bf16.mxu0 0
        %1343 = vmatpush2.bf16.msra.mxu0 0
        %1344 = vmatprep.subr.bf16.mxu0 0
        %1345 = vmatpush2.bf16.msra.mxu0 0
        %1346 = vmatprep.mubr.bf16.mxu0 0
        %1347 = vmatmul.mubr.bf16.gmra.mxu0 %v1258
        %v1348 = vpop.f32.mrf.mxu0
        %v1349 = vadd.f32 0.0, %v1348
        %v1350 = vpop.f32.mrf.mxu0
        %v1351 = vpop.f32.mrf.mxu0
        %v1352 = vadd.f32 0.0, %v1351
        %v1353 = vpop.f32.mrf.mxu0
        %1354 = vmatprep.mubr.bf16.mxu0 0
        %1355 = vmatmul.mubr.bf16.gmra.mxu0 %v1259
        %v1356 = vpop.f32.mrf.mxu0
        %v1357 = vadd.f32 0.0, %v1356
        %v1358 = vpop.f32.mrf.mxu0
        %v1359 = vpop.f32.mrf.mxu0
        %v1360 = vadd.f32 0.0, %v1359
        %v1361 = vpop.f32.mrf.mxu0
        %1362 = vmatprep.mubr.bf16.mxu0 0
        %1363 = vmatmul.mubr.bf16.gmra.mxu0 %v1260
        %v1364 = vpop.f32.mrf.mxu0
        %v1365 = vadd.f32 0.0, %v1364
        %v1366 = vpop.f32.mrf.mxu0
        %v1367 = vpop.f32.mrf.mxu0
        %v1368 = vadd.f32 0.0, %v1367
        %v1369 = vpop.f32.mrf.mxu0
        %1370 = vmatprep.mubr.bf16.mxu0 0
        %1371 = vmatmul.mubr.bf16.gmra.mxu0 %v1261
        %v1372 = vpop.f32.mrf.mxu0
        %v1373 = vadd.f32 0.0, %v1372
        %v1374 = vpop.f32.mrf.mxu0
        %v1375 = vpop.f32.mrf.mxu0
        %v1376 = vadd.f32 0.0, %v1375
        %v1377 = vpop.f32.mrf.mxu0
        %1378 = vmatprep.mubr.bf16.mxu0 0
        %1379 = vmatmul.mubr.bf16.gmra.mxu0 %v1262
        %v1380 = vpop.f32.mrf.mxu0
        %v1381 = vadd.f32 0.0, %v1380
        %v1382 = vpop.f32.mrf.mxu0
        %v1383 = vpop.f32.mrf.mxu0
        %v1384 = vadd.f32 0.0, %v1383
        %v1385 = vpop.f32.mrf.mxu0
        %1386 = vmatprep.mubr.bf16.mxu0 0
        %1387 = vmatmul.mubr.bf16.gmra.mxu0 %v1263
        %v1388 = vpop.f32.mrf.mxu0
        %v1389 = vadd.f32 0.0, %v1388
        %v1390 = vpop.f32.mrf.mxu0
        %v1391 = vpop.f32.mrf.mxu0
        %v1392 = vadd.f32 0.0, %v1391
        %v1393 = vpop.f32.mrf.mxu0
        %1394 = vmatprep.mubr.bf16.mxu0 0
        %1395 = vmatmul.mubr.bf16.gmra.mxu0 %v1264
        %v1396 = vpop.f32.mrf.mxu0
        %v1397 = vadd.f32 0.0, %v1396
        %v1398 = vpop.f32.mrf.mxu0
        %v1399 = vpop.f32.mrf.mxu0
        %v1400 = vadd.f32 0.0, %v1399
        %v1401 = vpop.f32.mrf.mxu0
        %1402 = vmatprep.mubr.bf16.mxu0 0
        %1403 = vmatmul.mubr.bf16.gmra.mxu0 %v1265
        %v1404 = vpop.f32.mrf.mxu0
        %v1405 = vadd.f32 0.0, %v1404
        %v1406 = vpop.f32.mrf.mxu0
        %v1407 = vpop.f32.mrf.mxu0
        %v1408 = vadd.f32 0.0, %v1407
        %v1409 = vpop.f32.mrf.mxu0
        %1410 = vdwg.mxu0
        %v1411 = vrcp.pop %v1227
        %v1412 = vrcp.pop %v1229
        %v1413 = vrcp.pop %v1231
        %v1414 = vrcp.pop %v1233
        %v1415 = vrcp.pop %v1235
        %v1416 = vrcp.pop %v1237
        %v1417 = vrcp.pop %v1239
        %v1418 = vrcp.pop %v1241
        %v1419 = vrcp.pop %v1243
        %v1420 = vrcp.pop %v1245
        %v1421 = vrcp.pop %v1247
        %v1422 = vrcp.pop %v1249
        %v1423 = vrcp.pop %v1251
        %v1424 = vrcp.pop %v1253
        %v1425 = vrcp.pop %v1255
        %v1426 = vrcp.pop %v1257
        %v1427 = vmul.f32 %v1349, %v1411
        %v1428 = vmul.f32 %v1352, %v1412
        %v1429 = vmul.f32 %v1357, %v1413
        %v1430 = vmul.f32 %v1360, %v1414
        %v1431 = vmul.f32 %v1365, %v1415
        %v1432 = vmul.f32 %v1368, %v1416
        %v1433 = vmul.f32 %v1373, %v1417
        %v1434 = vmul.f32 %v1376, %v1418
        %v1435 = vmul.f32 %v1381, %v1419
        %v1436 = vmul.f32 %v1384, %v1420
        %v1437 = vmul.f32 %v1389, %v1421
        %v1438 = vmul.f32 %v1392, %v1422
        %v1439 = vmul.f32 %v1397, %v1423
        %v1440 = vmul.f32 %v1400, %v1424
        %v1441 = vmul.f32 %v1405, %v1425
        %v1442 = vmul.f32 %v1408, %v1426
        %v1443 = vpack.c.bf16 %v1428, %v1427
        %v1444 = vpack.c.bf16 %v1430, %v1429
        %v1445 = vpack.c.bf16 %v1432, %v1431
        %v1446 = vpack.c.bf16 %v1434, %v1433
        %v1447 = vpack.c.bf16 %v1436, %v1435
        %v1448 = vpack.c.bf16 %v1438, %v1437
        %v1449 = vpack.c.bf16 %v1440, %v1439
        %v1450 = vpack.c.bf16 %v1442, %v1441
        %v1459 = vunpack.c.l.b16 %v1443
        %v1460 = vunpack.c.h.b16 %v1443
        %v1461 = vunpack.c.l.b16 %v1444
        %v1462 = vunpack.c.h.b16 %v1444
        %v1463 = vunpack.c.l.b16 %v1445
        %v1464 = vunpack.c.h.b16 %v1445
        %v1465 = vunpack.c.l.b16 %v1446
        %v1466 = vunpack.c.h.b16 %v1446
        %v1467 = vunpack.c.l.b16 %v1447
        %v1468 = vunpack.c.h.b16 %v1447
        %v1469 = vunpack.c.l.b16 %v1448
        %v1470 = vunpack.c.h.b16 %v1448
        %v1471 = vunpack.c.l.b16 %v1449
        %v1472 = vunpack.c.h.b16 %v1449
        %v1473 = vunpack.c.l.b16 %v1450
        %v1474 = vunpack.c.h.b16 %v1450
        %v1475 = vpack.c.b16 %v1459, %v1459
        %v1476 = vpack.c.b16 %v1460, %v1460
        %v1477 = vpack.c.b16 %v1461, %v1461
        %v1478 = vpack.c.b16 %v1462, %v1462
        %v1479 = vpack.c.b16 %v1463, %v1463
        %v1480 = vpack.c.b16 %v1464, %v1464
        %v1481 = vpack.c.b16 %v1465, %v1465
        %v1482 = vpack.c.b16 %v1466, %v1466
        %v1483 = vpack.c.b16 %v1467, %v1467
        %v1484 = vpack.c.b16 %v1468, %v1468
        %v1485 = vpack.c.b16 %v1469, %v1469
        %v1486 = vpack.c.b16 %v1470, %v1470
        %v1487 = vpack.c.b16 %v1471, %v1471
        %v1488 = vpack.c.b16 %v1472, %v1472
        %v1489 = vpack.c.b16 %v1473, %v1473
        %v1490 = vpack.c.b16 %v1474, %v1474
        %vm1507 = vcmask 125952
        %1508 = vst.msk [vmem:[#allocation3] sm:$0xf] %vm1507, %v1475
        %1509 = vst.msk [vmem:[#allocation3 + $0x4] sm:$0xf] %vm1507, %v1476
        %1510 = vst.msk [vmem:[#allocation3 + $0x8] sm:$0xf] %vm1507, %v1477
        %1511 = vst.msk [vmem:[#allocation3 + $0xc] sm:$0xf] %vm1507, %v1478
        %1512 = vst.msk [vmem:[#allocation3 + $0x10] sm:$0xf] %vm1507, %v1479
        %1513 = vst.msk [vmem:[#allocation3 + $0x14] sm:$0xf] %vm1507, %v1480
        %1514 = vst.msk [vmem:[#allocation3 + $0x18] sm:$0xf] %vm1507, %v1481
        %1515 = vst.msk [vmem:[#allocation3 + $0x1c] sm:$0xf] %vm1507, %v1482
        %1516 = vst.msk [vmem:[#allocation3 + $0x20] sm:$0xf] %vm1507, %v1483
        %1517 = vst.msk [vmem:[#allocation3 + $0x24] sm:$0xf] %vm1507, %v1484
        %1518 = vst.msk [vmem:[#allocation3 + $0x28] sm:$0xf] %vm1507, %v1485
        %1519 = vst.msk [vmem:[#allocation3 + $0x2c] sm:$0xf] %vm1507, %v1486
        %1520 = vst.msk [vmem:[#allocation3 + $0x30] sm:$0xf] %vm1507, %v1487
        %1521 = vst.msk [vmem:[#allocation3 + $0x34] sm:$0xf] %vm1507, %v1488
        %1522 = vst.msk [vmem:[#allocation3 + $0x38] sm:$0xf] %vm1507, %v1489
        %1523 = vst.msk [vmem:[#allocation3 + $0x3c] sm:$0xf] %vm1507, %v1490
        %v1524 = vld [vmem:[#allocation2] sm:$0xf]
        %v1525 = vld [vmem:[#allocation2 + $0xc] sm:$0xf]
        %v1526 = vld [vmem:[#allocation2 + $0x18] sm:$0xf]
        %v1527 = vld [vmem:[#allocation2 + $0x24] sm:$0xf]
        %v1528 = vld [vmem:[#allocation2 + $0x30] sm:$0xf]
        %v1529 = vld [vmem:[#allocation2 + $0x3c] sm:$0xf]
        %v1530 = vld [vmem:[#allocation2 + $0x48] sm:$0xf]
        %v1531 = vld [vmem:[#allocation2 + $0x54] sm:$0xf]
        %v1532 = vld [vmem:[#allocation2 + $0x60] sm:$0xf]
        %v1533 = vld [vmem:[#allocation2 + $0x6c] sm:$0xf]
        %v1534 = vld [vmem:[#allocation2 + $0x78] sm:$0xf]
        %v1535 = vld [vmem:[#allocation2 + $0x84] sm:$0xf]
        %v1536 = vld [vmem:[#allocation2 + $0x90] sm:$0xf]
        %v1537 = vld [vmem:[#allocation2 + $0x9c] sm:$0xf]
        %v1538 = vld [vmem:[#allocation2 + $0xa8] sm:$0xf]
        %v1539 = vld [vmem:[#allocation2 + $0xb4] sm:$0xf]
        %v1540 = vld [vmem:[#allocation2 + $0x4] sm:$0xf]
        %v1541 = vld [vmem:[#allocation2 + $0x10] sm:$0xf]
        %v1542 = vld [vmem:[#allocation2 + $0x1c] sm:$0xf]
        %v1543 = vld [vmem:[#allocation2 + $0x28] sm:$0xf]
        %v1544 = vld [vmem:[#allocation2 + $0x34] sm:$0xf]
        %v1545 = vld [vmem:[#allocation2 + $0x40] sm:$0xf]
        %v1546 = vld [vmem:[#allocation2 + $0x4c] sm:$0xf]
        %v1547 = vld [vmem:[#allocation2 + $0x58] sm:$0xf]
        %v1548 = vld [vmem:[#allocation2 + $0x64] sm:$0xf]
        %v1549 = vld [vmem:[#allocation2 + $0x70] sm:$0xf]
        %v1550 = vld [vmem:[#allocation2 + $0x7c] sm:$0xf]
        %v1551 = vld [vmem:[#allocation2 + $0x88] sm:$0xf]
        %v1552 = vld [vmem:[#allocation2 + $0x94] sm:$0xf]
        %v1553 = vld [vmem:[#allocation2 + $0xa0] sm:$0xf]
        %v1554 = vld [vmem:[#allocation2 + $0xac] sm:$0xf]
        %v1555 = vld [vmem:[#allocation2 + $0xb8] sm:$0xf]
        %v1556 = vld [vmem:[#allocation2 + $0x8] sm:$0xf]
        %v1557 = vld [vmem:[#allocation2 + $0x14] sm:$0xf]
        %v1558 = vld [vmem:[#allocation2 + $0x20] sm:$0xf]
        %v1559 = vld [vmem:[#allocation2 + $0x2c] sm:$0xf]
        %v1560 = vld [vmem:[#allocation2 + $0x38] sm:$0xf]
        %v1561 = vld [vmem:[#allocation2 + $0x44] sm:$0xf]
        %v1562 = vld [vmem:[#allocation2 + $0x50] sm:$0xf]
        %v1563 = vld [vmem:[#allocation2 + $0x5c] sm:$0xf]
        %v1564 = vld [vmem:[#allocation2 + $0x68] sm:$0xf]
        %v1565 = vld [vmem:[#allocation2 + $0x74] sm:$0xf]
        %v1566 = vld [vmem:[#allocation2 + $0x80] sm:$0xf]
        %v1567 = vld [vmem:[#allocation2 + $0x8c] sm:$0xf]
        %v1568 = vld [vmem:[#allocation2 + $0x98] sm:$0xf]
        %v1569 = vld [vmem:[#allocation2 + $0xa4] sm:$0xf]
        %v1570 = vld [vmem:[#allocation2 + $0xb0] sm:$0xf]
        %v1571 = vld [vmem:[#allocation2 + $0xbc] sm:$0xf]
        %v1588 = vunpack.c.l.b16 %v1524
        %v1589 = vunpack.c.l.b16 %v1525
        %v1590 = vunpack.c.l.b16 %v1526
        %v1591 = vunpack.c.l.b16 %v1527
        %v1592 = vunpack.c.l.b16 %v1528
        %v1593 = vunpack.c.l.b16 %v1529
        %v1594 = vunpack.c.l.b16 %v1530
        %v1595 = vunpack.c.l.b16 %v1531
        %v1596 = vunpack.c.l.b16 %v1532
        %v1597 = vunpack.c.l.b16 %v1533
        %v1598 = vunpack.c.l.b16 %v1534
        %v1599 = vunpack.c.l.b16 %v1535
        %v1600 = vunpack.c.l.b16 %v1536
        %v1601 = vunpack.c.l.b16 %v1537
        %v1602 = vunpack.c.l.b16 %v1538
        %v1603 = vunpack.c.l.b16 %v1539
        %v1604 = vpack.c.b16 %v1589, %v1588
        %v1605 = vpack.c.b16 %v1591, %v1590
        %v1606 = vpack.c.b16 %v1593, %v1592
        %v1607 = vpack.c.b16 %v1595, %v1594
        %v1608 = vpack.c.b16 %v1597, %v1596
        %v1609 = vpack.c.b16 %v1599, %v1598
        %v1610 = vpack.c.b16 %v1601, %v1600
        %v1611 = vpack.c.b16 %v1603, %v1602
        %1612 = vrot.lane.b32.xlu0 %v1604, 112
        %v1613 = vpop.permute.xlu0 %1612
        %1614 = vrot.lane.b32.xlu0 %v1605, 112
        %v1615 = vpop.permute.xlu0 %1614
        %1616 = vrot.lane.b32.xlu0 %v1606, 112
        %v1617 = vpop.permute.xlu0 %1616
        %1618 = vrot.lane.b32.xlu0 %v1607, 112
        %v1619 = vpop.permute.xlu0 %1618
        %1620 = vrot.lane.b32.xlu0 %v1608, 112
        %v1621 = vpop.permute.xlu0 %1620
        %1622 = vrot.lane.b32.xlu0 %v1609, 112
        %v1623 = vpop.permute.xlu0 %1622
        %1624 = vrot.lane.b32.xlu0 %v1610, 112
        %v1625 = vpop.permute.xlu0 %1624
        %1626 = vrot.lane.b32.xlu0 %v1611, 112
        %v1627 = vpop.permute.xlu0 %1626
        %v1644 = vunpack.c.l.b16 %v1540
        %v1645 = vunpack.c.l.b16 %v1541
        %v1646 = vunpack.c.l.b16 %v1542
        %v1647 = vunpack.c.l.b16 %v1543
        %v1648 = vunpack.c.l.b16 %v1544
        %v1649 = vunpack.c.l.b16 %v1545
        %v1650 = vunpack.c.l.b16 %v1546
        %v1651 = vunpack.c.l.b16 %v1547
        %v1652 = vunpack.c.l.b16 %v1548
        %v1653 = vunpack.c.l.b16 %v1549
        %v1654 = vunpack.c.l.b16 %v1550
        %v1655 = vunpack.c.l.b16 %v1551
        %v1656 = vunpack.c.l.b16 %v1552
        %v1657 = vunpack.c.l.b16 %v1553
        %v1658 = vunpack.c.l.b16 %v1554
        %v1659 = vunpack.c.l.b16 %v1555
        %v1660 = vpack.c.b16 %v1645, %v1644
        %v1661 = vpack.c.b16 %v1647, %v1646
        %v1662 = vpack.c.b16 %v1649, %v1648
        %v1663 = vpack.c.b16 %v1651, %v1650
        %v1664 = vpack.c.b16 %v1653, %v1652
        %v1665 = vpack.c.b16 %v1655, %v1654
        %v1666 = vpack.c.b16 %v1657, %v1656
        %v1667 = vpack.c.b16 %v1659, %v1658
        %1668 = vrot.lane.b32.xlu0 %v1660, 112
        %v1669 = vpop.permute.xlu0 %1668
        %1670 = vrot.lane.b32.xlu0 %v1661, 112
        %v1671 = vpop.permute.xlu0 %1670
        %1672 = vrot.lane.b32.xlu0 %v1662, 112
        %v1673 = vpop.permute.xlu0 %1672
        %1674 = vrot.lane.b32.xlu0 %v1663, 112
        %v1675 = vpop.permute.xlu0 %1674
        %1676 = vrot.lane.b32.xlu0 %v1664, 112
        %v1677 = vpop.permute.xlu0 %1676
        %1678 = vrot.lane.b32.xlu0 %v1665, 112
        %v1679 = vpop.permute.xlu0 %1678
        %1680 = vrot.lane.b32.xlu0 %v1666, 112
        %v1681 = vpop.permute.xlu0 %1680
        %1682 = vrot.lane.b32.xlu0 %v1667, 112
        %v1683 = vpop.permute.xlu0 %1682
        %v1685 = vsel %vm1000, %v1613, 0
        %v1688 = vsel %vm1000, %v1615, 0
        %v1691 = vsel %vm1000, %v1617, 0
        %v1694 = vsel %vm1000, %v1619, 0
        %v1697 = vsel %vm1000, %v1621, 0
        %v1700 = vsel %vm1000, %v1623, 0
        %v1703 = vsel %vm1000, %v1625, 0
        %v1706 = vsel %vm1000, %v1627, 0
        %v1709 = vsel %vm1000, %v1669, 0
        %v1712 = vsel %vm1000, %v1671, 0
        %v1715 = vsel %vm1000, %v1673, 0
        %v1718 = vsel %vm1000, %v1675, 0
        %v1721 = vsel %vm1000, %v1677, 0
        %v1724 = vsel %vm1000, %v1679, 0
        %v1727 = vsel %vm1000, %v1681, 0
        %v1730 = vsel %vm1000, %v1683, 0
        %1732 = vmatprep.subr.bf16.mxu0 0
        %1733 = vmatpush1.bf16.xpose.msra.mxu0 %v1730
        %1734 = vmatprep.subr.bf16.mxu0 0
        %1735 = vmatpush1.bf16.xpose.msra.mxu0 %v1727
        %1736 = vmatprep.subr.bf16.mxu0 0
        %1737 = vmatpush1.bf16.xpose.msra.mxu0 %v1724
        %1738 = vmatprep.subr.bf16.mxu0 0
        %1739 = vmatpush1.bf16.xpose.msra.mxu0 %v1721
        %1740 = vmatprep.subr.bf16.mxu0 0
        %1741 = vmatpush1.bf16.xpose.msra.mxu0 %v1718
        %1742 = vmatprep.subr.bf16.mxu0 0
        %1743 = vmatpush1.bf16.xpose.msra.mxu0 %v1715
        %1744 = vmatprep.subr.bf16.mxu0 0
        %1745 = vmatpush1.bf16.xpose.msra.mxu0 %v1712
        %1746 = vmatprep.subr.bf16.mxu0 0
        %1747 = vmatpush1.bf16.xpose.msra.mxu0 %v1709
        %1748 = vmatprep.subr.bf16.mxu0 0
        %1749 = vmatpush2.bf16.xpose.msra.mxu0 0
        %1750 = vmatprep.subr.bf16.mxu0 0
        %1751 = vmatpush2.bf16.xpose.msra.mxu0 0
        %1752 = vmatprep.subr.bf16.mxu0 0
        %1753 = vmatpush2.bf16.xpose.msra.mxu0 0
        %1754 = vmatprep.subr.bf16.mxu0 0
        %1755 = vmatpush2.bf16.xpose.msra.mxu0 0
        %1756 = vmatprep.subr.bf16.mxu0 0
        %1757 = vmatpush2.bf16.xpose.msra.mxu0 0
        %1758 = vmatprep.subr.bf16.mxu0 0
        %1759 = vmatpush2.bf16.xpose.msra.mxu0 0
        %1760 = vmatprep.subr.bf16.mxu0 0
        %1761 = vmatpush2.bf16.xpose.msra.mxu0 0
        %1762 = vmatprep.subr.bf16.mxu0 0
        %1763 = vmatpush2.bf16.xpose.msra.mxu0 0
        %1764 = vmatprep.mubr.bf16.mxu0 0
        %1765 = vmatmul.mubr.bf16.gmra.mxu0 %v1685
        %v1766 = vpop.f32.mrf.mxu0
        %v1767 = vadd.f32 0.0, %v1766
        %v1768 = vpop.f32.mrf.mxu0
        %v1769 = vpop.f32.mrf.mxu0
        %v1770 = vadd.f32 0.0, %v1769
        %v1771 = vpop.f32.mrf.mxu0
        %1772 = vmatprep.mubr.bf16.mxu0 0
        %1773 = vmatmul.mubr.bf16.gmra.mxu0 %v1688
        %v1774 = vpop.f32.mrf.mxu0
        %v1775 = vadd.f32 0.0, %v1774
        %v1776 = vpop.f32.mrf.mxu0
        %v1777 = vpop.f32.mrf.mxu0
        %v1778 = vadd.f32 0.0, %v1777
        %v1779 = vpop.f32.mrf.mxu0
        %1780 = vmatprep.mubr.bf16.mxu0 0
        %1781 = vmatmul.mubr.bf16.gmra.mxu0 %v1691
        %v1782 = vpop.f32.mrf.mxu0
        %v1783 = vadd.f32 0.0, %v1782
        %v1784 = vpop.f32.mrf.mxu0
        %v1785 = vpop.f32.mrf.mxu0
        %v1786 = vadd.f32 0.0, %v1785
        %v1787 = vpop.f32.mrf.mxu0
        %1788 = vmatprep.mubr.bf16.mxu0 0
        %1789 = vmatmul.mubr.bf16.gmra.mxu0 %v1694
        %v1790 = vpop.f32.mrf.mxu0
        %v1791 = vadd.f32 0.0, %v1790
        %v1792 = vpop.f32.mrf.mxu0
        %v1793 = vpop.f32.mrf.mxu0
        %v1794 = vadd.f32 0.0, %v1793
        %v1795 = vpop.f32.mrf.mxu0
        %1796 = vmatprep.mubr.bf16.mxu0 0
        %1797 = vmatmul.mubr.bf16.gmra.mxu0 %v1697
        %v1798 = vpop.f32.mrf.mxu0
        %v1799 = vadd.f32 0.0, %v1798
        %v1800 = vpop.f32.mrf.mxu0
        %v1801 = vpop.f32.mrf.mxu0
        %v1802 = vadd.f32 0.0, %v1801
        %v1803 = vpop.f32.mrf.mxu0
        %1804 = vmatprep.mubr.bf16.mxu0 0
        %1805 = vmatmul.mubr.bf16.gmra.mxu0 %v1700
        %v1806 = vpop.f32.mrf.mxu0
        %v1807 = vadd.f32 0.0, %v1806
        %v1808 = vpop.f32.mrf.mxu0
        %v1809 = vpop.f32.mrf.mxu0
        %v1810 = vadd.f32 0.0, %v1809
        %v1811 = vpop.f32.mrf.mxu0
        %1812 = vmatprep.mubr.bf16.mxu0 0
        %1813 = vmatmul.mubr.bf16.gmra.mxu0 %v1703
        %v1814 = vpop.f32.mrf.mxu0
        %v1815 = vadd.f32 0.0, %v1814
        %v1816 = vpop.f32.mrf.mxu0
        %v1817 = vpop.f32.mrf.mxu0
        %v1818 = vadd.f32 0.0, %v1817
        %v1819 = vpop.f32.mrf.mxu0
        %1820 = vmatprep.mubr.bf16.mxu0 0
        %1821 = vmatmul.mubr.bf16.gmra.mxu0 %v1706
        %v1822 = vpop.f32.mrf.mxu0
        %v1823 = vadd.f32 0.0, %v1822
        %v1824 = vpop.f32.mrf.mxu0
        %v1825 = vpop.f32.mrf.mxu0
        %v1826 = vadd.f32 0.0, %v1825
        %v1827 = vpop.f32.mrf.mxu0
        %1828 = vdwg.mxu0
        %1829 = vmax.xlane.f32.xlu0 %v1767
        %v1830 = vpop.xlane.xlu0 %1829
        %1831 = vmax.xlane.f32.xlu0 %v1770
        %v1832 = vpop.xlane.xlu0 %1831
        %1833 = vmax.xlane.f32.xlu0 %v1775
        %v1834 = vpop.xlane.xlu0 %1833
        %1835 = vmax.xlane.f32.xlu0 %v1778
        %v1836 = vpop.xlane.xlu0 %1835
        %1837 = vmax.xlane.f32.xlu0 %v1783
        %v1838 = vpop.xlane.xlu0 %1837
        %1839 = vmax.xlane.f32.xlu0 %v1786
        %v1840 = vpop.xlane.xlu0 %1839
        %1841 = vmax.xlane.f32.xlu0 %v1791
        %v1842 = vpop.xlane.xlu0 %1841
        %1843 = vmax.xlane.f32.xlu0 %v1794
        %v1844 = vpop.xlane.xlu0 %1843
        %1845 = vmax.xlane.f32.xlu0 %v1799
        %v1846 = vpop.xlane.xlu0 %1845
        %1847 = vmax.xlane.f32.xlu0 %v1802
        %v1848 = vpop.xlane.xlu0 %1847
        %1849 = vmax.xlane.f32.xlu0 %v1807
        %v1850 = vpop.xlane.xlu0 %1849
        %1851 = vmax.xlane.f32.xlu0 %v1810
        %v1852 = vpop.xlane.xlu0 %1851
        %1853 = vmax.xlane.f32.xlu0 %v1815
        %v1854 = vpop.xlane.xlu0 %1853
        %1855 = vmax.xlane.f32.xlu0 %v1818
        %v1856 = vpop.xlane.xlu0 %1855
        %1857 = vmax.xlane.f32.xlu0 %v1823
        %v1858 = vpop.xlane.xlu0 %1857
        %1859 = vmax.xlane.f32.xlu0 %v1826
        %v1860 = vpop.xlane.xlu0 %1859
        %v1861 = vsub.f32 %v1767, %v1830
        %v1862 = vsub.f32 %v1770, %v1832
        %v1863 = vsub.f32 %v1775, %v1834
        %v1864 = vsub.f32 %v1778, %v1836
        %v1865 = vsub.f32 %v1783, %v1838
        %v1866 = vsub.f32 %v1786, %v1840
        %v1867 = vsub.f32 %v1791, %v1842
        %v1868 = vsub.f32 %v1794, %v1844
        %v1869 = vsub.f32 %v1799, %v1846
        %v1870 = vsub.f32 %v1802, %v1848
        %v1871 = vsub.f32 %v1807, %v1850
        %v1872 = vsub.f32 %v1810, %v1852
        %v1873 = vsub.f32 %v1815, %v1854
        %v1874 = vsub.f32 %v1818, %v1856
        %v1875 = vsub.f32 %v1823, %v1858
        %v1876 = vsub.f32 %v1826, %v1860
        %v1877 = vmul.f32 %v1861, 1.442695
        %v1878 = vpow.pop %v1877
        %v1879 = vmul.f32 %v1862, 1.442695
        %v1880 = vpow.pop %v1879
        %v1881 = vmul.f32 %v1863, 1.442695
        %v1882 = vpow.pop %v1881
        %v1883 = vmul.f32 %v1864, 1.442695
        %v1884 = vpow.pop %v1883
        %v1885 = vmul.f32 %v1865, 1.442695
        %v1886 = vpow.pop %v1885
        %v1887 = vmul.f32 %v1866, 1.442695
        %v1888 = vpow.pop %v1887
        %v1889 = vmul.f32 %v1867, 1.442695
        %v1890 = vpow.pop %v1889
        %v1891 = vmul.f32 %v1868, 1.442695
        %v1892 = vpow.pop %v1891
        %v1893 = vmul.f32 %v1869, 1.442695
        %v1894 = vpow.pop %v1893
        %v1895 = vmul.f32 %v1870, 1.442695
        %v1896 = vpow.pop %v1895
        %v1897 = vmul.f32 %v1871, 1.442695
        %v1898 = vpow.pop %v1897
        %v1899 = vmul.f32 %v1872, 1.442695
        %v1900 = vpow.pop %v1899
        %v1901 = vmul.f32 %v1873, 1.442695
        %v1902 = vpow.pop %v1901
        %v1903 = vmul.f32 %v1874, 1.442695
        %v1904 = vpow.pop %v1903
        %v1905 = vmul.f32 %v1875, 1.442695
        %v1906 = vpow.pop %v1905
        %v1907 = vmul.f32 %v1876, 1.442695
        %v1908 = vpow.pop %v1907
        %1909 = vadd.xlane.f32.xlu0 %v1878
        %v1910 = vpop.xlane.xlu0 %1909
        %1911 = vadd.xlane.f32.xlu0 %v1880
        %v1912 = vpop.xlane.xlu0 %1911
        %1913 = vadd.xlane.f32.xlu0 %v1882
        %v1914 = vpop.xlane.xlu0 %1913
        %1915 = vadd.xlane.f32.xlu0 %v1884
        %v1916 = vpop.xlane.xlu0 %1915
        %1917 = vadd.xlane.f32.xlu0 %v1886
        %v1918 = vpop.xlane.xlu0 %1917
        %1919 = vadd.xlane.f32.xlu0 %v1888
        %v1920 = vpop.xlane.xlu0 %1919
        %1921 = vadd.xlane.f32.xlu0 %v1890
        %v1922 = vpop.xlane.xlu0 %1921
        %1923 = vadd.xlane.f32.xlu0 %v1892
        %v1924 = vpop.xlane.xlu0 %1923
        %1925 = vadd.xlane.f32.xlu0 %v1894
        %v1926 = vpop.xlane.xlu0 %1925
        %1927 = vadd.xlane.f32.xlu0 %v1896
        %v1928 = vpop.xlane.xlu0 %1927
        %1929 = vadd.xlane.f32.xlu0 %v1898
        %v1930 = vpop.xlane.xlu0 %1929
        %1931 = vadd.xlane.f32.xlu0 %v1900
        %v1932 = vpop.xlane.xlu0 %1931
        %1933 = vadd.xlane.f32.xlu0 %v1902
        %v1934 = vpop.xlane.xlu0 %1933
        %1935 = vadd.xlane.f32.xlu0 %v1904
        %v1936 = vpop.xlane.xlu0 %1935
        %1937 = vadd.xlane.f32.xlu0 %v1906
        %v1938 = vpop.xlane.xlu0 %1937
        %1939 = vadd.xlane.f32.xlu0 %v1908
        %v1940 = vpop.xlane.xlu0 %1939
        %v1941 = vpack.c.bf16 %v1880, %v1878
        %v1942 = vpack.c.bf16 %v1884, %v1882
        %v1943 = vpack.c.bf16 %v1888, %v1886
        %v1944 = vpack.c.bf16 %v1892, %v1890
        %v1945 = vpack.c.bf16 %v1896, %v1894
        %v1946 = vpack.c.bf16 %v1900, %v1898
        %v1947 = vpack.c.bf16 %v1904, %v1902
        %v1948 = vpack.c.bf16 %v1908, %v1906
        %v1965 = vunpack.c.l.b16 %v1556
        %v1966 = vunpack.c.l.b16 %v1557
        %v1967 = vunpack.c.l.b16 %v1558
        %v1968 = vunpack.c.l.b16 %v1559
        %v1969 = vunpack.c.l.b16 %v1560
        %v1970 = vunpack.c.l.b16 %v1561
        %v1971 = vunpack.c.l.b16 %v1562
        %v1972 = vunpack.c.l.b16 %v1563
        %v1973 = vunpack.c.l.b16 %v1564
        %v1974 = vunpack.c.l.b16 %v1565
        %v1975 = vunpack.c.l.b16 %v1566
        %v1976 = vunpack.c.l.b16 %v1567
        %v1977 = vunpack.c.l.b16 %v1568
        %v1978 = vunpack.c.l.b16 %v1569
        %v1979 = vunpack.c.l.b16 %v1570
        %v1980 = vunpack.c.l.b16 %v1571
        %v1981 = vpack.c.b16 %v1966, %v1965
        %v1982 = vpack.c.b16 %v1968, %v1967
        %v1983 = vpack.c.b16 %v1970, %v1969
        %v1984 = vpack.c.b16 %v1972, %v1971
        %v1985 = vpack.c.b16 %v1974, %v1973
        %v1986 = vpack.c.b16 %v1976, %v1975
        %v1987 = vpack.c.b16 %v1978, %v1977
        %v1988 = vpack.c.b16 %v1980, %v1979
        %1989 = vrot.lane.b32.xlu0 %v1981, 112
        %v1990 = vpop.permute.xlu0 %1989
        %1991 = vrot.lane.b32.xlu0 %v1982, 112
        %v1992 = vpop.permute.xlu0 %1991
        %1993 = vrot.lane.b32.xlu0 %v1983, 112
        %v1994 = vpop.permute.xlu0 %1993
        %1995 = vrot.lane.b32.xlu0 %v1984, 112
        %v1996 = vpop.permute.xlu0 %1995
        %1997 = vrot.lane.b32.xlu0 %v1985, 112
        %v1998 = vpop.permute.xlu0 %1997
        %1999 = vrot.lane.b32.xlu0 %v1986, 112
        %v2000 = vpop.permute.xlu0 %1999
        %2001 = vrot.lane.b32.xlu0 %v1987, 112
        %v2002 = vpop.permute.xlu0 %2001
        %2003 = vrot.lane.b32.xlu0 %v1988, 112
        %v2004 = vpop.permute.xlu0 %2003
        %2013 = vmatprep.subr.bf16.mxu0 0
        %2014 = vmatpush1.bf16.msra.mxu0 %v2004
        %2015 = vmatprep.subr.bf16.mxu0 0
        %2016 = vmatpush1.bf16.msra.mxu0 %v2002
        %2017 = vmatprep.subr.bf16.mxu0 0
        %2018 = vmatpush1.bf16.msra.mxu0 %v2000
        %2019 = vmatprep.subr.bf16.mxu0 0
        %2020 = vmatpush1.bf16.msra.mxu0 %v1998
        %2021 = vmatprep.subr.bf16.mxu0 0
        %2022 = vmatpush1.bf16.msra.mxu0 %v1996
        %2023 = vmatprep.subr.bf16.mxu0 0
        %2024 = vmatpush1.bf16.msra.mxu0 %v1994
        %2025 = vmatprep.subr.bf16.mxu0 0
        %2026 = vmatpush1.bf16.msra.mxu0 %v1992
        %2027 = vmatprep.subr.bf16.mxu0 0
        %2028 = vmatpush1.bf16.msra.mxu0 %v1990
        %2029 = vmatprep.subr.bf16.mxu0 0
        %2030 = vmatpush2.bf16.msra.mxu0 0
        %2031 = vmatprep.subr.bf16.mxu0 0
        %2032 = vmatpush2.bf16.msra.mxu0 0
        %2033 = vmatprep.subr.bf16.mxu0 0
        %2034 = vmatpush2.bf16.msra.mxu0 0
        %2035 = vmatprep.subr.bf16.mxu0 0
        %2036 = vmatpush2.bf16.msra.mxu0 0
        %2037 = vmatprep.subr.bf16.mxu0 0
        %2038 = vmatpush2.bf16.msra.mxu0 0
        %2039 = vmatprep.subr.bf16.mxu0 0
        %2040 = vmatpush2.bf16.msra.mxu0 0
        %2041 = vmatprep.subr.bf16.mxu0 0
        %2042 = vmatpush2.bf16.msra.mxu0 0
        %2043 = vmatprep.subr.bf16.mxu0 0
        %2044 = vmatpush2.bf16.msra.mxu0 0
        %2045 = vmatprep.mubr.bf16.mxu0 0
        %2046 = vmatmul.mubr.bf16.gmra.mxu0 %v1941
        %v2047 = vpop.f32.mrf.mxu0
        %v2048 = vadd.f32 0.0, %v2047
        %v2049 = vpop.f32.mrf.mxu0
        %v2050 = vpop.f32.mrf.mxu0
        %v2051 = vadd.f32 0.0, %v2050
        %v2052 = vpop.f32.mrf.mxu0
        %2053 = vmatprep.mubr.bf16.mxu0 0
        %2054 = vmatmul.mubr.bf16.gmra.mxu0 %v1942
        %v2055 = vpop.f32.mrf.mxu0
        %v2056 = vadd.f32 0.0, %v2055
        %v2057 = vpop.f32.mrf.mxu0
        %v2058 = vpop.f32.mrf.mxu0
        %v2059 = vadd.f32 0.0, %v2058
        %v2060 = vpop.f32.mrf.mxu0
        %2061 = vmatprep.mubr.bf16.mxu0 0
        %2062 = vmatmul.mubr.bf16.gmra.mxu0 %v1943
        %v2063 = vpop.f32.mrf.mxu0
        %v2064 = vadd.f32 0.0, %v2063
        %v2065 = vpop.f32.mrf.mxu0
        %v2066 = vpop.f32.mrf.mxu0
        %v2067 = vadd.f32 0.0, %v2066
        %v2068 = vpop.f32.mrf.mxu0
        %2069 = vmatprep.mubr.bf16.mxu0 0
        %2070 = vmatmul.mubr.bf16.gmra.mxu0 %v1944
        %v2071 = vpop.f32.mrf.mxu0
        %v2072 = vadd.f32 0.0, %v2071
        %v2073 = vpop.f32.mrf.mxu0
        %v2074 = vpop.f32.mrf.mxu0
        %v2075 = vadd.f32 0.0, %v2074
        %v2076 = vpop.f32.mrf.mxu0
        %2077 = vmatprep.mubr.bf16.mxu0 0
        %2078 = vmatmul.mubr.bf16.gmra.mxu0 %v1945
        %v2079 = vpop.f32.mrf.mxu0
        %v2080 = vadd.f32 0.0, %v2079
        %v2081 = vpop.f32.mrf.mxu0
        %v2082 = vpop.f32.mrf.mxu0
        %v2083 = vadd.f32 0.0, %v2082
        %v2084 = vpop.f32.mrf.mxu0
        %2085 = vmatprep.mubr.bf16.mxu0 0
        %2086 = vmatmul.mubr.bf16.gmra.mxu0 %v1946
        %v2087 = vpop.f32.mrf.mxu0
        %v2088 = vadd.f32 0.0, %v2087
        %v2089 = vpop.f32.mrf.mxu0
        %v2090 = vpop.f32.mrf.mxu0
        %v2091 = vadd.f32 0.0, %v2090
        %v2092 = vpop.f32.mrf.mxu0
        %2093 = vmatprep.mubr.bf16.mxu0 0
        %2094 = vmatmul.mubr.bf16.gmra.mxu0 %v1947
        %v2095 = vpop.f32.mrf.mxu0
        %v2096 = vadd.f32 0.0, %v2095
        %v2097 = vpop.f32.mrf.mxu0
        %v2098 = vpop.f32.mrf.mxu0
        %v2099 = vadd.f32 0.0, %v2098
        %v2100 = vpop.f32.mrf.mxu0
        %2101 = vmatprep.mubr.bf16.mxu0 0
        %2102 = vmatmul.mubr.bf16.gmra.mxu0 %v1948
        %v2103 = vpop.f32.mrf.mxu0
        %v2104 = vadd.f32 0.0, %v2103
        %v2105 = vpop.f32.mrf.mxu0
        %v2106 = vpop.f32.mrf.mxu0
        %v2107 = vadd.f32 0.0, %v2106
        %v2108 = vpop.f32.mrf.mxu0
        %2109 = vdwg.mxu0
        %v2110 = vrcp.pop %v1910
        %v2111 = vrcp.pop %v1912
        %v2112 = vrcp.pop %v1914
        %v2113 = vrcp.pop %v1916
        %v2114 = vrcp.pop %v1918
        %v2115 = vrcp.pop %v1920
        %v2116 = vrcp.pop %v1922
        %v2117 = vrcp.pop %v1924
        %v2118 = vrcp.pop %v1926
        %v2119 = vrcp.pop %v1928
        %v2120 = vrcp.pop %v1930
        %v2121 = vrcp.pop %v1932
        %v2122 = vrcp.pop %v1934
        %v2123 = vrcp.pop %v1936
        %v2124 = vrcp.pop %v1938
        %v2125 = vrcp.pop %v1940
        %v2126 = vmul.f32 %v2048, %v2110
        %v2127 = vmul.f32 %v2051, %v2111
        %v2128 = vmul.f32 %v2056, %v2112
        %v2129 = vmul.f32 %v2059, %v2113
        %v2130 = vmul.f32 %v2064, %v2114
        %v2131 = vmul.f32 %v2067, %v2115
        %v2132 = vmul.f32 %v2072, %v2116
        %v2133 = vmul.f32 %v2075, %v2117
        %v2134 = vmul.f32 %v2080, %v2118
        %v2135 = vmul.f32 %v2083, %v2119
        %v2136 = vmul.f32 %v2088, %v2120
        %v2137 = vmul.f32 %v2091, %v2121
        %v2138 = vmul.f32 %v2096, %v2122
        %v2139 = vmul.f32 %v2099, %v2123
        %v2140 = vmul.f32 %v2104, %v2124
        %v2141 = vmul.f32 %v2107, %v2125
        %v2142 = vpack.c.bf16 %v2127, %v2126
        %v2143 = vpack.c.bf16 %v2129, %v2128
        %v2144 = vpack.c.bf16 %v2131, %v2130
        %v2145 = vpack.c.bf16 %v2133, %v2132
        %v2146 = vpack.c.bf16 %v2135, %v2134
        %v2147 = vpack.c.bf16 %v2137, %v2136
        %v2148 = vpack.c.bf16 %v2139, %v2138
        %v2149 = vpack.c.bf16 %v2141, %v2140
        %v2158 = vunpack.c.l.b16 %v2142
        %v2159 = vunpack.c.h.b16 %v2142
        %v2160 = vunpack.c.l.b16 %v2143
        %v2161 = vunpack.c.h.b16 %v2143
        %v2162 = vunpack.c.l.b16 %v2144
        %v2163 = vunpack.c.h.b16 %v2144
        %v2164 = vunpack.c.l.b16 %v2145
        %v2165 = vunpack.c.h.b16 %v2145
        %v2166 = vunpack.c.l.b16 %v2146
        %v2167 = vunpack.c.h.b16 %v2146
        %v2168 = vunpack.c.l.b16 %v2147
        %v2169 = vunpack.c.h.b16 %v2147
        %v2170 = vunpack.c.l.b16 %v2148
        %v2171 = vunpack.c.h.b16 %v2148
        %v2172 = vunpack.c.l.b16 %v2149
        %v2173 = vunpack.c.h.b16 %v2149
        %v2174 = vpack.c.b16 %v2158, %v2158
        %v2175 = vpack.c.b16 %v2159, %v2159
        %v2176 = vpack.c.b16 %v2160, %v2160
        %v2177 = vpack.c.b16 %v2161, %v2161
        %v2178 = vpack.c.b16 %v2162, %v2162
        %v2179 = vpack.c.b16 %v2163, %v2163
        %v2180 = vpack.c.b16 %v2164, %v2164
        %v2181 = vpack.c.b16 %v2165, %v2165
        %v2182 = vpack.c.b16 %v2166, %v2166
        %v2183 = vpack.c.b16 %v2167, %v2167
        %v2184 = vpack.c.b16 %v2168, %v2168
        %v2185 = vpack.c.b16 %v2169, %v2169
        %v2186 = vpack.c.b16 %v2170, %v2170
        %v2187 = vpack.c.b16 %v2171, %v2171
        %v2188 = vpack.c.b16 %v2172, %v2172
        %v2189 = vpack.c.b16 %v2173, %v2173
        %2190 = vrot.lane.b32.xlu0 %v2174, 16
        %v2191 = vpop.permute.xlu0 %2190
        %2192 = vrot.lane.b32.xlu0 %v2175, 16
        %v2193 = vpop.permute.xlu0 %2192
        %2194 = vrot.lane.b32.xlu0 %v2176, 16
        %v2195 = vpop.permute.xlu0 %2194
        %2196 = vrot.lane.b32.xlu0 %v2177, 16
        %v2197 = vpop.permute.xlu0 %2196
        %2198 = vrot.lane.b32.xlu0 %v2178, 16
        %v2199 = vpop.permute.xlu0 %2198
        %2200 = vrot.lane.b32.xlu0 %v2179, 16
        %v2201 = vpop.permute.xlu0 %2200
        %2202 = vrot.lane.b32.xlu0 %v2180, 16
        %v2203 = vpop.permute.xlu0 %2202
        %2204 = vrot.lane.b32.xlu0 %v2181, 16
        %v2205 = vpop.permute.xlu0 %2204
        %2206 = vrot.lane.b32.xlu0 %v2182, 16
        %v2207 = vpop.permute.xlu0 %2206
        %2208 = vrot.lane.b32.xlu0 %v2183, 16
        %v2209 = vpop.permute.xlu0 %2208
        %2210 = vrot.lane.b32.xlu0 %v2184, 16
        %v2211 = vpop.permute.xlu0 %2210
        %2212 = vrot.lane.b32.xlu0 %v2185, 16
        %v2213 = vpop.permute.xlu0 %2212
        %2214 = vrot.lane.b32.xlu0 %v2186, 16
        %v2215 = vpop.permute.xlu0 %2214
        %2216 = vrot.lane.b32.xlu0 %v2187, 16
        %v2217 = vpop.permute.xlu0 %2216
        %2218 = vrot.lane.b32.xlu0 %v2188, 16
        %v2219 = vpop.permute.xlu0 %2218
        %2220 = vrot.lane.b32.xlu0 %v2189, 16
        %v2221 = vpop.permute.xlu0 %2220
        %vm2238 = vcmask 257152
        %2239 = vst.msk [vmem:[#allocation3] sm:$0xf] %vm2238, %v2191
        %2240 = vst.msk [vmem:[#allocation3 + $0x4] sm:$0xf] %vm2238, %v2193
        %2241 = vst.msk [vmem:[#allocation3 + $0x8] sm:$0xf] %vm2238, %v2195
        %2242 = vst.msk [vmem:[#allocation3 + $0xc] sm:$0xf] %vm2238, %v2197
        %2243 = vst.msk [vmem:[#allocation3 + $0x10] sm:$0xf] %vm2238, %v2199
        %2244 = vst.msk [vmem:[#allocation3 + $0x14] sm:$0xf] %vm2238, %v2201
        %2245 = vst.msk [vmem:[#allocation3 + $0x18] sm:$0xf] %vm2238, %v2203
        %2246 = vst.msk [vmem:[#allocation3 + $0x1c] sm:$0xf] %vm2238, %v2205
        %2247 = vst.msk [vmem:[#allocation3 + $0x20] sm:$0xf] %vm2238, %v2207
        %2248 = vst.msk [vmem:[#allocation3 + $0x24] sm:$0xf] %vm2238, %v2209
        %2249 = vst.msk [vmem:[#allocation3 + $0x28] sm:$0xf] %vm2238, %v2211
        %2250 = vst.msk [vmem:[#allocation3 + $0x2c] sm:$0xf] %vm2238, %v2213
        %2251 = vst.msk [vmem:[#allocation3 + $0x30] sm:$0xf] %vm2238, %v2215
        %2252 = vst.msk [vmem:[#allocation3 + $0x34] sm:$0xf] %vm2238, %v2217
        %2253 = vst.msk [vmem:[#allocation3 + $0x38] sm:$0xf] %vm2238, %v2219
        %2254 = vst.msk [vmem:[#allocation3 + $0x3c] sm:$0xf] %vm2238, %v2221
        %v2255 = vld [vmem:[#allocation2] sm:$0xf]
        %v2256 = vld [vmem:[#allocation2 + $0xc] sm:$0xf]
        %v2257 = vld [vmem:[#allocation2 + $0x18] sm:$0xf]
        %v2258 = vld [vmem:[#allocation2 + $0x24] sm:$0xf]
        %v2259 = vld [vmem:[#allocation2 + $0x30] sm:$0xf]
        %v2260 = vld [vmem:[#allocation2 + $0x3c] sm:$0xf]
        %v2261 = vld [vmem:[#allocation2 + $0x48] sm:$0xf]
        %v2262 = vld [vmem:[#allocation2 + $0x54] sm:$0xf]
        %v2263 = vld [vmem:[#allocation2 + $0x60] sm:$0xf]
        %v2264 = vld [vmem:[#allocation2 + $0x6c] sm:$0xf]
        %v2265 = vld [vmem:[#allocation2 + $0x78] sm:$0xf]
        %v2266 = vld [vmem:[#allocation2 + $0x84] sm:$0xf]
        %v2267 = vld [vmem:[#allocation2 + $0x90] sm:$0xf]
        %v2268 = vld [vmem:[#allocation2 + $0x9c] sm:$0xf]
        %v2269 = vld [vmem:[#allocation2 + $0xa8] sm:$0xf]
        %v2270 = vld [vmem:[#allocation2 + $0xb4] sm:$0xf]
        %v2271 = vld [vmem:[#allocation2 + $0x4] sm:$0xf]
        %v2272 = vld [vmem:[#allocation2 + $0x10] sm:$0xf]
        %v2273 = vld [vmem:[#allocation2 + $0x1c] sm:$0xf]
        %v2274 = vld [vmem:[#allocation2 + $0x28] sm:$0xf]
        %v2275 = vld [vmem:[#allocation2 + $0x34] sm:$0xf]
        %v2276 = vld [vmem:[#allocation2 + $0x40] sm:$0xf]
        %v2277 = vld [vmem:[#allocation2 + $0x4c] sm:$0xf]
        %v2278 = vld [vmem:[#allocation2 + $0x58] sm:$0xf]
        %v2279 = vld [vmem:[#allocation2 + $0x64] sm:$0xf]
        %v2280 = vld [vmem:[#allocation2 + $0x70] sm:$0xf]
        %v2281 = vld [vmem:[#allocation2 + $0x7c] sm:$0xf]
        %v2282 = vld [vmem:[#allocation2 + $0x88] sm:$0xf]
        %v2283 = vld [vmem:[#allocation2 + $0x94] sm:$0xf]
        %v2284 = vld [vmem:[#allocation2 + $0xa0] sm:$0xf]
        %v2285 = vld [vmem:[#allocation2 + $0xac] sm:$0xf]
        %v2286 = vld [vmem:[#allocation2 + $0xb8] sm:$0xf]
        %v2287 = vld [vmem:[#allocation2 + $0x8] sm:$0xf]
        %v2288 = vld [vmem:[#allocation2 + $0x14] sm:$0xf]
        %v2289 = vld [vmem:[#allocation2 + $0x20] sm:$0xf]
        %v2290 = vld [vmem:[#allocation2 + $0x2c] sm:$0xf]
        %v2291 = vld [vmem:[#allocation2 + $0x38] sm:$0xf]
        %v2292 = vld [vmem:[#allocation2 + $0x44] sm:$0xf]
        %v2293 = vld [vmem:[#allocation2 + $0x50] sm:$0xf]
        %v2294 = vld [vmem:[#allocation2 + $0x5c] sm:$0xf]
        %v2295 = vld [vmem:[#allocation2 + $0x68] sm:$0xf]
        %v2296 = vld [vmem:[#allocation2 + $0x74] sm:$0xf]
        %v2297 = vld [vmem:[#allocation2 + $0x80] sm:$0xf]
        %v2298 = vld [vmem:[#allocation2 + $0x8c] sm:$0xf]
        %v2299 = vld [vmem:[#allocation2 + $0x98] sm:$0xf]
        %v2300 = vld [vmem:[#allocation2 + $0xa4] sm:$0xf]
        %v2301 = vld [vmem:[#allocation2 + $0xb0] sm:$0xf]
        %v2302 = vld [vmem:[#allocation2 + $0xbc] sm:$0xf]
        %v2319 = vunpack.c.l.b16 %v2255
        %v2320 = vunpack.c.l.b16 %v2256
        %v2321 = vunpack.c.l.b16 %v2257
        %v2322 = vunpack.c.l.b16 %v2258
        %v2323 = vunpack.c.l.b16 %v2259
        %v2324 = vunpack.c.l.b16 %v2260
        %v2325 = vunpack.c.l.b16 %v2261
        %v2326 = vunpack.c.l.b16 %v2262
        %v2327 = vunpack.c.l.b16 %v2263
        %v2328 = vunpack.c.l.b16 %v2264
        %v2329 = vunpack.c.l.b16 %v2265
        %v2330 = vunpack.c.l.b16 %v2266
        %v2331 = vunpack.c.l.b16 %v2267
        %v2332 = vunpack.c.l.b16 %v2268
        %v2333 = vunpack.c.l.b16 %v2269
        %v2334 = vunpack.c.l.b16 %v2270
        %v2335 = vpack.c.b16 %v2320, %v2319
        %v2336 = vpack.c.b16 %v2322, %v2321
        %v2337 = vpack.c.b16 %v2324, %v2323
        %v2338 = vpack.c.b16 %v2326, %v2325
        %v2339 = vpack.c.b16 %v2328, %v2327
        %v2340 = vpack.c.b16 %v2330, %v2329
        %v2341 = vpack.c.b16 %v2332, %v2331
        %v2342 = vpack.c.b16 %v2334, %v2333
        %2343 = vrot.lane.b32.xlu0 %v2335, 96
        %v2344 = vpop.permute.xlu0 %2343
        %2345 = vrot.lane.b32.xlu0 %v2336, 96
        %v2346 = vpop.permute.xlu0 %2345
        %2347 = vrot.lane.b32.xlu0 %v2337, 96
        %v2348 = vpop.permute.xlu0 %2347
        %2349 = vrot.lane.b32.xlu0 %v2338, 96
        %v2350 = vpop.permute.xlu0 %2349
        %2351 = vrot.lane.b32.xlu0 %v2339, 96
        %v2352 = vpop.permute.xlu0 %2351
        %2353 = vrot.lane.b32.xlu0 %v2340, 96
        %v2354 = vpop.permute.xlu0 %2353
        %2355 = vrot.lane.b32.xlu0 %v2341, 96
        %v2356 = vpop.permute.xlu0 %2355
        %2357 = vrot.lane.b32.xlu0 %v2342, 96
        %v2358 = vpop.permute.xlu0 %2357
        %v2375 = vunpack.c.l.b16 %v2271
        %v2376 = vunpack.c.l.b16 %v2272
        %v2377 = vunpack.c.l.b16 %v2273
        %v2378 = vunpack.c.l.b16 %v2274
        %v2379 = vunpack.c.l.b16 %v2275
        %v2380 = vunpack.c.l.b16 %v2276
        %v2381 = vunpack.c.l.b16 %v2277
        %v2382 = vunpack.c.l.b16 %v2278
        %v2383 = vunpack.c.l.b16 %v2279
        %v2384 = vunpack.c.l.b16 %v2280
        %v2385 = vunpack.c.l.b16 %v2281
        %v2386 = vunpack.c.l.b16 %v2282
        %v2387 = vunpack.c.l.b16 %v2283
        %v2388 = vunpack.c.l.b16 %v2284
        %v2389 = vunpack.c.l.b16 %v2285
        %v2390 = vunpack.c.l.b16 %v2286
        %v2391 = vpack.c.b16 %v2376, %v2375
        %v2392 = vpack.c.b16 %v2378, %v2377
        %v2393 = vpack.c.b16 %v2380, %v2379
        %v2394 = vpack.c.b16 %v2382, %v2381
        %v2395 = vpack.c.b16 %v2384, %v2383
        %v2396 = vpack.c.b16 %v2386, %v2385
        %v2397 = vpack.c.b16 %v2388, %v2387
        %v2398 = vpack.c.b16 %v2390, %v2389
        %2399 = vrot.lane.b32.xlu0 %v2391, 96
        %v2400 = vpop.permute.xlu0 %2399
        %2401 = vrot.lane.b32.xlu0 %v2392, 96
        %v2402 = vpop.permute.xlu0 %2401
        %2403 = vrot.lane.b32.xlu0 %v2393, 96
        %v2404 = vpop.permute.xlu0 %2403
        %2405 = vrot.lane.b32.xlu0 %v2394, 96
        %v2406 = vpop.permute.xlu0 %2405
        %2407 = vrot.lane.b32.xlu0 %v2395, 96
        %v2408 = vpop.permute.xlu0 %2407
        %2409 = vrot.lane.b32.xlu0 %v2396, 96
        %v2410 = vpop.permute.xlu0 %2409
        %2411 = vrot.lane.b32.xlu0 %v2397, 96
        %v2412 = vpop.permute.xlu0 %2411
        %2413 = vrot.lane.b32.xlu0 %v2398, 96
        %v2414 = vpop.permute.xlu0 %2413
        %v2416 = vsel %vm1000, %v2344, 0
        %v2419 = vsel %vm1000, %v2346, 0
        %v2422 = vsel %vm1000, %v2348, 0
        %v2425 = vsel %vm1000, %v2350, 0
        %v2428 = vsel %vm1000, %v2352, 0
        %v2431 = vsel %vm1000, %v2354, 0
        %v2434 = vsel %vm1000, %v2356, 0
        %v2437 = vsel %vm1000, %v2358, 0
        %v2440 = vsel %vm1000, %v2400, 0
        %v2443 = vsel %vm1000, %v2402, 0
        %v2446 = vsel %vm1000, %v2404, 0
        %v2449 = vsel %vm1000, %v2406, 0
        %v2452 = vsel %vm1000, %v2408, 0
        %v2455 = vsel %vm1000, %v2410, 0
        %v2458 = vsel %vm1000, %v2412, 0
        %v2461 = vsel %vm1000, %v2414, 0
        %2463 = vmatprep.subr.bf16.mxu0 0
        %2464 = vmatpush1.bf16.xpose.msra.mxu0 %v2461
        %2465 = vmatprep.subr.bf16.mxu0 0
        %2466 = vmatpush1.bf16.xpose.msra.mxu0 %v2458
        %2467 = vmatprep.subr.bf16.mxu0 0
        %2468 = vmatpush1.bf16.xpose.msra.mxu0 %v2455
        %2469 = vmatprep.subr.bf16.mxu0 0
        %2470 = vmatpush1.bf16.xpose.msra.mxu0 %v2452
        %2471 = vmatprep.subr.bf16.mxu0 0
        %2472 = vmatpush1.bf16.xpose.msra.mxu0 %v2449
        %2473 = vmatprep.subr.bf16.mxu0 0
        %2474 = vmatpush1.bf16.xpose.msra.mxu0 %v2446
        %2475 = vmatprep.subr.bf16.mxu0 0
        %2476 = vmatpush1.bf16.xpose.msra.mxu0 %v2443
        %2477 = vmatprep.subr.bf16.mxu0 0
        %2478 = vmatpush1.bf16.xpose.msra.mxu0 %v2440
        %2479 = vmatprep.subr.bf16.mxu0 0
        %2480 = vmatpush2.bf16.xpose.msra.mxu0 0
        %2481 = vmatprep.subr.bf16.mxu0 0
        %2482 = vmatpush2.bf16.xpose.msra.mxu0 0
        %2483 = vmatprep.subr.bf16.mxu0 0
        %2484 = vmatpush2.bf16.xpose.msra.mxu0 0
        %2485 = vmatprep.subr.bf16.mxu0 0
        %2486 = vmatpush2.bf16.xpose.msra.mxu0 0
        %2487 = vmatprep.subr.bf16.mxu0 0
        %2488 = vmatpush2.bf16.xpose.msra.mxu0 0
        %2489 = vmatprep.subr.bf16.mxu0 0
        %2490 = vmatpush2.bf16.xpose.msra.mxu0 0
        %2491 = vmatprep.subr.bf16.mxu0 0
        %2492 = vmatpush2.bf16.xpose.msra.mxu0 0
        %2493 = vmatprep.subr.bf16.mxu0 0
        %2494 = vmatpush2.bf16.xpose.msra.mxu0 0
        %2495 = vmatprep.mubr.bf16.mxu0 0
        %2496 = vmatmul.mubr.bf16.gmra.mxu0 %v2416
        %v2497 = vpop.f32.mrf.mxu0
        %v2498 = vadd.f32 0.0, %v2497
        %v2499 = vpop.f32.mrf.mxu0
        %v2500 = vpop.f32.mrf.mxu0
        %v2501 = vadd.f32 0.0, %v2500
        %v2502 = vpop.f32.mrf.mxu0
        %2503 = vmatprep.mubr.bf16.mxu0 0
        %2504 = vmatmul.mubr.bf16.gmra.mxu0 %v2419
        %v2505 = vpop.f32.mrf.mxu0
        %v2506 = vadd.f32 0.0, %v2505
        %v2507 = vpop.f32.mrf.mxu0
        %v2508 = vpop.f32.mrf.mxu0
        %v2509 = vadd.f32 0.0, %v2508
        %v2510 = vpop.f32.mrf.mxu0
        %2511 = vmatprep.mubr.bf16.mxu0 0
        %2512 = vmatmul.mubr.bf16.gmra.mxu0 %v2422
        %v2513 = vpop.f32.mrf.mxu0
        %v2514 = vadd.f32 0.0, %v2513
        %v2515 = vpop.f32.mrf.mxu0
        %v2516 = vpop.f32.mrf.mxu0
        %v2517 = vadd.f32 0.0, %v2516
        %v2518 = vpop.f32.mrf.mxu0
        %2519 = vmatprep.mubr.bf16.mxu0 0
        %2520 = vmatmul.mubr.bf16.gmra.mxu0 %v2425
        %v2521 = vpop.f32.mrf.mxu0
        %v2522 = vadd.f32 0.0, %v2521
        %v2523 = vpop.f32.mrf.mxu0
        %v2524 = vpop.f32.mrf.mxu0
        %v2525 = vadd.f32 0.0, %v2524
        %v2526 = vpop.f32.mrf.mxu0
        %2527 = vmatprep.mubr.bf16.mxu0 0
        %2528 = vmatmul.mubr.bf16.gmra.mxu0 %v2428
        %v2529 = vpop.f32.mrf.mxu0
        %v2530 = vadd.f32 0.0, %v2529
        %v2531 = vpop.f32.mrf.mxu0
        %v2532 = vpop.f32.mrf.mxu0
        %v2533 = vadd.f32 0.0, %v2532
        %v2534 = vpop.f32.mrf.mxu0
        %2535 = vmatprep.mubr.bf16.mxu0 0
        %2536 = vmatmul.mubr.bf16.gmra.mxu0 %v2431
        %v2537 = vpop.f32.mrf.mxu0
        %v2538 = vadd.f32 0.0, %v2537
        %v2539 = vpop.f32.mrf.mxu0
        %v2540 = vpop.f32.mrf.mxu0
        %v2541 = vadd.f32 0.0, %v2540
        %v2542 = vpop.f32.mrf.mxu0
        %2543 = vmatprep.mubr.bf16.mxu0 0
        %2544 = vmatmul.mubr.bf16.gmra.mxu0 %v2434
        %v2545 = vpop.f32.mrf.mxu0
        %v2546 = vadd.f32 0.0, %v2545
        %v2547 = vpop.f32.mrf.mxu0
        %v2548 = vpop.f32.mrf.mxu0
        %v2549 = vadd.f32 0.0, %v2548
        %v2550 = vpop.f32.mrf.mxu0
        %2551 = vmatprep.mubr.bf16.mxu0 0
        %2552 = vmatmul.mubr.bf16.gmra.mxu0 %v2437
        %v2553 = vpop.f32.mrf.mxu0
        %v2554 = vadd.f32 0.0, %v2553
        %v2555 = vpop.f32.mrf.mxu0
        %v2556 = vpop.f32.mrf.mxu0
        %v2557 = vadd.f32 0.0, %v2556
        %v2558 = vpop.f32.mrf.mxu0
        %2559 = vdwg.mxu0
        %2560 = vmax.xlane.f32.xlu0 %v2498
        %v2561 = vpop.xlane.xlu0 %2560
        %2562 = vmax.xlane.f32.xlu0 %v2501
        %v2563 = vpop.xlane.xlu0 %2562
        %2564 = vmax.xlane.f32.xlu0 %v2506
        %v2565 = vpop.xlane.xlu0 %2564
        %2566 = vmax.xlane.f32.xlu0 %v2509
        %v2567 = vpop.xlane.xlu0 %2566
        %2568 = vmax.xlane.f32.xlu0 %v2514
        %v2569 = vpop.xlane.xlu0 %2568
        %2570 = vmax.xlane.f32.xlu0 %v2517
        %v2571 = vpop.xlane.xlu0 %2570
        %2572 = vmax.xlane.f32.xlu0 %v2522
        %v2573 = vpop.xlane.xlu0 %2572
        %2574 = vmax.xlane.f32.xlu0 %v2525
        %v2575 = vpop.xlane.xlu0 %2574
        %2576 = vmax.xlane.f32.xlu0 %v2530
        %v2577 = vpop.xlane.xlu0 %2576
        %2578 = vmax.xlane.f32.xlu0 %v2533
        %v2579 = vpop.xlane.xlu0 %2578
        %2580 = vmax.xlane.f32.xlu0 %v2538
        %v2581 = vpop.xlane.xlu0 %2580
        %2582 = vmax.xlane.f32.xlu0 %v2541
        %v2583 = vpop.xlane.xlu0 %2582
        %2584 = vmax.xlane.f32.xlu0 %v2546
        %v2585 = vpop.xlane.xlu0 %2584
        %2586 = vmax.xlane.f32.xlu0 %v2549
        %v2587 = vpop.xlane.xlu0 %2586
        %2588 = vmax.xlane.f32.xlu0 %v2554
        %v2589 = vpop.xlane.xlu0 %2588
        %2590 = vmax.xlane.f32.xlu0 %v2557
        %v2591 = vpop.xlane.xlu0 %2590
        %v2592 = vsub.f32 %v2498, %v2561
        %v2593 = vsub.f32 %v2501, %v2563
        %v2594 = vsub.f32 %v2506, %v2565
        %v2595 = vsub.f32 %v2509, %v2567
        %v2596 = vsub.f32 %v2514, %v2569
        %v2597 = vsub.f32 %v2517, %v2571
        %v2598 = vsub.f32 %v2522, %v2573
        %v2599 = vsub.f32 %v2525, %v2575
        %v2600 = vsub.f32 %v2530, %v2577
        %v2601 = vsub.f32 %v2533, %v2579
        %v2602 = vsub.f32 %v2538, %v2581
        %v2603 = vsub.f32 %v2541, %v2583
        %v2604 = vsub.f32 %v2546, %v2585
        %v2605 = vsub.f32 %v2549, %v2587
        %v2606 = vsub.f32 %v2554, %v2589
        %v2607 = vsub.f32 %v2557, %v2591
        %v2608 = vmul.f32 %v2592, 1.442695
        %v2609 = vpow.pop %v2608
        %v2610 = vmul.f32 %v2593, 1.442695
        %v2611 = vpow.pop %v2610
        %v2612 = vmul.f32 %v2594, 1.442695
        %v2613 = vpow.pop %v2612
        %v2614 = vmul.f32 %v2595, 1.442695
        %v2615 = vpow.pop %v2614
        %v2616 = vmul.f32 %v2596, 1.442695
        %v2617 = vpow.pop %v2616
        %v2618 = vmul.f32 %v2597, 1.442695
        %v2619 = vpow.pop %v2618
        %v2620 = vmul.f32 %v2598, 1.442695
        %v2621 = vpow.pop %v2620
        %v2622 = vmul.f32 %v2599, 1.442695
        %v2623 = vpow.pop %v2622
        %v2624 = vmul.f32 %v2600, 1.442695
        %v2625 = vpow.pop %v2624
        %v2626 = vmul.f32 %v2601, 1.442695
        %v2627 = vpow.pop %v2626
        %v2628 = vmul.f32 %v2602, 1.442695
        %v2629 = vpow.pop %v2628
        %v2630 = vmul.f32 %v2603, 1.442695
        %v2631 = vpow.pop %v2630
        %v2632 = vmul.f32 %v2604, 1.442695
        %v2633 = vpow.pop %v2632
        %v2634 = vmul.f32 %v2605, 1.442695
        %v2635 = vpow.pop %v2634
        %v2636 = vmul.f32 %v2606, 1.442695
        %v2637 = vpow.pop %v2636
        %v2638 = vmul.f32 %v2607, 1.442695
        %v2639 = vpow.pop %v2638
        %2640 = vadd.xlane.f32.xlu0 %v2609
        %v2641 = vpop.xlane.xlu0 %2640
        %2642 = vadd.xlane.f32.xlu0 %v2611
        %v2643 = vpop.xlane.xlu0 %2642
        %2644 = vadd.xlane.f32.xlu0 %v2613
        %v2645 = vpop.xlane.xlu0 %2644
        %2646 = vadd.xlane.f32.xlu0 %v2615
        %v2647 = vpop.xlane.xlu0 %2646
        %2648 = vadd.xlane.f32.xlu0 %v2617
        %v2649 = vpop.xlane.xlu0 %2648
        %2650 = vadd.xlane.f32.xlu0 %v2619
        %v2651 = vpop.xlane.xlu0 %2650
        %2652 = vadd.xlane.f32.xlu0 %v2621
        %v2653 = vpop.xlane.xlu0 %2652
        %2654 = vadd.xlane.f32.xlu0 %v2623
        %v2655 = vpop.xlane.xlu0 %2654
        %2656 = vadd.xlane.f32.xlu0 %v2625
        %v2657 = vpop.xlane.xlu0 %2656
        %2658 = vadd.xlane.f32.xlu0 %v2627
        %v2659 = vpop.xlane.xlu0 %2658
        %2660 = vadd.xlane.f32.xlu0 %v2629
        %v2661 = vpop.xlane.xlu0 %2660
        %2662 = vadd.xlane.f32.xlu0 %v2631
        %v2663 = vpop.xlane.xlu0 %2662
        %2664 = vadd.xlane.f32.xlu0 %v2633
        %v2665 = vpop.xlane.xlu0 %2664
        %2666 = vadd.xlane.f32.xlu0 %v2635
        %v2667 = vpop.xlane.xlu0 %2666
        %2668 = vadd.xlane.f32.xlu0 %v2637
        %v2669 = vpop.xlane.xlu0 %2668
        %2670 = vadd.xlane.f32.xlu0 %v2639
        %v2671 = vpop.xlane.xlu0 %2670
        %v2672 = vpack.c.bf16 %v2611, %v2609
        %v2673 = vpack.c.bf16 %v2615, %v2613
        %v2674 = vpack.c.bf16 %v2619, %v2617
        %v2675 = vpack.c.bf16 %v2623, %v2621
        %v2676 = vpack.c.bf16 %v2627, %v2625
        %v2677 = vpack.c.bf16 %v2631, %v2629
        %v2678 = vpack.c.bf16 %v2635, %v2633
        %v2679 = vpack.c.bf16 %v2639, %v2637
        %v2696 = vunpack.c.l.b16 %v2287
        %v2697 = vunpack.c.l.b16 %v2288
        %v2698 = vunpack.c.l.b16 %v2289
        %v2699 = vunpack.c.l.b16 %v2290
        %v2700 = vunpack.c.l.b16 %v2291
        %v2701 = vunpack.c.l.b16 %v2292
        %v2702 = vunpack.c.l.b16 %v2293
        %v2703 = vunpack.c.l.b16 %v2294
        %v2704 = vunpack.c.l.b16 %v2295
        %v2705 = vunpack.c.l.b16 %v2296
        %v2706 = vunpack.c.l.b16 %v2297
        %v2707 = vunpack.c.l.b16 %v2298
        %v2708 = vunpack.c.l.b16 %v2299
        %v2709 = vunpack.c.l.b16 %v2300
        %v2710 = vunpack.c.l.b16 %v2301
        %v2711 = vunpack.c.l.b16 %v2302
        %v2712 = vpack.c.b16 %v2697, %v2696
        %v2713 = vpack.c.b16 %v2699, %v2698
        %v2714 = vpack.c.b16 %v2701, %v2700
        %v2715 = vpack.c.b16 %v2703, %v2702
        %v2716 = vpack.c.b16 %v2705, %v2704
        %v2717 = vpack.c.b16 %v2707, %v2706
        %v2718 = vpack.c.b16 %v2709, %v2708
        %v2719 = vpack.c.b16 %v2711, %v2710
        %2720 = vrot.lane.b32.xlu0 %v2712, 96
        %v2721 = vpop.permute.xlu0 %2720
        %2722 = vrot.lane.b32.xlu0 %v2713, 96
        %v2723 = vpop.permute.xlu0 %2722
        %2724 = vrot.lane.b32.xlu0 %v2714, 96
        %v2725 = vpop.permute.xlu0 %2724
        %2726 = vrot.lane.b32.xlu0 %v2715, 96
        %v2727 = vpop.permute.xlu0 %2726
        %2728 = vrot.lane.b32.xlu0 %v2716, 96
        %v2729 = vpop.permute.xlu0 %2728
        %2730 = vrot.lane.b32.xlu0 %v2717, 96
        %v2731 = vpop.permute.xlu0 %2730
        %2732 = vrot.lane.b32.xlu0 %v2718, 96
        %v2733 = vpop.permute.xlu0 %2732
        %2734 = vrot.lane.b32.xlu0 %v2719, 96
        %v2735 = vpop.permute.xlu0 %2734
        %2744 = vmatprep.subr.bf16.mxu0 0
        %2745 = vmatpush1.bf16.msra.mxu0 %v2735
        %2746 = vmatprep.subr.bf16.mxu0 0
        %2747 = vmatpush1.bf16.msra.mxu0 %v2733
        %2748 = vmatprep.subr.bf16.mxu0 0
        %2749 = vmatpush1.bf16.msra.mxu0 %v2731
        %2750 = vmatprep.subr.bf16.mxu0 0
        %2751 = vmatpush1.bf16.msra.mxu0 %v2729
        %2752 = vmatprep.subr.bf16.mxu0 0
        %2753 = vmatpush1.bf16.msra.mxu0 %v2727
        %2754 = vmatprep.subr.bf16.mxu0 0
        %2755 = vmatpush1.bf16.msra.mxu0 %v2725
        %2756 = vmatprep.subr.bf16.mxu0 0
        %2757 = vmatpush1.bf16.msra.mxu0 %v2723
        %2758 = vmatprep.subr.bf16.mxu0 0
        %2759 = vmatpush1.bf16.msra.mxu0 %v2721
        %2760 = vmatprep.subr.bf16.mxu0 0
        %2761 = vmatpush2.bf16.msra.mxu0 0
        %2762 = vmatprep.subr.bf16.mxu0 0
        %2763 = vmatpush2.bf16.msra.mxu0 0
        %2764 = vmatprep.subr.bf16.mxu0 0
        %2765 = vmatpush2.bf16.msra.mxu0 0
        %2766 = vmatprep.subr.bf16.mxu0 0
        %2767 = vmatpush2.bf16.msra.mxu0 0
        %2768 = vmatprep.subr.bf16.mxu0 0
        %2769 = vmatpush2.bf16.msra.mxu0 0
        %2770 = vmatprep.subr.bf16.mxu0 0
        %2771 = vmatpush2.bf16.msra.mxu0 0
        %2772 = vmatprep.subr.bf16.mxu0 0
        %2773 = vmatpush2.bf16.msra.mxu0 0
        %2774 = vmatprep.subr.bf16.mxu0 0
        %2775 = vmatpush2.bf16.msra.mxu0 0
        %2776 = vmatprep.mubr.bf16.mxu0 0
        %2777 = vmatmul.mubr.bf16.gmra.mxu0 %v2672
        %v2778 = vpop.f32.mrf.mxu0
        %v2779 = vadd.f32 0.0, %v2778
        %v2780 = vpop.f32.mrf.mxu0
        %v2781 = vpop.f32.mrf.mxu0
        %v2782 = vadd.f32 0.0, %v2781
        %v2783 = vpop.f32.mrf.mxu0
        %2784 = vmatprep.mubr.bf16.mxu0 0
        %2785 = vmatmul.mubr.bf16.gmra.mxu0 %v2673
        %v2786 = vpop.f32.mrf.mxu0
        %v2787 = vadd.f32 0.0, %v2786
        %v2788 = vpop.f32.mrf.mxu0
        %v2789 = vpop.f32.mrf.mxu0
        %v2790 = vadd.f32 0.0, %v2789
        %v2791 = vpop.f32.mrf.mxu0
        %2792 = vmatprep.mubr.bf16.mxu0 0
        %2793 = vmatmul.mubr.bf16.gmra.mxu0 %v2674
        %v2794 = vpop.f32.mrf.mxu0
        %v2795 = vadd.f32 0.0, %v2794
        %v2796 = vpop.f32.mrf.mxu0
        %v2797 = vpop.f32.mrf.mxu0
        %v2798 = vadd.f32 0.0, %v2797
        %v2799 = vpop.f32.mrf.mxu0
        %2800 = vmatprep.mubr.bf16.mxu0 0
        %2801 = vmatmul.mubr.bf16.gmra.mxu0 %v2675
        %v2802 = vpop.f32.mrf.mxu0
        %v2803 = vadd.f32 0.0, %v2802
        %v2804 = vpop.f32.mrf.mxu0
        %v2805 = vpop.f32.mrf.mxu0
        %v2806 = vadd.f32 0.0, %v2805
        %v2807 = vpop.f32.mrf.mxu0
        %2808 = vmatprep.mubr.bf16.mxu0 0
        %2809 = vmatmul.mubr.bf16.gmra.mxu0 %v2676
        %v2810 = vpop.f32.mrf.mxu0
        %v2811 = vadd.f32 0.0, %v2810
        %v2812 = vpop.f32.mrf.mxu0
        %v2813 = vpop.f32.mrf.mxu0
        %v2814 = vadd.f32 0.0, %v2813
        %v2815 = vpop.f32.mrf.mxu0
        %2816 = vmatprep.mubr.bf16.mxu0 0
        %2817 = vmatmul.mubr.bf16.gmra.mxu0 %v2677
        %v2818 = vpop.f32.mrf.mxu0
        %v2819 = vadd.f32 0.0, %v2818
        %v2820 = vpop.f32.mrf.mxu0
        %v2821 = vpop.f32.mrf.mxu0
        %v2822 = vadd.f32 0.0, %v2821
        %v2823 = vpop.f32.mrf.mxu0
        %2824 = vmatprep.mubr.bf16.mxu0 0
        %2825 = vmatmul.mubr.bf16.gmra.mxu0 %v2678
        %v2826 = vpop.f32.mrf.mxu0
        %v2827 = vadd.f32 0.0, %v2826
        %v2828 = vpop.f32.mrf.mxu0
        %v2829 = vpop.f32.mrf.mxu0
        %v2830 = vadd.f32 0.0, %v2829
        %v2831 = vpop.f32.mrf.mxu0
        %2832 = vmatprep.mubr.bf16.mxu0 0
        %2833 = vmatmul.mubr.bf16.gmra.mxu0 %v2679
        %v2834 = vpop.f32.mrf.mxu0
        %v2835 = vadd.f32 0.0, %v2834
        %v2836 = vpop.f32.mrf.mxu0
        %v2837 = vpop.f32.mrf.mxu0
        %v2838 = vadd.f32 0.0, %v2837
        %v2839 = vpop.f32.mrf.mxu0
        %2840 = vdwg.mxu0
        %v2841 = vrcp.pop %v2641
        %v2842 = vrcp.pop %v2643
        %v2843 = vrcp.pop %v2645
        %v2844 = vrcp.pop %v2647
        %v2845 = vrcp.pop %v2649
        %v2846 = vrcp.pop %v2651
        %v2847 = vrcp.pop %v2653
        %v2848 = vrcp.pop %v2655
        %v2849 = vrcp.pop %v2657
        %v2850 = vrcp.pop %v2659
        %v2851 = vrcp.pop %v2661
        %v2852 = vrcp.pop %v2663
        %v2853 = vrcp.pop %v2665
        %v2854 = vrcp.pop %v2667
        %v2855 = vrcp.pop %v2669
        %v2856 = vrcp.pop %v2671
        %v2857 = vmul.f32 %v2779, %v2841
        %v2858 = vmul.f32 %v2782, %v2842
        %v2859 = vmul.f32 %v2787, %v2843
        %v2860 = vmul.f32 %v2790, %v2844
        %v2861 = vmul.f32 %v2795, %v2845
        %v2862 = vmul.f32 %v2798, %v2846
        %v2863 = vmul.f32 %v2803, %v2847
        %v2864 = vmul.f32 %v2806, %v2848
        %v2865 = vmul.f32 %v2811, %v2849
        %v2866 = vmul.f32 %v2814, %v2850
        %v2867 = vmul.f32 %v2819, %v2851
        %v2868 = vmul.f32 %v2822, %v2852
        %v2869 = vmul.f32 %v2827, %v2853
        %v2870 = vmul.f32 %v2830, %v2854
        %v2871 = vmul.f32 %v2835, %v2855
        %v2872 = vmul.f32 %v2838, %v2856
        %v2873 = vpack.c.bf16 %v2858, %v2857
        %v2874 = vpack.c.bf16 %v2860, %v2859
        %v2875 = vpack.c.bf16 %v2862, %v2861
        %v2876 = vpack.c.bf16 %v2864, %v2863
        %v2877 = vpack.c.bf16 %v2866, %v2865
        %v2878 = vpack.c.bf16 %v2868, %v2867
        %v2879 = vpack.c.bf16 %v2870, %v2869
        %v2880 = vpack.c.bf16 %v2872, %v2871
        %v2889 = vunpack.c.l.b16 %v2873
        %v2890 = vunpack.c.h.b16 %v2873
        %v2891 = vunpack.c.l.b16 %v2874
        %v2892 = vunpack.c.h.b16 %v2874
        %v2893 = vunpack.c.l.b16 %v2875
        %v2894 = vunpack.c.h.b16 %v2875
        %v2895 = vunpack.c.l.b16 %v2876
        %v2896 = vunpack.c.h.b16 %v2876
        %v2897 = vunpack.c.l.b16 %v2877
        %v2898 = vunpack.c.h.b16 %v2877
        %v2899 = vunpack.c.l.b16 %v2878
        %v2900 = vunpack.c.h.b16 %v2878
        %v2901 = vunpack.c.l.b16 %v2879
        %v2902 = vunpack.c.h.b16 %v2879
        %v2903 = vunpack.c.l.b16 %v2880
        %v2904 = vunpack.c.h.b16 %v2880
        %v2905 = vpack.c.b16 %v2889, %v2889
        %v2906 = vpack.c.b16 %v2890, %v2890
        %v2907 = vpack.c.b16 %v2891, %v2891
        %v2908 = vpack.c.b16 %v2892, %v2892
        %v2909 = vpack.c.b16 %v2893, %v2893
        %v2910 = vpack.c.b16 %v2894, %v2894
        %v2911 = vpack.c.b16 %v2895, %v2895
        %v2912 = vpack.c.b16 %v2896, %v2896
        %v2913 = vpack.c.b16 %v2897, %v2897
        %v2914 = vpack.c.b16 %v2898, %v2898
        %v2915 = vpack.c.b16 %v2899, %v2899
        %v2916 = vpack.c.b16 %v2900, %v2900
        %v2917 = vpack.c.b16 %v2901, %v2901
        %v2918 = vpack.c.b16 %v2902, %v2902
        %v2919 = vpack.c.b16 %v2903, %v2903
        %v2920 = vpack.c.b16 %v2904, %v2904
        %2921 = vrot.lane.b32.xlu0 %v2905, 32
        %v2922 = vpop.permute.xlu0 %2921
        %2923 = vrot.lane.b32.xlu0 %v2906, 32
        %v2924 = vpop.permute.xlu0 %2923
        %2925 = vrot.lane.b32.xlu0 %v2907, 32
        %v2926 = vpop.permute.xlu0 %2925
        %2927 = vrot.lane.b32.xlu0 %v2908, 32
        %v2928 = vpop.permute.xlu0 %2927
        %2929 = vrot.lane.b32.xlu0 %v2909, 32
        %v2930 = vpop.permute.xlu0 %2929
        %2931 = vrot.lane.b32.xlu0 %v2910, 32
        %v2932 = vpop.permute.xlu0 %2931
        %2933 = vrot.lane.b32.xlu0 %v2911, 32
        %v2934 = vpop.permute.xlu0 %2933
        %2935 = vrot.lane.b32.xlu0 %v2912, 32
        %v2936 = vpop.permute.xlu0 %2935
        %2937 = vrot.lane.b32.xlu0 %v2913, 32
        %v2938 = vpop.permute.xlu0 %2937
        %2939 = vrot.lane.b32.xlu0 %v2914, 32
        %v2940 = vpop.permute.xlu0 %2939
        %2941 = vrot.lane.b32.xlu0 %v2915, 32
        %v2942 = vpop.permute.xlu0 %2941
        %2943 = vrot.lane.b32.xlu0 %v2916, 32
        %v2944 = vpop.permute.xlu0 %2943
        %2945 = vrot.lane.b32.xlu0 %v2917, 32
        %v2946 = vpop.permute.xlu0 %2945
        %2947 = vrot.lane.b32.xlu0 %v2918, 32
        %v2948 = vpop.permute.xlu0 %2947
        %2949 = vrot.lane.b32.xlu0 %v2919, 32
        %v2950 = vpop.permute.xlu0 %2949
        %2951 = vrot.lane.b32.xlu0 %v2920, 32
        %v2952 = vpop.permute.xlu0 %2951
        %vm2969 = vcmask 388352
        %2970 = vst.msk [vmem:[#allocation3] sm:$0xf] %vm2969, %v2922
        %2971 = vst.msk [vmem:[#allocation3 + $0x4] sm:$0xf] %vm2969, %v2924
        %2972 = vst.msk [vmem:[#allocation3 + $0x8] sm:$0xf] %vm2969, %v2926
        %2973 = vst.msk [vmem:[#allocation3 + $0xc] sm:$0xf] %vm2969, %v2928
        %2974 = vst.msk [vmem:[#allocation3 + $0x10] sm:$0xf] %vm2969, %v2930
        %2975 = vst.msk [vmem:[#allocation3 + $0x14] sm:$0xf] %vm2969, %v2932
        %2976 = vst.msk [vmem:[#allocation3 + $0x18] sm:$0xf] %vm2969, %v2934
        %2977 = vst.msk [vmem:[#allocation3 + $0x1c] sm:$0xf] %vm2969, %v2936
        %2978 = vst.msk [vmem:[#allocation3 + $0x20] sm:$0xf] %vm2969, %v2938
        %2979 = vst.msk [vmem:[#allocation3 + $0x24] sm:$0xf] %vm2969, %v2940
        %2980 = vst.msk [vmem:[#allocation3 + $0x28] sm:$0xf] %vm2969, %v2942
        %2981 = vst.msk [vmem:[#allocation3 + $0x2c] sm:$0xf] %vm2969, %v2944
        %2982 = vst.msk [vmem:[#allocation3 + $0x30] sm:$0xf] %vm2969, %v2946
        %2983 = vst.msk [vmem:[#allocation3 + $0x34] sm:$0xf] %vm2969, %v2948
        %2984 = vst.msk [vmem:[#allocation3 + $0x38] sm:$0xf] %vm2969, %v2950
        %2985 = vst.msk [vmem:[#allocation3 + $0x3c] sm:$0xf] %vm2969, %v2952
        %v2986 = vld [vmem:[#allocation2] sm:$0xf]
        %v2987 = vld [vmem:[#allocation2 + $0xc] sm:$0xf]
        %v2988 = vld [vmem:[#allocation2 + $0x18] sm:$0xf]
        %v2989 = vld [vmem:[#allocation2 + $0x24] sm:$0xf]
        %v2990 = vld [vmem:[#allocation2 + $0x30] sm:$0xf]
        %v2991 = vld [vmem:[#allocation2 + $0x3c] sm:$0xf]
        %v2992 = vld [vmem:[#allocation2 + $0x48] sm:$0xf]
        %v2993 = vld [vmem:[#allocation2 + $0x54] sm:$0xf]
        %v2994 = vld [vmem:[#allocation2 + $0x60] sm:$0xf]
        %v2995 = vld [vmem:[#allocation2 + $0x6c] sm:$0xf]
        %v2996 = vld [vmem:[#allocation2 + $0x78] sm:$0xf]
        %v2997 = vld [vmem:[#allocation2 + $0x84] sm:$0xf]
        %v2998 = vld [vmem:[#allocation2 + $0x90] sm:$0xf]
        %v2999 = vld [vmem:[#allocation2 + $0x9c] sm:$0xf]
        %v3000 = vld [vmem:[#allocation2 + $0xa8] sm:$0xf]
        %v3001 = vld [vmem:[#allocation2 + $0xb4] sm:$0xf]
        %v3002 = vld [vmem:[#allocation2 + $0x4] sm:$0xf]
        %v3003 = vld [vmem:[#allocation2 + $0x10] sm:$0xf]
        %v3004 = vld [vmem:[#allocation2 + $0x1c] sm:$0xf]
        %v3005 = vld [vmem:[#allocation2 + $0x28] sm:$0xf]
        %v3006 = vld [vmem:[#allocation2 + $0x34] sm:$0xf]
        %v3007 = vld [vmem:[#allocation2 + $0x40] sm:$0xf]
        %v3008 = vld [vmem:[#allocation2 + $0x4c] sm:$0xf]
        %v3009 = vld [vmem:[#allocation2 + $0x58] sm:$0xf]
        %v3010 = vld [vmem:[#allocation2 + $0x64] sm:$0xf]
        %v3011 = vld [vmem:[#allocation2 + $0x70] sm:$0xf]
        %v3012 = vld [vmem:[#allocation2 + $0x7c] sm:$0xf]
        %v3013 = vld [vmem:[#allocation2 + $0x88] sm:$0xf]
        %v3014 = vld [vmem:[#allocation2 + $0x94] sm:$0xf]
        %v3015 = vld [vmem:[#allocation2 + $0xa0] sm:$0xf]
        %v3016 = vld [vmem:[#allocation2 + $0xac] sm:$0xf]
        %v3017 = vld [vmem:[#allocation2 + $0xb8] sm:$0xf]
        %v3018 = vld [vmem:[#allocation2 + $0x8] sm:$0xf]
        %v3019 = vld [vmem:[#allocation2 + $0x14] sm:$0xf]
        %v3020 = vld [vmem:[#allocation2 + $0x20] sm:$0xf]
        %v3021 = vld [vmem:[#allocation2 + $0x2c] sm:$0xf]
        %v3022 = vld [vmem:[#allocation2 + $0x38] sm:$0xf]
        %v3023 = vld [vmem:[#allocation2 + $0x44] sm:$0xf]
        %v3024 = vld [vmem:[#allocation2 + $0x50] sm:$0xf]
        %v3025 = vld [vmem:[#allocation2 + $0x5c] sm:$0xf]
        %v3026 = vld [vmem:[#allocation2 + $0x68] sm:$0xf]
        %v3027 = vld [vmem:[#allocation2 + $0x74] sm:$0xf]
        %v3028 = vld [vmem:[#allocation2 + $0x80] sm:$0xf]
        %v3029 = vld [vmem:[#allocation2 + $0x8c] sm:$0xf]
        %v3030 = vld [vmem:[#allocation2 + $0x98] sm:$0xf]
        %v3031 = vld [vmem:[#allocation2 + $0xa4] sm:$0xf]
        %v3032 = vld [vmem:[#allocation2 + $0xb0] sm:$0xf]
        %v3033 = vld [vmem:[#allocation2 + $0xbc] sm:$0xf]
        %v3050 = vunpack.c.l.b16 %v2986
        %v3051 = vunpack.c.l.b16 %v2987
        %v3052 = vunpack.c.l.b16 %v2988
        %v3053 = vunpack.c.l.b16 %v2989
        %v3054 = vunpack.c.l.b16 %v2990
        %v3055 = vunpack.c.l.b16 %v2991
        %v3056 = vunpack.c.l.b16 %v2992
        %v3057 = vunpack.c.l.b16 %v2993
        %v3058 = vunpack.c.l.b16 %v2994
        %v3059 = vunpack.c.l.b16 %v2995
        %v3060 = vunpack.c.l.b16 %v2996
        %v3061 = vunpack.c.l.b16 %v2997
        %v3062 = vunpack.c.l.b16 %v2998
        %v3063 = vunpack.c.l.b16 %v2999
        %v3064 = vunpack.c.l.b16 %v3000
        %v3065 = vunpack.c.l.b16 %v3001
        %v3066 = vpack.c.b16 %v3051, %v3050
        %v3067 = vpack.c.b16 %v3053, %v3052
        %v3068 = vpack.c.b16 %v3055, %v3054
        %v3069 = vpack.c.b16 %v3057, %v3056
        %v3070 = vpack.c.b16 %v3059, %v3058
        %v3071 = vpack.c.b16 %v3061, %v3060
        %v3072 = vpack.c.b16 %v3063, %v3062
        %v3073 = vpack.c.b16 %v3065, %v3064
        %3074 = vrot.lane.b32.xlu0 %v3066, 80
        %v3075 = vpop.permute.xlu0 %3074
        %3076 = vrot.lane.b32.xlu0 %v3067, 80
        %v3077 = vpop.permute.xlu0 %3076
        %3078 = vrot.lane.b32.xlu0 %v3068, 80
        %v3079 = vpop.permute.xlu0 %3078
        %3080 = vrot.lane.b32.xlu0 %v3069, 80
        %v3081 = vpop.permute.xlu0 %3080
        %3082 = vrot.lane.b32.xlu0 %v3070, 80
        %v3083 = vpop.permute.xlu0 %3082
        %3084 = vrot.lane.b32.xlu0 %v3071, 80
        %v3085 = vpop.permute.xlu0 %3084
        %3086 = vrot.lane.b32.xlu0 %v3072, 80
        %v3087 = vpop.permute.xlu0 %3086
        %3088 = vrot.lane.b32.xlu0 %v3073, 80
        %v3089 = vpop.permute.xlu0 %3088
        %v3106 = vunpack.c.l.b16 %v3002
        %v3107 = vunpack.c.l.b16 %v3003
        %v3108 = vunpack.c.l.b16 %v3004
        %v3109 = vunpack.c.l.b16 %v3005
        %v3110 = vunpack.c.l.b16 %v3006
        %v3111 = vunpack.c.l.b16 %v3007
        %v3112 = vunpack.c.l.b16 %v3008
        %v3113 = vunpack.c.l.b16 %v3009
        %v3114 = vunpack.c.l.b16 %v3010
        %v3115 = vunpack.c.l.b16 %v3011
        %v3116 = vunpack.c.l.b16 %v3012
        %v3117 = vunpack.c.l.b16 %v3013
        %v3118 = vunpack.c.l.b16 %v3014
        %v3119 = vunpack.c.l.b16 %v3015
        %v3120 = vunpack.c.l.b16 %v3016
        %v3121 = vunpack.c.l.b16 %v3017
        %v3122 = vpack.c.b16 %v3107, %v3106
        %v3123 = vpack.c.b16 %v3109, %v3108
        %v3124 = vpack.c.b16 %v3111, %v3110
        %v3125 = vpack.c.b16 %v3113, %v3112
        %v3126 = vpack.c.b16 %v3115, %v3114
        %v3127 = vpack.c.b16 %v3117, %v3116
        %v3128 = vpack.c.b16 %v3119, %v3118
        %v3129 = vpack.c.b16 %v3121, %v3120
        %3130 = vrot.lane.b32.xlu0 %v3122, 80
        %v3131 = vpop.permute.xlu0 %3130
        %3132 = vrot.lane.b32.xlu0 %v3123, 80
        %v3133 = vpop.permute.xlu0 %3132
        %3134 = vrot.lane.b32.xlu0 %v3124, 80
        %v3135 = vpop.permute.xlu0 %3134
        %3136 = vrot.lane.b32.xlu0 %v3125, 80
        %v3137 = vpop.permute.xlu0 %3136
        %3138 = vrot.lane.b32.xlu0 %v3126, 80
        %v3139 = vpop.permute.xlu0 %3138
        %3140 = vrot.lane.b32.xlu0 %v3127, 80
        %v3141 = vpop.permute.xlu0 %3140
        %3142 = vrot.lane.b32.xlu0 %v3128, 80
        %v3143 = vpop.permute.xlu0 %3142
        %3144 = vrot.lane.b32.xlu0 %v3129, 80
        %v3145 = vpop.permute.xlu0 %3144
        %v3147 = vsel %vm1000, %v3075, 0
        %v3150 = vsel %vm1000, %v3077, 0
        %v3153 = vsel %vm1000, %v3079, 0
        %v3156 = vsel %vm1000, %v3081, 0
        %v3159 = vsel %vm1000, %v3083, 0
        %v3162 = vsel %vm1000, %v3085, 0
        %v3165 = vsel %vm1000, %v3087, 0
        %v3168 = vsel %vm1000, %v3089, 0
        %v3171 = vsel %vm1000, %v3131, 0
        %v3174 = vsel %vm1000, %v3133, 0
        %v3177 = vsel %vm1000, %v3135, 0
        %v3180 = vsel %vm1000, %v3137, 0
        %v3183 = vsel %vm1000, %v3139, 0
        %v3186 = vsel %vm1000, %v3141, 0
        %v3189 = vsel %vm1000, %v3143, 0
        %v3192 = vsel %vm1000, %v3145, 0
        %3194 = vmatprep.subr.bf16.mxu0 0
        %3195 = vmatpush1.bf16.xpose.msra.mxu0 %v3192
        %3196 = vmatprep.subr.bf16.mxu0 0
        %3197 = vmatpush1.bf16.xpose.msra.mxu0 %v3189
        %3198 = vmatprep.subr.bf16.mxu0 0
        %3199 = vmatpush1.bf16.xpose.msra.mxu0 %v3186
        %3200 = vmatprep.subr.bf16.mxu0 0
        %3201 = vmatpush1.bf16.xpose.msra.mxu0 %v3183
        %3202 = vmatprep.subr.bf16.mxu0 0
        %3203 = vmatpush1.bf16.xpose.msra.mxu0 %v3180
        %3204 = vmatprep.subr.bf16.mxu0 0
        %3205 = vmatpush1.bf16.xpose.msra.mxu0 %v3177
        %3206 = vmatprep.subr.bf16.mxu0 0
        %3207 = vmatpush1.bf16.xpose.msra.mxu0 %v3174
        %3208 = vmatprep.subr.bf16.mxu0 0
        %3209 = vmatpush1.bf16.xpose.msra.mxu0 %v3171
        %3210 = vmatprep.subr.bf16.mxu0 0
        %3211 = vmatpush2.bf16.xpose.msra.mxu0 0
        %3212 = vmatprep.subr.bf16.mxu0 0
        %3213 = vmatpush2.bf16.xpose.msra.mxu0 0
        %3214 = vmatprep.subr.bf16.mxu0 0
        %3215 = vmatpush2.bf16.xpose.msra.mxu0 0
        %3216 = vmatprep.subr.bf16.mxu0 0
        %3217 = vmatpush2.bf16.xpose.msra.mxu0 0
        %3218 = vmatprep.subr.bf16.mxu0 0
        %3219 = vmatpush2.bf16.xpose.msra.mxu0 0
        %3220 = vmatprep.subr.bf16.mxu0 0
        %3221 = vmatpush2.bf16.xpose.msra.mxu0 0
        %3222 = vmatprep.subr.bf16.mxu0 0
        %3223 = vmatpush2.bf16.xpose.msra.mxu0 0
        %3224 = vmatprep.subr.bf16.mxu0 0
        %3225 = vmatpush2.bf16.xpose.msra.mxu0 0
        %3226 = vmatprep.mubr.bf16.mxu0 0
        %3227 = vmatmul.mubr.bf16.gmra.mxu0 %v3147
        %v3228 = vpop.f32.mrf.mxu0
        %v3229 = vadd.f32 0.0, %v3228
        %v3230 = vpop.f32.mrf.mxu0
        %v3231 = vpop.f32.mrf.mxu0
        %v3232 = vadd.f32 0.0, %v3231
        %v3233 = vpop.f32.mrf.mxu0
        %3234 = vmatprep.mubr.bf16.mxu0 0
        %3235 = vmatmul.mubr.bf16.gmra.mxu0 %v3150
        %v3236 = vpop.f32.mrf.mxu0
        %v3237 = vadd.f32 0.0, %v3236
        %v3238 = vpop.f32.mrf.mxu0
        %v3239 = vpop.f32.mrf.mxu0
        %v3240 = vadd.f32 0.0, %v3239
        %v3241 = vpop.f32.mrf.mxu0
        %3242 = vmatprep.mubr.bf16.mxu0 0
        %3243 = vmatmul.mubr.bf16.gmra.mxu0 %v3153
        %v3244 = vpop.f32.mrf.mxu0
        %v3245 = vadd.f32 0.0, %v3244
        %v3246 = vpop.f32.mrf.mxu0
        %v3247 = vpop.f32.mrf.mxu0
        %v3248 = vadd.f32 0.0, %v3247
        %v3249 = vpop.f32.mrf.mxu0
        %3250 = vmatprep.mubr.bf16.mxu0 0
        %3251 = vmatmul.mubr.bf16.gmra.mxu0 %v3156
        %v3252 = vpop.f32.mrf.mxu0
        %v3253 = vadd.f32 0.0, %v3252
        %v3254 = vpop.f32.mrf.mxu0
        %v3255 = vpop.f32.mrf.mxu0
        %v3256 = vadd.f32 0.0, %v3255
        %v3257 = vpop.f32.mrf.mxu0
        %3258 = vmatprep.mubr.bf16.mxu0 0
        %3259 = vmatmul.mubr.bf16.gmra.mxu0 %v3159
        %v3260 = vpop.f32.mrf.mxu0
        %v3261 = vadd.f32 0.0, %v3260
        %v3262 = vpop.f32.mrf.mxu0
        %v3263 = vpop.f32.mrf.mxu0
        %v3264 = vadd.f32 0.0, %v3263
        %v3265 = vpop.f32.mrf.mxu0
        %3266 = vmatprep.mubr.bf16.mxu0 0
        %3267 = vmatmul.mubr.bf16.gmra.mxu0 %v3162
        %v3268 = vpop.f32.mrf.mxu0
        %v3269 = vadd.f32 0.0, %v3268
        %v3270 = vpop.f32.mrf.mxu0
        %v3271 = vpop.f32.mrf.mxu0
        %v3272 = vadd.f32 0.0, %v3271
        %v3273 = vpop.f32.mrf.mxu0
        %3274 = vmatprep.mubr.bf16.mxu0 0
        %3275 = vmatmul.mubr.bf16.gmra.mxu0 %v3165
        %v3276 = vpop.f32.mrf.mxu0
        %v3277 = vadd.f32 0.0, %v3276
        %v3278 = vpop.f32.mrf.mxu0
        %v3279 = vpop.f32.mrf.mxu0
        %v3280 = vadd.f32 0.0, %v3279
        %v3281 = vpop.f32.mrf.mxu0
        %3282 = vmatprep.mubr.bf16.mxu0 0
        %3283 = vmatmul.mubr.bf16.gmra.mxu0 %v3168
        %v3284 = vpop.f32.mrf.mxu0
        %v3285 = vadd.f32 0.0, %v3284
        %v3286 = vpop.f32.mrf.mxu0
        %v3287 = vpop.f32.mrf.mxu0
        %v3288 = vadd.f32 0.0, %v3287
        %v3289 = vpop.f32.mrf.mxu0
        %3290 = vdwg.mxu0
        %3291 = vmax.xlane.f32.xlu0 %v3229
        %v3292 = vpop.xlane.xlu0 %3291
        %3293 = vmax.xlane.f32.xlu0 %v3232
        %v3294 = vpop.xlane.xlu0 %3293
        %3295 = vmax.xlane.f32.xlu0 %v3237
        %v3296 = vpop.xlane.xlu0 %3295
        %3297 = vmax.xlane.f32.xlu0 %v3240
        %v3298 = vpop.xlane.xlu0 %3297
        %3299 = vmax.xlane.f32.xlu0 %v3245
        %v3300 = vpop.xlane.xlu0 %3299
        %3301 = vmax.xlane.f32.xlu0 %v3248
        %v3302 = vpop.xlane.xlu0 %3301
        %3303 = vmax.xlane.f32.xlu0 %v3253
        %v3304 = vpop.xlane.xlu0 %3303
        %3305 = vmax.xlane.f32.xlu0 %v3256
        %v3306 = vpop.xlane.xlu0 %3305
        %3307 = vmax.xlane.f32.xlu0 %v3261
        %v3308 = vpop.xlane.xlu0 %3307
        %3309 = vmax.xlane.f32.xlu0 %v3264
        %v3310 = vpop.xlane.xlu0 %3309
        %3311 = vmax.xlane.f32.xlu0 %v3269
        %v3312 = vpop.xlane.xlu0 %3311
        %3313 = vmax.xlane.f32.xlu0 %v3272
        %v3314 = vpop.xlane.xlu0 %3313
        %3315 = vmax.xlane.f32.xlu0 %v3277
        %v3316 = vpop.xlane.xlu0 %3315
        %3317 = vmax.xlane.f32.xlu0 %v3280
        %v3318 = vpop.xlane.xlu0 %3317
        %3319 = vmax.xlane.f32.xlu0 %v3285
        %v3320 = vpop.xlane.xlu0 %3319
        %3321 = vmax.xlane.f32.xlu0 %v3288
        %v3322 = vpop.xlane.xlu0 %3321
        %v3323 = vsub.f32 %v3229, %v3292
        %v3324 = vsub.f32 %v3232, %v3294
        %v3325 = vsub.f32 %v3237, %v3296
        %v3326 = vsub.f32 %v3240, %v3298
        %v3327 = vsub.f32 %v3245, %v3300
        %v3328 = vsub.f32 %v3248, %v3302
        %v3329 = vsub.f32 %v3253, %v3304
        %v3330 = vsub.f32 %v3256, %v3306
        %v3331 = vsub.f32 %v3261, %v3308
        %v3332 = vsub.f32 %v3264, %v3310
        %v3333 = vsub.f32 %v3269, %v3312
        %v3334 = vsub.f32 %v3272, %v3314
        %v3335 = vsub.f32 %v3277, %v3316
        %v3336 = vsub.f32 %v3280, %v3318
        %v3337 = vsub.f32 %v3285, %v3320
        %v3338 = vsub.f32 %v3288, %v3322
        %v3339 = vmul.f32 %v3323, 1.442695
        %v3340 = vpow.pop %v3339
        %v3341 = vmul.f32 %v3324, 1.442695
        %v3342 = vpow.pop %v3341
        %v3343 = vmul.f32 %v3325, 1.442695
        %v3344 = vpow.pop %v3343
        %v3345 = vmul.f32 %v3326, 1.442695
        %v3346 = vpow.pop %v3345
        %v3347 = vmul.f32 %v3327, 1.442695
        %v3348 = vpow.pop %v3347
        %v3349 = vmul.f32 %v3328, 1.442695
        %v3350 = vpow.pop %v3349
        %v3351 = vmul.f32 %v3329, 1.442695
        %v3352 = vpow.pop %v3351
        %v3353 = vmul.f32 %v3330, 1.442695
        %v3354 = vpow.pop %v3353
        %v3355 = vmul.f32 %v3331, 1.442695
        %v3356 = vpow.pop %v3355
        %v3357 = vmul.f32 %v3332, 1.442695
        %v3358 = vpow.pop %v3357
        %v3359 = vmul.f32 %v3333, 1.442695
        %v3360 = vpow.pop %v3359
        %v3361 = vmul.f32 %v3334, 1.442695
        %v3362 = vpow.pop %v3361
        %v3363 = vmul.f32 %v3335, 1.442695
        %v3364 = vpow.pop %v3363
        %v3365 = vmul.f32 %v3336, 1.442695
        %v3366 = vpow.pop %v3365
        %v3367 = vmul.f32 %v3337, 1.442695
        %v3368 = vpow.pop %v3367
        %v3369 = vmul.f32 %v3338, 1.442695
        %v3370 = vpow.pop %v3369
        %3371 = vadd.xlane.f32.xlu0 %v3340
        %v3372 = vpop.xlane.xlu0 %3371
        %3373 = vadd.xlane.f32.xlu0 %v3342
        %v3374 = vpop.xlane.xlu0 %3373
        %3375 = vadd.xlane.f32.xlu0 %v3344
        %v3376 = vpop.xlane.xlu0 %3375
        %3377 = vadd.xlane.f32.xlu0 %v3346
        %v3378 = vpop.xlane.xlu0 %3377
        %3379 = vadd.xlane.f32.xlu0 %v3348
        %v3380 = vpop.xlane.xlu0 %3379
        %3381 = vadd.xlane.f32.xlu0 %v3350
        %v3382 = vpop.xlane.xlu0 %3381
        %3383 = vadd.xlane.f32.xlu0 %v3352
        %v3384 = vpop.xlane.xlu0 %3383
        %3385 = vadd.xlane.f32.xlu0 %v3354
        %v3386 = vpop.xlane.xlu0 %3385
        %3387 = vadd.xlane.f32.xlu0 %v3356
        %v3388 = vpop.xlane.xlu0 %3387
        %3389 = vadd.xlane.f32.xlu0 %v3358
        %v3390 = vpop.xlane.xlu0 %3389
        %3391 = vadd.xlane.f32.xlu0 %v3360
        %v3392 = vpop.xlane.xlu0 %3391
        %3393 = vadd.xlane.f32.xlu0 %v3362
        %v3394 = vpop.xlane.xlu0 %3393
        %3395 = vadd.xlane.f32.xlu0 %v3364
        %v3396 = vpop.xlane.xlu0 %3395
        %3397 = vadd.xlane.f32.xlu0 %v3366
        %v3398 = vpop.xlane.xlu0 %3397
        %3399 = vadd.xlane.f32.xlu0 %v3368
        %v3400 = vpop.xlane.xlu0 %3399
        %3401 = vadd.xlane.f32.xlu0 %v3370
        %v3402 = vpop.xlane.xlu0 %3401
        %v3403 = vpack.c.bf16 %v3342, %v3340
        %v3404 = vpack.c.bf16 %v3346, %v3344
        %v3405 = vpack.c.bf16 %v3350, %v3348
        %v3406 = vpack.c.bf16 %v3354, %v3352
        %v3407 = vpack.c.bf16 %v3358, %v3356
        %v3408 = vpack.c.bf16 %v3362, %v3360
        %v3409 = vpack.c.bf16 %v3366, %v3364
        %v3410 = vpack.c.bf16 %v3370, %v3368
        %v3427 = vunpack.c.l.b16 %v3018
        %v3428 = vunpack.c.l.b16 %v3019
        %v3429 = vunpack.c.l.b16 %v3020
        %v3430 = vunpack.c.l.b16 %v3021
        %v3431 = vunpack.c.l.b16 %v3022
        %v3432 = vunpack.c.l.b16 %v3023
        %v3433 = vunpack.c.l.b16 %v3024
        %v3434 = vunpack.c.l.b16 %v3025
        %v3435 = vunpack.c.l.b16 %v3026
        %v3436 = vunpack.c.l.b16 %v3027
        %v3437 = vunpack.c.l.b16 %v3028
        %v3438 = vunpack.c.l.b16 %v3029
        %v3439 = vunpack.c.l.b16 %v3030
        %v3440 = vunpack.c.l.b16 %v3031
        %v3441 = vunpack.c.l.b16 %v3032
        %v3442 = vunpack.c.l.b16 %v3033
        %v3443 = vpack.c.b16 %v3428, %v3427
        %v3444 = vpack.c.b16 %v3430, %v3429
        %v3445 = vpack.c.b16 %v3432, %v3431
        %v3446 = vpack.c.b16 %v3434, %v3433
        %v3447 = vpack.c.b16 %v3436, %v3435
        %v3448 = vpack.c.b16 %v3438, %v3437
        %v3449 = vpack.c.b16 %v3440, %v3439
        %v3450 = vpack.c.b16 %v3442, %v3441
        %3451 = vrot.lane.b32.xlu0 %v3443, 80
        %v3452 = vpop.permute.xlu0 %3451
        %3453 = vrot.lane.b32.xlu0 %v3444, 80
        %v3454 = vpop.permute.xlu0 %3453
        %3455 = vrot.lane.b32.xlu0 %v3445, 80
        %v3456 = vpop.permute.xlu0 %3455
        %3457 = vrot.lane.b32.xlu0 %v3446, 80
        %v3458 = vpop.permute.xlu0 %3457
        %3459 = vrot.lane.b32.xlu0 %v3447, 80
        %v3460 = vpop.permute.xlu0 %3459
        %3461 = vrot.lane.b32.xlu0 %v3448, 80
        %v3462 = vpop.permute.xlu0 %3461
        %3463 = vrot.lane.b32.xlu0 %v3449, 80
        %v3464 = vpop.permute.xlu0 %3463
        %3465 = vrot.lane.b32.xlu0 %v3450, 80
        %v3466 = vpop.permute.xlu0 %3465
        %3475 = vmatprep.subr.bf16.mxu0 0
        %3476 = vmatpush1.bf16.msra.mxu0 %v3466
        %3477 = vmatprep.subr.bf16.mxu0 0
        %3478 = vmatpush1.bf16.msra.mxu0 %v3464
        %3479 = vmatprep.subr.bf16.mxu0 0
        %3480 = vmatpush1.bf16.msra.mxu0 %v3462
        %3481 = vmatprep.subr.bf16.mxu0 0
        %3482 = vmatpush1.bf16.msra.mxu0 %v3460
        %3483 = vmatprep.subr.bf16.mxu0 0
        %3484 = vmatpush1.bf16.msra.mxu0 %v3458
        %3485 = vmatprep.subr.bf16.mxu0 0
        %3486 = vmatpush1.bf16.msra.mxu0 %v3456
        %3487 = vmatprep.subr.bf16.mxu0 0
        %3488 = vmatpush1.bf16.msra.mxu0 %v3454
        %3489 = vmatprep.subr.bf16.mxu0 0
        %3490 = vmatpush1.bf16.msra.mxu0 %v3452
        %3491 = vmatprep.subr.bf16.mxu0 0
        %3492 = vmatpush2.bf16.msra.mxu0 0
        %3493 = vmatprep.subr.bf16.mxu0 0
        %3494 = vmatpush2.bf16.msra.mxu0 0
        %3495 = vmatprep.subr.bf16.mxu0 0
        %3496 = vmatpush2.bf16.msra.mxu0 0
        %3497 = vmatprep.subr.bf16.mxu0 0
        %3498 = vmatpush2.bf16.msra.mxu0 0
        %3499 = vmatprep.subr.bf16.mxu0 0
        %3500 = vmatpush2.bf16.msra.mxu0 0
        %3501 = vmatprep.subr.bf16.mxu0 0
        %3502 = vmatpush2.bf16.msra.mxu0 0
        %3503 = vmatprep.subr.bf16.mxu0 0
        %3504 = vmatpush2.bf16.msra.mxu0 0
        %3505 = vmatprep.subr.bf16.mxu0 0
        %3506 = vmatpush2.bf16.msra.mxu0 0
        %3507 = vmatprep.mubr.bf16.mxu0 0
        %3508 = vmatmul.mubr.bf16.gmra.mxu0 %v3403
        %v3509 = vpop.f32.mrf.mxu0
        %v3510 = vadd.f32 0.0, %v3509
        %v3511 = vpop.f32.mrf.mxu0
        %v3512 = vpop.f32.mrf.mxu0
        %v3513 = vadd.f32 0.0, %v3512
        %v3514 = vpop.f32.mrf.mxu0
        %3515 = vmatprep.mubr.bf16.mxu0 0
        %3516 = vmatmul.mubr.bf16.gmra.mxu0 %v3404
        %v3517 = vpop.f32.mrf.mxu0
        %v3518 = vadd.f32 0.0, %v3517
        %v3519 = vpop.f32.mrf.mxu0
        %v3520 = vpop.f32.mrf.mxu0
        %v3521 = vadd.f32 0.0, %v3520
        %v3522 = vpop.f32.mrf.mxu0
        %3523 = vmatprep.mubr.bf16.mxu0 0
        %3524 = vmatmul.mubr.bf16.gmra.mxu0 %v3405
        %v3525 = vpop.f32.mrf.mxu0
        %v3526 = vadd.f32 0.0, %v3525
        %v3527 = vpop.f32.mrf.mxu0
        %v3528 = vpop.f32.mrf.mxu0
        %v3529 = vadd.f32 0.0, %v3528
        %v3530 = vpop.f32.mrf.mxu0
        %3531 = vmatprep.mubr.bf16.mxu0 0
        %3532 = vmatmul.mubr.bf16.gmra.mxu0 %v3406
        %v3533 = vpop.f32.mrf.mxu0
        %v3534 = vadd.f32 0.0, %v3533
        %v3535 = vpop.f32.mrf.mxu0
        %v3536 = vpop.f32.mrf.mxu0
        %v3537 = vadd.f32 0.0, %v3536
        %v3538 = vpop.f32.mrf.mxu0
        %3539 = vmatprep.mubr.bf16.mxu0 0
        %3540 = vmatmul.mubr.bf16.gmra.mxu0 %v3407
        %v3541 = vpop.f32.mrf.mxu0
        %v3542 = vadd.f32 0.0, %v3541
        %v3543 = vpop.f32.mrf.mxu0
        %v3544 = vpop.f32.mrf.mxu0
        %v3545 = vadd.f32 0.0, %v3544
        %v3546 = vpop.f32.mrf.mxu0
        %3547 = vmatprep.mubr.bf16.mxu0 0
        %3548 = vmatmul.mubr.bf16.gmra.mxu0 %v3408
        %v3549 = vpop.f32.mrf.mxu0
        %v3550 = vadd.f32 0.0, %v3549
        %v3551 = vpop.f32.mrf.mxu0
        %v3552 = vpop.f32.mrf.mxu0
        %v3553 = vadd.f32 0.0, %v3552
        %v3554 = vpop.f32.mrf.mxu0
        %3555 = vmatprep.mubr.bf16.mxu0 0
        %3556 = vmatmul.mubr.bf16.gmra.mxu0 %v3409
        %v3557 = vpop.f32.mrf.mxu0
        %v3558 = vadd.f32 0.0, %v3557
        %v3559 = vpop.f32.mrf.mxu0
        %v3560 = vpop.f32.mrf.mxu0
        %v3561 = vadd.f32 0.0, %v3560
        %v3562 = vpop.f32.mrf.mxu0
        %3563 = vmatprep.mubr.bf16.mxu0 0
        %3564 = vmatmul.mubr.bf16.gmra.mxu0 %v3410
        %v3565 = vpop.f32.mrf.mxu0
        %v3566 = vadd.f32 0.0, %v3565
        %v3567 = vpop.f32.mrf.mxu0
        %v3568 = vpop.f32.mrf.mxu0
        %v3569 = vadd.f32 0.0, %v3568
        %v3570 = vpop.f32.mrf.mxu0
        %3571 = vdwg.mxu0
        %v3572 = vrcp.pop %v3372
        %v3573 = vrcp.pop %v3374
        %v3574 = vrcp.pop %v3376
        %v3575 = vrcp.pop %v3378
        %v3576 = vrcp.pop %v3380
        %v3577 = vrcp.pop %v3382
        %v3578 = vrcp.pop %v3384
        %v3579 = vrcp.pop %v3386
        %v3580 = vrcp.pop %v3388
        %v3581 = vrcp.pop %v3390
        %v3582 = vrcp.pop %v3392
        %v3583 = vrcp.pop %v3394
        %v3584 = vrcp.pop %v3396
        %v3585 = vrcp.pop %v3398
        %v3586 = vrcp.pop %v3400
        %v3587 = vrcp.pop %v3402
        %v3588 = vmul.f32 %v3510, %v3572
        %v3589 = vmul.f32 %v3513, %v3573
        %v3590 = vmul.f32 %v3518, %v3574
        %v3591 = vmul.f32 %v3521, %v3575
        %v3592 = vmul.f32 %v3526, %v3576
        %v3593 = vmul.f32 %v3529, %v3577
        %v3594 = vmul.f32 %v3534, %v3578
        %v3595 = vmul.f32 %v3537, %v3579
        %v3596 = vmul.f32 %v3542, %v3580
        %v3597 = vmul.f32 %v3545, %v3581
        %v3598 = vmul.f32 %v3550, %v3582
        %v3599 = vmul.f32 %v3553, %v3583
        %v3600 = vmul.f32 %v3558, %v3584
        %v3601 = vmul.f32 %v3561, %v3585
        %v3602 = vmul.f32 %v3566, %v3586
        %v3603 = vmul.f32 %v3569, %v3587
        %v3604 = vpack.c.bf16 %v3589, %v3588
        %v3605 = vpack.c.bf16 %v3591, %v3590
        %v3606 = vpack.c.bf16 %v3593, %v3592
        %v3607 = vpack.c.bf16 %v3595, %v3594
        %v3608 = vpack.c.bf16 %v3597, %v3596
        %v3609 = vpack.c.bf16 %v3599, %v3598
        %v3610 = vpack.c.bf16 %v3601, %v3600
        %v3611 = vpack.c.bf16 %v3603, %v3602
        %v3620 = vunpack.c.l.b16 %v3604
        %v3621 = vunpack.c.h.b16 %v3604
        %v3622 = vunpack.c.l.b16 %v3605
        %v3623 = vunpack.c.h.b16 %v3605
        %v3624 = vunpack.c.l.b16 %v3606
        %v3625 = vunpack.c.h.b16 %v3606
        %v3626 = vunpack.c.l.b16 %v3607
        %v3627 = vunpack.c.h.b16 %v3607
        %v3628 = vunpack.c.l.b16 %v3608
        %v3629 = vunpack.c.h.b16 %v3608
        %v3630 = vunpack.c.l.b16 %v3609
        %v3631 = vunpack.c.h.b16 %v3609
        %v3632 = vunpack.c.l.b16 %v3610
        %v3633 = vunpack.c.h.b16 %v3610
        %v3634 = vunpack.c.l.b16 %v3611
        %v3635 = vunpack.c.h.b16 %v3611
        %v3636 = vpack.c.b16 %v3620, %v3620
        %v3637 = vpack.c.b16 %v3621, %v3621
        %v3638 = vpack.c.b16 %v3622, %v3622
        %v3639 = vpack.c.b16 %v3623, %v3623
        %v3640 = vpack.c.b16 %v3624, %v3624
        %v3641 = vpack.c.b16 %v3625, %v3625
        %v3642 = vpack.c.b16 %v3626, %v3626
        %v3643 = vpack.c.b16 %v3627, %v3627
        %v3644 = vpack.c.b16 %v3628, %v3628
        %v3645 = vpack.c.b16 %v3629, %v3629
        %v3646 = vpack.c.b16 %v3630, %v3630
        %v3647 = vpack.c.b16 %v3631, %v3631
        %v3648 = vpack.c.b16 %v3632, %v3632
        %v3649 = vpack.c.b16 %v3633, %v3633
        %v3650 = vpack.c.b16 %v3634, %v3634
        %v3651 = vpack.c.b16 %v3635, %v3635
        %3652 = vrot.lane.b32.xlu0 %v3636, 48
        %v3653 = vpop.permute.xlu0 %3652
        %3654 = vrot.lane.b32.xlu0 %v3637, 48
        %v3655 = vpop.permute.xlu0 %3654
        %3656 = vrot.lane.b32.xlu0 %v3638, 48
        %v3657 = vpop.permute.xlu0 %3656
        %3658 = vrot.lane.b32.xlu0 %v3639, 48
        %v3659 = vpop.permute.xlu0 %3658
        %3660 = vrot.lane.b32.xlu0 %v3640, 48
        %v3661 = vpop.permute.xlu0 %3660
        %3662 = vrot.lane.b32.xlu0 %v3641, 48
        %v3663 = vpop.permute.xlu0 %3662
        %3664 = vrot.lane.b32.xlu0 %v3642, 48
        %v3665 = vpop.permute.xlu0 %3664
        %3666 = vrot.lane.b32.xlu0 %v3643, 48
        %v3667 = vpop.permute.xlu0 %3666
        %3668 = vrot.lane.b32.xlu0 %v3644, 48
        %v3669 = vpop.permute.xlu0 %3668
        %3670 = vrot.lane.b32.xlu0 %v3645, 48
        %v3671 = vpop.permute.xlu0 %3670
        %3672 = vrot.lane.b32.xlu0 %v3646, 48
        %v3673 = vpop.permute.xlu0 %3672
        %3674 = vrot.lane.b32.xlu0 %v3647, 48
        %v3675 = vpop.permute.xlu0 %3674
        %3676 = vrot.lane.b32.xlu0 %v3648, 48
        %v3677 = vpop.permute.xlu0 %3676
        %3678 = vrot.lane.b32.xlu0 %v3649, 48
        %v3679 = vpop.permute.xlu0 %3678
        %3680 = vrot.lane.b32.xlu0 %v3650, 48
        %v3681 = vpop.permute.xlu0 %3680
        %3682 = vrot.lane.b32.xlu0 %v3651, 48
        %v3683 = vpop.permute.xlu0 %3682
        %vm3700 = vcmask 519552
        %3701 = vst.msk [vmem:[#allocation3] sm:$0xf] %vm3700, %v3653
        %3702 = vst.msk [vmem:[#allocation3 + $0x4] sm:$0xf] %vm3700, %v3655
        %3703 = vst.msk [vmem:[#allocation3 + $0x8] sm:$0xf] %vm3700, %v3657
        %3704 = vst.msk [vmem:[#allocation3 + $0xc] sm:$0xf] %vm3700, %v3659
        %3705 = vst.msk [vmem:[#allocation3 + $0x10] sm:$0xf] %vm3700, %v3661
        %3706 = vst.msk [vmem:[#allocation3 + $0x14] sm:$0xf] %vm3700, %v3663
        %3707 = vst.msk [vmem:[#allocation3 + $0x18] sm:$0xf] %vm3700, %v3665
        %3708 = vst.msk [vmem:[#allocation3 + $0x1c] sm:$0xf] %vm3700, %v3667
        %3709 = vst.msk [vmem:[#allocation3 + $0x20] sm:$0xf] %vm3700, %v3669
        %3710 = vst.msk [vmem:[#allocation3 + $0x24] sm:$0xf] %vm3700, %v3671
        %3711 = vst.msk [vmem:[#allocation3 + $0x28] sm:$0xf] %vm3700, %v3673
        %3712 = vst.msk [vmem:[#allocation3 + $0x2c] sm:$0xf] %vm3700, %v3675
        %3713 = vst.msk [vmem:[#allocation3 + $0x30] sm:$0xf] %vm3700, %v3677
        %3714 = vst.msk [vmem:[#allocation3 + $0x34] sm:$0xf] %vm3700, %v3679
        %3715 = vst.msk [vmem:[#allocation3 + $0x38] sm:$0xf] %vm3700, %v3681
        %3716 = vst.msk [vmem:[#allocation3 + $0x3c] sm:$0xf] %vm3700, %v3683
        %v3717 = vld [vmem:[#allocation2] sm:$0xf]
        %v3718 = vld [vmem:[#allocation2 + $0xc] sm:$0xf]
        %v3719 = vld [vmem:[#allocation2 + $0x18] sm:$0xf]
        %v3720 = vld [vmem:[#allocation2 + $0x24] sm:$0xf]
        %v3721 = vld [vmem:[#allocation2 + $0x30] sm:$0xf]
        %v3722 = vld [vmem:[#allocation2 + $0x3c] sm:$0xf]
        %v3723 = vld [vmem:[#allocation2 + $0x48] sm:$0xf]
        %v3724 = vld [vmem:[#allocation2 + $0x54] sm:$0xf]
        %v3725 = vld [vmem:[#allocation2 + $0x60] sm:$0xf]
        %v3726 = vld [vmem:[#allocation2 + $0x6c] sm:$0xf]
        %v3727 = vld [vmem:[#allocation2 + $0x78] sm:$0xf]
        %v3728 = vld [vmem:[#allocation2 + $0x84] sm:$0xf]
        %v3729 = vld [vmem:[#allocation2 + $0x90] sm:$0xf]
        %v3730 = vld [vmem:[#allocation2 + $0x9c] sm:$0xf]
        %v3731 = vld [vmem:[#allocation2 + $0xa8] sm:$0xf]
        %v3732 = vld [vmem:[#allocation2 + $0xb4] sm:$0xf]
        %v3733 = vld [vmem:[#allocation2 + $0x4] sm:$0xf]
        %v3734 = vld [vmem:[#allocation2 + $0x10] sm:$0xf]
        %v3735 = vld [vmem:[#allocation2 + $0x1c] sm:$0xf]
        %v3736 = vld [vmem:[#allocation2 + $0x28] sm:$0xf]
        %v3737 = vld [vmem:[#allocation2 + $0x34] sm:$0xf]
        %v3738 = vld [vmem:[#allocation2 + $0x40] sm:$0xf]
        %v3739 = vld [vmem:[#allocation2 + $0x4c] sm:$0xf]
        %v3740 = vld [vmem:[#allocation2 + $0x58] sm:$0xf]
        %v3741 = vld [vmem:[#allocation2 + $0x64] sm:$0xf]
        %v3742 = vld [vmem:[#allocation2 + $0x70] sm:$0xf]
        %v3743 = vld [vmem:[#allocation2 + $0x7c] sm:$0xf]
        %v3744 = vld [vmem:[#allocation2 + $0x88] sm:$0xf]
        %v3745 = vld [vmem:[#allocation2 + $0x94] sm:$0xf]
        %v3746 = vld [vmem:[#allocation2 + $0xa0] sm:$0xf]
        %v3747 = vld [vmem:[#allocation2 + $0xac] sm:$0xf]
        %v3748 = vld [vmem:[#allocation2 + $0xb8] sm:$0xf]
        %v3749 = vld [vmem:[#allocation2 + $0x8] sm:$0xf]
        %v3750 = vld [vmem:[#allocation2 + $0x14] sm:$0xf]
        %v3751 = vld [vmem:[#allocation2 + $0x20] sm:$0xf]
        %v3752 = vld [vmem:[#allocation2 + $0x2c] sm:$0xf]
        %v3753 = vld [vmem:[#allocation2 + $0x38] sm:$0xf]
        %v3754 = vld [vmem:[#allocation2 + $0x44] sm:$0xf]
        %v3755 = vld [vmem:[#allocation2 + $0x50] sm:$0xf]
        %v3756 = vld [vmem:[#allocation2 + $0x5c] sm:$0xf]
        %v3757 = vld [vmem:[#allocation2 + $0x68] sm:$0xf]
        %v3758 = vld [vmem:[#allocation2 + $0x74] sm:$0xf]
        %v3759 = vld [vmem:[#allocation2 + $0x80] sm:$0xf]
        %v3760 = vld [vmem:[#allocation2 + $0x8c] sm:$0xf]
        %v3761 = vld [vmem:[#allocation2 + $0x98] sm:$0xf]
        %v3762 = vld [vmem:[#allocation2 + $0xa4] sm:$0xf]
        %v3763 = vld [vmem:[#allocation2 + $0xb0] sm:$0xf]
        %v3764 = vld [vmem:[#allocation2 + $0xbc] sm:$0xf]
        %v3781 = vunpack.c.l.b16 %v3717
        %v3782 = vunpack.c.l.b16 %v3718
        %v3783 = vunpack.c.l.b16 %v3719
        %v3784 = vunpack.c.l.b16 %v3720
        %v3785 = vunpack.c.l.b16 %v3721
        %v3786 = vunpack.c.l.b16 %v3722
        %v3787 = vunpack.c.l.b16 %v3723
        %v3788 = vunpack.c.l.b16 %v3724
        %v3789 = vunpack.c.l.b16 %v3725
        %v3790 = vunpack.c.l.b16 %v3726
        %v3791 = vunpack.c.l.b16 %v3727
        %v3792 = vunpack.c.l.b16 %v3728
        %v3793 = vunpack.c.l.b16 %v3729
        %v3794 = vunpack.c.l.b16 %v3730
        %v3795 = vunpack.c.l.b16 %v3731
        %v3796 = vunpack.c.l.b16 %v3732
        %v3797 = vpack.c.b16 %v3782, %v3781
        %v3798 = vpack.c.b16 %v3784, %v3783
        %v3799 = vpack.c.b16 %v3786, %v3785
        %v3800 = vpack.c.b16 %v3788, %v3787
        %v3801 = vpack.c.b16 %v3790, %v3789
        %v3802 = vpack.c.b16 %v3792, %v3791
        %v3803 = vpack.c.b16 %v3794, %v3793
        %v3804 = vpack.c.b16 %v3796, %v3795
        %3805 = vrot.lane.b32.xlu0 %v3797, 64
        %v3806 = vpop.permute.xlu0 %3805
        %3807 = vrot.lane.b32.xlu0 %v3798, 64
        %v3808 = vpop.permute.xlu0 %3807
        %3809 = vrot.lane.b32.xlu0 %v3799, 64
        %v3810 = vpop.permute.xlu0 %3809
        %3811 = vrot.lane.b32.xlu0 %v3800, 64
        %v3812 = vpop.permute.xlu0 %3811
        %3813 = vrot.lane.b32.xlu0 %v3801, 64
        %v3814 = vpop.permute.xlu0 %3813
        %3815 = vrot.lane.b32.xlu0 %v3802, 64
        %v3816 = vpop.permute.xlu0 %3815
        %3817 = vrot.lane.b32.xlu0 %v3803, 64
        %v3818 = vpop.permute.xlu0 %3817
        %3819 = vrot.lane.b32.xlu0 %v3804, 64
        %v3820 = vpop.permute.xlu0 %3819
        %v3837 = vunpack.c.l.b16 %v3733
        %v3838 = vunpack.c.l.b16 %v3734
        %v3839 = vunpack.c.l.b16 %v3735
        %v3840 = vunpack.c.l.b16 %v3736
        %v3841 = vunpack.c.l.b16 %v3737
        %v3842 = vunpack.c.l.b16 %v3738
        %v3843 = vunpack.c.l.b16 %v3739
        %v3844 = vunpack.c.l.b16 %v3740
        %v3845 = vunpack.c.l.b16 %v3741
        %v3846 = vunpack.c.l.b16 %v3742
        %v3847 = vunpack.c.l.b16 %v3743
        %v3848 = vunpack.c.l.b16 %v3744
        %v3849 = vunpack.c.l.b16 %v3745
        %v3850 = vunpack.c.l.b16 %v3746
        %v3851 = vunpack.c.l.b16 %v3747
        %v3852 = vunpack.c.l.b16 %v3748
        %v3853 = vpack.c.b16 %v3838, %v3837
        %v3854 = vpack.c.b16 %v3840, %v3839
        %v3855 = vpack.c.b16 %v3842, %v3841
        %v3856 = vpack.c.b16 %v3844, %v3843
        %v3857 = vpack.c.b16 %v3846, %v3845
        %v3858 = vpack.c.b16 %v3848, %v3847
        %v3859 = vpack.c.b16 %v3850, %v3849
        %v3860 = vpack.c.b16 %v3852, %v3851
        %3861 = vrot.lane.b32.xlu0 %v3853, 64
        %v3862 = vpop.permute.xlu0 %3861
        %3863 = vrot.lane.b32.xlu0 %v3854, 64
        %v3864 = vpop.permute.xlu0 %3863
        %3865 = vrot.lane.b32.xlu0 %v3855, 64
        %v3866 = vpop.permute.xlu0 %3865
        %3867 = vrot.lane.b32.xlu0 %v3856, 64
        %v3868 = vpop.permute.xlu0 %3867
        %3869 = vrot.lane.b32.xlu0 %v3857, 64
        %v3870 = vpop.permute.xlu0 %3869
        %3871 = vrot.lane.b32.xlu0 %v3858, 64
        %v3872 = vpop.permute.xlu0 %3871
        %3873 = vrot.lane.b32.xlu0 %v3859, 64
        %v3874 = vpop.permute.xlu0 %3873
        %3875 = vrot.lane.b32.xlu0 %v3860, 64
        %v3876 = vpop.permute.xlu0 %3875
        %v3878 = vsel %vm1000, %v3806, 0
        %v3881 = vsel %vm1000, %v3808, 0
        %v3884 = vsel %vm1000, %v3810, 0
        %v3887 = vsel %vm1000, %v3812, 0
        %v3890 = vsel %vm1000, %v3814, 0
        %v3893 = vsel %vm1000, %v3816, 0
        %v3896 = vsel %vm1000, %v3818, 0
        %v3899 = vsel %vm1000, %v3820, 0
        %v3902 = vsel %vm1000, %v3862, 0
        %v3905 = vsel %vm1000, %v3864, 0
        %v3908 = vsel %vm1000, %v3866, 0
        %v3911 = vsel %vm1000, %v3868, 0
        %v3914 = vsel %vm1000, %v3870, 0
        %v3917 = vsel %vm1000, %v3872, 0
        %v3920 = vsel %vm1000, %v3874, 0
        %v3923 = vsel %vm1000, %v3876, 0
        %3925 = vmatprep.subr.bf16.mxu0 0
        %3926 = vmatpush1.bf16.xpose.msra.mxu0 %v3923
        %3927 = vmatprep.subr.bf16.mxu0 0
        %3928 = vmatpush1.bf16.xpose.msra.mxu0 %v3920
        %3929 = vmatprep.subr.bf16.mxu0 0
        %3930 = vmatpush1.bf16.xpose.msra.mxu0 %v3917
        %3931 = vmatprep.subr.bf16.mxu0 0
        %3932 = vmatpush1.bf16.xpose.msra.mxu0 %v3914
        %3933 = vmatprep.subr.bf16.mxu0 0
        %3934 = vmatpush1.bf16.xpose.msra.mxu0 %v3911
        %3935 = vmatprep.subr.bf16.mxu0 0
        %3936 = vmatpush1.bf16.xpose.msra.mxu0 %v3908
        %3937 = vmatprep.subr.bf16.mxu0 0
        %3938 = vmatpush1.bf16.xpose.msra.mxu0 %v3905
        %3939 = vmatprep.subr.bf16.mxu0 0
        %3940 = vmatpush1.bf16.xpose.msra.mxu0 %v3902
        %3941 = vmatprep.subr.bf16.mxu0 0
        %3942 = vmatpush2.bf16.xpose.msra.mxu0 0
        %3943 = vmatprep.subr.bf16.mxu0 0
        %3944 = vmatpush2.bf16.xpose.msra.mxu0 0
        %3945 = vmatprep.subr.bf16.mxu0 0
        %3946 = vmatpush2.bf16.xpose.msra.mxu0 0
        %3947 = vmatprep.subr.bf16.mxu0 0
        %3948 = vmatpush2.bf16.xpose.msra.mxu0 0
        %3949 = vmatprep.subr.bf16.mxu0 0
        %3950 = vmatpush2.bf16.xpose.msra.mxu0 0
        %3951 = vmatprep.subr.bf16.mxu0 0
        %3952 = vmatpush2.bf16.xpose.msra.mxu0 0
        %3953 = vmatprep.subr.bf16.mxu0 0
        %3954 = vmatpush2.bf16.xpose.msra.mxu0 0
        %3955 = vmatprep.subr.bf16.mxu0 0
        %3956 = vmatpush2.bf16.xpose.msra.mxu0 0
        %3957 = vmatprep.mubr.bf16.mxu0 0
        %3958 = vmatmul.mubr.bf16.gmra.mxu0 %v3878
        %v3959 = vpop.f32.mrf.mxu0
        %v3960 = vadd.f32 0.0, %v3959
        %v3961 = vpop.f32.mrf.mxu0
        %v3962 = vpop.f32.mrf.mxu0
        %v3963 = vadd.f32 0.0, %v3962
        %v3964 = vpop.f32.mrf.mxu0
        %3965 = vmatprep.mubr.bf16.mxu0 0
        %3966 = vmatmul.mubr.bf16.gmra.mxu0 %v3881
        %v3967 = vpop.f32.mrf.mxu0
        %v3968 = vadd.f32 0.0, %v3967
        %v3969 = vpop.f32.mrf.mxu0
        %v3970 = vpop.f32.mrf.mxu0
        %v3971 = vadd.f32 0.0, %v3970
        %v3972 = vpop.f32.mrf.mxu0
        %3973 = vmatprep.mubr.bf16.mxu0 0
        %3974 = vmatmul.mubr.bf16.gmra.mxu0 %v3884
        %v3975 = vpop.f32.mrf.mxu0
        %v3976 = vadd.f32 0.0, %v3975
        %v3977 = vpop.f32.mrf.mxu0
        %v3978 = vpop.f32.mrf.mxu0
        %v3979 = vadd.f32 0.0, %v3978
        %v3980 = vpop.f32.mrf.mxu0
        %3981 = vmatprep.mubr.bf16.mxu0 0
        %3982 = vmatmul.mubr.bf16.gmra.mxu0 %v3887
        %v3983 = vpop.f32.mrf.mxu0
        %v3984 = vadd.f32 0.0, %v3983
        %v3985 = vpop.f32.mrf.mxu0
        %v3986 = vpop.f32.mrf.mxu0
        %v3987 = vadd.f32 0.0, %v3986
        %v3988 = vpop.f32.mrf.mxu0
        %3989 = vmatprep.mubr.bf16.mxu0 0
        %3990 = vmatmul.mubr.bf16.gmra.mxu0 %v3890
        %v3991 = vpop.f32.mrf.mxu0
        %v3992 = vadd.f32 0.0, %v3991
        %v3993 = vpop.f32.mrf.mxu0
        %v3994 = vpop.f32.mrf.mxu0
        %v3995 = vadd.f32 0.0, %v3994
        %v3996 = vpop.f32.mrf.mxu0
        %3997 = vmatprep.mubr.bf16.mxu0 0
        %3998 = vmatmul.mubr.bf16.gmra.mxu0 %v3893
        %v3999 = vpop.f32.mrf.mxu0
        %v4000 = vadd.f32 0.0, %v3999
        %v4001 = vpop.f32.mrf.mxu0
        %v4002 = vpop.f32.mrf.mxu0
        %v4003 = vadd.f32 0.0, %v4002
        %v4004 = vpop.f32.mrf.mxu0
        %4005 = vmatprep.mubr.bf16.mxu0 0
        %4006 = vmatmul.mubr.bf16.gmra.mxu0 %v3896
        %v4007 = vpop.f32.mrf.mxu0
        %v4008 = vadd.f32 0.0, %v4007
        %v4009 = vpop.f32.mrf.mxu0
        %v4010 = vpop.f32.mrf.mxu0
        %v4011 = vadd.f32 0.0, %v4010
        %v4012 = vpop.f32.mrf.mxu0
        %4013 = vmatprep.mubr.bf16.mxu0 0
        %4014 = vmatmul.mubr.bf16.gmra.mxu0 %v3899
        %v4015 = vpop.f32.mrf.mxu0
        %v4016 = vadd.f32 0.0, %v4015
        %v4017 = vpop.f32.mrf.mxu0
        %v4018 = vpop.f32.mrf.mxu0
        %v4019 = vadd.f32 0.0, %v4018
        %v4020 = vpop.f32.mrf.mxu0
        %4021 = vdwg.mxu0
        %4022 = vmax.xlane.f32.xlu0 %v3960
        %v4023 = vpop.xlane.xlu0 %4022
        %4024 = vmax.xlane.f32.xlu0 %v3963
        %v4025 = vpop.xlane.xlu0 %4024
        %4026 = vmax.xlane.f32.xlu0 %v3968
        %v4027 = vpop.xlane.xlu0 %4026
        %4028 = vmax.xlane.f32.xlu0 %v3971
        %v4029 = vpop.xlane.xlu0 %4028
        %4030 = vmax.xlane.f32.xlu0 %v3976
        %v4031 = vpop.xlane.xlu0 %4030
        %4032 = vmax.xlane.f32.xlu0 %v3979
        %v4033 = vpop.xlane.xlu0 %4032
        %4034 = vmax.xlane.f32.xlu0 %v3984
        %v4035 = vpop.xlane.xlu0 %4034
        %4036 = vmax.xlane.f32.xlu0 %v3987
        %v4037 = vpop.xlane.xlu0 %4036
        %4038 = vmax.xlane.f32.xlu0 %v3992
        %v4039 = vpop.xlane.xlu0 %4038
        %4040 = vmax.xlane.f32.xlu0 %v3995
        %v4041 = vpop.xlane.xlu0 %4040
        %4042 = vmax.xlane.f32.xlu0 %v4000
        %v4043 = vpop.xlane.xlu0 %4042
        %4044 = vmax.xlane.f32.xlu0 %v4003
        %v4045 = vpop.xlane.xlu0 %4044
        %4046 = vmax.xlane.f32.xlu0 %v4008
        %v4047 = vpop.xlane.xlu0 %4046
        %4048 = vmax.xlane.f32.xlu0 %v4011
        %v4049 = vpop.xlane.xlu0 %4048
        %4050 = vmax.xlane.f32.xlu0 %v4016
        %v4051 = vpop.xlane.xlu0 %4050
        %4052 = vmax.xlane.f32.xlu0 %v4019
        %v4053 = vpop.xlane.xlu0 %4052
        %v4054 = vsub.f32 %v3960, %v4023
        %v4055 = vsub.f32 %v3963, %v4025
        %v4056 = vsub.f32 %v3968, %v4027
        %v4057 = vsub.f32 %v3971, %v4029
        %v4058 = vsub.f32 %v3976, %v4031
        %v4059 = vsub.f32 %v3979, %v4033
        %v4060 = vsub.f32 %v3984, %v4035
        %v4061 = vsub.f32 %v3987, %v4037
        %v4062 = vsub.f32 %v3992, %v4039
        %v4063 = vsub.f32 %v3995, %v4041
        %v4064 = vsub.f32 %v4000, %v4043
        %v4065 = vsub.f32 %v4003, %v4045
        %v4066 = vsub.f32 %v4008, %v4047
        %v4067 = vsub.f32 %v4011, %v4049
        %v4068 = vsub.f32 %v4016, %v4051
        %v4069 = vsub.f32 %v4019, %v4053
        %v4070 = vmul.f32 %v4054, 1.442695
        %v4071 = vpow.pop %v4070
        %v4072 = vmul.f32 %v4055, 1.442695
        %v4073 = vpow.pop %v4072
        %v4074 = vmul.f32 %v4056, 1.442695
        %v4075 = vpow.pop %v4074
        %v4076 = vmul.f32 %v4057, 1.442695
        %v4077 = vpow.pop %v4076
        %v4078 = vmul.f32 %v4058, 1.442695
        %v4079 = vpow.pop %v4078
        %v4080 = vmul.f32 %v4059, 1.442695
        %v4081 = vpow.pop %v4080
        %v4082 = vmul.f32 %v4060, 1.442695
        %v4083 = vpow.pop %v4082
        %v4084 = vmul.f32 %v4061, 1.442695
        %v4085 = vpow.pop %v4084
        %v4086 = vmul.f32 %v4062, 1.442695
        %v4087 = vpow.pop %v4086
        %v4088 = vmul.f32 %v4063, 1.442695
        %v4089 = vpow.pop %v4088
        %v4090 = vmul.f32 %v4064, 1.442695
        %v4091 = vpow.pop %v4090
        %v4092 = vmul.f32 %v4065, 1.442695
        %v4093 = vpow.pop %v4092
        %v4094 = vmul.f32 %v4066, 1.442695
        %v4095 = vpow.pop %v4094
        %v4096 = vmul.f32 %v4067, 1.442695
        %v4097 = vpow.pop %v4096
        %v4098 = vmul.f32 %v4068, 1.442695
        %v4099 = vpow.pop %v4098
        %v4100 = vmul.f32 %v4069, 1.442695
        %v4101 = vpow.pop %v4100
        %4102 = vadd.xlane.f32.xlu0 %v4071
        %v4103 = vpop.xlane.xlu0 %4102
        %4104 = vadd.xlane.f32.xlu0 %v4073
        %v4105 = vpop.xlane.xlu0 %4104
        %4106 = vadd.xlane.f32.xlu0 %v4075
        %v4107 = vpop.xlane.xlu0 %4106
        %4108 = vadd.xlane.f32.xlu0 %v4077
        %v4109 = vpop.xlane.xlu0 %4108
        %4110 = vadd.xlane.f32.xlu0 %v4079
        %v4111 = vpop.xlane.xlu0 %4110
        %4112 = vadd.xlane.f32.xlu0 %v4081
        %v4113 = vpop.xlane.xlu0 %4112
        %4114 = vadd.xlane.f32.xlu0 %v4083
        %v4115 = vpop.xlane.xlu0 %4114
        %4116 = vadd.xlane.f32.xlu0 %v4085
        %v4117 = vpop.xlane.xlu0 %4116
        %4118 = vadd.xlane.f32.xlu0 %v4087
        %v4119 = vpop.xlane.xlu0 %4118
        %4120 = vadd.xlane.f32.xlu0 %v4089
        %v4121 = vpop.xlane.xlu0 %4120
        %4122 = vadd.xlane.f32.xlu0 %v4091
        %v4123 = vpop.xlane.xlu0 %4122
        %4124 = vadd.xlane.f32.xlu0 %v4093
        %v4125 = vpop.xlane.xlu0 %4124
        %4126 = vadd.xlane.f32.xlu0 %v4095
        %v4127 = vpop.xlane.xlu0 %4126
        %4128 = vadd.xlane.f32.xlu0 %v4097
        %v4129 = vpop.xlane.xlu0 %4128
        %4130 = vadd.xlane.f32.xlu0 %v4099
        %v4131 = vpop.xlane.xlu0 %4130
        %4132 = vadd.xlane.f32.xlu0 %v4101
        %v4133 = vpop.xlane.xlu0 %4132
        %v4134 = vpack.c.bf16 %v4073, %v4071
        %v4135 = vpack.c.bf16 %v4077, %v4075
        %v4136 = vpack.c.bf16 %v4081, %v4079
        %v4137 = vpack.c.bf16 %v4085, %v4083
        %v4138 = vpack.c.bf16 %v4089, %v4087
        %v4139 = vpack.c.bf16 %v4093, %v4091
        %v4140 = vpack.c.bf16 %v4097, %v4095
        %v4141 = vpack.c.bf16 %v4101, %v4099
        %v4158 = vunpack.c.l.b16 %v3749
        %v4159 = vunpack.c.l.b16 %v3750
        %v4160 = vunpack.c.l.b16 %v3751
        %v4161 = vunpack.c.l.b16 %v3752
        %v4162 = vunpack.c.l.b16 %v3753
        %v4163 = vunpack.c.l.b16 %v3754
        %v4164 = vunpack.c.l.b16 %v3755
        %v4165 = vunpack.c.l.b16 %v3756
        %v4166 = vunpack.c.l.b16 %v3757
        %v4167 = vunpack.c.l.b16 %v3758
        %v4168 = vunpack.c.l.b16 %v3759
        %v4169 = vunpack.c.l.b16 %v3760
        %v4170 = vunpack.c.l.b16 %v3761
        %v4171 = vunpack.c.l.b16 %v3762
        %v4172 = vunpack.c.l.b16 %v3763
        %v4173 = vunpack.c.l.b16 %v3764
        %v4174 = vpack.c.b16 %v4159, %v4158
        %v4175 = vpack.c.b16 %v4161, %v4160
        %v4176 = vpack.c.b16 %v4163, %v4162
        %v4177 = vpack.c.b16 %v4165, %v4164
        %v4178 = vpack.c.b16 %v4167, %v4166
        %v4179 = vpack.c.b16 %v4169, %v4168
        %v4180 = vpack.c.b16 %v4171, %v4170
        %v4181 = vpack.c.b16 %v4173, %v4172
        %4182 = vrot.lane.b32.xlu0 %v4174, 64
        %v4183 = vpop.permute.xlu0 %4182
        %4184 = vrot.lane.b32.xlu0 %v4175, 64
        %v4185 = vpop.permute.xlu0 %4184
        %4186 = vrot.lane.b32.xlu0 %v4176, 64
        %v4187 = vpop.permute.xlu0 %4186
        %4188 = vrot.lane.b32.xlu0 %v4177, 64
        %v4189 = vpop.permute.xlu0 %4188
        %4190 = vrot.lane.b32.xlu0 %v4178, 64
        %v4191 = vpop.permute.xlu0 %4190
        %4192 = vrot.lane.b32.xlu0 %v4179, 64
        %v4193 = vpop.permute.xlu0 %4192
        %4194 = vrot.lane.b32.xlu0 %v4180, 64
        %v4195 = vpop.permute.xlu0 %4194
        %4196 = vrot.lane.b32.xlu0 %v4181, 64
        %v4197 = vpop.permute.xlu0 %4196
        %4206 = vmatprep.subr.bf16.mxu0 0
        %4207 = vmatpush1.bf16.msra.mxu0 %v4197
        %4208 = vmatprep.subr.bf16.mxu0 0
        %4209 = vmatpush1.bf16.msra.mxu0 %v4195
        %4210 = vmatprep.subr.bf16.mxu0 0
        %4211 = vmatpush1.bf16.msra.mxu0 %v4193
        %4212 = vmatprep.subr.bf16.mxu0 0
        %4213 = vmatpush1.bf16.msra.mxu0 %v4191
        %4214 = vmatprep.subr.bf16.mxu0 0
        %4215 = vmatpush1.bf16.msra.mxu0 %v4189
        %4216 = vmatprep.subr.bf16.mxu0 0
        %4217 = vmatpush1.bf16.msra.mxu0 %v4187
        %4218 = vmatprep.subr.bf16.mxu0 0
        %4219 = vmatpush1.bf16.msra.mxu0 %v4185
        %4220 = vmatprep.subr.bf16.mxu0 0
        %4221 = vmatpush1.bf16.msra.mxu0 %v4183
        %4222 = vmatprep.subr.bf16.mxu0 0
        %4223 = vmatpush2.bf16.msra.mxu0 0
        %4224 = vmatprep.subr.bf16.mxu0 0
        %4225 = vmatpush2.bf16.msra.mxu0 0
        %4226 = vmatprep.subr.bf16.mxu0 0
        %4227 = vmatpush2.bf16.msra.mxu0 0
        %4228 = vmatprep.subr.bf16.mxu0 0
        %4229 = vmatpush2.bf16.msra.mxu0 0
        %4230 = vmatprep.subr.bf16.mxu0 0
        %4231 = vmatpush2.bf16.msra.mxu0 0
        %4232 = vmatprep.subr.bf16.mxu0 0
        %4233 = vmatpush2.bf16.msra.mxu0 0
        %4234 = vmatprep.subr.bf16.mxu0 0
        %4235 = vmatpush2.bf16.msra.mxu0 0
        %4236 = vmatprep.subr.bf16.mxu0 0
        %4237 = vmatpush2.bf16.msra.mxu0 0
        %4238 = vmatprep.mubr.bf16.mxu0 0
        %4239 = vmatmul.mubr.bf16.gmra.mxu0 %v4134
        %v4240 = vpop.f32.mrf.mxu0
        %v4241 = vadd.f32 0.0, %v4240
        %v4242 = vpop.f32.mrf.mxu0
        %v4243 = vpop.f32.mrf.mxu0
        %v4244 = vadd.f32 0.0, %v4243
        %v4245 = vpop.f32.mrf.mxu0
        %4246 = vmatprep.mubr.bf16.mxu0 0
        %4247 = vmatmul.mubr.bf16.gmra.mxu0 %v4135
        %v4248 = vpop.f32.mrf.mxu0
        %v4249 = vadd.f32 0.0, %v4248
        %v4250 = vpop.f32.mrf.mxu0
        %v4251 = vpop.f32.mrf.mxu0
        %v4252 = vadd.f32 0.0, %v4251
        %v4253 = vpop.f32.mrf.mxu0
        %4254 = vmatprep.mubr.bf16.mxu0 0
        %4255 = vmatmul.mubr.bf16.gmra.mxu0 %v4136
        %v4256 = vpop.f32.mrf.mxu0
        %v4257 = vadd.f32 0.0, %v4256
        %v4258 = vpop.f32.mrf.mxu0
        %v4259 = vpop.f32.mrf.mxu0
        %v4260 = vadd.f32 0.0, %v4259
        %v4261 = vpop.f32.mrf.mxu0
        %4262 = vmatprep.mubr.bf16.mxu0 0
        %4263 = vmatmul.mubr.bf16.gmra.mxu0 %v4137
        %v4264 = vpop.f32.mrf.mxu0
        %v4265 = vadd.f32 0.0, %v4264
        %v4266 = vpop.f32.mrf.mxu0
        %v4267 = vpop.f32.mrf.mxu0
        %v4268 = vadd.f32 0.0, %v4267
        %v4269 = vpop.f32.mrf.mxu0
        %4270 = vmatprep.mubr.bf16.mxu0 0
        %4271 = vmatmul.mubr.bf16.gmra.mxu0 %v4138
        %v4272 = vpop.f32.mrf.mxu0
        %v4273 = vadd.f32 0.0, %v4272
        %v4274 = vpop.f32.mrf.mxu0
        %v4275 = vpop.f32.mrf.mxu0
        %v4276 = vadd.f32 0.0, %v4275
        %v4277 = vpop.f32.mrf.mxu0
        %4278 = vmatprep.mubr.bf16.mxu0 0
        %4279 = vmatmul.mubr.bf16.gmra.mxu0 %v4139
        %v4280 = vpop.f32.mrf.mxu0
        %v4281 = vadd.f32 0.0, %v4280
        %v4282 = vpop.f32.mrf.mxu0
        %v4283 = vpop.f32.mrf.mxu0
        %v4284 = vadd.f32 0.0, %v4283
        %v4285 = vpop.f32.mrf.mxu0
        %4286 = vmatprep.mubr.bf16.mxu0 0
        %4287 = vmatmul.mubr.bf16.gmra.mxu0 %v4140
        %v4288 = vpop.f32.mrf.mxu0
        %v4289 = vadd.f32 0.0, %v4288
        %v4290 = vpop.f32.mrf.mxu0
        %v4291 = vpop.f32.mrf.mxu0
        %v4292 = vadd.f32 0.0, %v4291
        %v4293 = vpop.f32.mrf.mxu0
        %4294 = vmatprep.mubr.bf16.mxu0 0
        %4295 = vmatmul.mubr.bf16.gmra.mxu0 %v4141
        %v4296 = vpop.f32.mrf.mxu0
        %v4297 = vadd.f32 0.0, %v4296
        %v4298 = vpop.f32.mrf.mxu0
        %v4299 = vpop.f32.mrf.mxu0
        %v4300 = vadd.f32 0.0, %v4299
        %v4301 = vpop.f32.mrf.mxu0
        %4302 = vdwg.mxu0
        %v4303 = vrcp.pop %v4103
        %v4304 = vrcp.pop %v4105
        %v4305 = vrcp.pop %v4107
        %v4306 = vrcp.pop %v4109
        %v4307 = vrcp.pop %v4111
        %v4308 = vrcp.pop %v4113
        %v4309 = vrcp.pop %v4115
        %v4310 = vrcp.pop %v4117
        %v4311 = vrcp.pop %v4119
        %v4312 = vrcp.pop %v4121
        %v4313 = vrcp.pop %v4123
        %v4314 = vrcp.pop %v4125
        %v4315 = vrcp.pop %v4127
        %v4316 = vrcp.pop %v4129
        %v4317 = vrcp.pop %v4131
        %v4318 = vrcp.pop %v4133
        %v4319 = vmul.f32 %v4241, %v4303
        %v4320 = vmul.f32 %v4244, %v4304
        %v4321 = vmul.f32 %v4249, %v4305
        %v4322 = vmul.f32 %v4252, %v4306
        %v4323 = vmul.f32 %v4257, %v4307
        %v4324 = vmul.f32 %v4260, %v4308
        %v4325 = vmul.f32 %v4265, %v4309
        %v4326 = vmul.f32 %v4268, %v4310
        %v4327 = vmul.f32 %v4273, %v4311
        %v4328 = vmul.f32 %v4276, %v4312
        %v4329 = vmul.f32 %v4281, %v4313
        %v4330 = vmul.f32 %v4284, %v4314
        %v4331 = vmul.f32 %v4289, %v4315
        %v4332 = vmul.f32 %v4292, %v4316
        %v4333 = vmul.f32 %v4297, %v4317
        %v4334 = vmul.f32 %v4300, %v4318
        %v4335 = vpack.c.bf16 %v4320, %v4319
        %v4336 = vpack.c.bf16 %v4322, %v4321
        %v4337 = vpack.c.bf16 %v4324, %v4323
        %v4338 = vpack.c.bf16 %v4326, %v4325
        %v4339 = vpack.c.bf16 %v4328, %v4327
        %v4340 = vpack.c.bf16 %v4330, %v4329
        %v4341 = vpack.c.bf16 %v4332, %v4331
        %v4342 = vpack.c.bf16 %v4334, %v4333
        %v4351 = vunpack.c.l.b16 %v4335
        %v4352 = vunpack.c.h.b16 %v4335
        %v4353 = vunpack.c.l.b16 %v4336
        %v4354 = vunpack.c.h.b16 %v4336
        %v4355 = vunpack.c.l.b16 %v4337
        %v4356 = vunpack.c.h.b16 %v4337
        %v4357 = vunpack.c.l.b16 %v4338
        %v4358 = vunpack.c.h.b16 %v4338
        %v4359 = vunpack.c.l.b16 %v4339
        %v4360 = vunpack.c.h.b16 %v4339
        %v4361 = vunpack.c.l.b16 %v4340
        %v4362 = vunpack.c.h.b16 %v4340
        %v4363 = vunpack.c.l.b16 %v4341
        %v4364 = vunpack.c.h.b16 %v4341
        %v4365 = vunpack.c.l.b16 %v4342
        %v4366 = vunpack.c.h.b16 %v4342
        %v4367 = vpack.c.b16 %v4351, %v4351
        %v4368 = vpack.c.b16 %v4352, %v4352
        %v4369 = vpack.c.b16 %v4353, %v4353
        %v4370 = vpack.c.b16 %v4354, %v4354
        %v4371 = vpack.c.b16 %v4355, %v4355
        %v4372 = vpack.c.b16 %v4356, %v4356
        %v4373 = vpack.c.b16 %v4357, %v4357
        %v4374 = vpack.c.b16 %v4358, %v4358
        %v4375 = vpack.c.b16 %v4359, %v4359
        %v4376 = vpack.c.b16 %v4360, %v4360
        %v4377 = vpack.c.b16 %v4361, %v4361
        %v4378 = vpack.c.b16 %v4362, %v4362
        %v4379 = vpack.c.b16 %v4363, %v4363
        %v4380 = vpack.c.b16 %v4364, %v4364
        %v4381 = vpack.c.b16 %v4365, %v4365
        %v4382 = vpack.c.b16 %v4366, %v4366
        %4383 = vrot.lane.b32.xlu0 %v4367, 64
        %v4384 = vpop.permute.xlu0 %4383
        %4385 = vrot.lane.b32.xlu0 %v4368, 64
        %v4386 = vpop.permute.xlu0 %4385
        %4387 = vrot.lane.b32.xlu0 %v4369, 64
        %v4388 = vpop.permute.xlu0 %4387
        %4389 = vrot.lane.b32.xlu0 %v4370, 64
        %v4390 = vpop.permute.xlu0 %4389
        %4391 = vrot.lane.b32.xlu0 %v4371, 64
        %v4392 = vpop.permute.xlu0 %4391
        %4393 = vrot.lane.b32.xlu0 %v4372, 64
        %v4394 = vpop.permute.xlu0 %4393
        %4395 = vrot.lane.b32.xlu0 %v4373, 64
        %v4396 = vpop.permute.xlu0 %4395
        %4397 = vrot.lane.b32.xlu0 %v4374, 64
        %v4398 = vpop.permute.xlu0 %4397
        %4399 = vrot.lane.b32.xlu0 %v4375, 64
        %v4400 = vpop.permute.xlu0 %4399
        %4401 = vrot.lane.b32.xlu0 %v4376, 64
        %v4402 = vpop.permute.xlu0 %4401
        %4403 = vrot.lane.b32.xlu0 %v4377, 64
        %v4404 = vpop.permute.xlu0 %4403
        %4405 = vrot.lane.b32.xlu0 %v4378, 64
        %v4406 = vpop.permute.xlu0 %4405
        %4407 = vrot.lane.b32.xlu0 %v4379, 64
        %v4408 = vpop.permute.xlu0 %4407
        %4409 = vrot.lane.b32.xlu0 %v4380, 64
        %v4410 = vpop.permute.xlu0 %4409
        %4411 = vrot.lane.b32.xlu0 %v4381, 64
        %v4412 = vpop.permute.xlu0 %4411
        %4413 = vrot.lane.b32.xlu0 %v4382, 64
        %v4414 = vpop.permute.xlu0 %4413
        %vm4431 = vcmask 650752
        %4432 = vst.msk [vmem:[#allocation3] sm:$0xf] %vm4431, %v4384
        %4433 = vst.msk [vmem:[#allocation3 + $0x4] sm:$0xf] %vm4431, %v4386
        %4434 = vst.msk [vmem:[#allocation3 + $0x8] sm:$0xf] %vm4431, %v4388
        %4435 = vst.msk [vmem:[#allocation3 + $0xc] sm:$0xf] %vm4431, %v4390
        %4436 = vst.msk [vmem:[#allocation3 + $0x10] sm:$0xf] %vm4431, %v4392
        %4437 = vst.msk [vmem:[#allocation3 + $0x14] sm:$0xf] %vm4431, %v4394
        %4438 = vst.msk [vmem:[#allocation3 + $0x18] sm:$0xf] %vm4431, %v4396
        %4439 = vst.msk [vmem:[#allocation3 + $0x1c] sm:$0xf] %vm4431, %v4398
        %4440 = vst.msk [vmem:[#allocation3 + $0x20] sm:$0xf] %vm4431, %v4400
        %4441 = vst.msk [vmem:[#allocation3 + $0x24] sm:$0xf] %vm4431, %v4402
        %4442 = vst.msk [vmem:[#allocation3 + $0x28] sm:$0xf] %vm4431, %v4404
        %4443 = vst.msk [vmem:[#allocation3 + $0x2c] sm:$0xf] %vm4431, %v4406
        %4444 = vst.msk [vmem:[#allocation3 + $0x30] sm:$0xf] %vm4431, %v4408
        %4445 = vst.msk [vmem:[#allocation3 + $0x34] sm:$0xf] %vm4431, %v4410
        %4446 = vst.msk [vmem:[#allocation3 + $0x38] sm:$0xf] %vm4431, %v4412
        %4447 = vst.msk [vmem:[#allocation3 + $0x3c] sm:$0xf] %vm4431, %v4414
        %v4448 = vld [vmem:[#allocation2] sm:$0xf]
        %v4449 = vld [vmem:[#allocation2 + $0xc] sm:$0xf]
        %v4450 = vld [vmem:[#allocation2 + $0x18] sm:$0xf]
        %v4451 = vld [vmem:[#allocation2 + $0x24] sm:$0xf]
        %v4452 = vld [vmem:[#allocation2 + $0x30] sm:$0xf]
        %v4453 = vld [vmem:[#allocation2 + $0x3c] sm:$0xf]
        %v4454 = vld [vmem:[#allocation2 + $0x48] sm:$0xf]
        %v4455 = vld [vmem:[#allocation2 + $0x54] sm:$0xf]
        %v4456 = vld [vmem:[#allocation2 + $0x60] sm:$0xf]
        %v4457 = vld [vmem:[#allocation2 + $0x6c] sm:$0xf]
        %v4458 = vld [vmem:[#allocation2 + $0x78] sm:$0xf]
        %v4459 = vld [vmem:[#allocation2 + $0x84] sm:$0xf]
        %v4460 = vld [vmem:[#allocation2 + $0x90] sm:$0xf]
        %v4461 = vld [vmem:[#allocation2 + $0x9c] sm:$0xf]
        %v4462 = vld [vmem:[#allocation2 + $0xa8] sm:$0xf]
        %v4463 = vld [vmem:[#allocation2 + $0xb4] sm:$0xf]
        %v4464 = vld [vmem:[#allocation2 + $0x4] sm:$0xf]
        %v4465 = vld [vmem:[#allocation2 + $0x10] sm:$0xf]
        %v4466 = vld [vmem:[#allocation2 + $0x1c] sm:$0xf]
        %v4467 = vld [vmem:[#allocation2 + $0x28] sm:$0xf]
        %v4468 = vld [vmem:[#allocation2 + $0x34] sm:$0xf]
        %v4469 = vld [vmem:[#allocation2 + $0x40] sm:$0xf]
        %v4470 = vld [vmem:[#allocation2 + $0x4c] sm:$0xf]
        %v4471 = vld [vmem:[#allocation2 + $0x58] sm:$0xf]
        %v4472 = vld [vmem:[#allocation2 + $0x64] sm:$0xf]
        %v4473 = vld [vmem:[#allocation2 + $0x70] sm:$0xf]
        %v4474 = vld [vmem:[#allocation2 + $0x7c] sm:$0xf]
        %v4475 = vld [vmem:[#allocation2 + $0x88] sm:$0xf]
        %v4476 = vld [vmem:[#allocation2 + $0x94] sm:$0xf]
        %v4477 = vld [vmem:[#allocation2 + $0xa0] sm:$0xf]
        %v4478 = vld [vmem:[#allocation2 + $0xac] sm:$0xf]
        %v4479 = vld [vmem:[#allocation2 + $0xb8] sm:$0xf]
        %v4480 = vld [vmem:[#allocation2 + $0x8] sm:$0xf]
        %v4481 = vld [vmem:[#allocation2 + $0x14] sm:$0xf]
        %v4482 = vld [vmem:[#allocation2 + $0x20] sm:$0xf]
        %v4483 = vld [vmem:[#allocation2 + $0x2c] sm:$0xf]
        %v4484 = vld [vmem:[#allocation2 + $0x38] sm:$0xf]
        %v4485 = vld [vmem:[#allocation2 + $0x44] sm:$0xf]
        %v4486 = vld [vmem:[#allocation2 + $0x50] sm:$0xf]
        %v4487 = vld [vmem:[#allocation2 + $0x5c] sm:$0xf]
        %v4488 = vld [vmem:[#allocation2 + $0x68] sm:$0xf]
        %v4489 = vld [vmem:[#allocation2 + $0x74] sm:$0xf]
        %v4490 = vld [vmem:[#allocation2 + $0x80] sm:$0xf]
        %v4491 = vld [vmem:[#allocation2 + $0x8c] sm:$0xf]
        %v4492 = vld [vmem:[#allocation2 + $0x98] sm:$0xf]
        %v4493 = vld [vmem:[#allocation2 + $0xa4] sm:$0xf]
        %v4494 = vld [vmem:[#allocation2 + $0xb0] sm:$0xf]
        %v4495 = vld [vmem:[#allocation2 + $0xbc] sm:$0xf]
        %v4512 = vunpack.c.l.b16 %v4448
        %v4513 = vunpack.c.l.b16 %v4449
        %v4514 = vunpack.c.l.b16 %v4450
        %v4515 = vunpack.c.l.b16 %v4451
        %v4516 = vunpack.c.l.b16 %v4452
        %v4517 = vunpack.c.l.b16 %v4453
        %v4518 = vunpack.c.l.b16 %v4454
        %v4519 = vunpack.c.l.b16 %v4455
        %v4520 = vunpack.c.l.b16 %v4456
        %v4521 = vunpack.c.l.b16 %v4457
        %v4522 = vunpack.c.l.b16 %v4458
        %v4523 = vunpack.c.l.b16 %v4459
        %v4524 = vunpack.c.l.b16 %v4460
        %v4525 = vunpack.c.l.b16 %v4461
        %v4526 = vunpack.c.l.b16 %v4462
        %v4527 = vunpack.c.l.b16 %v4463
        %v4528 = vpack.c.b16 %v4513, %v4512
        %v4529 = vpack.c.b16 %v4515, %v4514
        %v4530 = vpack.c.b16 %v4517, %v4516
        %v4531 = vpack.c.b16 %v4519, %v4518
        %v4532 = vpack.c.b16 %v4521, %v4520
        %v4533 = vpack.c.b16 %v4523, %v4522
        %v4534 = vpack.c.b16 %v4525, %v4524
        %v4535 = vpack.c.b16 %v4527, %v4526
        %4536 = vrot.lane.b32.xlu0 %v4528, 48
        %v4537 = vpop.permute.xlu0 %4536
        %4538 = vrot.lane.b32.xlu0 %v4529, 48
        %v4539 = vpop.permute.xlu0 %4538
        %4540 = vrot.lane.b32.xlu0 %v4530, 48
        %v4541 = vpop.permute.xlu0 %4540
        %4542 = vrot.lane.b32.xlu0 %v4531, 48
        %v4543 = vpop.permute.xlu0 %4542
        %4544 = vrot.lane.b32.xlu0 %v4532, 48
        %v4545 = vpop.permute.xlu0 %4544
        %4546 = vrot.lane.b32.xlu0 %v4533, 48
        %v4547 = vpop.permute.xlu0 %4546
        %4548 = vrot.lane.b32.xlu0 %v4534, 48
        %v4549 = vpop.permute.xlu0 %4548
        %4550 = vrot.lane.b32.xlu0 %v4535, 48
        %v4551 = vpop.permute.xlu0 %4550
        %v4568 = vunpack.c.l.b16 %v4464
        %v4569 = vunpack.c.l.b16 %v4465
        %v4570 = vunpack.c.l.b16 %v4466
        %v4571 = vunpack.c.l.b16 %v4467
        %v4572 = vunpack.c.l.b16 %v4468
        %v4573 = vunpack.c.l.b16 %v4469
        %v4574 = vunpack.c.l.b16 %v4470
        %v4575 = vunpack.c.l.b16 %v4471
        %v4576 = vunpack.c.l.b16 %v4472
        %v4577 = vunpack.c.l.b16 %v4473
        %v4578 = vunpack.c.l.b16 %v4474
        %v4579 = vunpack.c.l.b16 %v4475
        %v4580 = vunpack.c.l.b16 %v4476
        %v4581 = vunpack.c.l.b16 %v4477
        %v4582 = vunpack.c.l.b16 %v4478
        %v4583 = vunpack.c.l.b16 %v4479
        %v4584 = vpack.c.b16 %v4569, %v4568
        %v4585 = vpack.c.b16 %v4571, %v4570
        %v4586 = vpack.c.b16 %v4573, %v4572
        %v4587 = vpack.c.b16 %v4575, %v4574
        %v4588 = vpack.c.b16 %v4577, %v4576
        %v4589 = vpack.c.b16 %v4579, %v4578
        %v4590 = vpack.c.b16 %v4581, %v4580
        %v4591 = vpack.c.b16 %v4583, %v4582
        %4592 = vrot.lane.b32.xlu0 %v4584, 48
        %v4593 = vpop.permute.xlu0 %4592
        %4594 = vrot.lane.b32.xlu0 %v4585, 48
        %v4595 = vpop.permute.xlu0 %4594
        %4596 = vrot.lane.b32.xlu0 %v4586, 48
        %v4597 = vpop.permute.xlu0 %4596
        %4598 = vrot.lane.b32.xlu0 %v4587, 48
        %v4599 = vpop.permute.xlu0 %4598
        %4600 = vrot.lane.b32.xlu0 %v4588, 48
        %v4601 = vpop.permute.xlu0 %4600
        %4602 = vrot.lane.b32.xlu0 %v4589, 48
        %v4603 = vpop.permute.xlu0 %4602
        %4604 = vrot.lane.b32.xlu0 %v4590, 48
        %v4605 = vpop.permute.xlu0 %4604
        %4606 = vrot.lane.b32.xlu0 %v4591, 48
        %v4607 = vpop.permute.xlu0 %4606
        %v4609 = vsel %vm1000, %v4537, 0
        %v4612 = vsel %vm1000, %v4539, 0
        %v4615 = vsel %vm1000, %v4541, 0
        %v4618 = vsel %vm1000, %v4543, 0
        %v4621 = vsel %vm1000, %v4545, 0
        %v4624 = vsel %vm1000, %v4547, 0
        %v4627 = vsel %vm1000, %v4549, 0
        %v4630 = vsel %vm1000, %v4551, 0
        %v4633 = vsel %vm1000, %v4593, 0
        %v4636 = vsel %vm1000, %v4595, 0
        %v4639 = vsel %vm1000, %v4597, 0
        %v4642 = vsel %vm1000, %v4599, 0
        %v4645 = vsel %vm1000, %v4601, 0
        %v4648 = vsel %vm1000, %v4603, 0
        %v4651 = vsel %vm1000, %v4605, 0
        %v4654 = vsel %vm1000, %v4607, 0
        %4656 = vmatprep.subr.bf16.mxu0 0
        %4657 = vmatpush1.bf16.xpose.msra.mxu0 %v4654
        %4658 = vmatprep.subr.bf16.mxu0 0
        %4659 = vmatpush1.bf16.xpose.msra.mxu0 %v4651
        %4660 = vmatprep.subr.bf16.mxu0 0
        %4661 = vmatpush1.bf16.xpose.msra.mxu0 %v4648
        %4662 = vmatprep.subr.bf16.mxu0 0
        %4663 = vmatpush1.bf16.xpose.msra.mxu0 %v4645
        %4664 = vmatprep.subr.bf16.mxu0 0
        %4665 = vmatpush1.bf16.xpose.msra.mxu0 %v4642
        %4666 = vmatprep.subr.bf16.mxu0 0
        %4667 = vmatpush1.bf16.xpose.msra.mxu0 %v4639
        %4668 = vmatprep.subr.bf16.mxu0 0
        %4669 = vmatpush1.bf16.xpose.msra.mxu0 %v4636
        %4670 = vmatprep.subr.bf16.mxu0 0
        %4671 = vmatpush1.bf16.xpose.msra.mxu0 %v4633
        %4672 = vmatprep.subr.bf16.mxu0 0
        %4673 = vmatpush2.bf16.xpose.msra.mxu0 0
        %4674 = vmatprep.subr.bf16.mxu0 0
        %4675 = vmatpush2.bf16.xpose.msra.mxu0 0
        %4676 = vmatprep.subr.bf16.mxu0 0
        %4677 = vmatpush2.bf16.xpose.msra.mxu0 0
        %4678 = vmatprep.subr.bf16.mxu0 0
        %4679 = vmatpush2.bf16.xpose.msra.mxu0 0
        %4680 = vmatprep.subr.bf16.mxu0 0
        %4681 = vmatpush2.bf16.xpose.msra.mxu0 0
        %4682 = vmatprep.subr.bf16.mxu0 0
        %4683 = vmatpush2.bf16.xpose.msra.mxu0 0
        %4684 = vmatprep.subr.bf16.mxu0 0
        %4685 = vmatpush2.bf16.xpose.msra.mxu0 0
        %4686 = vmatprep.subr.bf16.mxu0 0
        %4687 = vmatpush2.bf16.xpose.msra.mxu0 0
        %4688 = vmatprep.mubr.bf16.mxu0 0
        %4689 = vmatmul.mubr.bf16.gmra.mxu0 %v4609
        %v4690 = vpop.f32.mrf.mxu0
        %v4691 = vadd.f32 0.0, %v4690
        %v4692 = vpop.f32.mrf.mxu0
        %v4693 = vpop.f32.mrf.mxu0
        %v4694 = vadd.f32 0.0, %v4693
        %v4695 = vpop.f32.mrf.mxu0
        %4696 = vmatprep.mubr.bf16.mxu0 0
        %4697 = vmatmul.mubr.bf16.gmra.mxu0 %v4612
        %v4698 = vpop.f32.mrf.mxu0
        %v4699 = vadd.f32 0.0, %v4698
        %v4700 = vpop.f32.mrf.mxu0
        %v4701 = vpop.f32.mrf.mxu0
        %v4702 = vadd.f32 0.0, %v4701
        %v4703 = vpop.f32.mrf.mxu0
        %4704 = vmatprep.mubr.bf16.mxu0 0
        %4705 = vmatmul.mubr.bf16.gmra.mxu0 %v4615
        %v4706 = vpop.f32.mrf.mxu0
        %v4707 = vadd.f32 0.0, %v4706
        %v4708 = vpop.f32.mrf.mxu0
        %v4709 = vpop.f32.mrf.mxu0
        %v4710 = vadd.f32 0.0, %v4709
        %v4711 = vpop.f32.mrf.mxu0
        %4712 = vmatprep.mubr.bf16.mxu0 0
        %4713 = vmatmul.mubr.bf16.gmra.mxu0 %v4618
        %v4714 = vpop.f32.mrf.mxu0
        %v4715 = vadd.f32 0.0, %v4714
        %v4716 = vpop.f32.mrf.mxu0
        %v4717 = vpop.f32.mrf.mxu0
        %v4718 = vadd.f32 0.0, %v4717
        %v4719 = vpop.f32.mrf.mxu0
        %4720 = vmatprep.mubr.bf16.mxu0 0
        %4721 = vmatmul.mubr.bf16.gmra.mxu0 %v4621
        %v4722 = vpop.f32.mrf.mxu0
        %v4723 = vadd.f32 0.0, %v4722
        %v4724 = vpop.f32.mrf.mxu0
        %v4725 = vpop.f32.mrf.mxu0
        %v4726 = vadd.f32 0.0, %v4725
        %v4727 = vpop.f32.mrf.mxu0
        %4728 = vmatprep.mubr.bf16.mxu0 0
        %4729 = vmatmul.mubr.bf16.gmra.mxu0 %v4624
        %v4730 = vpop.f32.mrf.mxu0
        %v4731 = vadd.f32 0.0, %v4730
        %v4732 = vpop.f32.mrf.mxu0
        %v4733 = vpop.f32.mrf.mxu0
        %v4734 = vadd.f32 0.0, %v4733
        %v4735 = vpop.f32.mrf.mxu0
        %4736 = vmatprep.mubr.bf16.mxu0 0
        %4737 = vmatmul.mubr.bf16.gmra.mxu0 %v4627
        %v4738 = vpop.f32.mrf.mxu0
        %v4739 = vadd.f32 0.0, %v4738
        %v4740 = vpop.f32.mrf.mxu0
        %v4741 = vpop.f32.mrf.mxu0
        %v4742 = vadd.f32 0.0, %v4741
        %v4743 = vpop.f32.mrf.mxu0
        %4744 = vmatprep.mubr.bf16.mxu0 0
        %4745 = vmatmul.mubr.bf16.gmra.mxu0 %v4630
        %v4746 = vpop.f32.mrf.mxu0
        %v4747 = vadd.f32 0.0, %v4746
        %v4748 = vpop.f32.mrf.mxu0
        %v4749 = vpop.f32.mrf.mxu0
        %v4750 = vadd.f32 0.0, %v4749
        %v4751 = vpop.f32.mrf.mxu0
        %4752 = vdwg.mxu0
        %4753 = vmax.xlane.f32.xlu0 %v4691
        %v4754 = vpop.xlane.xlu0 %4753
        %4755 = vmax.xlane.f32.xlu0 %v4694
        %v4756 = vpop.xlane.xlu0 %4755
        %4757 = vmax.xlane.f32.xlu0 %v4699
        %v4758 = vpop.xlane.xlu0 %4757
        %4759 = vmax.xlane.f32.xlu0 %v4702
        %v4760 = vpop.xlane.xlu0 %4759
        %4761 = vmax.xlane.f32.xlu0 %v4707
        %v4762 = vpop.xlane.xlu0 %4761
        %4763 = vmax.xlane.f32.xlu0 %v4710
        %v4764 = vpop.xlane.xlu0 %4763
        %4765 = vmax.xlane.f32.xlu0 %v4715
        %v4766 = vpop.xlane.xlu0 %4765
        %4767 = vmax.xlane.f32.xlu0 %v4718
        %v4768 = vpop.xlane.xlu0 %4767
        %4769 = vmax.xlane.f32.xlu0 %v4723
        %v4770 = vpop.xlane.xlu0 %4769
        %4771 = vmax.xlane.f32.xlu0 %v4726
        %v4772 = vpop.xlane.xlu0 %4771
        %4773 = vmax.xlane.f32.xlu0 %v4731
        %v4774 = vpop.xlane.xlu0 %4773
        %4775 = vmax.xlane.f32.xlu0 %v4734
        %v4776 = vpop.xlane.xlu0 %4775
        %4777 = vmax.xlane.f32.xlu0 %v4739
        %v4778 = vpop.xlane.xlu0 %4777
        %4779 = vmax.xlane.f32.xlu0 %v4742
        %v4780 = vpop.xlane.xlu0 %4779
        %4781 = vmax.xlane.f32.xlu0 %v4747
        %v4782 = vpop.xlane.xlu0 %4781
        %4783 = vmax.xlane.f32.xlu0 %v4750
        %v4784 = vpop.xlane.xlu0 %4783
        %v4785 = vsub.f32 %v4691, %v4754
        %v4786 = vsub.f32 %v4694, %v4756
        %v4787 = vsub.f32 %v4699, %v4758
        %v4788 = vsub.f32 %v4702, %v4760
        %v4789 = vsub.f32 %v4707, %v4762
        %v4790 = vsub.f32 %v4710, %v4764
        %v4791 = vsub.f32 %v4715, %v4766
        %v4792 = vsub.f32 %v4718, %v4768
        %v4793 = vsub.f32 %v4723, %v4770
        %v4794 = vsub.f32 %v4726, %v4772
        %v4795 = vsub.f32 %v4731, %v4774
        %v4796 = vsub.f32 %v4734, %v4776
        %v4797 = vsub.f32 %v4739, %v4778
        %v4798 = vsub.f32 %v4742, %v4780
        %v4799 = vsub.f32 %v4747, %v4782
        %v4800 = vsub.f32 %v4750, %v4784
        %v4801 = vmul.f32 %v4785, 1.442695
        %v4802 = vpow.pop %v4801
        %v4803 = vmul.f32 %v4786, 1.442695
        %v4804 = vpow.pop %v4803
        %v4805 = vmul.f32 %v4787, 1.442695
        %v4806 = vpow.pop %v4805
        %v4807 = vmul.f32 %v4788, 1.442695
        %v4808 = vpow.pop %v4807
        %v4809 = vmul.f32 %v4789, 1.442695
        %v4810 = vpow.pop %v4809
        %v4811 = vmul.f32 %v4790, 1.442695
        %v4812 = vpow.pop %v4811
        %v4813 = vmul.f32 %v4791, 1.442695
        %v4814 = vpow.pop %v4813
        %v4815 = vmul.f32 %v4792, 1.442695
        %v4816 = vpow.pop %v4815
        %v4817 = vmul.f32 %v4793, 1.442695
        %v4818 = vpow.pop %v4817
        %v4819 = vmul.f32 %v4794, 1.442695
        %v4820 = vpow.pop %v4819
        %v4821 = vmul.f32 %v4795, 1.442695
        %v4822 = vpow.pop %v4821
        %v4823 = vmul.f32 %v4796, 1.442695
        %v4824 = vpow.pop %v4823
        %v4825 = vmul.f32 %v4797, 1.442695
        %v4826 = vpow.pop %v4825
        %v4827 = vmul.f32 %v4798, 1.442695
        %v4828 = vpow.pop %v4827
        %v4829 = vmul.f32 %v4799, 1.442695
        %v4830 = vpow.pop %v4829
        %v4831 = vmul.f32 %v4800, 1.442695
        %v4832 = vpow.pop %v4831
        %4833 = vadd.xlane.f32.xlu0 %v4802
        %v4834 = vpop.xlane.xlu0 %4833
        %4835 = vadd.xlane.f32.xlu0 %v4804
        %v4836 = vpop.xlane.xlu0 %4835
        %4837 = vadd.xlane.f32.xlu0 %v4806
        %v4838 = vpop.xlane.xlu0 %4837
        %4839 = vadd.xlane.f32.xlu0 %v4808
        %v4840 = vpop.xlane.xlu0 %4839
        %4841 = vadd.xlane.f32.xlu0 %v4810
        %v4842 = vpop.xlane.xlu0 %4841
        %4843 = vadd.xlane.f32.xlu0 %v4812
        %v4844 = vpop.xlane.xlu0 %4843
        %4845 = vadd.xlane.f32.xlu0 %v4814
        %v4846 = vpop.xlane.xlu0 %4845
        %4847 = vadd.xlane.f32.xlu0 %v4816
        %v4848 = vpop.xlane.xlu0 %4847
        %4849 = vadd.xlane.f32.xlu0 %v4818
        %v4850 = vpop.xlane.xlu0 %4849
        %4851 = vadd.xlane.f32.xlu0 %v4820
        %v4852 = vpop.xlane.xlu0 %4851
        %4853 = vadd.xlane.f32.xlu0 %v4822
        %v4854 = vpop.xlane.xlu0 %4853
        %4855 = vadd.xlane.f32.xlu0 %v4824
        %v4856 = vpop.xlane.xlu0 %4855
        %4857 = vadd.xlane.f32.xlu0 %v4826
        %v4858 = vpop.xlane.xlu0 %4857
        %4859 = vadd.xlane.f32.xlu0 %v4828
        %v4860 = vpop.xlane.xlu0 %4859
        %4861 = vadd.xlane.f32.xlu0 %v4830
        %v4862 = vpop.xlane.xlu0 %4861
        %4863 = vadd.xlane.f32.xlu0 %v4832
        %v4864 = vpop.xlane.xlu0 %4863
        %v4865 = vpack.c.bf16 %v4804, %v4802
        %v4866 = vpack.c.bf16 %v4808, %v4806
        %v4867 = vpack.c.bf16 %v4812, %v4810
        %v4868 = vpack.c.bf16 %v4816, %v4814
        %v4869 = vpack.c.bf16 %v4820, %v4818
        %v4870 = vpack.c.bf16 %v4824, %v4822
        %v4871 = vpack.c.bf16 %v4828, %v4826
        %v4872 = vpack.c.bf16 %v4832, %v4830
        %v4889 = vunpack.c.l.b16 %v4480
        %v4890 = vunpack.c.l.b16 %v4481
        %v4891 = vunpack.c.l.b16 %v4482
        %v4892 = vunpack.c.l.b16 %v4483
        %v4893 = vunpack.c.l.b16 %v4484
        %v4894 = vunpack.c.l.b16 %v4485
        %v4895 = vunpack.c.l.b16 %v4486
        %v4896 = vunpack.c.l.b16 %v4487
        %v4897 = vunpack.c.l.b16 %v4488
        %v4898 = vunpack.c.l.b16 %v4489
        %v4899 = vunpack.c.l.b16 %v4490
        %v4900 = vunpack.c.l.b16 %v4491
        %v4901 = vunpack.c.l.b16 %v4492
        %v4902 = vunpack.c.l.b16 %v4493
        %v4903 = vunpack.c.l.b16 %v4494
        %v4904 = vunpack.c.l.b16 %v4495
        %v4905 = vpack.c.b16 %v4890, %v4889
        %v4906 = vpack.c.b16 %v4892, %v4891
        %v4907 = vpack.c.b16 %v4894, %v4893
        %v4908 = vpack.c.b16 %v4896, %v4895
        %v4909 = vpack.c.b16 %v4898, %v4897
        %v4910 = vpack.c.b16 %v4900, %v4899
        %v4911 = vpack.c.b16 %v4902, %v4901
        %v4912 = vpack.c.b16 %v4904, %v4903
        %4913 = vrot.lane.b32.xlu0 %v4905, 48
        %v4914 = vpop.permute.xlu0 %4913
        %4915 = vrot.lane.b32.xlu0 %v4906, 48
        %v4916 = vpop.permute.xlu0 %4915
        %4917 = vrot.lane.b32.xlu0 %v4907, 48
        %v4918 = vpop.permute.xlu0 %4917
        %4919 = vrot.lane.b32.xlu0 %v4908, 48
        %v4920 = vpop.permute.xlu0 %4919
        %4921 = vrot.lane.b32.xlu0 %v4909, 48
        %v4922 = vpop.permute.xlu0 %4921
        %4923 = vrot.lane.b32.xlu0 %v4910, 48
        %v4924 = vpop.permute.xlu0 %4923
        %4925 = vrot.lane.b32.xlu0 %v4911, 48
        %v4926 = vpop.permute.xlu0 %4925
        %4927 = vrot.lane.b32.xlu0 %v4912, 48
        %v4928 = vpop.permute.xlu0 %4927
        %4937 = vmatprep.subr.bf16.mxu0 0
        %4938 = vmatpush1.bf16.msra.mxu0 %v4928
        %4939 = vmatprep.subr.bf16.mxu0 0
        %4940 = vmatpush1.bf16.msra.mxu0 %v4926
        %4941 = vmatprep.subr.bf16.mxu0 0
        %4942 = vmatpush1.bf16.msra.mxu0 %v4924
        %4943 = vmatprep.subr.bf16.mxu0 0
        %4944 = vmatpush1.bf16.msra.mxu0 %v4922
        %4945 = vmatprep.subr.bf16.mxu0 0
        %4946 = vmatpush1.bf16.msra.mxu0 %v4920
        %4947 = vmatprep.subr.bf16.mxu0 0
        %4948 = vmatpush1.bf16.msra.mxu0 %v4918
        %4949 = vmatprep.subr.bf16.mxu0 0
        %4950 = vmatpush1.bf16.msra.mxu0 %v4916
        %4951 = vmatprep.subr.bf16.mxu0 0
        %4952 = vmatpush1.bf16.msra.mxu0 %v4914
        %4953 = vmatprep.subr.bf16.mxu0 0
        %4954 = vmatpush2.bf16.msra.mxu0 0
        %4955 = vmatprep.subr.bf16.mxu0 0
        %4956 = vmatpush2.bf16.msra.mxu0 0
        %4957 = vmatprep.subr.bf16.mxu0 0
        %4958 = vmatpush2.bf16.msra.mxu0 0
        %4959 = vmatprep.subr.bf16.mxu0 0
        %4960 = vmatpush2.bf16.msra.mxu0 0
        %4961 = vmatprep.subr.bf16.mxu0 0
        %4962 = vmatpush2.bf16.msra.mxu0 0
        %4963 = vmatprep.subr.bf16.mxu0 0
        %4964 = vmatpush2.bf16.msra.mxu0 0
        %4965 = vmatprep.subr.bf16.mxu0 0
        %4966 = vmatpush2.bf16.msra.mxu0 0
        %4967 = vmatprep.subr.bf16.mxu0 0
        %4968 = vmatpush2.bf16.msra.mxu0 0
        %4969 = vmatprep.mubr.bf16.mxu0 0
        %4970 = vmatmul.mubr.bf16.gmra.mxu0 %v4865
        %v4971 = vpop.f32.mrf.mxu0
        %v4972 = vadd.f32 0.0, %v4971
        %v4973 = vpop.f32.mrf.mxu0
        %v4974 = vpop.f32.mrf.mxu0
        %v4975 = vadd.f32 0.0, %v4974
        %v4976 = vpop.f32.mrf.mxu0
        %4977 = vmatprep.mubr.bf16.mxu0 0
        %4978 = vmatmul.mubr.bf16.gmra.mxu0 %v4866
        %v4979 = vpop.f32.mrf.mxu0
        %v4980 = vadd.f32 0.0, %v4979
        %v4981 = vpop.f32.mrf.mxu0
        %v4982 = vpop.f32.mrf.mxu0
        %v4983 = vadd.f32 0.0, %v4982
        %v4984 = vpop.f32.mrf.mxu0
        %4985 = vmatprep.mubr.bf16.mxu0 0
        %4986 = vmatmul.mubr.bf16.gmra.mxu0 %v4867
        %v4987 = vpop.f32.mrf.mxu0
        %v4988 = vadd.f32 0.0, %v4987
        %v4989 = vpop.f32.mrf.mxu0
        %v4990 = vpop.f32.mrf.mxu0
        %v4991 = vadd.f32 0.0, %v4990
        %v4992 = vpop.f32.mrf.mxu0
        %4993 = vmatprep.mubr.bf16.mxu0 0
        %4994 = vmatmul.mubr.bf16.gmra.mxu0 %v4868
        %v4995 = vpop.f32.mrf.mxu0
        %v4996 = vadd.f32 0.0, %v4995
        %v4997 = vpop.f32.mrf.mxu0
        %v4998 = vpop.f32.mrf.mxu0
        %v4999 = vadd.f32 0.0, %v4998
        %v5000 = vpop.f32.mrf.mxu0
        %5001 = vmatprep.mubr.bf16.mxu0 0
        %5002 = vmatmul.mubr.bf16.gmra.mxu0 %v4869
        %v5003 = vpop.f32.mrf.mxu0
        %v5004 = vadd.f32 0.0, %v5003
        %v5005 = vpop.f32.mrf.mxu0
        %v5006 = vpop.f32.mrf.mxu0
        %v5007 = vadd.f32 0.0, %v5006
        %v5008 = vpop.f32.mrf.mxu0
        %5009 = vmatprep.mubr.bf16.mxu0 0
        %5010 = vmatmul.mubr.bf16.gmra.mxu0 %v4870
        %v5011 = vpop.f32.mrf.mxu0
        %v5012 = vadd.f32 0.0, %v5011
        %v5013 = vpop.f32.mrf.mxu0
        %v5014 = vpop.f32.mrf.mxu0
        %v5015 = vadd.f32 0.0, %v5014
        %v5016 = vpop.f32.mrf.mxu0
        %5017 = vmatprep.mubr.bf16.mxu0 0
        %5018 = vmatmul.mubr.bf16.gmra.mxu0 %v4871
        %v5019 = vpop.f32.mrf.mxu0
        %v5020 = vadd.f32 0.0, %v5019
        %v5021 = vpop.f32.mrf.mxu0
        %v5022 = vpop.f32.mrf.mxu0
        %v5023 = vadd.f32 0.0, %v5022
        %v5024 = vpop.f32.mrf.mxu0
        %5025 = vmatprep.mubr.bf16.mxu0 0
        %5026 = vmatmul.mubr.bf16.gmra.mxu0 %v4872
        %v5027 = vpop.f32.mrf.mxu0
        %v5028 = vadd.f32 0.0, %v5027
        %v5029 = vpop.f32.mrf.mxu0
        %v5030 = vpop.f32.mrf.mxu0
        %v5031 = vadd.f32 0.0, %v5030
        %v5032 = vpop.f32.mrf.mxu0
        %5033 = vdwg.mxu0
        %v5034 = vrcp.pop %v4834
        %v5035 = vrcp.pop %v4836
        %v5036 = vrcp.pop %v4838
        %v5037 = vrcp.pop %v4840
        %v5038 = vrcp.pop %v4842
        %v5039 = vrcp.pop %v4844
        %v5040 = vrcp.pop %v4846
        %v5041 = vrcp.pop %v4848
        %v5042 = vrcp.pop %v4850
        %v5043 = vrcp.pop %v4852
        %v5044 = vrcp.pop %v4854
        %v5045 = vrcp.pop %v4856
        %v5046 = vrcp.pop %v4858
        %v5047 = vrcp.pop %v4860
        %v5048 = vrcp.pop %v4862
        %v5049 = vrcp.pop %v4864
        %v5050 = vmul.f32 %v4972, %v5034
        %v5051 = vmul.f32 %v4975, %v5035
        %v5052 = vmul.f32 %v4980, %v5036
        %v5053 = vmul.f32 %v4983, %v5037
        %v5054 = vmul.f32 %v4988, %v5038
        %v5055 = vmul.f32 %v4991, %v5039
        %v5056 = vmul.f32 %v4996, %v5040
        %v5057 = vmul.f32 %v4999, %v5041
        %v5058 = vmul.f32 %v5004, %v5042
        %v5059 = vmul.f32 %v5007, %v5043
        %v5060 = vmul.f32 %v5012, %v5044
        %v5061 = vmul.f32 %v5015, %v5045
        %v5062 = vmul.f32 %v5020, %v5046
        %v5063 = vmul.f32 %v5023, %v5047
        %v5064 = vmul.f32 %v5028, %v5048
        %v5065 = vmul.f32 %v5031, %v5049
        %v5066 = vpack.c.bf16 %v5051, %v5050
        %v5067 = vpack.c.bf16 %v5053, %v5052
        %v5068 = vpack.c.bf16 %v5055, %v5054
        %v5069 = vpack.c.bf16 %v5057, %v5056
        %v5070 = vpack.c.bf16 %v5059, %v5058
        %v5071 = vpack.c.bf16 %v5061, %v5060
        %v5072 = vpack.c.bf16 %v5063, %v5062
        %v5073 = vpack.c.bf16 %v5065, %v5064
        %v5082 = vunpack.c.l.b16 %v5066
        %v5083 = vunpack.c.h.b16 %v5066
        %v5084 = vunpack.c.l.b16 %v5067
        %v5085 = vunpack.c.h.b16 %v5067
        %v5086 = vunpack.c.l.b16 %v5068
        %v5087 = vunpack.c.h.b16 %v5068
        %v5088 = vunpack.c.l.b16 %v5069
        %v5089 = vunpack.c.h.b16 %v5069
        %v5090 = vunpack.c.l.b16 %v5070
        %v5091 = vunpack.c.h.b16 %v5070
        %v5092 = vunpack.c.l.b16 %v5071
        %v5093 = vunpack.c.h.b16 %v5071
        %v5094 = vunpack.c.l.b16 %v5072
        %v5095 = vunpack.c.h.b16 %v5072
        %v5096 = vunpack.c.l.b16 %v5073
        %v5097 = vunpack.c.h.b16 %v5073
        %v5098 = vpack.c.b16 %v5082, %v5082
        %v5099 = vpack.c.b16 %v5083, %v5083
        %v5100 = vpack.c.b16 %v5084, %v5084
        %v5101 = vpack.c.b16 %v5085, %v5085
        %v5102 = vpack.c.b16 %v5086, %v5086
        %v5103 = vpack.c.b16 %v5087, %v5087
        %v5104 = vpack.c.b16 %v5088, %v5088
        %v5105 = vpack.c.b16 %v5089, %v5089
        %v5106 = vpack.c.b16 %v5090, %v5090
        %v5107 = vpack.c.b16 %v5091, %v5091
        %v5108 = vpack.c.b16 %v5092, %v5092
        %v5109 = vpack.c.b16 %v5093, %v5093
        %v5110 = vpack.c.b16 %v5094, %v5094
        %v5111 = vpack.c.b16 %v5095, %v5095
        %v5112 = vpack.c.b16 %v5096, %v5096
        %v5113 = vpack.c.b16 %v5097, %v5097
        %5114 = vrot.lane.b32.xlu0 %v5098, 80
        %v5115 = vpop.permute.xlu0 %5114
        %5116 = vrot.lane.b32.xlu0 %v5099, 80
        %v5117 = vpop.permute.xlu0 %5116
        %5118 = vrot.lane.b32.xlu0 %v5100, 80
        %v5119 = vpop.permute.xlu0 %5118
        %5120 = vrot.lane.b32.xlu0 %v5101, 80
        %v5121 = vpop.permute.xlu0 %5120
        %5122 = vrot.lane.b32.xlu0 %v5102, 80
        %v5123 = vpop.permute.xlu0 %5122
        %5124 = vrot.lane.b32.xlu0 %v5103, 80
        %v5125 = vpop.permute.xlu0 %5124
        %5126 = vrot.lane.b32.xlu0 %v5104, 80
        %v5127 = vpop.permute.xlu0 %5126
        %5128 = vrot.lane.b32.xlu0 %v5105, 80
        %v5129 = vpop.permute.xlu0 %5128
        %5130 = vrot.lane.b32.xlu0 %v5106, 80
        %v5131 = vpop.permute.xlu0 %5130
        %5132 = vrot.lane.b32.xlu0 %v5107, 80
        %v5133 = vpop.permute.xlu0 %5132
        %5134 = vrot.lane.b32.xlu0 %v5108, 80
        %v5135 = vpop.permute.xlu0 %5134
        %5136 = vrot.lane.b32.xlu0 %v5109, 80
        %v5137 = vpop.permute.xlu0 %5136
        %5138 = vrot.lane.b32.xlu0 %v5110, 80
        %v5139 = vpop.permute.xlu0 %5138
        %5140 = vrot.lane.b32.xlu0 %v5111, 80
        %v5141 = vpop.permute.xlu0 %5140
        %5142 = vrot.lane.b32.xlu0 %v5112, 80
        %v5143 = vpop.permute.xlu0 %5142
        %5144 = vrot.lane.b32.xlu0 %v5113, 80
        %v5145 = vpop.permute.xlu0 %5144
        %vm5162 = vcmask 781952
        %5163 = vst.msk [vmem:[#allocation3] sm:$0xf] %vm5162, %v5115
        %5164 = vst.msk [vmem:[#allocation3 + $0x4] sm:$0xf] %vm5162, %v5117
        %5165 = vst.msk [vmem:[#allocation3 + $0x8] sm:$0xf] %vm5162, %v5119
        %5166 = vst.msk [vmem:[#allocation3 + $0xc] sm:$0xf] %vm5162, %v5121
        %5167 = vst.msk [vmem:[#allocation3 + $0x10] sm:$0xf] %vm5162, %v5123
        %5168 = vst.msk [vmem:[#allocation3 + $0x14] sm:$0xf] %vm5162, %v5125
        %5169 = vst.msk [vmem:[#allocation3 + $0x18] sm:$0xf] %vm5162, %v5127
        %5170 = vst.msk [vmem:[#allocation3 + $0x1c] sm:$0xf] %vm5162, %v5129
        %5171 = vst.msk [vmem:[#allocation3 + $0x20] sm:$0xf] %vm5162, %v5131
        %5172 = vst.msk [vmem:[#allocation3 + $0x24] sm:$0xf] %vm5162, %v5133
        %5173 = vst.msk [vmem:[#allocation3 + $0x28] sm:$0xf] %vm5162, %v5135
        %5174 = vst.msk [vmem:[#allocation3 + $0x2c] sm:$0xf] %vm5162, %v5137
        %5175 = vst.msk [vmem:[#allocation3 + $0x30] sm:$0xf] %vm5162, %v5139
        %5176 = vst.msk [vmem:[#allocation3 + $0x34] sm:$0xf] %vm5162, %v5141
        %5177 = vst.msk [vmem:[#allocation3 + $0x38] sm:$0xf] %vm5162, %v5143
        %5178 = vst.msk [vmem:[#allocation3 + $0x3c] sm:$0xf] %vm5162, %v5145
        %v5179 = vld [vmem:[#allocation2] sm:$0xf]
        %v5180 = vld [vmem:[#allocation2 + $0xc] sm:$0xf]
        %v5181 = vld [vmem:[#allocation2 + $0x18] sm:$0xf]
        %v5182 = vld [vmem:[#allocation2 + $0x24] sm:$0xf]
        %v5183 = vld [vmem:[#allocation2 + $0x30] sm:$0xf]
        %v5184 = vld [vmem:[#allocation2 + $0x3c] sm:$0xf]
        %v5185 = vld [vmem:[#allocation2 + $0x48] sm:$0xf]
        %v5186 = vld [vmem:[#allocation2 + $0x54] sm:$0xf]
        %v5187 = vld [vmem:[#allocation2 + $0x60] sm:$0xf]
        %v5188 = vld [vmem:[#allocation2 + $0x6c] sm:$0xf]
        %v5189 = vld [vmem:[#allocation2 + $0x78] sm:$0xf]
        %v5190 = vld [vmem:[#allocation2 + $0x84] sm:$0xf]
        %v5191 = vld [vmem:[#allocation2 + $0x90] sm:$0xf]
        %v5192 = vld [vmem:[#allocation2 + $0x9c] sm:$0xf]
        %v5193 = vld [vmem:[#allocation2 + $0xa8] sm:$0xf]
        %v5194 = vld [vmem:[#allocation2 + $0xb4] sm:$0xf]
        %v5195 = vld [vmem:[#allocation2 + $0x4] sm:$0xf]
        %v5196 = vld [vmem:[#allocation2 + $0x10] sm:$0xf]
        %v5197 = vld [vmem:[#allocation2 + $0x1c] sm:$0xf]
        %v5198 = vld [vmem:[#allocation2 + $0x28] sm:$0xf]
        %v5199 = vld [vmem:[#allocation2 + $0x34] sm:$0xf]
        %v5200 = vld [vmem:[#allocation2 + $0x40] sm:$0xf]
        %v5201 = vld [vmem:[#allocation2 + $0x4c] sm:$0xf]
        %v5202 = vld [vmem:[#allocation2 + $0x58] sm:$0xf]
        %v5203 = vld [vmem:[#allocation2 + $0x64] sm:$0xf]
        %v5204 = vld [vmem:[#allocation2 + $0x70] sm:$0xf]
        %v5205 = vld [vmem:[#allocation2 + $0x7c] sm:$0xf]
        %v5206 = vld [vmem:[#allocation2 + $0x88] sm:$0xf]
        %v5207 = vld [vmem:[#allocation2 + $0x94] sm:$0xf]
        %v5208 = vld [vmem:[#allocation2 + $0xa0] sm:$0xf]
        %v5209 = vld [vmem:[#allocation2 + $0xac] sm:$0xf]
        %v5210 = vld [vmem:[#allocation2 + $0xb8] sm:$0xf]
        %v5211 = vld [vmem:[#allocation2 + $0x8] sm:$0xf]
        %v5212 = vld [vmem:[#allocation2 + $0x14] sm:$0xf]
        %v5213 = vld [vmem:[#allocation2 + $0x20] sm:$0xf]
        %v5214 = vld [vmem:[#allocation2 + $0x2c] sm:$0xf]
        %v5215 = vld [vmem:[#allocation2 + $0x38] sm:$0xf]
        %v5216 = vld [vmem:[#allocation2 + $0x44] sm:$0xf]
        %v5217 = vld [vmem:[#allocation2 + $0x50] sm:$0xf]
        %v5218 = vld [vmem:[#allocation2 + $0x5c] sm:$0xf]
        %v5219 = vld [vmem:[#allocation2 + $0x68] sm:$0xf]
        %v5220 = vld [vmem:[#allocation2 + $0x74] sm:$0xf]
        %v5221 = vld [vmem:[#allocation2 + $0x80] sm:$0xf]
        %v5222 = vld [vmem:[#allocation2 + $0x8c] sm:$0xf]
        %v5223 = vld [vmem:[#allocation2 + $0x98] sm:$0xf]
        %v5224 = vld [vmem:[#allocation2 + $0xa4] sm:$0xf]
        %v5225 = vld [vmem:[#allocation2 + $0xb0] sm:$0xf]
        %v5226 = vld [vmem:[#allocation2 + $0xbc] sm:$0xf]
        %v5243 = vunpack.c.l.b16 %v5179
        %v5244 = vunpack.c.l.b16 %v5180
        %v5245 = vunpack.c.l.b16 %v5181
        %v5246 = vunpack.c.l.b16 %v5182
        %v5247 = vunpack.c.l.b16 %v5183
        %v5248 = vunpack.c.l.b16 %v5184
        %v5249 = vunpack.c.l.b16 %v5185
        %v5250 = vunpack.c.l.b16 %v5186
        %v5251 = vunpack.c.l.b16 %v5187
        %v5252 = vunpack.c.l.b16 %v5188
        %v5253 = vunpack.c.l.b16 %v5189
        %v5254 = vunpack.c.l.b16 %v5190
        %v5255 = vunpack.c.l.b16 %v5191
        %v5256 = vunpack.c.l.b16 %v5192
        %v5257 = vunpack.c.l.b16 %v5193
        %v5258 = vunpack.c.l.b16 %v5194
        %v5259 = vpack.c.b16 %v5244, %v5243
        %v5260 = vpack.c.b16 %v5246, %v5245
        %v5261 = vpack.c.b16 %v5248, %v5247
        %v5262 = vpack.c.b16 %v5250, %v5249
        %v5263 = vpack.c.b16 %v5252, %v5251
        %v5264 = vpack.c.b16 %v5254, %v5253
        %v5265 = vpack.c.b16 %v5256, %v5255
        %v5266 = vpack.c.b16 %v5258, %v5257
        %5267 = vrot.lane.b32.xlu0 %v5259, 32
        %v5268 = vpop.permute.xlu0 %5267
        %5269 = vrot.lane.b32.xlu0 %v5260, 32
        %v5270 = vpop.permute.xlu0 %5269
        %5271 = vrot.lane.b32.xlu0 %v5261, 32
        %v5272 = vpop.permute.xlu0 %5271
        %5273 = vrot.lane.b32.xlu0 %v5262, 32
        %v5274 = vpop.permute.xlu0 %5273
        %5275 = vrot.lane.b32.xlu0 %v5263, 32
        %v5276 = vpop.permute.xlu0 %5275
        %5277 = vrot.lane.b32.xlu0 %v5264, 32
        %v5278 = vpop.permute.xlu0 %5277
        %5279 = vrot.lane.b32.xlu0 %v5265, 32
        %v5280 = vpop.permute.xlu0 %5279
        %5281 = vrot.lane.b32.xlu0 %v5266, 32
        %v5282 = vpop.permute.xlu0 %5281
        %v5299 = vunpack.c.l.b16 %v5195
        %v5300 = vunpack.c.l.b16 %v5196
        %v5301 = vunpack.c.l.b16 %v5197
        %v5302 = vunpack.c.l.b16 %v5198
        %v5303 = vunpack.c.l.b16 %v5199
        %v5304 = vunpack.c.l.b16 %v5200
        %v5305 = vunpack.c.l.b16 %v5201
        %v5306 = vunpack.c.l.b16 %v5202
        %v5307 = vunpack.c.l.b16 %v5203
        %v5308 = vunpack.c.l.b16 %v5204
        %v5309 = vunpack.c.l.b16 %v5205
        %v5310 = vunpack.c.l.b16 %v5206
        %v5311 = vunpack.c.l.b16 %v5207
        %v5312 = vunpack.c.l.b16 %v5208
        %v5313 = vunpack.c.l.b16 %v5209
        %v5314 = vunpack.c.l.b16 %v5210
        %v5315 = vpack.c.b16 %v5300, %v5299
        %v5316 = vpack.c.b16 %v5302, %v5301
        %v5317 = vpack.c.b16 %v5304, %v5303
        %v5318 = vpack.c.b16 %v5306, %v5305
        %v5319 = vpack.c.b16 %v5308, %v5307
        %v5320 = vpack.c.b16 %v5310, %v5309
        %v5321 = vpack.c.b16 %v5312, %v5311
        %v5322 = vpack.c.b16 %v5314, %v5313
        %5323 = vrot.lane.b32.xlu0 %v5315, 32
        %v5324 = vpop.permute.xlu0 %5323
        %5325 = vrot.lane.b32.xlu0 %v5316, 32
        %v5326 = vpop.permute.xlu0 %5325
        %5327 = vrot.lane.b32.xlu0 %v5317, 32
        %v5328 = vpop.permute.xlu0 %5327
        %5329 = vrot.lane.b32.xlu0 %v5318, 32
        %v5330 = vpop.permute.xlu0 %5329
        %5331 = vrot.lane.b32.xlu0 %v5319, 32
        %v5332 = vpop.permute.xlu0 %5331
        %5333 = vrot.lane.b32.xlu0 %v5320, 32
        %v5334 = vpop.permute.xlu0 %5333
        %5335 = vrot.lane.b32.xlu0 %v5321, 32
        %v5336 = vpop.permute.xlu0 %5335
        %5337 = vrot.lane.b32.xlu0 %v5322, 32
        %v5338 = vpop.permute.xlu0 %5337
        %v5340 = vsel %vm1000, %v5268, 0
        %v5343 = vsel %vm1000, %v5270, 0
        %v5346 = vsel %vm1000, %v5272, 0
        %v5349 = vsel %vm1000, %v5274, 0
        %v5352 = vsel %vm1000, %v5276, 0
        %v5355 = vsel %vm1000, %v5278, 0
        %v5358 = vsel %vm1000, %v5280, 0
        %v5361 = vsel %vm1000, %v5282, 0
        %v5364 = vsel %vm1000, %v5324, 0
        %v5367 = vsel %vm1000, %v5326, 0
        %v5370 = vsel %vm1000, %v5328, 0
        %v5373 = vsel %vm1000, %v5330, 0
        %v5376 = vsel %vm1000, %v5332, 0
        %v5379 = vsel %vm1000, %v5334, 0
        %v5382 = vsel %vm1000, %v5336, 0
        %v5385 = vsel %vm1000, %v5338, 0
        %5387 = vmatprep.subr.bf16.mxu0 0
        %5388 = vmatpush1.bf16.xpose.msra.mxu0 %v5385
        %5389 = vmatprep.subr.bf16.mxu0 0
        %5390 = vmatpush1.bf16.xpose.msra.mxu0 %v5382
        %5391 = vmatprep.subr.bf16.mxu0 0
        %5392 = vmatpush1.bf16.xpose.msra.mxu0 %v5379
        %5393 = vmatprep.subr.bf16.mxu0 0
        %5394 = vmatpush1.bf16.xpose.msra.mxu0 %v5376
        %5395 = vmatprep.subr.bf16.mxu0 0
        %5396 = vmatpush1.bf16.xpose.msra.mxu0 %v5373
        %5397 = vmatprep.subr.bf16.mxu0 0
        %5398 = vmatpush1.bf16.xpose.msra.mxu0 %v5370
        %5399 = vmatprep.subr.bf16.mxu0 0
        %5400 = vmatpush1.bf16.xpose.msra.mxu0 %v5367
        %5401 = vmatprep.subr.bf16.mxu0 0
        %5402 = vmatpush1.bf16.xpose.msra.mxu0 %v5364
        %5403 = vmatprep.subr.bf16.mxu0 0
        %5404 = vmatpush2.bf16.xpose.msra.mxu0 0
        %5405 = vmatprep.subr.bf16.mxu0 0
        %5406 = vmatpush2.bf16.xpose.msra.mxu0 0
        %5407 = vmatprep.subr.bf16.mxu0 0
        %5408 = vmatpush2.bf16.xpose.msra.mxu0 0
        %5409 = vmatprep.subr.bf16.mxu0 0
        %5410 = vmatpush2.bf16.xpose.msra.mxu0 0
        %5411 = vmatprep.subr.bf16.mxu0 0
        %5412 = vmatpush2.bf16.xpose.msra.mxu0 0
        %5413 = vmatprep.subr.bf16.mxu0 0
        %5414 = vmatpush2.bf16.xpose.msra.mxu0 0
        %5415 = vmatprep.subr.bf16.mxu0 0
        %5416 = vmatpush2.bf16.xpose.msra.mxu0 0
        %5417 = vmatprep.subr.bf16.mxu0 0
        %5418 = vmatpush2.bf16.xpose.msra.mxu0 0
        %5419 = vmatprep.mubr.bf16.mxu0 0
        %5420 = vmatmul.mubr.bf16.gmra.mxu0 %v5340
        %v5421 = vpop.f32.mrf.mxu0
        %v5422 = vadd.f32 0.0, %v5421
        %v5423 = vpop.f32.mrf.mxu0
        %v5424 = vpop.f32.mrf.mxu0
        %v5425 = vadd.f32 0.0, %v5424
        %v5426 = vpop.f32.mrf.mxu0
        %5427 = vmatprep.mubr.bf16.mxu0 0
        %5428 = vmatmul.mubr.bf16.gmra.mxu0 %v5343
        %v5429 = vpop.f32.mrf.mxu0
        %v5430 = vadd.f32 0.0, %v5429
        %v5431 = vpop.f32.mrf.mxu0
        %v5432 = vpop.f32.mrf.mxu0
        %v5433 = vadd.f32 0.0, %v5432
        %v5434 = vpop.f32.mrf.mxu0
        %5435 = vmatprep.mubr.bf16.mxu0 0
        %5436 = vmatmul.mubr.bf16.gmra.mxu0 %v5346
        %v5437 = vpop.f32.mrf.mxu0
        %v5438 = vadd.f32 0.0, %v5437
        %v5439 = vpop.f32.mrf.mxu0
        %v5440 = vpop.f32.mrf.mxu0
        %v5441 = vadd.f32 0.0, %v5440
        %v5442 = vpop.f32.mrf.mxu0
        %5443 = vmatprep.mubr.bf16.mxu0 0
        %5444 = vmatmul.mubr.bf16.gmra.mxu0 %v5349
        %v5445 = vpop.f32.mrf.mxu0
        %v5446 = vadd.f32 0.0, %v5445
        %v5447 = vpop.f32.mrf.mxu0
        %v5448 = vpop.f32.mrf.mxu0
        %v5449 = vadd.f32 0.0, %v5448
        %v5450 = vpop.f32.mrf.mxu0
        %5451 = vmatprep.mubr.bf16.mxu0 0
        %5452 = vmatmul.mubr.bf16.gmra.mxu0 %v5352
        %v5453 = vpop.f32.mrf.mxu0
        %v5454 = vadd.f32 0.0, %v5453
        %v5455 = vpop.f32.mrf.mxu0
        %v5456 = vpop.f32.mrf.mxu0
        %v5457 = vadd.f32 0.0, %v5456
        %v5458 = vpop.f32.mrf.mxu0
        %5459 = vmatprep.mubr.bf16.mxu0 0
        %5460 = vmatmul.mubr.bf16.gmra.mxu0 %v5355
        %v5461 = vpop.f32.mrf.mxu0
        %v5462 = vadd.f32 0.0, %v5461
        %v5463 = vpop.f32.mrf.mxu0
        %v5464 = vpop.f32.mrf.mxu0
        %v5465 = vadd.f32 0.0, %v5464
        %v5466 = vpop.f32.mrf.mxu0
        %5467 = vmatprep.mubr.bf16.mxu0 0
        %5468 = vmatmul.mubr.bf16.gmra.mxu0 %v5358
        %v5469 = vpop.f32.mrf.mxu0
        %v5470 = vadd.f32 0.0, %v5469
        %v5471 = vpop.f32.mrf.mxu0
        %v5472 = vpop.f32.mrf.mxu0
        %v5473 = vadd.f32 0.0, %v5472
        %v5474 = vpop.f32.mrf.mxu0
        %5475 = vmatprep.mubr.bf16.mxu0 0
        %5476 = vmatmul.mubr.bf16.gmra.mxu0 %v5361
        %v5477 = vpop.f32.mrf.mxu0
        %v5478 = vadd.f32 0.0, %v5477
        %v5479 = vpop.f32.mrf.mxu0
        %v5480 = vpop.f32.mrf.mxu0
        %v5481 = vadd.f32 0.0, %v5480
        %v5482 = vpop.f32.mrf.mxu0
        %5483 = vdwg.mxu0
        %5484 = vmax.xlane.f32.xlu0 %v5422
        %v5485 = vpop.xlane.xlu0 %5484
        %5486 = vmax.xlane.f32.xlu0 %v5425
        %v5487 = vpop.xlane.xlu0 %5486
        %5488 = vmax.xlane.f32.xlu0 %v5430
        %v5489 = vpop.xlane.xlu0 %5488
        %5490 = vmax.xlane.f32.xlu0 %v5433
        %v5491 = vpop.xlane.xlu0 %5490
        %5492 = vmax.xlane.f32.xlu0 %v5438
        %v5493 = vpop.xlane.xlu0 %5492
        %5494 = vmax.xlane.f32.xlu0 %v5441
        %v5495 = vpop.xlane.xlu0 %5494
        %5496 = vmax.xlane.f32.xlu0 %v5446
        %v5497 = vpop.xlane.xlu0 %5496
        %5498 = vmax.xlane.f32.xlu0 %v5449
        %v5499 = vpop.xlane.xlu0 %5498
        %5500 = vmax.xlane.f32.xlu0 %v5454
        %v5501 = vpop.xlane.xlu0 %5500
        %5502 = vmax.xlane.f32.xlu0 %v5457
        %v5503 = vpop.xlane.xlu0 %5502
        %5504 = vmax.xlane.f32.xlu0 %v5462
        %v5505 = vpop.xlane.xlu0 %5504
        %5506 = vmax.xlane.f32.xlu0 %v5465
        %v5507 = vpop.xlane.xlu0 %5506
        %5508 = vmax.xlane.f32.xlu0 %v5470
        %v5509 = vpop.xlane.xlu0 %5508
        %5510 = vmax.xlane.f32.xlu0 %v5473
        %v5511 = vpop.xlane.xlu0 %5510
        %5512 = vmax.xlane.f32.xlu0 %v5478
        %v5513 = vpop.xlane.xlu0 %5512
        %5514 = vmax.xlane.f32.xlu0 %v5481
        %v5515 = vpop.xlane.xlu0 %5514
        %v5516 = vsub.f32 %v5422, %v5485
        %v5517 = vsub.f32 %v5425, %v5487
        %v5518 = vsub.f32 %v5430, %v5489
        %v5519 = vsub.f32 %v5433, %v5491
        %v5520 = vsub.f32 %v5438, %v5493
        %v5521 = vsub.f32 %v5441, %v5495
        %v5522 = vsub.f32 %v5446, %v5497
        %v5523 = vsub.f32 %v5449, %v5499
        %v5524 = vsub.f32 %v5454, %v5501
        %v5525 = vsub.f32 %v5457, %v5503
        %v5526 = vsub.f32 %v5462, %v5505
        %v5527 = vsub.f32 %v5465, %v5507
        %v5528 = vsub.f32 %v5470, %v5509
        %v5529 = vsub.f32 %v5473, %v5511
        %v5530 = vsub.f32 %v5478, %v5513
        %v5531 = vsub.f32 %v5481, %v5515
        %v5532 = vmul.f32 %v5516, 1.442695
        %v5533 = vpow.pop %v5532
        %v5534 = vmul.f32 %v5517, 1.442695
        %v5535 = vpow.pop %v5534
        %v5536 = vmul.f32 %v5518, 1.442695
        %v5537 = vpow.pop %v5536
        %v5538 = vmul.f32 %v5519, 1.442695
        %v5539 = vpow.pop %v5538
        %v5540 = vmul.f32 %v5520, 1.442695
        %v5541 = vpow.pop %v5540
        %v5542 = vmul.f32 %v5521, 1.442695
        %v5543 = vpow.pop %v5542
        %v5544 = vmul.f32 %v5522, 1.442695
        %v5545 = vpow.pop %v5544
        %v5546 = vmul.f32 %v5523, 1.442695
        %v5547 = vpow.pop %v5546
        %v5548 = vmul.f32 %v5524, 1.442695
        %v5549 = vpow.pop %v5548
        %v5550 = vmul.f32 %v5525, 1.442695
        %v5551 = vpow.pop %v5550
        %v5552 = vmul.f32 %v5526, 1.442695
        %v5553 = vpow.pop %v5552
        %v5554 = vmul.f32 %v5527, 1.442695
        %v5555 = vpow.pop %v5554
        %v5556 = vmul.f32 %v5528, 1.442695
        %v5557 = vpow.pop %v5556
        %v5558 = vmul.f32 %v5529, 1.442695
        %v5559 = vpow.pop %v5558
        %v5560 = vmul.f32 %v5530, 1.442695
        %v5561 = vpow.pop %v5560
        %v5562 = vmul.f32 %v5531, 1.442695
        %v5563 = vpow.pop %v5562
        %5564 = vadd.xlane.f32.xlu0 %v5533
        %v5565 = vpop.xlane.xlu0 %5564
        %5566 = vadd.xlane.f32.xlu0 %v5535
        %v5567 = vpop.xlane.xlu0 %5566
        %5568 = vadd.xlane.f32.xlu0 %v5537
        %v5569 = vpop.xlane.xlu0 %5568
        %5570 = vadd.xlane.f32.xlu0 %v5539
        %v5571 = vpop.xlane.xlu0 %5570
        %5572 = vadd.xlane.f32.xlu0 %v5541
        %v5573 = vpop.xlane.xlu0 %5572
        %5574 = vadd.xlane.f32.xlu0 %v5543
        %v5575 = vpop.xlane.xlu0 %5574
        %5576 = vadd.xlane.f32.xlu0 %v5545
        %v5577 = vpop.xlane.xlu0 %5576
        %5578 = vadd.xlane.f32.xlu0 %v5547
        %v5579 = vpop.xlane.xlu0 %5578
        %5580 = vadd.xlane.f32.xlu0 %v5549
        %v5581 = vpop.xlane.xlu0 %5580
        %5582 = vadd.xlane.f32.xlu0 %v5551
        %v5583 = vpop.xlane.xlu0 %5582
        %5584 = vadd.xlane.f32.xlu0 %v5553
        %v5585 = vpop.xlane.xlu0 %5584
        %5586 = vadd.xlane.f32.xlu0 %v5555
        %v5587 = vpop.xlane.xlu0 %5586
        %5588 = vadd.xlane.f32.xlu0 %v5557
        %v5589 = vpop.xlane.xlu0 %5588
        %5590 = vadd.xlane.f32.xlu0 %v5559
        %v5591 = vpop.xlane.xlu0 %5590
        %5592 = vadd.xlane.f32.xlu0 %v5561
        %v5593 = vpop.xlane.xlu0 %5592
        %5594 = vadd.xlane.f32.xlu0 %v5563
        %v5595 = vpop.xlane.xlu0 %5594
        %v5596 = vpack.c.bf16 %v5535, %v5533
        %v5597 = vpack.c.bf16 %v5539, %v5537
        %v5598 = vpack.c.bf16 %v5543, %v5541
        %v5599 = vpack.c.bf16 %v5547, %v5545
        %v5600 = vpack.c.bf16 %v5551, %v5549
        %v5601 = vpack.c.bf16 %v5555, %v5553
        %v5602 = vpack.c.bf16 %v5559, %v5557
        %v5603 = vpack.c.bf16 %v5563, %v5561
        %v5620 = vunpack.c.l.b16 %v5211
        %v5621 = vunpack.c.l.b16 %v5212
        %v5622 = vunpack.c.l.b16 %v5213
        %v5623 = vunpack.c.l.b16 %v5214
        %v5624 = vunpack.c.l.b16 %v5215
        %v5625 = vunpack.c.l.b16 %v5216
        %v5626 = vunpack.c.l.b16 %v5217
        %v5627 = vunpack.c.l.b16 %v5218
        %v5628 = vunpack.c.l.b16 %v5219
        %v5629 = vunpack.c.l.b16 %v5220
        %v5630 = vunpack.c.l.b16 %v5221
        %v5631 = vunpack.c.l.b16 %v5222
        %v5632 = vunpack.c.l.b16 %v5223
        %v5633 = vunpack.c.l.b16 %v5224
        %v5634 = vunpack.c.l.b16 %v5225
        %v5635 = vunpack.c.l.b16 %v5226
        %v5636 = vpack.c.b16 %v5621, %v5620
        %v5637 = vpack.c.b16 %v5623, %v5622
        %v5638 = vpack.c.b16 %v5625, %v5624
        %v5639 = vpack.c.b16 %v5627, %v5626
        %v5640 = vpack.c.b16 %v5629, %v5628
        %v5641 = vpack.c.b16 %v5631, %v5630
        %v5642 = vpack.c.b16 %v5633, %v5632
        %v5643 = vpack.c.b16 %v5635, %v5634
        %5644 = vrot.lane.b32.xlu0 %v5636, 32
        %v5645 = vpop.permute.xlu0 %5644
        %5646 = vrot.lane.b32.xlu0 %v5637, 32
        %v5647 = vpop.permute.xlu0 %5646
        %5648 = vrot.lane.b32.xlu0 %v5638, 32
        %v5649 = vpop.permute.xlu0 %5648
        %5650 = vrot.lane.b32.xlu0 %v5639, 32
        %v5651 = vpop.permute.xlu0 %5650
        %5652 = vrot.lane.b32.xlu0 %v5640, 32
        %v5653 = vpop.permute.xlu0 %5652
        %5654 = vrot.lane.b32.xlu0 %v5641, 32
        %v5655 = vpop.permute.xlu0 %5654
        %5656 = vrot.lane.b32.xlu0 %v5642, 32
        %v5657 = vpop.permute.xlu0 %5656
        %5658 = vrot.lane.b32.xlu0 %v5643, 32
        %v5659 = vpop.permute.xlu0 %5658
        %5668 = vmatprep.subr.bf16.mxu0 0
        %5669 = vmatpush1.bf16.msra.mxu0 %v5659
        %5670 = vmatprep.subr.bf16.mxu0 0
        %5671 = vmatpush1.bf16.msra.mxu0 %v5657
        %5672 = vmatprep.subr.bf16.mxu0 0
        %5673 = vmatpush1.bf16.msra.mxu0 %v5655
        %5674 = vmatprep.subr.bf16.mxu0 0
        %5675 = vmatpush1.bf16.msra.mxu0 %v5653
        %5676 = vmatprep.subr.bf16.mxu0 0
        %5677 = vmatpush1.bf16.msra.mxu0 %v5651
        %5678 = vmatprep.subr.bf16.mxu0 0
        %5679 = vmatpush1.bf16.msra.mxu0 %v5649
        %5680 = vmatprep.subr.bf16.mxu0 0
        %5681 = vmatpush1.bf16.msra.mxu0 %v5647
        %5682 = vmatprep.subr.bf16.mxu0 0
        %5683 = vmatpush1.bf16.msra.mxu0 %v5645
        %5684 = vmatprep.subr.bf16.mxu0 0
        %5685 = vmatpush2.bf16.msra.mxu0 0
        %5686 = vmatprep.subr.bf16.mxu0 0
        %5687 = vmatpush2.bf16.msra.mxu0 0
        %5688 = vmatprep.subr.bf16.mxu0 0
        %5689 = vmatpush2.bf16.msra.mxu0 0
        %5690 = vmatprep.subr.bf16.mxu0 0
        %5691 = vmatpush2.bf16.msra.mxu0 0
        %5692 = vmatprep.subr.bf16.mxu0 0
        %5693 = vmatpush2.bf16.msra.mxu0 0
        %5694 = vmatprep.subr.bf16.mxu0 0
        %5695 = vmatpush2.bf16.msra.mxu0 0
        %5696 = vmatprep.subr.bf16.mxu0 0
        %5697 = vmatpush2.bf16.msra.mxu0 0
        %5698 = vmatprep.subr.bf16.mxu0 0
        %5699 = vmatpush2.bf16.msra.mxu0 0
        %5700 = vmatprep.mubr.bf16.mxu0 0
        %5701 = vmatmul.mubr.bf16.gmra.mxu0 %v5596
        %v5702 = vpop.f32.mrf.mxu0
        %v5703 = vadd.f32 0.0, %v5702
        %v5704 = vpop.f32.mrf.mxu0
        %v5705 = vpop.f32.mrf.mxu0
        %v5706 = vadd.f32 0.0, %v5705
        %v5707 = vpop.f32.mrf.mxu0
        %5708 = vmatprep.mubr.bf16.mxu0 0
        %5709 = vmatmul.mubr.bf16.gmra.mxu0 %v5597
        %v5710 = vpop.f32.mrf.mxu0
        %v5711 = vadd.f32 0.0, %v5710
        %v5712 = vpop.f32.mrf.mxu0
        %v5713 = vpop.f32.mrf.mxu0
        %v5714 = vadd.f32 0.0, %v5713
        %v5715 = vpop.f32.mrf.mxu0
        %5716 = vmatprep.mubr.bf16.mxu0 0
        %5717 = vmatmul.mubr.bf16.gmra.mxu0 %v5598
        %v5718 = vpop.f32.mrf.mxu0
        %v5719 = vadd.f32 0.0, %v5718
        %v5720 = vpop.f32.mrf.mxu0
        %v5721 = vpop.f32.mrf.mxu0
        %v5722 = vadd.f32 0.0, %v5721
        %v5723 = vpop.f32.mrf.mxu0
        %5724 = vmatprep.mubr.bf16.mxu0 0
        %5725 = vmatmul.mubr.bf16.gmra.mxu0 %v5599
        %v5726 = vpop.f32.mrf.mxu0
        %v5727 = vadd.f32 0.0, %v5726
        %v5728 = vpop.f32.mrf.mxu0
        %v5729 = vpop.f32.mrf.mxu0
        %v5730 = vadd.f32 0.0, %v5729
        %v5731 = vpop.f32.mrf.mxu0
        %5732 = vmatprep.mubr.bf16.mxu0 0
        %5733 = vmatmul.mubr.bf16.gmra.mxu0 %v5600
        %v5734 = vpop.f32.mrf.mxu0
        %v5735 = vadd.f32 0.0, %v5734
        %v5736 = vpop.f32.mrf.mxu0
        %v5737 = vpop.f32.mrf.mxu0
        %v5738 = vadd.f32 0.0, %v5737
        %v5739 = vpop.f32.mrf.mxu0
        %5740 = vmatprep.mubr.bf16.mxu0 0
        %5741 = vmatmul.mubr.bf16.gmra.mxu0 %v5601
        %v5742 = vpop.f32.mrf.mxu0
        %v5743 = vadd.f32 0.0, %v5742
        %v5744 = vpop.f32.mrf.mxu0
        %v5745 = vpop.f32.mrf.mxu0
        %v5746 = vadd.f32 0.0, %v5745
        %v5747 = vpop.f32.mrf.mxu0
        %5748 = vmatprep.mubr.bf16.mxu0 0
        %5749 = vmatmul.mubr.bf16.gmra.mxu0 %v5602
        %v5750 = vpop.f32.mrf.mxu0
        %v5751 = vadd.f32 0.0, %v5750
        %v5752 = vpop.f32.mrf.mxu0
        %v5753 = vpop.f32.mrf.mxu0
        %v5754 = vadd.f32 0.0, %v5753
        %v5755 = vpop.f32.mrf.mxu0
        %5756 = vmatprep.mubr.bf16.mxu0 0
        %5757 = vmatmul.mubr.bf16.gmra.mxu0 %v5603
        %v5758 = vpop.f32.mrf.mxu0
        %v5759 = vadd.f32 0.0, %v5758
        %v5760 = vpop.f32.mrf.mxu0
        %v5761 = vpop.f32.mrf.mxu0
        %v5762 = vadd.f32 0.0, %v5761
        %v5763 = vpop.f32.mrf.mxu0
        %5764 = vdwg.mxu0
        %v5765 = vrcp.pop %v5565
        %v5766 = vrcp.pop %v5567
        %v5767 = vrcp.pop %v5569
        %v5768 = vrcp.pop %v5571
        %v5769 = vrcp.pop %v5573
        %v5770 = vrcp.pop %v5575
        %v5771 = vrcp.pop %v5577
        %v5772 = vrcp.pop %v5579
        %v5773 = vrcp.pop %v5581
        %v5774 = vrcp.pop %v5583
        %v5775 = vrcp.pop %v5585
        %v5776 = vrcp.pop %v5587
        %v5777 = vrcp.pop %v5589
        %v5778 = vrcp.pop %v5591
        %v5779 = vrcp.pop %v5593
        %v5780 = vrcp.pop %v5595
        %v5781 = vmul.f32 %v5703, %v5765
        %v5782 = vmul.f32 %v5706, %v5766
        %v5783 = vmul.f32 %v5711, %v5767
        %v5784 = vmul.f32 %v5714, %v5768
        %v5785 = vmul.f32 %v5719, %v5769
        %v5786 = vmul.f32 %v5722, %v5770
        %v5787 = vmul.f32 %v5727, %v5771
        %v5788 = vmul.f32 %v5730, %v5772
        %v5789 = vmul.f32 %v5735, %v5773
        %v5790 = vmul.f32 %v5738, %v5774
        %v5791 = vmul.f32 %v5743, %v5775
        %v5792 = vmul.f32 %v5746, %v5776
        %v5793 = vmul.f32 %v5751, %v5777
        %v5794 = vmul.f32 %v5754, %v5778
        %v5795 = vmul.f32 %v5759, %v5779
        %v5796 = vmul.f32 %v5762, %v5780
        %v5797 = vpack.c.bf16 %v5782, %v5781
        %v5798 = vpack.c.bf16 %v5784, %v5783
        %v5799 = vpack.c.bf16 %v5786, %v5785
        %v5800 = vpack.c.bf16 %v5788, %v5787
        %v5801 = vpack.c.bf16 %v5790, %v5789
        %v5802 = vpack.c.bf16 %v5792, %v5791
        %v5803 = vpack.c.bf16 %v5794, %v5793
        %v5804 = vpack.c.bf16 %v5796, %v5795
        %v5813 = vunpack.c.l.b16 %v5797
        %v5814 = vunpack.c.h.b16 %v5797
        %v5815 = vunpack.c.l.b16 %v5798
        %v5816 = vunpack.c.h.b16 %v5798
        %v5817 = vunpack.c.l.b16 %v5799
        %v5818 = vunpack.c.h.b16 %v5799
        %v5819 = vunpack.c.l.b16 %v5800
        %v5820 = vunpack.c.h.b16 %v5800
        %v5821 = vunpack.c.l.b16 %v5801
        %v5822 = vunpack.c.h.b16 %v5801
        %v5823 = vunpack.c.l.b16 %v5802
        %v5824 = vunpack.c.h.b16 %v5802
        %v5825 = vunpack.c.l.b16 %v5803
        %v5826 = vunpack.c.h.b16 %v5803
        %v5827 = vunpack.c.l.b16 %v5804
        %v5828 = vunpack.c.h.b16 %v5804
        %v5829 = vpack.c.b16 %v5813, %v5813
        %v5830 = vpack.c.b16 %v5814, %v5814
        %v5831 = vpack.c.b16 %v5815, %v5815
        %v5832 = vpack.c.b16 %v5816, %v5816
        %v5833 = vpack.c.b16 %v5817, %v5817
        %v5834 = vpack.c.b16 %v5818, %v5818
        %v5835 = vpack.c.b16 %v5819, %v5819
        %v5836 = vpack.c.b16 %v5820, %v5820
        %v5837 = vpack.c.b16 %v5821, %v5821
        %v5838 = vpack.c.b16 %v5822, %v5822
        %v5839 = vpack.c.b16 %v5823, %v5823
        %v5840 = vpack.c.b16 %v5824, %v5824
        %v5841 = vpack.c.b16 %v5825, %v5825
        %v5842 = vpack.c.b16 %v5826, %v5826
        %v5843 = vpack.c.b16 %v5827, %v5827
        %v5844 = vpack.c.b16 %v5828, %v5828
        %5845 = vrot.lane.b32.xlu0 %v5829, 96
        %v5846 = vpop.permute.xlu0 %5845
        %5847 = vrot.lane.b32.xlu0 %v5830, 96
        %v5848 = vpop.permute.xlu0 %5847
        %5849 = vrot.lane.b32.xlu0 %v5831, 96
        %v5850 = vpop.permute.xlu0 %5849
        %5851 = vrot.lane.b32.xlu0 %v5832, 96
        %v5852 = vpop.permute.xlu0 %5851
        %5853 = vrot.lane.b32.xlu0 %v5833, 96
        %v5854 = vpop.permute.xlu0 %5853
        %5855 = vrot.lane.b32.xlu0 %v5834, 96
        %v5856 = vpop.permute.xlu0 %5855
        %5857 = vrot.lane.b32.xlu0 %v5835, 96
        %v5858 = vpop.permute.xlu0 %5857
        %5859 = vrot.lane.b32.xlu0 %v5836, 96
        %v5860 = vpop.permute.xlu0 %5859
        %5861 = vrot.lane.b32.xlu0 %v5837, 96
        %v5862 = vpop.permute.xlu0 %5861
        %5863 = vrot.lane.b32.xlu0 %v5838, 96
        %v5864 = vpop.permute.xlu0 %5863
        %5865 = vrot.lane.b32.xlu0 %v5839, 96
        %v5866 = vpop.permute.xlu0 %5865
        %5867 = vrot.lane.b32.xlu0 %v5840, 96
        %v5868 = vpop.permute.xlu0 %5867
        %5869 = vrot.lane.b32.xlu0 %v5841, 96
        %v5870 = vpop.permute.xlu0 %5869
        %5871 = vrot.lane.b32.xlu0 %v5842, 96
        %v5872 = vpop.permute.xlu0 %5871
        %5873 = vrot.lane.b32.xlu0 %v5843, 96
        %v5874 = vpop.permute.xlu0 %5873
        %5875 = vrot.lane.b32.xlu0 %v5844, 96
        %v5876 = vpop.permute.xlu0 %5875
        %vm5893 = vcmask 913152
        %5894 = vst.msk [vmem:[#allocation3] sm:$0xf] %vm5893, %v5846
        %5895 = vst.msk [vmem:[#allocation3 + $0x4] sm:$0xf] %vm5893, %v5848
        %5896 = vst.msk [vmem:[#allocation3 + $0x8] sm:$0xf] %vm5893, %v5850
        %5897 = vst.msk [vmem:[#allocation3 + $0xc] sm:$0xf] %vm5893, %v5852
        %5898 = vst.msk [vmem:[#allocation3 + $0x10] sm:$0xf] %vm5893, %v5854
        %5899 = vst.msk [vmem:[#allocation3 + $0x14] sm:$0xf] %vm5893, %v5856
        %5900 = vst.msk [vmem:[#allocation3 + $0x18] sm:$0xf] %vm5893, %v5858
        %5901 = vst.msk [vmem:[#allocation3 + $0x1c] sm:$0xf] %vm5893, %v5860
        %5902 = vst.msk [vmem:[#allocation3 + $0x20] sm:$0xf] %vm5893, %v5862
        %5903 = vst.msk [vmem:[#allocation3 + $0x24] sm:$0xf] %vm5893, %v5864
        %5904 = vst.msk [vmem:[#allocation3 + $0x28] sm:$0xf] %vm5893, %v5866
        %5905 = vst.msk [vmem:[#allocation3 + $0x2c] sm:$0xf] %vm5893, %v5868
        %5906 = vst.msk [vmem:[#allocation3 + $0x30] sm:$0xf] %vm5893, %v5870
        %5907 = vst.msk [vmem:[#allocation3 + $0x34] sm:$0xf] %vm5893, %v5872
        %5908 = vst.msk [vmem:[#allocation3 + $0x38] sm:$0xf] %vm5893, %v5874
        %5909 = vst.msk [vmem:[#allocation3 + $0x3c] sm:$0xf] %vm5893, %v5876
        %v5910 = vld [vmem:[#allocation2] sm:$0xf]
        %v5911 = vld [vmem:[#allocation2 + $0xc] sm:$0xf]
        %v5912 = vld [vmem:[#allocation2 + $0x18] sm:$0xf]
        %v5913 = vld [vmem:[#allocation2 + $0x24] sm:$0xf]
        %v5914 = vld [vmem:[#allocation2 + $0x30] sm:$0xf]
        %v5915 = vld [vmem:[#allocation2 + $0x3c] sm:$0xf]
        %v5916 = vld [vmem:[#allocation2 + $0x48] sm:$0xf]
        %v5917 = vld [vmem:[#allocation2 + $0x54] sm:$0xf]
        %v5918 = vld [vmem:[#allocation2 + $0x60] sm:$0xf]
        %v5919 = vld [vmem:[#allocation2 + $0x6c] sm:$0xf]
        %v5920 = vld [vmem:[#allocation2 + $0x78] sm:$0xf]
        %v5921 = vld [vmem:[#allocation2 + $0x84] sm:$0xf]
        %v5922 = vld [vmem:[#allocation2 + $0x90] sm:$0xf]
        %v5923 = vld [vmem:[#allocation2 + $0x9c] sm:$0xf]
        %v5924 = vld [vmem:[#allocation2 + $0xa8] sm:$0xf]
        %v5925 = vld [vmem:[#allocation2 + $0xb4] sm:$0xf]
        %v5926 = vld [vmem:[#allocation2 + $0x4] sm:$0xf]
        %v5927 = vld [vmem:[#allocation2 + $0x10] sm:$0xf]
        %v5928 = vld [vmem:[#allocation2 + $0x1c] sm:$0xf]
        %v5929 = vld [vmem:[#allocation2 + $0x28] sm:$0xf]
        %v5930 = vld [vmem:[#allocation2 + $0x34] sm:$0xf]
        %v5931 = vld [vmem:[#allocation2 + $0x40] sm:$0xf]
        %v5932 = vld [vmem:[#allocation2 + $0x4c] sm:$0xf]
        %v5933 = vld [vmem:[#allocation2 + $0x58] sm:$0xf]
        %v5934 = vld [vmem:[#allocation2 + $0x64] sm:$0xf]
        %v5935 = vld [vmem:[#allocation2 + $0x70] sm:$0xf]
        %v5936 = vld [vmem:[#allocation2 + $0x7c] sm:$0xf]
        %v5937 = vld [vmem:[#allocation2 + $0x88] sm:$0xf]
        %v5938 = vld [vmem:[#allocation2 + $0x94] sm:$0xf]
        %v5939 = vld [vmem:[#allocation2 + $0xa0] sm:$0xf]
        %v5940 = vld [vmem:[#allocation2 + $0xac] sm:$0xf]
        %v5941 = vld [vmem:[#allocation2 + $0xb8] sm:$0xf]
        %v5942 = vld [vmem:[#allocation2 + $0x8] sm:$0xf]
        %v5943 = vld [vmem:[#allocation2 + $0x14] sm:$0xf]
        %v5944 = vld [vmem:[#allocation2 + $0x20] sm:$0xf]
        %v5945 = vld [vmem:[#allocation2 + $0x2c] sm:$0xf]
        %v5946 = vld [vmem:[#allocation2 + $0x38] sm:$0xf]
        %v5947 = vld [vmem:[#allocation2 + $0x44] sm:$0xf]
        %v5948 = vld [vmem:[#allocation2 + $0x50] sm:$0xf]
        %v5949 = vld [vmem:[#allocation2 + $0x5c] sm:$0xf]
        %v5950 = vld [vmem:[#allocation2 + $0x68] sm:$0xf]
        %v5951 = vld [vmem:[#allocation2 + $0x74] sm:$0xf]
        %v5952 = vld [vmem:[#allocation2 + $0x80] sm:$0xf]
        %v5953 = vld [vmem:[#allocation2 + $0x8c] sm:$0xf]
        %v5954 = vld [vmem:[#allocation2 + $0x98] sm:$0xf]
        %v5955 = vld [vmem:[#allocation2 + $0xa4] sm:$0xf]
        %v5956 = vld [vmem:[#allocation2 + $0xb0] sm:$0xf]
        %v5957 = vld [vmem:[#allocation2 + $0xbc] sm:$0xf]
        %v5974 = vunpack.c.l.b16 %v5910
        %v5975 = vunpack.c.l.b16 %v5911
        %v5976 = vunpack.c.l.b16 %v5912
        %v5977 = vunpack.c.l.b16 %v5913
        %v5978 = vunpack.c.l.b16 %v5914
        %v5979 = vunpack.c.l.b16 %v5915
        %v5980 = vunpack.c.l.b16 %v5916
        %v5981 = vunpack.c.l.b16 %v5917
        %v5982 = vunpack.c.l.b16 %v5918
        %v5983 = vunpack.c.l.b16 %v5919
        %v5984 = vunpack.c.l.b16 %v5920
        %v5985 = vunpack.c.l.b16 %v5921
        %v5986 = vunpack.c.l.b16 %v5922
        %v5987 = vunpack.c.l.b16 %v5923
        %v5988 = vunpack.c.l.b16 %v5924
        %v5989 = vunpack.c.l.b16 %v5925
        %v5990 = vpack.c.b16 %v5975, %v5974
        %v5991 = vpack.c.b16 %v5977, %v5976
        %v5992 = vpack.c.b16 %v5979, %v5978
        %v5993 = vpack.c.b16 %v5981, %v5980
        %v5994 = vpack.c.b16 %v5983, %v5982
        %v5995 = vpack.c.b16 %v5985, %v5984
        %v5996 = vpack.c.b16 %v5987, %v5986
        %v5997 = vpack.c.b16 %v5989, %v5988
        %5998 = vrot.lane.b32.xlu0 %v5990, 16
        %v5999 = vpop.permute.xlu0 %5998
        %6000 = vrot.lane.b32.xlu0 %v5991, 16
        %v6001 = vpop.permute.xlu0 %6000
        %6002 = vrot.lane.b32.xlu0 %v5992, 16
        %v6003 = vpop.permute.xlu0 %6002
        %6004 = vrot.lane.b32.xlu0 %v5993, 16
        %v6005 = vpop.permute.xlu0 %6004
        %6006 = vrot.lane.b32.xlu0 %v5994, 16
        %v6007 = vpop.permute.xlu0 %6006
        %6008 = vrot.lane.b32.xlu0 %v5995, 16
        %v6009 = vpop.permute.xlu0 %6008
        %6010 = vrot.lane.b32.xlu0 %v5996, 16
        %v6011 = vpop.permute.xlu0 %6010
        %6012 = vrot.lane.b32.xlu0 %v5997, 16
        %v6013 = vpop.permute.xlu0 %6012
        %v6030 = vunpack.c.l.b16 %v5926
        %v6031 = vunpack.c.l.b16 %v5927
        %v6032 = vunpack.c.l.b16 %v5928
        %v6033 = vunpack.c.l.b16 %v5929
        %v6034 = vunpack.c.l.b16 %v5930
        %v6035 = vunpack.c.l.b16 %v5931
        %v6036 = vunpack.c.l.b16 %v5932
        %v6037 = vunpack.c.l.b16 %v5933
        %v6038 = vunpack.c.l.b16 %v5934
        %v6039 = vunpack.c.l.b16 %v5935
        %v6040 = vunpack.c.l.b16 %v5936
        %v6041 = vunpack.c.l.b16 %v5937
        %v6042 = vunpack.c.l.b16 %v5938
        %v6043 = vunpack.c.l.b16 %v5939
        %v6044 = vunpack.c.l.b16 %v5940
        %v6045 = vunpack.c.l.b16 %v5941
        %v6046 = vpack.c.b16 %v6031, %v6030
        %v6047 = vpack.c.b16 %v6033, %v6032
        %v6048 = vpack.c.b16 %v6035, %v6034
        %v6049 = vpack.c.b16 %v6037, %v6036
        %v6050 = vpack.c.b16 %v6039, %v6038
        %v6051 = vpack.c.b16 %v6041, %v6040
        %v6052 = vpack.c.b16 %v6043, %v6042
        %v6053 = vpack.c.b16 %v6045, %v6044
        %6054 = vrot.lane.b32.xlu0 %v6046, 16
        %v6055 = vpop.permute.xlu0 %6054
        %6056 = vrot.lane.b32.xlu0 %v6047, 16
        %v6057 = vpop.permute.xlu0 %6056
        %6058 = vrot.lane.b32.xlu0 %v6048, 16
        %v6059 = vpop.permute.xlu0 %6058
        %6060 = vrot.lane.b32.xlu0 %v6049, 16
        %v6061 = vpop.permute.xlu0 %6060
        %6062 = vrot.lane.b32.xlu0 %v6050, 16
        %v6063 = vpop.permute.xlu0 %6062
        %6064 = vrot.lane.b32.xlu0 %v6051, 16
        %v6065 = vpop.permute.xlu0 %6064
        %6066 = vrot.lane.b32.xlu0 %v6052, 16
        %v6067 = vpop.permute.xlu0 %6066
        %6068 = vrot.lane.b32.xlu0 %v6053, 16
        %v6069 = vpop.permute.xlu0 %6068
        %v6071 = vsel %vm1000, %v5999, 0
        %v6074 = vsel %vm1000, %v6001, 0
        %v6077 = vsel %vm1000, %v6003, 0
        %v6080 = vsel %vm1000, %v6005, 0
        %v6083 = vsel %vm1000, %v6007, 0
        %v6086 = vsel %vm1000, %v6009, 0
        %v6089 = vsel %vm1000, %v6011, 0
        %v6092 = vsel %vm1000, %v6013, 0
        %v6095 = vsel %vm1000, %v6055, 0
        %v6098 = vsel %vm1000, %v6057, 0
        %v6101 = vsel %vm1000, %v6059, 0
        %v6104 = vsel %vm1000, %v6061, 0
        %v6107 = vsel %vm1000, %v6063, 0
        %v6110 = vsel %vm1000, %v6065, 0
        %v6113 = vsel %vm1000, %v6067, 0
        %v6116 = vsel %vm1000, %v6069, 0
        %6118 = vmatprep.subr.bf16.mxu0 0
        %6119 = vmatpush1.bf16.xpose.msra.mxu0 %v6116
        %6120 = vmatprep.subr.bf16.mxu0 0
        %6121 = vmatpush1.bf16.xpose.msra.mxu0 %v6113
        %6122 = vmatprep.subr.bf16.mxu0 0
        %6123 = vmatpush1.bf16.xpose.msra.mxu0 %v6110
        %6124 = vmatprep.subr.bf16.mxu0 0
        %6125 = vmatpush1.bf16.xpose.msra.mxu0 %v6107
        %6126 = vmatprep.subr.bf16.mxu0 0
        %6127 = vmatpush1.bf16.xpose.msra.mxu0 %v6104
        %6128 = vmatprep.subr.bf16.mxu0 0
        %6129 = vmatpush1.bf16.xpose.msra.mxu0 %v6101
        %6130 = vmatprep.subr.bf16.mxu0 0
        %6131 = vmatpush1.bf16.xpose.msra.mxu0 %v6098
        %6132 = vmatprep.subr.bf16.mxu0 0
        %6133 = vmatpush1.bf16.xpose.msra.mxu0 %v6095
        %6134 = vmatprep.subr.bf16.mxu0 0
        %6135 = vmatpush2.bf16.xpose.msra.mxu0 0
        %6136 = vmatprep.subr.bf16.mxu0 0
        %6137 = vmatpush2.bf16.xpose.msra.mxu0 0
        %6138 = vmatprep.subr.bf16.mxu0 0
        %6139 = vmatpush2.bf16.xpose.msra.mxu0 0
        %6140 = vmatprep.subr.bf16.mxu0 0
        %6141 = vmatpush2.bf16.xpose.msra.mxu0 0
        %6142 = vmatprep.subr.bf16.mxu0 0
        %6143 = vmatpush2.bf16.xpose.msra.mxu0 0
        %6144 = vmatprep.subr.bf16.mxu0 0
        %6145 = vmatpush2.bf16.xpose.msra.mxu0 0
        %6146 = vmatprep.subr.bf16.mxu0 0
        %6147 = vmatpush2.bf16.xpose.msra.mxu0 0
        %6148 = vmatprep.subr.bf16.mxu0 0
        %6149 = vmatpush2.bf16.xpose.msra.mxu0 0
        %6150 = vmatprep.mubr.bf16.mxu0 0
        %6151 = vmatmul.mubr.bf16.gmra.mxu0 %v6071
        %v6152 = vpop.f32.mrf.mxu0
        %v6153 = vadd.f32 0.0, %v6152
        %v6154 = vpop.f32.mrf.mxu0
        %v6155 = vpop.f32.mrf.mxu0
        %v6156 = vadd.f32 0.0, %v6155
        %v6157 = vpop.f32.mrf.mxu0
        %6158 = vmatprep.mubr.bf16.mxu0 0
        %6159 = vmatmul.mubr.bf16.gmra.mxu0 %v6074
        %v6160 = vpop.f32.mrf.mxu0
        %v6161 = vadd.f32 0.0, %v6160
        %v6162 = vpop.f32.mrf.mxu0
        %v6163 = vpop.f32.mrf.mxu0
        %v6164 = vadd.f32 0.0, %v6163
        %v6165 = vpop.f32.mrf.mxu0
        %6166 = vmatprep.mubr.bf16.mxu0 0
        %6167 = vmatmul.mubr.bf16.gmra.mxu0 %v6077
        %v6168 = vpop.f32.mrf.mxu0
        %v6169 = vadd.f32 0.0, %v6168
        %v6170 = vpop.f32.mrf.mxu0
        %v6171 = vpop.f32.mrf.mxu0
        %v6172 = vadd.f32 0.0, %v6171
        %v6173 = vpop.f32.mrf.mxu0
        %6174 = vmatprep.mubr.bf16.mxu0 0
        %6175 = vmatmul.mubr.bf16.gmra.mxu0 %v6080
        %v6176 = vpop.f32.mrf.mxu0
        %v6177 = vadd.f32 0.0, %v6176
        %v6178 = vpop.f32.mrf.mxu0
        %v6179 = vpop.f32.mrf.mxu0
        %v6180 = vadd.f32 0.0, %v6179
        %v6181 = vpop.f32.mrf.mxu0
        %6182 = vmatprep.mubr.bf16.mxu0 0
        %6183 = vmatmul.mubr.bf16.gmra.mxu0 %v6083
        %v6184 = vpop.f32.mrf.mxu0
        %v6185 = vadd.f32 0.0, %v6184
        %v6186 = vpop.f32.mrf.mxu0
        %v6187 = vpop.f32.mrf.mxu0
        %v6188 = vadd.f32 0.0, %v6187
        %v6189 = vpop.f32.mrf.mxu0
        %6190 = vmatprep.mubr.bf16.mxu0 0
        %6191 = vmatmul.mubr.bf16.gmra.mxu0 %v6086
        %v6192 = vpop.f32.mrf.mxu0
        %v6193 = vadd.f32 0.0, %v6192
        %v6194 = vpop.f32.mrf.mxu0
        %v6195 = vpop.f32.mrf.mxu0
        %v6196 = vadd.f32 0.0, %v6195
        %v6197 = vpop.f32.mrf.mxu0
        %6198 = vmatprep.mubr.bf16.mxu0 0
        %6199 = vmatmul.mubr.bf16.gmra.mxu0 %v6089
        %v6200 = vpop.f32.mrf.mxu0
        %v6201 = vadd.f32 0.0, %v6200
        %v6202 = vpop.f32.mrf.mxu0
        %v6203 = vpop.f32.mrf.mxu0
        %v6204 = vadd.f32 0.0, %v6203
        %v6205 = vpop.f32.mrf.mxu0
        %6206 = vmatprep.mubr.bf16.mxu0 0
        %6207 = vmatmul.mubr.bf16.gmra.mxu0 %v6092
        %v6208 = vpop.f32.mrf.mxu0
        %v6209 = vadd.f32 0.0, %v6208
        %v6210 = vpop.f32.mrf.mxu0
        %v6211 = vpop.f32.mrf.mxu0
        %v6212 = vadd.f32 0.0, %v6211
        %v6213 = vpop.f32.mrf.mxu0
        %6214 = vdwg.mxu0
        %6215 = vmax.xlane.f32.xlu0 %v6153
        %v6216 = vpop.xlane.xlu0 %6215
        %6217 = vmax.xlane.f32.xlu0 %v6156
        %v6218 = vpop.xlane.xlu0 %6217
        %6219 = vmax.xlane.f32.xlu0 %v6161
        %v6220 = vpop.xlane.xlu0 %6219
        %6221 = vmax.xlane.f32.xlu0 %v6164
        %v6222 = vpop.xlane.xlu0 %6221
        %6223 = vmax.xlane.f32.xlu0 %v6169
        %v6224 = vpop.xlane.xlu0 %6223
        %6225 = vmax.xlane.f32.xlu0 %v6172
        %v6226 = vpop.xlane.xlu0 %6225
        %6227 = vmax.xlane.f32.xlu0 %v6177
        %v6228 = vpop.xlane.xlu0 %6227
        %6229 = vmax.xlane.f32.xlu0 %v6180
        %v6230 = vpop.xlane.xlu0 %6229
        %6231 = vmax.xlane.f32.xlu0 %v6185
        %v6232 = vpop.xlane.xlu0 %6231
        %6233 = vmax.xlane.f32.xlu0 %v6188
        %v6234 = vpop.xlane.xlu0 %6233
        %6235 = vmax.xlane.f32.xlu0 %v6193
        %v6236 = vpop.xlane.xlu0 %6235
        %6237 = vmax.xlane.f32.xlu0 %v6196
        %v6238 = vpop.xlane.xlu0 %6237
        %6239 = vmax.xlane.f32.xlu0 %v6201
        %v6240 = vpop.xlane.xlu0 %6239
        %6241 = vmax.xlane.f32.xlu0 %v6204
        %v6242 = vpop.xlane.xlu0 %6241
        %6243 = vmax.xlane.f32.xlu0 %v6209
        %v6244 = vpop.xlane.xlu0 %6243
        %6245 = vmax.xlane.f32.xlu0 %v6212
        %v6246 = vpop.xlane.xlu0 %6245
        %v6247 = vsub.f32 %v6153, %v6216
        %v6248 = vsub.f32 %v6156, %v6218
        %v6249 = vsub.f32 %v6161, %v6220
        %v6250 = vsub.f32 %v6164, %v6222
        %v6251 = vsub.f32 %v6169, %v6224
        %v6252 = vsub.f32 %v6172, %v6226
        %v6253 = vsub.f32 %v6177, %v6228
        %v6254 = vsub.f32 %v6180, %v6230
        %v6255 = vsub.f32 %v6185, %v6232
        %v6256 = vsub.f32 %v6188, %v6234
        %v6257 = vsub.f32 %v6193, %v6236
        %v6258 = vsub.f32 %v6196, %v6238
        %v6259 = vsub.f32 %v6201, %v6240
        %v6260 = vsub.f32 %v6204, %v6242
        %v6261 = vsub.f32 %v6209, %v6244
        %v6262 = vsub.f32 %v6212, %v6246
        %v6263 = vmul.f32 %v6247, 1.442695
        %v6264 = vpow.pop %v6263
        %v6265 = vmul.f32 %v6248, 1.442695
        %v6266 = vpow.pop %v6265
        %v6267 = vmul.f32 %v6249, 1.442695
        %v6268 = vpow.pop %v6267
        %v6269 = vmul.f32 %v6250, 1.442695
        %v6270 = vpow.pop %v6269
        %v6271 = vmul.f32 %v6251, 1.442695
        %v6272 = vpow.pop %v6271
        %v6273 = vmul.f32 %v6252, 1.442695
        %v6274 = vpow.pop %v6273
        %v6275 = vmul.f32 %v6253, 1.442695
        %v6276 = vpow.pop %v6275
        %v6277 = vmul.f32 %v6254, 1.442695
        %v6278 = vpow.pop %v6277
        %v6279 = vmul.f32 %v6255, 1.442695
        %v6280 = vpow.pop %v6279
        %v6281 = vmul.f32 %v6256, 1.442695
        %v6282 = vpow.pop %v6281
        %v6283 = vmul.f32 %v6257, 1.442695
        %v6284 = vpow.pop %v6283
        %v6285 = vmul.f32 %v6258, 1.442695
        %v6286 = vpow.pop %v6285
        %v6287 = vmul.f32 %v6259, 1.442695
        %v6288 = vpow.pop %v6287
        %v6289 = vmul.f32 %v6260, 1.442695
        %v6290 = vpow.pop %v6289
        %v6291 = vmul.f32 %v6261, 1.442695
        %v6292 = vpow.pop %v6291
        %v6293 = vmul.f32 %v6262, 1.442695
        %v6294 = vpow.pop %v6293
        %6295 = vadd.xlane.f32.xlu0 %v6264
        %v6296 = vpop.xlane.xlu0 %6295
        %6297 = vadd.xlane.f32.xlu0 %v6266
        %v6298 = vpop.xlane.xlu0 %6297
        %6299 = vadd.xlane.f32.xlu0 %v6268
        %v6300 = vpop.xlane.xlu0 %6299
        %6301 = vadd.xlane.f32.xlu0 %v6270
        %v6302 = vpop.xlane.xlu0 %6301
        %6303 = vadd.xlane.f32.xlu0 %v6272
        %v6304 = vpop.xlane.xlu0 %6303
        %6305 = vadd.xlane.f32.xlu0 %v6274
        %v6306 = vpop.xlane.xlu0 %6305
        %6307 = vadd.xlane.f32.xlu0 %v6276
        %v6308 = vpop.xlane.xlu0 %6307
        %6309 = vadd.xlane.f32.xlu0 %v6278
        %v6310 = vpop.xlane.xlu0 %6309
        %6311 = vadd.xlane.f32.xlu0 %v6280
        %v6312 = vpop.xlane.xlu0 %6311
        %6313 = vadd.xlane.f32.xlu0 %v6282
        %v6314 = vpop.xlane.xlu0 %6313
        %6315 = vadd.xlane.f32.xlu0 %v6284
        %v6316 = vpop.xlane.xlu0 %6315
        %6317 = vadd.xlane.f32.xlu0 %v6286
        %v6318 = vpop.xlane.xlu0 %6317
        %6319 = vadd.xlane.f32.xlu0 %v6288
        %v6320 = vpop.xlane.xlu0 %6319
        %6321 = vadd.xlane.f32.xlu0 %v6290
        %v6322 = vpop.xlane.xlu0 %6321
        %6323 = vadd.xlane.f32.xlu0 %v6292
        %v6324 = vpop.xlane.xlu0 %6323
        %6325 = vadd.xlane.f32.xlu0 %v6294
        %v6326 = vpop.xlane.xlu0 %6325
        %v6327 = vpack.c.bf16 %v6266, %v6264
        %v6328 = vpack.c.bf16 %v6270, %v6268
        %v6329 = vpack.c.bf16 %v6274, %v6272
        %v6330 = vpack.c.bf16 %v6278, %v6276
        %v6331 = vpack.c.bf16 %v6282, %v6280
        %v6332 = vpack.c.bf16 %v6286, %v6284
        %v6333 = vpack.c.bf16 %v6290, %v6288
        %v6334 = vpack.c.bf16 %v6294, %v6292
        %v6351 = vunpack.c.l.b16 %v5942
        %v6352 = vunpack.c.l.b16 %v5943
        %v6353 = vunpack.c.l.b16 %v5944
        %v6354 = vunpack.c.l.b16 %v5945
        %v6355 = vunpack.c.l.b16 %v5946
        %v6356 = vunpack.c.l.b16 %v5947
        %v6357 = vunpack.c.l.b16 %v5948
        %v6358 = vunpack.c.l.b16 %v5949
        %v6359 = vunpack.c.l.b16 %v5950
        %v6360 = vunpack.c.l.b16 %v5951
        %v6361 = vunpack.c.l.b16 %v5952
        %v6362 = vunpack.c.l.b16 %v5953
        %v6363 = vunpack.c.l.b16 %v5954
        %v6364 = vunpack.c.l.b16 %v5955
        %v6365 = vunpack.c.l.b16 %v5956
        %v6366 = vunpack.c.l.b16 %v5957
        %v6367 = vpack.c.b16 %v6352, %v6351
        %v6368 = vpack.c.b16 %v6354, %v6353
        %v6369 = vpack.c.b16 %v6356, %v6355
        %v6370 = vpack.c.b16 %v6358, %v6357
        %v6371 = vpack.c.b16 %v6360, %v6359
        %v6372 = vpack.c.b16 %v6362, %v6361
        %v6373 = vpack.c.b16 %v6364, %v6363
        %v6374 = vpack.c.b16 %v6366, %v6365
        %6375 = vrot.lane.b32.xlu0 %v6367, 16
        %v6376 = vpop.permute.xlu0 %6375
        %6377 = vrot.lane.b32.xlu0 %v6368, 16
        %v6378 = vpop.permute.xlu0 %6377
        %6379 = vrot.lane.b32.xlu0 %v6369, 16
        %v6380 = vpop.permute.xlu0 %6379
        %6381 = vrot.lane.b32.xlu0 %v6370, 16
        %v6382 = vpop.permute.xlu0 %6381
        %6383 = vrot.lane.b32.xlu0 %v6371, 16
        %v6384 = vpop.permute.xlu0 %6383
        %6385 = vrot.lane.b32.xlu0 %v6372, 16
        %v6386 = vpop.permute.xlu0 %6385
        %6387 = vrot.lane.b32.xlu0 %v6373, 16
        %v6388 = vpop.permute.xlu0 %6387
        %6389 = vrot.lane.b32.xlu0 %v6374, 16
        %v6390 = vpop.permute.xlu0 %6389
        %6399 = vmatprep.subr.bf16.mxu0 0
        %6400 = vmatpush1.bf16.msra.mxu0 %v6390
        %6401 = vmatprep.subr.bf16.mxu0 0
        %6402 = vmatpush1.bf16.msra.mxu0 %v6388
        %6403 = vmatprep.subr.bf16.mxu0 0
        %6404 = vmatpush1.bf16.msra.mxu0 %v6386
        %6405 = vmatprep.subr.bf16.mxu0 0
        %6406 = vmatpush1.bf16.msra.mxu0 %v6384
        %6407 = vmatprep.subr.bf16.mxu0 0
        %6408 = vmatpush1.bf16.msra.mxu0 %v6382
        %6409 = vmatprep.subr.bf16.mxu0 0
        %6410 = vmatpush1.bf16.msra.mxu0 %v6380
        %6411 = vmatprep.subr.bf16.mxu0 0
        %6412 = vmatpush1.bf16.msra.mxu0 %v6378
        %6413 = vmatprep.subr.bf16.mxu0 0
        %6414 = vmatpush1.bf16.msra.mxu0 %v6376
        %6415 = vmatprep.subr.bf16.mxu0 0
        %6416 = vmatpush2.bf16.msra.mxu0 0
        %6417 = vmatprep.subr.bf16.mxu0 0
        %6418 = vmatpush2.bf16.msra.mxu0 0
        %6419 = vmatprep.subr.bf16.mxu0 0
        %6420 = vmatpush2.bf16.msra.mxu0 0
        %6421 = vmatprep.subr.bf16.mxu0 0
        %6422 = vmatpush2.bf16.msra.mxu0 0
        %6423 = vmatprep.subr.bf16.mxu0 0
        %6424 = vmatpush2.bf16.msra.mxu0 0
        %6425 = vmatprep.subr.bf16.mxu0 0
        %6426 = vmatpush2.bf16.msra.mxu0 0
        %6427 = vmatprep.subr.bf16.mxu0 0
        %6428 = vmatpush2.bf16.msra.mxu0 0
        %6429 = vmatprep.subr.bf16.mxu0 0
        %6430 = vmatpush2.bf16.msra.mxu0 0
        %6431 = vmatprep.mubr.bf16.mxu0 0
        %6432 = vmatmul.mubr.bf16.gmra.mxu0 %v6327
        %v6433 = vpop.f32.mrf.mxu0
        %v6434 = vadd.f32 0.0, %v6433
        %v6435 = vpop.f32.mrf.mxu0
        %v6436 = vpop.f32.mrf.mxu0
        %v6437 = vadd.f32 0.0, %v6436
        %v6438 = vpop.f32.mrf.mxu0
        %6439 = vmatprep.mubr.bf16.mxu0 0
        %6440 = vmatmul.mubr.bf16.gmra.mxu0 %v6328
        %v6441 = vpop.f32.mrf.mxu0
        %v6442 = vadd.f32 0.0, %v6441
        %v6443 = vpop.f32.mrf.mxu0
        %v6444 = vpop.f32.mrf.mxu0
        %v6445 = vadd.f32 0.0, %v6444
        %v6446 = vpop.f32.mrf.mxu0
        %6447 = vmatprep.mubr.bf16.mxu0 0
        %6448 = vmatmul.mubr.bf16.gmra.mxu0 %v6329
        %v6449 = vpop.f32.mrf.mxu0
        %v6450 = vadd.f32 0.0, %v6449
        %v6451 = vpop.f32.mrf.mxu0
        %v6452 = vpop.f32.mrf.mxu0
        %v6453 = vadd.f32 0.0, %v6452
        %v6454 = vpop.f32.mrf.mxu0
        %6455 = vmatprep.mubr.bf16.mxu0 0
        %6456 = vmatmul.mubr.bf16.gmra.mxu0 %v6330
        %v6457 = vpop.f32.mrf.mxu0
        %v6458 = vadd.f32 0.0, %v6457
        %v6459 = vpop.f32.mrf.mxu0
        %v6460 = vpop.f32.mrf.mxu0
        %v6461 = vadd.f32 0.0, %v6460
        %v6462 = vpop.f32.mrf.mxu0
        %6463 = vmatprep.mubr.bf16.mxu0 0
        %6464 = vmatmul.mubr.bf16.gmra.mxu0 %v6331
        %v6465 = vpop.f32.mrf.mxu0
        %v6466 = vadd.f32 0.0, %v6465
        %v6467 = vpop.f32.mrf.mxu0
        %v6468 = vpop.f32.mrf.mxu0
        %v6469 = vadd.f32 0.0, %v6468
        %v6470 = vpop.f32.mrf.mxu0
        %6471 = vmatprep.mubr.bf16.mxu0 0
        %6472 = vmatmul.mubr.bf16.gmra.mxu0 %v6332
        %v6473 = vpop.f32.mrf.mxu0
        %v6474 = vadd.f32 0.0, %v6473
        %v6475 = vpop.f32.mrf.mxu0
        %v6476 = vpop.f32.mrf.mxu0
        %v6477 = vadd.f32 0.0, %v6476
        %v6478 = vpop.f32.mrf.mxu0
        %6479 = vmatprep.mubr.bf16.mxu0 0
        %6480 = vmatmul.mubr.bf16.gmra.mxu0 %v6333
        %v6481 = vpop.f32.mrf.mxu0
        %v6482 = vadd.f32 0.0, %v6481
        %v6483 = vpop.f32.mrf.mxu0
        %v6484 = vpop.f32.mrf.mxu0
        %v6485 = vadd.f32 0.0, %v6484
        %v6486 = vpop.f32.mrf.mxu0
        %6487 = vmatprep.mubr.bf16.mxu0 0
        %6488 = vmatmul.mubr.bf16.gmra.mxu0 %v6334
        %v6489 = vpop.f32.mrf.mxu0
        %v6490 = vadd.f32 0.0, %v6489
        %v6491 = vpop.f32.mrf.mxu0
        %v6492 = vpop.f32.mrf.mxu0
        %v6493 = vadd.f32 0.0, %v6492
        %v6494 = vpop.f32.mrf.mxu0
        %6495 = vdwg.mxu0
        %v6496 = vrcp.pop %v6296
        %v6497 = vrcp.pop %v6298
        %v6498 = vrcp.pop %v6300
        %v6499 = vrcp.pop %v6302
        %v6500 = vrcp.pop %v6304
        %v6501 = vrcp.pop %v6306
        %v6502 = vrcp.pop %v6308
        %v6503 = vrcp.pop %v6310
        %v6504 = vrcp.pop %v6312
        %v6505 = vrcp.pop %v6314
        %v6506 = vrcp.pop %v6316
        %v6507 = vrcp.pop %v6318
        %v6508 = vrcp.pop %v6320
        %v6509 = vrcp.pop %v6322
        %v6510 = vrcp.pop %v6324
        %v6511 = vrcp.pop %v6326
        %v6512 = vmul.f32 %v6434, %v6496
        %v6513 = vmul.f32 %v6437, %v6497
        %v6514 = vmul.f32 %v6442, %v6498
        %v6515 = vmul.f32 %v6445, %v6499
        %v6516 = vmul.f32 %v6450, %v6500
        %v6517 = vmul.f32 %v6453, %v6501
        %v6518 = vmul.f32 %v6458, %v6502
        %v6519 = vmul.f32 %v6461, %v6503
        %v6520 = vmul.f32 %v6466, %v6504
        %v6521 = vmul.f32 %v6469, %v6505
        %v6522 = vmul.f32 %v6474, %v6506
        %v6523 = vmul.f32 %v6477, %v6507
        %v6524 = vmul.f32 %v6482, %v6508
        %v6525 = vmul.f32 %v6485, %v6509
        %v6526 = vmul.f32 %v6490, %v6510
        %v6527 = vmul.f32 %v6493, %v6511
        %v6528 = vpack.c.bf16 %v6513, %v6512
        %v6529 = vpack.c.bf16 %v6515, %v6514
        %v6530 = vpack.c.bf16 %v6517, %v6516
        %v6531 = vpack.c.bf16 %v6519, %v6518
        %v6532 = vpack.c.bf16 %v6521, %v6520
        %v6533 = vpack.c.bf16 %v6523, %v6522
        %v6534 = vpack.c.bf16 %v6525, %v6524
        %v6535 = vpack.c.bf16 %v6527, %v6526
        %v6544 = vunpack.c.l.b16 %v6528
        %v6545 = vunpack.c.h.b16 %v6528
        %v6546 = vunpack.c.l.b16 %v6529
        %v6547 = vunpack.c.h.b16 %v6529
        %v6548 = vunpack.c.l.b16 %v6530
        %v6549 = vunpack.c.h.b16 %v6530
        %v6550 = vunpack.c.l.b16 %v6531
        %v6551 = vunpack.c.h.b16 %v6531
        %v6552 = vunpack.c.l.b16 %v6532
        %v6553 = vunpack.c.h.b16 %v6532
        %v6554 = vunpack.c.l.b16 %v6533
        %v6555 = vunpack.c.h.b16 %v6533
        %v6556 = vunpack.c.l.b16 %v6534
        %v6557 = vunpack.c.h.b16 %v6534
        %v6558 = vunpack.c.l.b16 %v6535
        %v6559 = vunpack.c.h.b16 %v6535
        %v6560 = vpack.c.b16 %v6544, %v6544
        %v6561 = vpack.c.b16 %v6545, %v6545
        %v6562 = vpack.c.b16 %v6546, %v6546
        %v6563 = vpack.c.b16 %v6547, %v6547
        %v6564 = vpack.c.b16 %v6548, %v6548
        %v6565 = vpack.c.b16 %v6549, %v6549
        %v6566 = vpack.c.b16 %v6550, %v6550
        %v6567 = vpack.c.b16 %v6551, %v6551
        %v6568 = vpack.c.b16 %v6552, %v6552
        %v6569 = vpack.c.b16 %v6553, %v6553
        %v6570 = vpack.c.b16 %v6554, %v6554
        %v6571 = vpack.c.b16 %v6555, %v6555
        %v6572 = vpack.c.b16 %v6556, %v6556
        %v6573 = vpack.c.b16 %v6557, %v6557
        %v6574 = vpack.c.b16 %v6558, %v6558
        %v6575 = vpack.c.b16 %v6559, %v6559
        %6576 = vrot.lane.b32.xlu0 %v6560, 112
        %v6577 = vpop.permute.xlu0 %6576
        %6578 = vrot.lane.b32.xlu0 %v6561, 112
        %v6579 = vpop.permute.xlu0 %6578
        %6580 = vrot.lane.b32.xlu0 %v6562, 112
        %v6581 = vpop.permute.xlu0 %6580
        %6582 = vrot.lane.b32.xlu0 %v6563, 112
        %v6583 = vpop.permute.xlu0 %6582
        %6584 = vrot.lane.b32.xlu0 %v6564, 112
        %v6585 = vpop.permute.xlu0 %6584
        %6586 = vrot.lane.b32.xlu0 %v6565, 112
        %v6587 = vpop.permute.xlu0 %6586
        %6588 = vrot.lane.b32.xlu0 %v6566, 112
        %v6589 = vpop.permute.xlu0 %6588
        %6590 = vrot.lane.b32.xlu0 %v6567, 112
        %v6591 = vpop.permute.xlu0 %6590
        %6592 = vrot.lane.b32.xlu0 %v6568, 112
        %v6593 = vpop.permute.xlu0 %6592
        %6594 = vrot.lane.b32.xlu0 %v6569, 112
        %v6595 = vpop.permute.xlu0 %6594
        %6596 = vrot.lane.b32.xlu0 %v6570, 112
        %v6597 = vpop.permute.xlu0 %6596
        %6598 = vrot.lane.b32.xlu0 %v6571, 112
        %v6599 = vpop.permute.xlu0 %6598
        %6600 = vrot.lane.b32.xlu0 %v6572, 112
        %v6601 = vpop.permute.xlu0 %6600
        %6602 = vrot.lane.b32.xlu0 %v6573, 112
        %v6603 = vpop.permute.xlu0 %6602
        %6604 = vrot.lane.b32.xlu0 %v6574, 112
        %v6605 = vpop.permute.xlu0 %6604
        %6606 = vrot.lane.b32.xlu0 %v6575, 112
        %v6607 = vpop.permute.xlu0 %6606
        %vm6624 = vcmask 1044352
        %6625 = vst.msk [vmem:[#allocation3] sm:$0xf] %vm6624, %v6577
        %6626 = vst.msk [vmem:[#allocation3 + $0x4] sm:$0xf] %vm6624, %v6579
        %6627 = vst.msk [vmem:[#allocation3 + $0x8] sm:$0xf] %vm6624, %v6581
        %6628 = vst.msk [vmem:[#allocation3 + $0xc] sm:$0xf] %vm6624, %v6583
        %6629 = vst.msk [vmem:[#allocation3 + $0x10] sm:$0xf] %vm6624, %v6585
        %6630 = vst.msk [vmem:[#allocation3 + $0x14] sm:$0xf] %vm6624, %v6587
        %6631 = vst.msk [vmem:[#allocation3 + $0x18] sm:$0xf] %vm6624, %v6589
        %6632 = vst.msk [vmem:[#allocation3 + $0x1c] sm:$0xf] %vm6624, %v6591
        %6633 = vst.msk [vmem:[#allocation3 + $0x20] sm:$0xf] %vm6624, %v6593
        %6634 = vst.msk [vmem:[#allocation3 + $0x24] sm:$0xf] %vm6624, %v6595
        %6635 = vst.msk [vmem:[#allocation3 + $0x28] sm:$0xf] %vm6624, %v6597
        %6636 = vst.msk [vmem:[#allocation3 + $0x2c] sm:$0xf] %vm6624, %v6599
        %6637 = vst.msk [vmem:[#allocation3 + $0x30] sm:$0xf] %vm6624, %v6601
        %6638 = vst.msk [vmem:[#allocation3 + $0x34] sm:$0xf] %vm6624, %v6603
        %6639 = vst.msk [vmem:[#allocation3 + $0x38] sm:$0xf] %vm6624, %v6605
        %6640 = vst.msk [vmem:[#allocation3 + $0x3c] sm:$0xf] %vm6624, %v6607
        %v6641 = vld [vmem:[#allocation3] sm:$0xf]
        %v6642 = vld [vmem:[#allocation3 + $0x4] sm:$0xf]
        %v6643 = vld [vmem:[#allocation3 + $0x8] sm:$0xf]
        %v6644 = vld [vmem:[#allocation3 + $0xc] sm:$0xf]
        %v6645 = vld [vmem:[#allocation3 + $0x10] sm:$0xf]
        %v6646 = vld [vmem:[#allocation3 + $0x14] sm:$0xf]
        %v6647 = vld [vmem:[#allocation3 + $0x18] sm:$0xf]
        %v6648 = vld [vmem:[#allocation3 + $0x1c] sm:$0xf]
        %v6649 = vld [vmem:[#allocation3 + $0x20] sm:$0xf]
        %v6650 = vld [vmem:[#allocation3 + $0x24] sm:$0xf]
        %v6651 = vld [vmem:[#allocation3 + $0x28] sm:$0xf]
        %v6652 = vld [vmem:[#allocation3 + $0x2c] sm:$0xf]
        %v6653 = vld [vmem:[#allocation3 + $0x30] sm:$0xf]
        %v6654 = vld [vmem:[#allocation3 + $0x34] sm:$0xf]
        %v6655 = vld [vmem:[#allocation3 + $0x38] sm:$0xf]
        %v6656 = vld [vmem:[#allocation3 + $0x3c] sm:$0xf]
        %v6657 = vld [vmem:[#allocation9] sm:$0xf]
        %v6658 = vld [vmem:[#allocation9 + $0x4] sm:$0xf]
        %v6659 = vld [vmem:[#allocation9 + $0x8] sm:$0xf]
        %v6660 = vld [vmem:[#allocation9 + $0xc] sm:$0xf]
        %v6661 = vld [vmem:[#allocation9 + $0x10] sm:$0xf]
        %v6662 = vld [vmem:[#allocation9 + $0x14] sm:$0xf]
        %v6663 = vld [vmem:[#allocation9 + $0x18] sm:$0xf]
        %v6664 = vld [vmem:[#allocation9 + $0x1c] sm:$0xf]
        %v6665 = vld [vmem:[#allocation9 + $0x20] sm:$0xf]
        %v6666 = vld [vmem:[#allocation9 + $0x24] sm:$0xf]
        %v6667 = vld [vmem:[#allocation9 + $0x28] sm:$0xf]
        %v6668 = vld [vmem:[#allocation9 + $0x2c] sm:$0xf]
        %v6669 = vld [vmem:[#allocation9 + $0x30] sm:$0xf]
        %v6670 = vld [vmem:[#allocation9 + $0x34] sm:$0xf]
        %v6671 = vld [vmem:[#allocation9 + $0x38] sm:$0xf]
        %v6672 = vld [vmem:[#allocation9 + $0x3c] sm:$0xf]
        %v6673 = vld [vmem:[%s3] sm:$0x1]
        %v6675 = vlaneseq
        %v6676 = vshrl.u32 %v6675, 7
        %v6677 = vsub.s32 0, %v6676
        %v6678 = vrot.slane %v6673, %v6677
        %v6696 = vunpack.c.l.b16 %v6641
        %v6697 = vunpack.c.l.b16 %v6642
        %v6698 = vunpack.c.l.b16 %v6643
        %v6699 = vunpack.c.l.b16 %v6644
        %v6700 = vunpack.c.l.b16 %v6645
        %v6701 = vunpack.c.l.b16 %v6646
        %v6702 = vunpack.c.l.b16 %v6647
        %v6703 = vunpack.c.l.b16 %v6648
        %v6704 = vunpack.c.l.b16 %v6649
        %v6705 = vunpack.c.l.b16 %v6650
        %v6706 = vunpack.c.l.b16 %v6651
        %v6707 = vunpack.c.l.b16 %v6652
        %v6708 = vunpack.c.l.b16 %v6653
        %v6709 = vunpack.c.l.b16 %v6654
        %v6710 = vunpack.c.l.b16 %v6655
        %v6711 = vunpack.c.l.b16 %v6656
        %v6712 = vpack.c.b16 %v6697, %v6696
        %v6713 = vpack.c.b16 %v6699, %v6698
        %v6714 = vpack.c.b16 %v6701, %v6700
        %v6715 = vpack.c.b16 %v6703, %v6702
        %v6716 = vpack.c.b16 %v6705, %v6704
        %v6717 = vpack.c.b16 %v6707, %v6706
        %v6718 = vpack.c.b16 %v6709, %v6708
        %v6719 = vpack.c.b16 %v6711, %v6710
        %v6744 = vunpack.c.l.b16 %v6657
        %v6745 = vunpack.c.l.b16 %v6658
        %v6746 = vunpack.c.l.b16 %v6659
        %v6747 = vunpack.c.l.b16 %v6660
        %v6748 = vunpack.c.l.b16 %v6661
        %v6749 = vunpack.c.l.b16 %v6662
        %v6750 = vunpack.c.l.b16 %v6663
        %v6751 = vunpack.c.l.b16 %v6664
        %v6752 = vunpack.c.l.b16 %v6665
        %v6753 = vunpack.c.l.b16 %v6666
        %v6754 = vunpack.c.l.b16 %v6667
        %v6755 = vunpack.c.l.b16 %v6668
        %v6756 = vunpack.c.l.b16 %v6669
        %v6757 = vunpack.c.l.b16 %v6670
        %v6758 = vunpack.c.l.b16 %v6671
        %v6759 = vunpack.c.l.b16 %v6672
        %v6760 = vpack.c.b16 %v6745, %v6744
        %v6761 = vpack.c.b16 %v6747, %v6746
        %v6762 = vpack.c.b16 %v6749, %v6748
        %v6763 = vpack.c.b16 %v6751, %v6750
        %v6764 = vpack.c.b16 %v6753, %v6752
        %v6765 = vpack.c.b16 %v6755, %v6754
        %v6766 = vpack.c.b16 %v6757, %v6756
        %v6767 = vpack.c.b16 %v6759, %v6758
        %6776 = vmatprep.subr.bf16.mxu0 0
        %6777 = vmatpush1.bf16.msra.mxu0 %v6767
        %6778 = vmatprep.subr.bf16.mxu0 0
        %6779 = vmatpush1.bf16.msra.mxu0 %v6766
        %6780 = vmatprep.subr.bf16.mxu0 0
        %6781 = vmatpush1.bf16.msra.mxu0 %v6765
        %6782 = vmatprep.subr.bf16.mxu0 0
        %6783 = vmatpush1.bf16.msra.mxu0 %v6764
        %6784 = vmatprep.subr.bf16.mxu0 0
        %6785 = vmatpush1.bf16.msra.mxu0 %v6763
        %6786 = vmatprep.subr.bf16.mxu0 0
        %6787 = vmatpush1.bf16.msra.mxu0 %v6762
        %6788 = vmatprep.subr.bf16.mxu0 0
        %6789 = vmatpush1.bf16.msra.mxu0 %v6761
        %6790 = vmatprep.subr.bf16.mxu0 0
        %6791 = vmatpush1.bf16.msra.mxu0 %v6760
        %6792 = vmatprep.subr.bf16.mxu0 0
        %6793 = vmatpush2.bf16.msra.mxu0 0
        %6794 = vmatprep.subr.bf16.mxu0 0
        %6795 = vmatpush2.bf16.msra.mxu0 0
        %6796 = vmatprep.subr.bf16.mxu0 0
        %6797 = vmatpush2.bf16.msra.mxu0 0
        %6798 = vmatprep.subr.bf16.mxu0 0
        %6799 = vmatpush2.bf16.msra.mxu0 0
        %6800 = vmatprep.subr.bf16.mxu0 0
        %6801 = vmatpush2.bf16.msra.mxu0 0
        %6802 = vmatprep.subr.bf16.mxu0 0
        %6803 = vmatpush2.bf16.msra.mxu0 0
        %6804 = vmatprep.subr.bf16.mxu0 0
        %6805 = vmatpush2.bf16.msra.mxu0 0
        %6806 = vmatprep.subr.bf16.mxu0 0
        %6807 = vmatpush2.bf16.msra.mxu0 0
        %6808 = vmatprep.mubr.bf16.mxu0 0
        %6809 = vmatmul.mubr.bf16.gmra.mxu0 %v6712
        %v6810 = vpop.f32.mrf.mxu0
        %v6811 = vadd.f32 %v6678, %v6810
        %v6812 = vpop.f32.mrf.mxu0
        %v6813 = vpop.f32.mrf.mxu0
        %v6814 = vadd.f32 %v6678, %v6813
        %v6815 = vpop.f32.mrf.mxu0
        %6816 = vmatprep.mubr.bf16.mxu0 0
        %6817 = vmatmul.mubr.bf16.gmra.mxu0 %v6713
        %v6818 = vpop.f32.mrf.mxu0
        %v6819 = vadd.f32 %v6678, %v6818
        %v6820 = vpop.f32.mrf.mxu0
        %v6821 = vpop.f32.mrf.mxu0
        %v6822 = vadd.f32 %v6678, %v6821
        %v6823 = vpop.f32.mrf.mxu0
        %6824 = vmatprep.mubr.bf16.mxu0 0
        %6825 = vmatmul.mubr.bf16.gmra.mxu0 %v6714
        %v6826 = vpop.f32.mrf.mxu0
        %v6827 = vadd.f32 %v6678, %v6826
        %v6828 = vpop.f32.mrf.mxu0
        %v6829 = vpop.f32.mrf.mxu0
        %v6830 = vadd.f32 %v6678, %v6829
        %v6831 = vpop.f32.mrf.mxu0
        %6832 = vmatprep.mubr.bf16.mxu0 0
        %6833 = vmatmul.mubr.bf16.gmra.mxu0 %v6715
        %v6834 = vpop.f32.mrf.mxu0
        %v6835 = vadd.f32 %v6678, %v6834
        %v6836 = vpop.f32.mrf.mxu0
        %v6837 = vpop.f32.mrf.mxu0
        %v6838 = vadd.f32 %v6678, %v6837
        %v6839 = vpop.f32.mrf.mxu0
        %6840 = vmatprep.mubr.bf16.mxu0 0
        %6841 = vmatmul.mubr.bf16.gmra.mxu0 %v6716
        %v6842 = vpop.f32.mrf.mxu0
        %v6843 = vadd.f32 %v6678, %v6842
        %v6844 = vpop.f32.mrf.mxu0
        %v6845 = vpop.f32.mrf.mxu0
        %v6846 = vadd.f32 %v6678, %v6845
        %v6847 = vpop.f32.mrf.mxu0
        %6848 = vmatprep.mubr.bf16.mxu0 0
        %6849 = vmatmul.mubr.bf16.gmra.mxu0 %v6717
        %v6850 = vpop.f32.mrf.mxu0
        %v6851 = vadd.f32 %v6678, %v6850
        %v6852 = vpop.f32.mrf.mxu0
        %v6853 = vpop.f32.mrf.mxu0
        %v6854 = vadd.f32 %v6678, %v6853
        %v6855 = vpop.f32.mrf.mxu0
        %6856 = vmatprep.mubr.bf16.mxu0 0
        %6857 = vmatmul.mubr.bf16.gmra.mxu0 %v6718
        %v6858 = vpop.f32.mrf.mxu0
        %v6859 = vadd.f32 %v6678, %v6858
        %v6860 = vpop.f32.mrf.mxu0
        %v6861 = vpop.f32.mrf.mxu0
        %v6862 = vadd.f32 %v6678, %v6861
        %v6863 = vpop.f32.mrf.mxu0
        %6864 = vmatprep.mubr.bf16.mxu0 0
        %6865 = vmatmul.mubr.bf16.gmra.mxu0 %v6719
        %v6866 = vpop.f32.mrf.mxu0
        %v6867 = vadd.f32 %v6678, %v6866
        %v6868 = vpop.f32.mrf.mxu0
        %v6869 = vpop.f32.mrf.mxu0
        %v6870 = vadd.f32 %v6678, %v6869
        %v6871 = vpop.f32.mrf.mxu0
        %6872 = vdwg.mxu0
        %6873 = vst [vmem:[%s244] sm:$0xff] %v6811
        %6874 = vst [vmem:[%s244 + $0x8] sm:$0xff] %v6814
        %6875 = vst [vmem:[%s244 + $0x10] sm:$0xff] %v6819
        %6876 = vst [vmem:[%s244 + $0x18] sm:$0xff] %v6822
        %6877 = vst [vmem:[%s244 + $0x20] sm:$0xff] %v6827
        %6878 = vst [vmem:[%s244 + $0x28] sm:$0xff] %v6830
        %6879 = vst [vmem:[%s244 + $0x30] sm:$0xff] %v6835
        %6880 = vst [vmem:[%s244 + $0x38] sm:$0xff] %v6838
        %6881 = vst [vmem:[%s244 + $0x40] sm:$0xff] %v6843
        %6882 = vst [vmem:[%s244 + $0x48] sm:$0xff] %v6846
        %6883 = vst [vmem:[%s244 + $0x50] sm:$0xff] %v6851
        %6884 = vst [vmem:[%s244 + $0x58] sm:$0xff] %v6854
        %6885 = vst [vmem:[%s244 + $0x60] sm:$0xff] %v6859
        %6886 = vst [vmem:[%s244 + $0x68] sm:$0xff] %v6862
        %6887 = vst [vmem:[%s244 + $0x70] sm:$0xff] %v6867
        %6888 = vst [vmem:[%s244 + $0x78] sm:$0xff] %v6870
        %s6889 = sand.u32 %s119, 1
        %s6890 = scalar_lea.sflag [#allocation6], %s6889
        %s6891 = sand.u32 %s119, 1
        %s6892 = smul.addr %s6891, 128
        %s6893 = scalar_lea.vmem [#allocation10], %s6892
        // Predicated region
        $region49: #{tpu_custom_call.1} parent=35 // pred_check
          %p6894 = pneg %p129
        $region50: #{tpu_custom_call.1} parent=35 // pred_check_branch
          %6896 = sbr.rel (%p6894) target = $region52
        $region51: #{tpu_custom_call.1} parent=35 // pred_region
          %s6898 = ssub.s32 2048, 2048
          %6899 = vsyncadd %s6890, %s6898
          %s6900 = smul.addr %s22, 16
          %s6901 = smul.addr %s6900, 128
          %s6902 = scalar_lea.hbm %s4, %s6901
          %s6903 = sshll.u32 %s6893, 4
          %s6904 = int_to_ptr.vmem [resolvable:$true] %s6903
          %6909 = dma.vmem_to_hbm [thread:$0]  %s6904, 2048, %s6902, %s6890, 128, 128, 8
        $region52: #{tpu_custom_call.1} parent=35 // pred_fallthru
          _
      $region36: #{tpu_custom_call.1} parent=5 // pred_fallthru
        _
      %p6910 = scmp.le.s32.totalorder 2, %s17
      // Predicated region
      $region53: #{tpu_custom_call.1} parent=5 // pred_check
        %p6911 = pneg %p6910
      $region54: #{tpu_custom_call.1} parent=5 // pred_check_branch
        %6913 = sbr.rel (%p6911) target = $region56
      $region55: #{tpu_custom_call.1} parent=5 // pred_region
        %s6914 = ssub.s32 %s17, 2
        // Predicated region
        $region57: #{tpu_custom_call.1} parent=55 // pred_check
          %p6915 = pneg %p135
        $region58: #{tpu_custom_call.1} parent=55 // pred_check_branch
          %6917 = sbr.rel (%p6915) target = $region60
        $region59: #{tpu_custom_call.1} parent=55 // pred_region
          %s6918 = sand.u32 %s120, 1
          %s6919 = scalar_lea.sflag [#allocation6], %s6918
          %s6920 = sand.u32 %s120, 1
          %s6921 = smul.addr %s6920, 128
          %s6922 = scalar_lea.vmem [#allocation10], %s6921
          %6923 = dma.done %s6919, 2048
        $region60: #{tpu_custom_call.1} parent=55 // pred_fallthru
          _
      $region56: #{tpu_custom_call.1} parent=5 // pred_fallthru
        _
    $region6: #{tpu_custom_call.1} parent=1 // loop_footer
      %s21 = sadd.s32 1, %s17
    $region7: #{tpu_custom_call.1} parent=1 // loop_footer_branch
      %16 = sbr.rel target = $region3
    $region8: #{tpu_custom_call.1} parent=1 // loop_exit
      _
    %6924 = vsyncpa [#allocation5], 1
    %s6925 = scalar_lea.sflag [#allocation5], 1
    %6926 = vsyncpa %s6925, 1
    %6927 = vsyncpa [#allocation8], 1
    %6928 = vsyncpa [#allocation6], 1
    %s6929 = scalar_lea.sflag [#allocation6], 1
    %6930 = vsyncpa %s6929, 1

</llo_original>
